<compile_context>
chip_gen: v6e
topology: v6e:2x2x1
jax: 0.10.0
libtpu: 0.0.40
codegen_flags: <defaults>
</compile_context>

<pallas_src>
import jax
import jax.numpy as jnp
from jax.experimental import pallas as pl
from jax.experimental.pallas import tpu as pltpu

# ----------------------------- configuration -------------------------------
T = 8            # sequence length
B = 32           # batch size; must equal HID (BatchNorm1d channel constraint)
IN_DIM = 12      # input feature dim
HID = 32         # hid_dim
NUM_LAYERS = 2   # GRU layers (fused kernel is specialized to 2)
CLAMP = 10.0     # clamp_magnitude
BN_EPS = 1e-5

H = HID
H2 = 2 * H       # 64
H3 = 3 * H       # 96
H4 = 4 * H       # 128
H6 = 6 * H       # 192
TB = T * B

assert B == HID, "PyTorch module's BatchNorm1d(hid_dim) on (T,B,H) needs B == hid_dim"

# Packed bf16 weight slab row offsets (all multiples of 16 -> clean bf16 sublane tiles).
W1_R0 = 0                     # rows 0:12   cols 0:32    first Linear
WIH0_R0 = 16                  # rows 16:80               layer-0 x->gates (both dirs)
WHH0_R0 = WIH0_R0 + H2        # rows 80:144              layer-0 h->gates (block diag)
WIH1_R0 = WHH0_R0 + H2        # rows 144:272             layer-1 x->gates
WHH1_R0 = WIH1_R0 + H4        # rows 272:336             layer-1 h->gates
WPACK_ROWS = WHH1_R0 + H2     # 336

_VMEM = pl.BlockSpec(memory_space=pltpu.MemorySpace.VMEM)


def _sigmoid(v):
    # Exact sigmoid via tanh: keeps the transcendental on the EUP slot, no VALU divide.
    return 0.5 * jnp.tanh(0.5 * v) + 0.5


# ------------------------------ fused kernel --------------------------------
def fused_rnn_disc_kernel(
    x_ref,        # (T*B, IN_DIM) f32
    wpack_ref,    # (336, 192)    bf16  packed weights
    vecs_ref,     # (4, 192)      f32   [b1|wout|bout], bih_l0, bih_l1, [bhn_l0|bhn_l1]
    cvecs_ref,    # (32, 2)       f32   gamma | beta (column oriented, channel axis = row)
    o_ref,        # (T*B, 1)      f32   clamped logits
    y_ref,        # (T*B, H)      f32 scratch: pre-BN linear output
    src0_ref,     # (T*B, 2H)     bf16 scratch: [act(t) | act(T-1-t)]
    src1_ref,     # (T*B, 4H)     bf16 scratch: [l0out(t) | l0out(T-1-t)]
    gx_ref,       # (T*B, 6H)     f32 scratch: hoisted gate projections
    h1_ref,       # (T*B, 2H)     f32 scratch: layer-1 GRU output
):
    f32, bf16 = jnp.float32, jnp.bfloat16

    # ---- before_linear_model: Linear -> BatchNorm1d (train-mode stats) -> ReLU ----
    w1 = wpack_ref[W1_R0:W1_R0 + IN_DIM, 0:H]                    # bf16 (12, 32)
    b1 = vecs_ref[0:1, 0:H]                                      # (1, 32)
    y_ref[...] = jnp.dot(x_ref[...].astype(bf16), w1,
                         preferred_element_type=f32) + b1

    # One-pass stats per channel b (row within each time block) over (T, H).
    s = jnp.zeros((B, H), f32)
    ss = jnp.zeros((B, H), f32)
    for t in range(T):
        blk = y_ref[t * B:(t + 1) * B, :]
        s = s + blk
        ss = ss + blk * blk
    inv_n = 1.0 / float(T * H)
    mean = jnp.sum(s, axis=1, keepdims=True) * inv_n             # (B, 1)
    msq = jnp.sum(ss, axis=1, keepdims=True) * inv_n
    var = jnp.maximum(msq - mean * mean, 0.0)                    # biased var (train mode)
    gamma = cvecs_ref[:, 0:1]
    beta = cvecs_ref[:, 1:2]
    scale = gamma * jax.lax.rsqrt(var + BN_EPS)                  # (B, 1)
    shift = beta - mean * scale                                  # single FMA form
    # Write the activation twice: time-forward (cols 0:H) and time-reversed (cols H:2H)
    # so each GRU layer's input projection is ONE matmul covering both directions.
    for t in range(T):
        blk = y_ref[t * B:(t + 1) * B, :]
        act = jnp.maximum(blk * scale + shift, 0.0).astype(bf16)
        src0_ref[t * B:(t + 1) * B, 0:H] = act
        src0_ref[(T - 1 - t) * B:(T - t) * B, H:H2] = act
    # TODO(synk): running_mean/running_var buffer updates are not materialized
    # (they do not affect the forward output in training mode).

    # ---- bidirectional GRU layer ----
    # Gate column layout: [r_f|r_r (0:2H), z_f|z_r (2H:4H), n_f|n_r (4H:6H)].
    # gx row block t already pairs fwd gates of time t with rev gates of time T-1-t.
    def gru_layer(src, wih, bih, whh, bhn, store_fn):
        # Hoisted input projection (both directions, all timesteps): one bf16 matmul.
        gx_ref[...] = jnp.dot(src, wih, preferred_element_type=f32) + bih
        bhn_b = jnp.broadcast_to(bhn, (B, H2))          # hoisted broadcast (not CSE'd)
        h2 = jnp.zeros((B, H2), f32)                    # carry [h_fwd | h_rev] in vregs
        for t in range(T):
            tr = T - 1 - t
            gh = jnp.dot(h2.astype(bf16), whh, preferred_element_type=f32)   # (B, 6H)
            rows = slice(t * B, (t + 1) * B)
            g = _sigmoid(gx_ref[rows, 0:H4] + gh[:, 0:H4])   # one 128-lane sigmoid (r|z)
            r = g[:, 0:H2]
            z = g[:, H2:H4]
            n = jnp.tanh(gx_ref[rows, H4:H6] + r * (gh[:, H4:H6] + bhn_b))   # 64-lane tanh
            h2 = (1.0 - z) * n + z * h2
            store_fn(t, tr, h2)                          # off the serial dependency chain

    def store_layer0(t, tr, h2):
        hf = h2[:, 0:H].astype(bf16)
        hr = h2[:, H:H2].astype(bf16)
        # layer-1 input rows: [out(t) | out(T-1-t)], each in [fwd|rev] feature order
        src1_ref[t * B:(t + 1) * B, 0:H] = hf
        src1_ref[tr * B:(tr + 1) * B, H:H2] = hr
        src1_ref[tr * B:(tr + 1) * B, H2:H3] = hf
        src1_ref[t * B:(t + 1) * B, H3:H4] = hr

    def store_layer1(t, tr, h2):
        h1_ref[t * B:(t + 1) * B, 0:H] = h2[:, 0:H]
        h1_ref[tr * B:(tr + 1) * B, H:H2] = h2[:, H:H2]

    # layer 0: src0 (T*B, 2H) -> src1 (T*B, 4H)
    gru_layer(src0_ref[...],
              wpack_ref[WIH0_R0:WIH0_R0 + H2, :],
              vecs_ref[1:2, :],
              wpack_ref[WHH0_R0:WHH0_R0 + H2, :],
              vecs_ref[3:4, 0:H2],
              store_layer0)
    # layer 1: src1 (T*B, 4H) -> h1 (T*B, 2H)   (distinct buffers; no read/write aliasing)
    gru_layer(src1_ref[...],
              wpack_ref[WIH1_R0:WIH1_R0 + H4, :],
              vecs_ref[2:3, :],
              wpack_ref[WHH1_R0:WHH1_R0 + H2, :],
              vecs_ref[3:4, H2:H4],
              store_layer1)

    # ---- after_linear_model: Linear(2H -> 1) + clamp as VPU mul + lane reduce ----
    wout = vecs_ref[0:1, H:H3]                # (1, 2H)
    bout = vecs_ref[0:1, H3:H3 + 1]           # (1, 1)
    logits = jnp.sum(h1_ref[...] * wout, axis=1, keepdims=True) + bout
    o_ref[...] = jnp.clip(logits, -CLAMP, CLAMP)
    # TODO(synk): a lane-dense (1, T*B) output would avoid masked (T*B,1) stores, but
    # needs an in-kernel (256,1)->(1,256) relayout; kept the column output for lowering
    # safety (the absolute win is small on this kernel).


# ------------------------------ wrapper -------------------------------------
def rnn_disc_forward(batch, kp):
    t, b, d = batch.shape
    assert (t, b, d) == (T, B, IN_DIM)
    x2 = batch.reshape(TB, IN_DIM)
    out = pl.pallas_call(
        fused_rnn_disc_kernel,
        out_shape=jax.ShapeDtypeStruct((TB, 1), jnp.float32),
        in_specs=[_VMEM] * 4,
        out_specs=_VMEM,
        scratch_shapes=[
            pltpu.VMEM((TB, H), jnp.float32),      # y: pre-BN linear output
            pltpu.VMEM((TB, H2), jnp.bfloat16),    # src0: [act | act time-reversed]
            pltpu.VMEM((TB, H4), jnp.bfloat16),    # src1: [l0 out | l0 out time-reversed]
            pltpu.VMEM((TB, H6), jnp.float32),     # gx: hoisted gate projections
            pltpu.VMEM((TB, H2), jnp.float32),     # h1: layer-1 GRU output
        ],
    )(x2, kp["wpack"], kp["vecs"], kp["cvecs"])
    # TODO(synk): on v7x add a leading "parallel" grid axis over independent minibatches
    # to occupy the second TensorCore (no single-call latency benefit, so omitted here).
    return out.reshape(T, B, 1)


# ----------------- parameter init (PyTorch-like layout) ---------------------
def init_params(key):
    keys = list(jax.random.split(key, 32))
    ki = iter(keys)

    def unif(shape, bound):
        return jax.random.uniform(next(ki), shape, jnp.float32, -bound, bound)

    params = {}
    b1 = 1.0 / (IN_DIM ** 0.5)
    params["w1"] = unif((IN_DIM, HID), b1)
    params["b1"] = unif((HID,), b1)
    params["bn_gamma"] = jnp.ones((HID,), jnp.float32)
    params["bn_beta"] = jnp.zeros((HID,), jnp.float32)

    gru = []
    for layer in range(NUM_LAYERS):
        din = HID if layer == 0 else 2 * HID
        bg = 1.0 / (HID ** 0.5)
        dirs = []
        for _ in range(2):
            dirs.append({
                "w_ih": unif((3 * HID, din), bg),   # PyTorch gate order r, z, n
                "w_hh": unif((3 * HID, HID), bg),
                "b_ih": unif((3 * HID,), bg),
                "b_hh": unif((3 * HID,), bg),
            })
        gru.append(dirs)
    params["gru"] = gru

    bo = 1.0 / ((2 * HID) ** 0.5)
    params["w_out"] = unif((2 * HID, 1), bo)
    params["b_out"] = unif((1,), bo)
    return params


# -------- one-time weight re-layout into the fused-kernel format ------------
def prepare_kernel_params(params):
    wpack = jnp.zeros((WPACK_ROWS, H6), jnp.float32)
    vecs = jnp.zeros((4, H6), jnp.float32)
    cvecs = jnp.stack([params["bn_gamma"], params["bn_beta"]], axis=1)   # (32, 2)

    # row 0: [b1 (0:H) | wout (H:3H) | bout (3H)]
    vecs = vecs.at[0, 0:H].set(params["b1"])
    vecs = vecs.at[0, H:H3].set(params["w_out"].reshape(H2))
    vecs = vecs.at[0, H3].set(params["b_out"][0])

    wpack = wpack.at[W1_R0:W1_R0 + IN_DIM, 0:H].set(params["w1"])

    wih_offsets = (WIH0_R0, WIH1_R0)
    whh_offsets = (WHH0_R0, WHH1_R0)
    for l in range(NUM_LAYERS):
        din = H if l == 0 else H2
        for d in range(2):                       # 0 = forward, 1 = reverse
            p = params["gru"][l][d]
            w_ih, w_hh = p["w_ih"], p["w_hh"]    # (3H, din), (3H, H)
            b_ih, b_hh = p["b_ih"], p["b_hh"]    # (3H,)
            r0 = wih_offsets[l] + d * din        # fwd rows see x(t), rev rows see x(T-1-t)
            rh = whh_offsets[l] + d * H          # block-diagonal hidden->gates
            for g in range(3):                   # gates r, z, n
                c0 = 2 * g * H + d * H           # column block for (gate g, direction d)
                wpack = wpack.at[r0:r0 + din, c0:c0 + H].set(w_ih[g * H:(g + 1) * H, :].T)
                wpack = wpack.at[rh:rh + H, c0:c0 + H].set(w_hh[g * H:(g + 1) * H, :].T)
                if g < 2:   # fold hidden bias of r, z into the hoisted projection bias
                    vecs = vecs.at[1 + l, c0:c0 + H].set(
                        b_ih[g * H:(g + 1) * H] + b_hh[g * H:(g + 1) * H])
                else:       # n: only the input bias is hoisted; b_hn stays in-loop
                    vecs = vecs.at[1 + l, c0:c0 + H].set(b_ih[g * H:(g + 1) * H])
            vecs = vecs.at[3, l * H2 + d * H:l * H2 + (d + 1) * H].set(b_hh[2 * H:3 * H])

    return {"wpack": wpack.astype(jnp.bfloat16), "vecs": vecs, "cvecs": cvecs}


# ------------------------- pure-JAX reference --------------------------------
def rnn_disc_reference(batch, params):
    t, b, d = batch.shape
    y = (batch.reshape(t * b, d) @ params["w1"] + params["b1"]).reshape(t, b, HID)
    mean = jnp.mean(y, axis=(0, 2), keepdims=True)
    var = jnp.mean((y - mean) ** 2, axis=(0, 2), keepdims=True)
    y = (y - mean) * jax.lax.rsqrt(var + BN_EPS)
    y = y * params["bn_gamma"].reshape(1, b, 1) + params["bn_beta"].reshape(1, b, 1)
    x = jnp.maximum(y, 0.0)
    for layer in range(NUM_LAYERS):
        outs = []
        for d_idx, rev in enumerate((False, True)):
            p = params["gru"][layer][d_idx]
            xs = jnp.flip(x, 0) if rev else x
            h = jnp.zeros((b, HID), jnp.float32)
            hs = []
            for tt in range(t):
                gx = xs[tt] @ p["w_ih"].T + p["b_ih"]
                gh = h @ p["w_hh"].T + p["b_hh"]
                r = jax.nn.sigmoid(gx[:, :HID] + gh[:, :HID])
                z = jax.nn.sigmoid(gx[:, HID:2 * HID] + gh[:, HID:2 * HID])
                n = jnp.tanh(gx[:, 2 * HID:] + r * gh[:, 2 * HID:])
                h = (1.0 - z) * n + z * h
                hs.append(h)
            o = jnp.stack(hs, 0)
            if rev:
                o = jnp.flip(o, 0)
            outs.append(o)
        x = jnp.concatenate(outs, -1)
    out = x.reshape(t * b, 2 * HID) @ params["w_out"] + params["b_out"]
    return jnp.clip(out, -CLAMP, CLAMP).reshape(t, b, 1)


if __name__ == "__main__":
    key = jax.random.PRNGKey(0)
    pkey, xkey = jax.random.split(key)
    params = init_params(pkey)
    kp = prepare_kernel_params(params)           # weight re-layout done once, outside jit
    batch = jax.random.normal(xkey, (T, B, IN_DIM), jnp.float32)

    fwd = jax.jit(rnn_disc_forward)
    out = fwd(batch, kp)
    jax.block_until_ready(out)

    assert out.shape == (T, B, 1), out.shape
    assert bool(jnp.all(jnp.isfinite(out)))
    assert bool(jnp.all(jnp.abs(out) <= CLAMP + 1e-6))

    ref = jax.jit(rnn_disc_reference)(batch, params)
    err = float(jnp.max(jnp.abs(out - ref)))
    assert err < 5e-2, f"max abs diff vs reference = {err}"
    print("KERNEL_OK")
</pallas_src>

<mosaic_0001>
module attributes {stable_mosaic.version = 11 : i64} {
  func.func @fused_rnn_disc_kernel(%arg0: memref<256x12xf32, #tpu.memory_space<vmem>>, %arg1: memref<336x192xbf16, #tpu.memory_space<vmem>>, %arg2: memref<4x192xf32, #tpu.memory_space<vmem>>, %arg3: memref<32x2xf32, #tpu.memory_space<vmem>>, %arg4: memref<256x1xf32, #tpu.memory_space<vmem>>, %arg5: memref<256x32xf32, #tpu.memory_space<vmem>>, %arg6: memref<256x64xbf16, #tpu.memory_space<vmem>>, %arg7: memref<256x128xbf16, #tpu.memory_space<vmem>>, %arg8: memref<256x192xf32, #tpu.memory_space<vmem>>, %arg9: memref<256x64xf32, #tpu.memory_space<vmem>>) attributes {dimension_semantics = [], scalar_prefetch = 0 : i64, scratch_operands = 5 : i64, tpu.core_type = #tpu.core_type<tc>} {
    %c0 = arith.constant 0 : index
    %c0_0 = arith.constant 0 : index
    %0 = vector.load %arg1[%c0, %c0_0] : memref<336x192xbf16, #tpu.memory_space<vmem>>, vector<12x32xbf16>
    %c0_1 = arith.constant 0 : index
    %c0_2 = arith.constant 0 : index
    %1 = vector.load %arg2[%c0_1, %c0_2] : memref<4x192xf32, #tpu.memory_space<vmem>>, vector<1x32xf32>
    %c0_3 = arith.constant 0 : index
    %c0_4 = arith.constant 0 : index
    %2 = vector.load %arg0[%c0_3, %c0_4] : memref<256x12xf32, #tpu.memory_space<vmem>>, vector<256x12xf32>
    %3 = arith.truncf %2 : vector<256x12xf32> to vector<256x12xbf16>
    %cst = arith.constant dense<0.000000e+00> : vector<256x32xf32>
    %4 = tpu.matmul %3, %0, %cst {dimension_numbers = #tpu.dot_dimension_numbers<[1], [0], [0], [1], [0, 0, 1, 1], [], []>} : vector<256x12xbf16>, vector<12x32xbf16>, vector<256x32xf32> -> vector<256x32xf32>
    %5 = vector.broadcast %1 : vector<1x32xf32> to vector<256x32xf32>
    %6 = arith.addf %4, %5 : vector<256x32xf32>
    %c0_5 = arith.constant 0 : index
    %c0_6 = arith.constant 0 : index
    %7 = vector.load %arg5[%c0_5, %c0_6] : memref<256x32xf32, #tpu.memory_space<vmem>>, vector<256x32xf32>
    tpu.vector_store %arg5[%c0_5, %c0_6], %6 {strides = array<i32>} : memref<256x32xf32, #tpu.memory_space<vmem>>, vector<256x32xf32>,
    %cst_7 = arith.constant 0.000000e+00 : f32
    %8 = vector.broadcast %cst_7 : f32 to vector<32x32xf32>
    %cst_8 = arith.constant 0.000000e+00 : f32
    %9 = vector.broadcast %cst_8 : f32 to vector<32x32xf32>
    %c0_9 = arith.constant 0 : index
    %c0_10 = arith.constant 0 : index
    %10 = vector.load %arg5[%c0_9, %c0_10] : memref<256x32xf32, #tpu.memory_space<vmem>>, vector<32x32xf32>
    %11 = arith.addf %8, %10 : vector<32x32xf32>
    %12 = arith.mulf %10, %10 : vector<32x32xf32>
    %13 = arith.addf %9, %12 : vector<32x32xf32>
    %c32 = arith.constant 32 : index
    %c0_11 = arith.constant 0 : index
    %14 = vector.load %arg5[%c32, %c0_11] : memref<256x32xf32, #tpu.memory_space<vmem>>, vector<32x32xf32>
    %15 = arith.addf %11, %14 : vector<32x32xf32>
    %16 = arith.mulf %14, %14 : vector<32x32xf32>
    %17 = arith.addf %13, %16 : vector<32x32xf32>
    %c64 = arith.constant 64 : index
    %c0_12 = arith.constant 0 : index
    %18 = vector.load %arg5[%c64, %c0_12] : memref<256x32xf32, #tpu.memory_space<vmem>>, vector<32x32xf32>
    %19 = arith.addf %15, %18 : vector<32x32xf32>
    %20 = arith.mulf %18, %18 : vector<32x32xf32>
    %21 = arith.addf %17, %20 : vector<32x32xf32>
    %c96 = arith.constant 96 : index
    %c0_13 = arith.constant 0 : index
    %22 = vector.load %arg5[%c96, %c0_13] : memref<256x32xf32, #tpu.memory_space<vmem>>, vector<32x32xf32>
    %23 = arith.addf %19, %22 : vector<32x32xf32>
    %24 = arith.mulf %22, %22 : vector<32x32xf32>
    %25 = arith.addf %21, %24 : vector<32x32xf32>
    %c128 = arith.constant 128 : index
    %c0_14 = arith.constant 0 : index
    %26 = vector.load %arg5[%c128, %c0_14] : memref<256x32xf32, #tpu.memory_space<vmem>>, vector<32x32xf32>
    %27 = arith.addf %23, %26 : vector<32x32xf32>
    %28 = arith.mulf %26, %26 : vector<32x32xf32>
    %29 = arith.addf %25, %28 : vector<32x32xf32>
    %c160 = arith.constant 160 : index
    %c0_15 = arith.constant 0 : index
    %30 = vector.load %arg5[%c160, %c0_15] : memref<256x32xf32, #tpu.memory_space<vmem>>, vector<32x32xf32>
    %31 = arith.addf %27, %30 : vector<32x32xf32>
    %32 = arith.mulf %30, %30 : vector<32x32xf32>
    %33 = arith.addf %29, %32 : vector<32x32xf32>
    %c192 = arith.constant 192 : index
    %c0_16 = arith.constant 0 : index
    %34 = vector.load %arg5[%c192, %c0_16] : memref<256x32xf32, #tpu.memory_space<vmem>>, vector<32x32xf32>
    %35 = arith.addf %31, %34 : vector<32x32xf32>
    %36 = arith.mulf %34, %34 : vector<32x32xf32>
    %37 = arith.addf %33, %36 : vector<32x32xf32>
    %c224 = arith.constant 224 : index
    %c0_17 = arith.constant 0 : index
    %38 = vector.load %arg5[%c224, %c0_17] : memref<256x32xf32, #tpu.memory_space<vmem>>, vector<32x32xf32>
    %39 = arith.addf %35, %38 : vector<32x32xf32>
    %40 = arith.mulf %38, %38 : vector<32x32xf32>
    %41 = arith.addf %37, %40 : vector<32x32xf32>
    %cst_18 = arith.constant dense<0.000000e+00> : vector<32xf32>
    %42 = vector.multi_reduction <add>, %39, %cst_18 [1] : vector<32x32xf32> to vector<32xf32>
    %43 = vector.shape_cast %42 : vector<32xf32> to vector<32x1xf32>
    %cst_19 = arith.constant 3.906250e-03 : f32
    %44 = vector.broadcast %cst_19 : f32 to vector<32x1xf32>
    %45 = arith.mulf %43, %44 : vector<32x1xf32>
    %cst_20 = arith.constant dense<0.000000e+00> : vector<32xf32>
    %46 = vector.multi_reduction <add>, %41, %cst_20 [1] : vector<32x32xf32> to vector<32xf32>
    %47 = vector.shape_cast %46 : vector<32xf32> to vector<32x1xf32>
    %cst_21 = arith.constant 3.906250e-03 : f32
    %48 = vector.broadcast %cst_21 : f32 to vector<32x1xf32>
    %49 = arith.mulf %47, %48 : vector<32x1xf32>
    %50 = arith.mulf %45, %45 : vector<32x1xf32>
    %51 = arith.subf %49, %50 : vector<32x1xf32>
    %cst_22 = arith.constant 0.000000e+00 : f32
    %52 = vector.broadcast %cst_22 : f32 to vector<32x1xf32>
    %53 = arith.maximumf %51, %52 : vector<32x1xf32>
    %c0_23 = arith.constant 0 : index
    %c0_24 = arith.constant 0 : index
    %54 = vector.load %arg3[%c0_23, %c0_24] : memref<32x2xf32, #tpu.memory_space<vmem>>, vector<32x1xf32>
    %c0_25 = arith.constant 0 : index
    %c1 = arith.constant 1 : index
    %55 = vector.load %arg3[%c0_25, %c1] : memref<32x2xf32, #tpu.memory_space<vmem>>, vector<32x1xf32>
    %cst_26 = arith.constant 9.99999974E-6 : f32
    %56 = vector.broadcast %cst_26 : f32 to vector<32x1xf32>
    %57 = arith.addf %53, %56 : vector<32x1xf32>
    %58 = math.rsqrt %57 : vector<32x1xf32>
    %59 = arith.mulf %54, %58 : vector<32x1xf32>
    %60 = arith.mulf %45, %59 : vector<32x1xf32>
    %61 = arith.subf %55, %60 : vector<32x1xf32>
    %c0_27 = arith.constant 0 : index
    %c0_28 = arith.constant 0 : index
    %62 = vector.load %arg5[%c0_27, %c0_28] : memref<256x32xf32, #tpu.memory_space<vmem>>, vector<32x32xf32>
    %63 = vector.broadcast %59 : vector<32x1xf32> to vector<32x32xf32>
    %64 = arith.mulf %62, %63 : vector<32x32xf32>
    %65 = vector.broadcast %61 : vector<32x1xf32> to vector<32x32xf32>
    %66 = arith.addf %64, %65 : vector<32x32xf32>
    %cst_29 = arith.constant 0.000000e+00 : f32
    %67 = vector.broadcast %cst_29 : f32 to vector<32x32xf32>
    %68 = arith.maximumf %66, %67 : vector<32x32xf32>
    %69 = arith.truncf %68 : vector<32x32xf32> to vector<32x32xbf16>
    %c0_30 = arith.constant 0 : index
    %c0_31 = arith.constant 0 : index
    %70 = vector.load %arg6[%c0_30, %c0_31] : memref<256x64xbf16, #tpu.memory_space<vmem>>, vector<32x32xbf16>
    tpu.vector_store %arg6[%c0_30, %c0_31], %69 {strides = array<i32>} : memref<256x64xbf16, #tpu.memory_space<vmem>>, vector<32x32xbf16>,
    %c224_32 = arith.constant 224 : index
    %c32_33 = arith.constant 32 : index
    %71 = vector.load %arg6[%c224_32, %c32_33] : memref<256x64xbf16, #tpu.memory_space<vmem>>, vector<32x32xbf16>
    tpu.vector_store %arg6[%c224_32, %c32_33], %69 {strides = array<i32>} : memref<256x64xbf16, #tpu.memory_space<vmem>>, vector<32x32xbf16>,
    %c32_34 = arith.constant 32 : index
    %c0_35 = arith.constant 0 : index
    %72 = vector.load %arg5[%c32_34, %c0_35] : memref<256x32xf32, #tpu.memory_space<vmem>>, vector<32x32xf32>
    %73 = vector.broadcast %59 : vector<32x1xf32> to vector<32x32xf32>
    %74 = arith.mulf %72, %73 : vector<32x32xf32>
    %75 = vector.broadcast %61 : vector<32x1xf32> to vector<32x32xf32>
    %76 = arith.addf %74, %75 : vector<32x32xf32>
    %cst_36 = arith.constant 0.000000e+00 : f32
    %77 = vector.broadcast %cst_36 : f32 to vector<32x32xf32>
    %78 = arith.maximumf %76, %77 : vector<32x32xf32>
    %79 = arith.truncf %78 : vector<32x32xf32> to vector<32x32xbf16>
    %c32_37 = arith.constant 32 : index
    %c0_38 = arith.constant 0 : index
    %80 = vector.load %arg6[%c32_37, %c0_38] : memref<256x64xbf16, #tpu.memory_space<vmem>>, vector<32x32xbf16>
    tpu.vector_store %arg6[%c32_37, %c0_38], %79 {strides = array<i32>} : memref<256x64xbf16, #tpu.memory_space<vmem>>, vector<32x32xbf16>,
    %c192_39 = arith.constant 192 : index
    %c32_40 = arith.constant 32 : index
    %81 = vector.load %arg6[%c192_39, %c32_40] : memref<256x64xbf16, #tpu.memory_space<vmem>>, vector<32x32xbf16>
    tpu.vector_store %arg6[%c192_39, %c32_40], %79 {strides = array<i32>} : memref<256x64xbf16, #tpu.memory_space<vmem>>, vector<32x32xbf16>,
    %c64_41 = arith.constant 64 : index
    %c0_42 = arith.constant 0 : index
    %82 = vector.load %arg5[%c64_41, %c0_42] : memref<256x32xf32, #tpu.memory_space<vmem>>, vector<32x32xf32>
    %83 = vector.broadcast %59 : vector<32x1xf32> to vector<32x32xf32>
    %84 = arith.mulf %82, %83 : vector<32x32xf32>
    %85 = vector.broadcast %61 : vector<32x1xf32> to vector<32x32xf32>
    %86 = arith.addf %84, %85 : vector<32x32xf32>
    %cst_43 = arith.constant 0.000000e+00 : f32
    %87 = vector.broadcast %cst_43 : f32 to vector<32x32xf32>
    %88 = arith.maximumf %86, %87 : vector<32x32xf32>
    %89 = arith.truncf %88 : vector<32x32xf32> to vector<32x32xbf16>
    %c64_44 = arith.constant 64 : index
    %c0_45 = arith.constant 0 : index
    %90 = vector.load %arg6[%c64_44, %c0_45] : memref<256x64xbf16, #tpu.memory_space<vmem>>, vector<32x32xbf16>
    tpu.vector_store %arg6[%c64_44, %c0_45], %89 {strides = array<i32>} : memref<256x64xbf16, #tpu.memory_space<vmem>>, vector<32x32xbf16>,
    %c160_46 = arith.constant 160 : index
    %c32_47 = arith.constant 32 : index
    %91 = vector.load %arg6[%c160_46, %c32_47] : memref<256x64xbf16, #tpu.memory_space<vmem>>, vector<32x32xbf16>
    tpu.vector_store %arg6[%c160_46, %c32_47], %89 {strides = array<i32>} : memref<256x64xbf16, #tpu.memory_space<vmem>>, vector<32x32xbf16>,
    %c96_48 = arith.constant 96 : index
    %c0_49 = arith.constant 0 : index
    %92 = vector.load %arg5[%c96_48, %c0_49] : memref<256x32xf32, #tpu.memory_space<vmem>>, vector<32x32xf32>
    %93 = vector.broadcast %59 : vector<32x1xf32> to vector<32x32xf32>
    %94 = arith.mulf %92, %93 : vector<32x32xf32>
    %95 = vector.broadcast %61 : vector<32x1xf32> to vector<32x32xf32>
    %96 = arith.addf %94, %95 : vector<32x32xf32>
    %cst_50 = arith.constant 0.000000e+00 : f32
    %97 = vector.broadcast %cst_50 : f32 to vector<32x32xf32>
    %98 = arith.maximumf %96, %97 : vector<32x32xf32>
    %99 = arith.truncf %98 : vector<32x32xf32> to vector<32x32xbf16>
    %c96_51 = arith.constant 96 : index
    %c0_52 = arith.constant 0 : index
    %100 = vector.load %arg6[%c96_51, %c0_52] : memref<256x64xbf16, #tpu.memory_space<vmem>>, vector<32x32xbf16>
    tpu.vector_store %arg6[%c96_51, %c0_52], %99 {strides = array<i32>} : memref<256x64xbf16, #tpu.memory_space<vmem>>, vector<32x32xbf16>,
    %c128_53 = arith.constant 128 : index
    %c32_54 = arith.constant 32 : index
    %101 = vector.load %arg6[%c128_53, %c32_54] : memref<256x64xbf16, #tpu.memory_space<vmem>>, vector<32x32xbf16>
    tpu.vector_store %arg6[%c128_53, %c32_54], %99 {strides = array<i32>} : memref<256x64xbf16, #tpu.memory_space<vmem>>, vector<32x32xbf16>,
    %c128_55 = arith.constant 128 : index
    %c0_56 = arith.constant 0 : index
    %102 = vector.load %arg5[%c128_55, %c0_56] : memref<256x32xf32, #tpu.memory_space<vmem>>, vector<32x32xf32>
    %103 = vector.broadcast %59 : vector<32x1xf32> to vector<32x32xf32>
    %104 = arith.mulf %102, %103 : vector<32x32xf32>
    %105 = vector.broadcast %61 : vector<32x1xf32> to vector<32x32xf32>
    %106 = arith.addf %104, %105 : vector<32x32xf32>
    %cst_57 = arith.constant 0.000000e+00 : f32
    %107 = vector.broadcast %cst_57 : f32 to vector<32x32xf32>
    %108 = arith.maximumf %106, %107 : vector<32x32xf32>
    %109 = arith.truncf %108 : vector<32x32xf32> to vector<32x32xbf16>
    %c128_58 = arith.constant 128 : index
    %c0_59 = arith.constant 0 : index
    %110 = vector.load %arg6[%c128_58, %c0_59] : memref<256x64xbf16, #tpu.memory_space<vmem>>, vector<32x32xbf16>
    tpu.vector_store %arg6[%c128_58, %c0_59], %109 {strides = array<i32>} : memref<256x64xbf16, #tpu.memory_space<vmem>>, vector<32x32xbf16>,
    %c96_60 = arith.constant 96 : index
    %c32_61 = arith.constant 32 : index
    %111 = vector.load %arg6[%c96_60, %c32_61] : memref<256x64xbf16, #tpu.memory_space<vmem>>, vector<32x32xbf16>
    tpu.vector_store %arg6[%c96_60, %c32_61], %109 {strides = array<i32>} : memref<256x64xbf16, #tpu.memory_space<vmem>>, vector<32x32xbf16>,
    %c160_62 = arith.constant 160 : index
    %c0_63 = arith.constant 0 : index
    %112 = vector.load %arg5[%c160_62, %c0_63] : memref<256x32xf32, #tpu.memory_space<vmem>>, vector<32x32xf32>
    %113 = vector.broadcast %59 : vector<32x1xf32> to vector<32x32xf32>
    %114 = arith.mulf %112, %113 : vector<32x32xf32>
    %115 = vector.broadcast %61 : vector<32x1xf32> to vector<32x32xf32>
    %116 = arith.addf %114, %115 : vector<32x32xf32>
    %cst_64 = arith.constant 0.000000e+00 : f32
    %117 = vector.broadcast %cst_64 : f32 to vector<32x32xf32>
    %118 = arith.maximumf %116, %117 : vector<32x32xf32>
    %119 = arith.truncf %118 : vector<32x32xf32> to vector<32x32xbf16>
    %c160_65 = arith.constant 160 : index
    %c0_66 = arith.constant 0 : index
    %120 = vector.load %arg6[%c160_65, %c0_66] : memref<256x64xbf16, #tpu.memory_space<vmem>>, vector<32x32xbf16>
    tpu.vector_store %arg6[%c160_65, %c0_66], %119 {strides = array<i32>} : memref<256x64xbf16, #tpu.memory_space<vmem>>, vector<32x32xbf16>,
    %c64_67 = arith.constant 64 : index
    %c32_68 = arith.constant 32 : index
    %121 = vector.load %arg6[%c64_67, %c32_68] : memref<256x64xbf16, #tpu.memory_space<vmem>>, vector<32x32xbf16>
    tpu.vector_store %arg6[%c64_67, %c32_68], %119 {strides = array<i32>} : memref<256x64xbf16, #tpu.memory_space<vmem>>, vector<32x32xbf16>,
    %c192_69 = arith.constant 192 : index
    %c0_70 = arith.constant 0 : index
    %122 = vector.load %arg5[%c192_69, %c0_70] : memref<256x32xf32, #tpu.memory_space<vmem>>, vector<32x32xf32>
    %123 = vector.broadcast %59 : vector<32x1xf32> to vector<32x32xf32>
    %124 = arith.mulf %122, %123 : vector<32x32xf32>
    %125 = vector.broadcast %61 : vector<32x1xf32> to vector<32x32xf32>
    %126 = arith.addf %124, %125 : vector<32x32xf32>
    %cst_71 = arith.constant 0.000000e+00 : f32
    %127 = vector.broadcast %cst_71 : f32 to vector<32x32xf32>
    %128 = arith.maximumf %126, %127 : vector<32x32xf32>
    %129 = arith.truncf %128 : vector<32x32xf32> to vector<32x32xbf16>
    %c192_72 = arith.constant 192 : index
    %c0_73 = arith.constant 0 : index
    %130 = vector.load %arg6[%c192_72, %c0_73] : memref<256x64xbf16, #tpu.memory_space<vmem>>, vector<32x32xbf16>
    tpu.vector_store %arg6[%c192_72, %c0_73], %129 {strides = array<i32>} : memref<256x64xbf16, #tpu.memory_space<vmem>>, vector<32x32xbf16>,
    %c32_74 = arith.constant 32 : index
    %c32_75 = arith.constant 32 : index
    %131 = vector.load %arg6[%c32_74, %c32_75] : memref<256x64xbf16, #tpu.memory_space<vmem>>, vector<32x32xbf16>
    tpu.vector_store %arg6[%c32_74, %c32_75], %129 {strides = array<i32>} : memref<256x64xbf16, #tpu.memory_space<vmem>>, vector<32x32xbf16>,
    %c224_76 = arith.constant 224 : index
    %c0_77 = arith.constant 0 : index
    %132 = vector.load %arg5[%c224_76, %c0_77] : memref<256x32xf32, #tpu.memory_space<vmem>>, vector<32x32xf32>
    %133 = vector.broadcast %59 : vector<32x1xf32> to vector<32x32xf32>
    %134 = arith.mulf %132, %133 : vector<32x32xf32>
    %135 = vector.broadcast %61 : vector<32x1xf32> to vector<32x32xf32>
    %136 = arith.addf %134, %135 : vector<32x32xf32>
    %cst_78 = arith.constant 0.000000e+00 : f32
    %137 = vector.broadcast %cst_78 : f32 to vector<32x32xf32>
    %138 = arith.maximumf %136, %137 : vector<32x32xf32>
    %139 = arith.truncf %138 : vector<32x32xf32> to vector<32x32xbf16>
    %c224_79 = arith.constant 224 : index
    %c0_80 = arith.constant 0 : index
    %140 = vector.load %arg6[%c224_79, %c0_80] : memref<256x64xbf16, #tpu.memory_space<vmem>>, vector<32x32xbf16>
    tpu.vector_store %arg6[%c224_79, %c0_80], %139 {strides = array<i32>} : memref<256x64xbf16, #tpu.memory_space<vmem>>, vector<32x32xbf16>,
    %c0_81 = arith.constant 0 : index
    %c32_82 = arith.constant 32 : index
    %141 = vector.load %arg6[%c0_81, %c32_82] : memref<256x64xbf16, #tpu.memory_space<vmem>>, vector<32x32xbf16>
    tpu.vector_store %arg6[%c0_81, %c32_82], %139 {strides = array<i32>} : memref<256x64xbf16, #tpu.memory_space<vmem>>, vector<32x32xbf16>,
    %c0_83 = arith.constant 0 : index
    %c0_84 = arith.constant 0 : index
    %142 = vector.load %arg6[%c0_83, %c0_84] : memref<256x64xbf16, #tpu.memory_space<vmem>>, vector<256x64xbf16>
    %c16 = arith.constant 16 : index
    %c0_85 = arith.constant 0 : index
    %143 = vector.load %arg1[%c16, %c0_85] : memref<336x192xbf16, #tpu.memory_space<vmem>>, vector<64x192xbf16>
    %c1_86 = arith.constant 1 : index
    %c0_87 = arith.constant 0 : index
    %144 = vector.load %arg2[%c1_86, %c0_87] : memref<4x192xf32, #tpu.memory_space<vmem>>, vector<1x192xf32>
    %c80 = arith.constant 80 : index
    %c0_88 = arith.constant 0 : index
    %145 = vector.load %arg1[%c80, %c0_88] : memref<336x192xbf16, #tpu.memory_space<vmem>>, vector<64x192xbf16>
    %c3 = arith.constant 3 : index
    %c0_89 = arith.constant 0 : index
    %146 = vector.load %arg2[%c3, %c0_89] : memref<4x192xf32, #tpu.memory_space<vmem>>, vector<1x64xf32>
    %cst_90 = arith.constant dense<0.000000e+00> : vector<256x192xf32>
    %147 = tpu.matmul %142, %143, %cst_90 {dimension_numbers = #tpu.dot_dimension_numbers<[1], [0], [0], [1], [0, 0, 1, 1], [], []>} : vector<256x64xbf16>, vector<64x192xbf16>, vector<256x192xf32> -> vector<256x192xf32>
    %148 = vector.broadcast %144 : vector<1x192xf32> to vector<256x192xf32>
    %149 = arith.addf %147, %148 : vector<256x192xf32>
    %c0_91 = arith.constant 0 : index
    %c0_92 = arith.constant 0 : index
    %150 = vector.load %arg8[%c0_91, %c0_92] : memref<256x192xf32, #tpu.memory_space<vmem>>, vector<256x192xf32>
    tpu.vector_store %arg8[%c0_91, %c0_92], %149 {strides = array<i32>} : memref<256x192xf32, #tpu.memory_space<vmem>>, vector<256x192xf32>,
    %151 = vector.shape_cast %146 : vector<1x64xf32> to vector<1x64xf32>
    %152 = vector.broadcast %151 : vector<1x64xf32> to vector<32x64xf32>
    %cst_93 = arith.constant 0.000000e+00 : f32
    %153 = vector.broadcast %cst_93 : f32 to vector<32x64xf32>
    %154 = arith.truncf %153 : vector<32x64xf32> to vector<32x64xbf16>
    %cst_94 = arith.constant dense<0.000000e+00> : vector<32x192xf32>
    %155 = tpu.matmul %154, %145, %cst_94 {dimension_numbers = #tpu.dot_dimension_numbers<[1], [0], [0], [1], [0, 0, 1, 1], [], []>} : vector<32x64xbf16>, vector<64x192xbf16>, vector<32x192xf32> -> vector<32x192xf32>
    %c0_95 = arith.constant 0 : index
    %c0_96 = arith.constant 0 : index
    %156 = vector.load %arg8[%c0_95, %c0_96] : memref<256x192xf32, #tpu.memory_space<vmem>>, vector<32x128xf32>
    %157 = vector.extract_strided_slice %155 {offsets = [0, 0], sizes = [32, 128], strides = [1, 1]} : vector<32x192xf32> to vector<32x128xf32>
    %158 = arith.addf %156, %157 : vector<32x128xf32>
    %cst_97 = arith.constant 5.000000e-01 : f32
    %159 = vector.broadcast %cst_97 : f32 to vector<32x128xf32>
    %160 = arith.mulf %159, %158 : vector<32x128xf32>
    %161 = math.tanh %160 : vector<32x128xf32>
    %cst_98 = arith.constant 5.000000e-01 : f32
    %162 = vector.broadcast %cst_98 : f32 to vector<32x128xf32>
    %163 = arith.mulf %162, %161 : vector<32x128xf32>
    %cst_99 = arith.constant 5.000000e-01 : f32
    %164 = vector.broadcast %cst_99 : f32 to vector<32x128xf32>
    %165 = arith.addf %163, %164 : vector<32x128xf32>
    %166 = vector.extract_strided_slice %165 {offsets = [0, 0], sizes = [32, 64], strides = [1, 1]} : vector<32x128xf32> to vector<32x64xf32>
    %167 = vector.extract_strided_slice %165 {offsets = [0, 64], sizes = [32, 64], strides = [1, 1]} : vector<32x128xf32> to vector<32x64xf32>
    %c0_100 = arith.constant 0 : index
    %c128_101 = arith.constant 128 : index
    %168 = vector.load %arg8[%c0_100, %c128_101] : memref<256x192xf32, #tpu.memory_space<vmem>>, vector<32x64xf32>
    %169 = vector.extract_strided_slice %155 {offsets = [0, 128], sizes = [32, 64], strides = [1, 1]} : vector<32x192xf32> to vector<32x64xf32>
    %170 = arith.addf %169, %152 : vector<32x64xf32>
    %171 = arith.mulf %166, %170 : vector<32x64xf32>
    %172 = arith.addf %168, %171 : vector<32x64xf32>
    %173 = math.tanh %172 : vector<32x64xf32>
    %cst_102 = arith.constant 1.000000e+00 : f32
    %174 = vector.broadcast %cst_102 : f32 to vector<32x64xf32>
    %175 = arith.subf %174, %167 : vector<32x64xf32>
    %176 = arith.mulf %175, %173 : vector<32x64xf32>
    %177 = arith.mulf %167, %153 : vector<32x64xf32>
    %178 = arith.addf %176, %177 : vector<32x64xf32>
    %179 = vector.extract_strided_slice %178 {offsets = [0, 0], sizes = [32, 32], strides = [1, 1]} : vector<32x64xf32> to vector<32x32xf32>
    %180 = arith.truncf %179 : vector<32x32xf32> to vector<32x32xbf16>
    %181 = vector.extract_strided_slice %178 {offsets = [0, 32], sizes = [32, 32], strides = [1, 1]} : vector<32x64xf32> to vector<32x32xf32>
    %182 = arith.truncf %181 : vector<32x32xf32> to vector<32x32xbf16>
    %c0_103 = arith.constant 0 : index
    %c0_104 = arith.constant 0 : index
    %183 = vector.load %arg7[%c0_103, %c0_104] : memref<256x128xbf16, #tpu.memory_space<vmem>>, vector<32x32xbf16>
    tpu.vector_store %arg7[%c0_103, %c0_104], %180 {strides = array<i32>} : memref<256x128xbf16, #tpu.memory_space<vmem>>, vector<32x32xbf16>,
    %c224_105 = arith.constant 224 : index
    %c32_106 = arith.constant 32 : index
    %184 = vector.load %arg7[%c224_105, %c32_106] : memref<256x128xbf16, #tpu.memory_space<vmem>>, vector<32x32xbf16>
    tpu.vector_store %arg7[%c224_105, %c32_106], %182 {strides = array<i32>} : memref<256x128xbf16, #tpu.memory_space<vmem>>, vector<32x32xbf16>,
    %c224_107 = arith.constant 224 : index
    %c64_108 = arith.constant 64 : index
    %185 = vector.load %arg7[%c224_107, %c64_108] : memref<256x128xbf16, #tpu.memory_space<vmem>>, vector<32x32xbf16>
    tpu.vector_store %arg7[%c224_107, %c64_108], %180 {strides = array<i32>} : memref<256x128xbf16, #tpu.memory_space<vmem>>, vector<32x32xbf16>,
    %c0_109 = arith.constant 0 : index
    %c96_110 = arith.constant 96 : index
    %186 = vector.load %arg7[%c0_109, %c96_110] : memref<256x128xbf16, #tpu.memory_space<vmem>>, vector<32x32xbf16>
    tpu.vector_store %arg7[%c0_109, %c96_110], %182 {strides = array<i32>} : memref<256x128xbf16, #tpu.memory_space<vmem>>, vector<32x32xbf16>,
    %187 = arith.truncf %178 : vector<32x64xf32> to vector<32x64xbf16>
    %cst_111 = arith.constant dense<0.000000e+00> : vector<32x192xf32>
    %188 = tpu.matmul %187, %145, %cst_111 {dimension_numbers = #tpu.dot_dimension_numbers<[1], [0], [0], [1], [0, 0, 1, 1], [], []>} : vector<32x64xbf16>, vector<64x192xbf16>, vector<32x192xf32> -> vector<32x192xf32>
    %c32_112 = arith.constant 32 : index
    %c0_113 = arith.constant 0 : index
    %189 = vector.load %arg8[%c32_112, %c0_113] : memref<256x192xf32, #tpu.memory_space<vmem>>, vector<32x128xf32>
    %190 = vector.extract_strided_slice %188 {offsets = [0, 0], sizes = [32, 128], strides = [1, 1]} : vector<32x192xf32> to vector<32x128xf32>
    %191 = arith.addf %189, %190 : vector<32x128xf32>
    %cst_114 = arith.constant 5.000000e-01 : f32
    %192 = vector.broadcast %cst_114 : f32 to vector<32x128xf32>
    %193 = arith.mulf %192, %191 : vector<32x128xf32>
    %194 = math.tanh %193 : vector<32x128xf32>
    %cst_115 = arith.constant 5.000000e-01 : f32
    %195 = vector.broadcast %cst_115 : f32 to vector<32x128xf32>
    %196 = arith.mulf %195, %194 : vector<32x128xf32>
    %cst_116 = arith.constant 5.000000e-01 : f32
    %197 = vector.broadcast %cst_116 : f32 to vector<32x128xf32>
    %198 = arith.addf %196, %197 : vector<32x128xf32>
    %199 = vector.extract_strided_slice %198 {offsets = [0, 0], sizes = [32, 64], strides = [1, 1]} : vector<32x128xf32> to vector<32x64xf32>
    %200 = vector.extract_strided_slice %198 {offsets = [0, 64], sizes = [32, 64], strides = [1, 1]} : vector<32x128xf32> to vector<32x64xf32>
    %c32_117 = arith.constant 32 : index
    %c128_118 = arith.constant 128 : index
    %201 = vector.load %arg8[%c32_117, %c128_118] : memref<256x192xf32, #tpu.memory_space<vmem>>, vector<32x64xf32>
    %202 = vector.extract_strided_slice %188 {offsets = [0, 128], sizes = [32, 64], strides = [1, 1]} : vector<32x192xf32> to vector<32x64xf32>
    %203 = arith.addf %202, %152 : vector<32x64xf32>
    %204 = arith.mulf %199, %203 : vector<32x64xf32>
    %205 = arith.addf %201, %204 : vector<32x64xf32>
    %206 = math.tanh %205 : vector<32x64xf32>
    %cst_119 = arith.constant 1.000000e+00 : f32
    %207 = vector.broadcast %cst_119 : f32 to vector<32x64xf32>
    %208 = arith.subf %207, %200 : vector<32x64xf32>
    %209 = arith.mulf %208, %206 : vector<32x64xf32>
    %210 = arith.mulf %200, %178 : vector<32x64xf32>
    %211 = arith.addf %209, %210 : vector<32x64xf32>
    %212 = vector.extract_strided_slice %211 {offsets = [0, 0], sizes = [32, 32], strides = [1, 1]} : vector<32x64xf32> to vector<32x32xf32>
    %213 = arith.truncf %212 : vector<32x32xf32> to vector<32x32xbf16>
    %214 = vector.extract_strided_slice %211 {offsets = [0, 32], sizes = [32, 32], strides = [1, 1]} : vector<32x64xf32> to vector<32x32xf32>
    %215 = arith.truncf %214 : vector<32x32xf32> to vector<32x32xbf16>
    %c32_120 = arith.constant 32 : index
    %c0_121 = arith.constant 0 : index
    %216 = vector.load %arg7[%c32_120, %c0_121] : memref<256x128xbf16, #tpu.memory_space<vmem>>, vector<32x32xbf16>
    tpu.vector_store %arg7[%c32_120, %c0_121], %213 {strides = array<i32>} : memref<256x128xbf16, #tpu.memory_space<vmem>>, vector<32x32xbf16>,
    %c192_122 = arith.constant 192 : index
    %c32_123 = arith.constant 32 : index
    %217 = vector.load %arg7[%c192_122, %c32_123] : memref<256x128xbf16, #tpu.memory_space<vmem>>, vector<32x32xbf16>
    tpu.vector_store %arg7[%c192_122, %c32_123], %215 {strides = array<i32>} : memref<256x128xbf16, #tpu.memory_space<vmem>>, vector<32x32xbf16>,
    %c192_124 = arith.constant 192 : index
    %c64_125 = arith.constant 64 : index
    %218 = vector.load %arg7[%c192_124, %c64_125] : memref<256x128xbf16, #tpu.memory_space<vmem>>, vector<32x32xbf16>
    tpu.vector_store %arg7[%c192_124, %c64_125], %213 {strides = array<i32>} : memref<256x128xbf16, #tpu.memory_space<vmem>>, vector<32x32xbf16>,
    %c32_126 = arith.constant 32 : index
    %c96_127 = arith.constant 96 : index
    %219 = vector.load %arg7[%c32_126, %c96_127] : memref<256x128xbf16, #tpu.memory_space<vmem>>, vector<32x32xbf16>
    tpu.vector_store %arg7[%c32_126, %c96_127], %215 {strides = array<i32>} : memref<256x128xbf16, #tpu.memory_space<vmem>>, vector<32x32xbf16>,
    %220 = arith.truncf %211 : vector<32x64xf32> to vector<32x64xbf16>
    %cst_128 = arith.constant dense<0.000000e+00> : vector<32x192xf32>
    %221 = tpu.matmul %220, %145, %cst_128 {dimension_numbers = #tpu.dot_dimension_numbers<[1], [0], [0], [1], [0, 0, 1, 1], [], []>} : vector<32x64xbf16>, vector<64x192xbf16>, vector<32x192xf32> -> vector<32x192xf32>
    %c64_129 = arith.constant 64 : index
    %c0_130 = arith.constant 0 : index
    %222 = vector.load %arg8[%c64_129, %c0_130] : memref<256x192xf32, #tpu.memory_space<vmem>>, vector<32x128xf32>
    %223 = vector.extract_strided_slice %221 {offsets = [0, 0], sizes = [32, 128], strides = [1, 1]} : vector<32x192xf32> to vector<32x128xf32>
    %224 = arith.addf %222, %223 : vector<32x128xf32>
    %cst_131 = arith.constant 5.000000e-01 : f32
    %225 = vector.broadcast %cst_131 : f32 to vector<32x128xf32>
    %226 = arith.mulf %225, %224 : vector<32x128xf32>
    %227 = math.tanh %226 : vector<32x128xf32>
    %cst_132 = arith.constant 5.000000e-01 : f32
    %228 = vector.broadcast %cst_132 : f32 to vector<32x128xf32>
    %229 = arith.mulf %228, %227 : vector<32x128xf32>
    %cst_133 = arith.constant 5.000000e-01 : f32
    %230 = vector.broadcast %cst_133 : f32 to vector<32x128xf32>
    %231 = arith.addf %229, %230 : vector<32x128xf32>
    %232 = vector.extract_strided_slice %231 {offsets = [0, 0], sizes = [32, 64], strides = [1, 1]} : vector<32x128xf32> to vector<32x64xf32>
    %233 = vector.extract_strided_slice %231 {offsets = [0, 64], sizes = [32, 64], strides = [1, 1]} : vector<32x128xf32> to vector<32x64xf32>
    %c64_134 = arith.constant 64 : index
    %c128_135 = arith.constant 128 : index
    %234 = vector.load %arg8[%c64_134, %c128_135] : memref<256x192xf32, #tpu.memory_space<vmem>>, vector<32x64xf32>
    %235 = vector.extract_strided_slice %221 {offsets = [0, 128], sizes = [32, 64], strides = [1, 1]} : vector<32x192xf32> to vector<32x64xf32>
    %236 = arith.addf %235, %152 : vector<32x64xf32>
    %237 = arith.mulf %232, %236 : vector<32x64xf32>
    %238 = arith.addf %234, %237 : vector<32x64xf32>
    %239 = math.tanh %238 : vector<32x64xf32>
    %cst_136 = arith.constant 1.000000e+00 : f32
    %240 = vector.broadcast %cst_136 : f32 to vector<32x64xf32>
    %241 = arith.subf %240, %233 : vector<32x64xf32>
    %242 = arith.mulf %241, %239 : vector<32x64xf32>
    %243 = arith.mulf %233, %211 : vector<32x64xf32>
    %244 = arith.addf %242, %243 : vector<32x64xf32>
    %245 = vector.extract_strided_slice %244 {offsets = [0, 0], sizes = [32, 32], strides = [1, 1]} : vector<32x64xf32> to vector<32x32xf32>
    %246 = arith.truncf %245 : vector<32x32xf32> to vector<32x32xbf16>
    %247 = vector.extract_strided_slice %244 {offsets = [0, 32], sizes = [32, 32], strides = [1, 1]} : vector<32x64xf32> to vector<32x32xf32>
    %248 = arith.truncf %247 : vector<32x32xf32> to vector<32x32xbf16>
    %c64_137 = arith.constant 64 : index
    %c0_138 = arith.constant 0 : index
    %249 = vector.load %arg7[%c64_137, %c0_138] : memref<256x128xbf16, #tpu.memory_space<vmem>>, vector<32x32xbf16>
    tpu.vector_store %arg7[%c64_137, %c0_138], %246 {strides = array<i32>} : memref<256x128xbf16, #tpu.memory_space<vmem>>, vector<32x32xbf16>,
    %c160_139 = arith.constant 160 : index
    %c32_140 = arith.constant 32 : index
    %250 = vector.load %arg7[%c160_139, %c32_140] : memref<256x128xbf16, #tpu.memory_space<vmem>>, vector<32x32xbf16>
    tpu.vector_store %arg7[%c160_139, %c32_140], %248 {strides = array<i32>} : memref<256x128xbf16, #tpu.memory_space<vmem>>, vector<32x32xbf16>,
    %c160_141 = arith.constant 160 : index
    %c64_142 = arith.constant 64 : index
    %251 = vector.load %arg7[%c160_141, %c64_142] : memref<256x128xbf16, #tpu.memory_space<vmem>>, vector<32x32xbf16>
    tpu.vector_store %arg7[%c160_141, %c64_142], %246 {strides = array<i32>} : memref<256x128xbf16, #tpu.memory_space<vmem>>, vector<32x32xbf16>,
    %c64_143 = arith.constant 64 : index
    %c96_144 = arith.constant 96 : index
    %252 = vector.load %arg7[%c64_143, %c96_144] : memref<256x128xbf16, #tpu.memory_space<vmem>>, vector<32x32xbf16>
    tpu.vector_store %arg7[%c64_143, %c96_144], %248 {strides = array<i32>} : memref<256x128xbf16, #tpu.memory_space<vmem>>, vector<32x32xbf16>,
    %253 = arith.truncf %244 : vector<32x64xf32> to vector<32x64xbf16>
    %cst_145 = arith.constant dense<0.000000e+00> : vector<32x192xf32>
    %254 = tpu.matmul %253, %145, %cst_145 {dimension_numbers = #tpu.dot_dimension_numbers<[1], [0], [0], [1], [0, 0, 1, 1], [], []>} : vector<32x64xbf16>, vector<64x192xbf16>, vector<32x192xf32> -> vector<32x192xf32>
    %c96_146 = arith.constant 96 : index
    %c0_147 = arith.constant 0 : index
    %255 = vector.load %arg8[%c96_146, %c0_147] : memref<256x192xf32, #tpu.memory_space<vmem>>, vector<32x128xf32>
    %256 = vector.extract_strided_slice %254 {offsets = [0, 0], sizes = [32, 128], strides = [1, 1]} : vector<32x192xf32> to vector<32x128xf32>
    %257 = arith.addf %255, %256 : vector<32x128xf32>
    %cst_148 = arith.constant 5.000000e-01 : f32
    %258 = vector.broadcast %cst_148 : f32 to vector<32x128xf32>
    %259 = arith.mulf %258, %257 : vector<32x128xf32>
    %260 = math.tanh %259 : vector<32x128xf32>
    %cst_149 = arith.constant 5.000000e-01 : f32
    %261 = vector.broadcast %cst_149 : f32 to vector<32x128xf32>
    %262 = arith.mulf %261, %260 : vector<32x128xf32>
    %cst_150 = arith.constant 5.000000e-01 : f32
    %263 = vector.broadcast %cst_150 : f32 to vector<32x128xf32>
    %264 = arith.addf %262, %263 : vector<32x128xf32>
    %265 = vector.extract_strided_slice %264 {offsets = [0, 0], sizes = [32, 64], strides = [1, 1]} : vector<32x128xf32> to vector<32x64xf32>
    %266 = vector.extract_strided_slice %264 {offsets = [0, 64], sizes = [32, 64], strides = [1, 1]} : vector<32x128xf32> to vector<32x64xf32>
    %c96_151 = arith.constant 96 : index
    %c128_152 = arith.constant 128 : index
    %267 = vector.load %arg8[%c96_151, %c128_152] : memref<256x192xf32, #tpu.memory_space<vmem>>, vector<32x64xf32>
    %268 = vector.extract_strided_slice %254 {offsets = [0, 128], sizes = [32, 64], strides = [1, 1]} : vector<32x192xf32> to vector<32x64xf32>
    %269 = arith.addf %268, %152 : vector<32x64xf32>
    %270 = arith.mulf %265, %269 : vector<32x64xf32>
    %271 = arith.addf %267, %270 : vector<32x64xf32>
    %272 = math.tanh %271 : vector<32x64xf32>
    %cst_153 = arith.constant 1.000000e+00 : f32
    %273 = vector.broadcast %cst_153 : f32 to vector<32x64xf32>
    %274 = arith.subf %273, %266 : vector<32x64xf32>
    %275 = arith.mulf %274, %272 : vector<32x64xf32>
    %276 = arith.mulf %266, %244 : vector<32x64xf32>
    %277 = arith.addf %275, %276 : vector<32x64xf32>
    %278 = vector.extract_strided_slice %277 {offsets = [0, 0], sizes = [32, 32], strides = [1, 1]} : vector<32x64xf32> to vector<32x32xf32>
    %279 = arith.truncf %278 : vector<32x32xf32> to vector<32x32xbf16>
    %280 = vector.extract_strided_slice %277 {offsets = [0, 32], sizes = [32, 32], strides = [1, 1]} : vector<32x64xf32> to vector<32x32xf32>
    %281 = arith.truncf %280 : vector<32x32xf32> to vector<32x32xbf16>
    %c96_154 = arith.constant 96 : index
    %c0_155 = arith.constant 0 : index
    %282 = vector.load %arg7[%c96_154, %c0_155] : memref<256x128xbf16, #tpu.memory_space<vmem>>, vector<32x32xbf16>
    tpu.vector_store %arg7[%c96_154, %c0_155], %279 {strides = array<i32>} : memref<256x128xbf16, #tpu.memory_space<vmem>>, vector<32x32xbf16>,
    %c128_156 = arith.constant 128 : index
    %c32_157 = arith.constant 32 : index
    %283 = vector.load %arg7[%c128_156, %c32_157] : memref<256x128xbf16, #tpu.memory_space<vmem>>, vector<32x32xbf16>
    tpu.vector_store %arg7[%c128_156, %c32_157], %281 {strides = array<i32>} : memref<256x128xbf16, #tpu.memory_space<vmem>>, vector<32x32xbf16>,
    %c128_158 = arith.constant 128 : index
    %c64_159 = arith.constant 64 : index
    %284 = vector.load %arg7[%c128_158, %c64_159] : memref<256x128xbf16, #tpu.memory_space<vmem>>, vector<32x32xbf16>
    tpu.vector_store %arg7[%c128_158, %c64_159], %279 {strides = array<i32>} : memref<256x128xbf16, #tpu.memory_space<vmem>>, vector<32x32xbf16>,
    %c96_160 = arith.constant 96 : index
    %c96_161 = arith.constant 96 : index
    %285 = vector.load %arg7[%c96_160, %c96_161] : memref<256x128xbf16, #tpu.memory_space<vmem>>, vector<32x32xbf16>
    tpu.vector_store %arg7[%c96_160, %c96_161], %281 {strides = array<i32>} : memref<256x128xbf16, #tpu.memory_space<vmem>>, vector<32x32xbf16>,
    %286 = arith.truncf %277 : vector<32x64xf32> to vector<32x64xbf16>
    %cst_162 = arith.constant dense<0.000000e+00> : vector<32x192xf32>
    %287 = tpu.matmul %286, %145, %cst_162 {dimension_numbers = #tpu.dot_dimension_numbers<[1], [0], [0], [1], [0, 0, 1, 1], [], []>} : vector<32x64xbf16>, vector<64x192xbf16>, vector<32x192xf32> -> vector<32x192xf32>
    %c128_163 = arith.constant 128 : index
    %c0_164 = arith.constant 0 : index
    %288 = vector.load %arg8[%c128_163, %c0_164] : memref<256x192xf32, #tpu.memory_space<vmem>>, vector<32x128xf32>
    %289 = vector.extract_strided_slice %287 {offsets = [0, 0], sizes = [32, 128], strides = [1, 1]} : vector<32x192xf32> to vector<32x128xf32>
    %290 = arith.addf %288, %289 : vector<32x128xf32>
    %cst_165 = arith.constant 5.000000e-01 : f32
    %291 = vector.broadcast %cst_165 : f32 to vector<32x128xf32>
    %292 = arith.mulf %291, %290 : vector<32x128xf32>
    %293 = math.tanh %292 : vector<32x128xf32>
    %cst_166 = arith.constant 5.000000e-01 : f32
    %294 = vector.broadcast %cst_166 : f32 to vector<32x128xf32>
    %295 = arith.mulf %294, %293 : vector<32x128xf32>
    %cst_167 = arith.constant 5.000000e-01 : f32
    %296 = vector.broadcast %cst_167 : f32 to vector<32x128xf32>
    %297 = arith.addf %295, %296 : vector<32x128xf32>
    %298 = vector.extract_strided_slice %297 {offsets = [0, 0], sizes = [32, 64], strides = [1, 1]} : vector<32x128xf32> to vector<32x64xf32>
    %299 = vector.extract_strided_slice %297 {offsets = [0, 64], sizes = [32, 64], strides = [1, 1]} : vector<32x128xf32> to vector<32x64xf32>
    %c128_168 = arith.constant 128 : index
    %c128_169 = arith.constant 128 : index
    %300 = vector.load %arg8[%c128_168, %c128_169] : memref<256x192xf32, #tpu.memory_space<vmem>>, vector<32x64xf32>
    %301 = vector.extract_strided_slice %287 {offsets = [0, 128], sizes = [32, 64], strides = [1, 1]} : vector<32x192xf32> to vector<32x64xf32>
    %302 = arith.addf %301, %152 : vector<32x64xf32>
    %303 = arith.mulf %298, %302 : vector<32x64xf32>
    %304 = arith.addf %300, %303 : vector<32x64xf32>
    %305 = math.tanh %304 : vector<32x64xf32>
    %cst_170 = arith.constant 1.000000e+00 : f32
    %306 = vector.broadcast %cst_170 : f32 to vector<32x64xf32>
    %307 = arith.subf %306, %299 : vector<32x64xf32>
    %308 = arith.mulf %307, %305 : vector<32x64xf32>
    %309 = arith.mulf %299, %277 : vector<32x64xf32>
    %310 = arith.addf %308, %309 : vector<32x64xf32>
    %311 = vector.extract_strided_slice %310 {offsets = [0, 0], sizes = [32, 32], strides = [1, 1]} : vector<32x64xf32> to vector<32x32xf32>
    %312 = arith.truncf %311 : vector<32x32xf32> to vector<32x32xbf16>
    %313 = vector.extract_strided_slice %310 {offsets = [0, 32], sizes = [32, 32], strides = [1, 1]} : vector<32x64xf32> to vector<32x32xf32>
    %314 = arith.truncf %313 : vector<32x32xf32> to vector<32x32xbf16>
    %c128_171 = arith.constant 128 : index
    %c0_172 = arith.constant 0 : index
    %315 = vector.load %arg7[%c128_171, %c0_172] : memref<256x128xbf16, #tpu.memory_space<vmem>>, vector<32x32xbf16>
    tpu.vector_store %arg7[%c128_171, %c0_172], %312 {strides = array<i32>} : memref<256x128xbf16, #tpu.memory_space<vmem>>, vector<32x32xbf16>,
    %c96_173 = arith.constant 96 : index
    %c32_174 = arith.constant 32 : index
    %316 = vector.load %arg7[%c96_173, %c32_174] : memref<256x128xbf16, #tpu.memory_space<vmem>>, vector<32x32xbf16>
    tpu.vector_store %arg7[%c96_173, %c32_174], %314 {strides = array<i32>} : memref<256x128xbf16, #tpu.memory_space<vmem>>, vector<32x32xbf16>,
    %c96_175 = arith.constant 96 : index
    %c64_176 = arith.constant 64 : index
    %317 = vector.load %arg7[%c96_175, %c64_176] : memref<256x128xbf16, #tpu.memory_space<vmem>>, vector<32x32xbf16>
    tpu.vector_store %arg7[%c96_175, %c64_176], %312 {strides = array<i32>} : memref<256x128xbf16, #tpu.memory_space<vmem>>, vector<32x32xbf16>,
    %c128_177 = arith.constant 128 : index
    %c96_178 = arith.constant 96 : index
    %318 = vector.load %arg7[%c128_177, %c96_178] : memref<256x128xbf16, #tpu.memory_space<vmem>>, vector<32x32xbf16>
    tpu.vector_store %arg7[%c128_177, %c96_178], %314 {strides = array<i32>} : memref<256x128xbf16, #tpu.memory_space<vmem>>, vector<32x32xbf16>,
    %319 = arith.truncf %310 : vector<32x64xf32> to vector<32x64xbf16>
    %cst_179 = arith.constant dense<0.000000e+00> : vector<32x192xf32>
    %320 = tpu.matmul %319, %145, %cst_179 {dimension_numbers = #tpu.dot_dimension_numbers<[1], [0], [0], [1], [0, 0, 1, 1], [], []>} : vector<32x64xbf16>, vector<64x192xbf16>, vector<32x192xf32> -> vector<32x192xf32>
    %c160_180 = arith.constant 160 : index
    %c0_181 = arith.constant 0 : index
    %321 = vector.load %arg8[%c160_180, %c0_181] : memref<256x192xf32, #tpu.memory_space<vmem>>, vector<32x128xf32>
    %322 = vector.extract_strided_slice %320 {offsets = [0, 0], sizes = [32, 128], strides = [1, 1]} : vector<32x192xf32> to vector<32x128xf32>
    %323 = arith.addf %321, %322 : vector<32x128xf32>
    %cst_182 = arith.constant 5.000000e-01 : f32
    %324 = vector.broadcast %cst_182 : f32 to vector<32x128xf32>
    %325 = arith.mulf %324, %323 : vector<32x128xf32>
    %326 = math.tanh %325 : vector<32x128xf32>
    %cst_183 = arith.constant 5.000000e-01 : f32
    %327 = vector.broadcast %cst_183 : f32 to vector<32x128xf32>
    %328 = arith.mulf %327, %326 : vector<32x128xf32>
    %cst_184 = arith.constant 5.000000e-01 : f32
    %329 = vector.broadcast %cst_184 : f32 to vector<32x128xf32>
    %330 = arith.addf %328, %329 : vector<32x128xf32>
    %331 = vector.extract_strided_slice %330 {offsets = [0, 0], sizes = [32, 64], strides = [1, 1]} : vector<32x128xf32> to vector<32x64xf32>
    %332 = vector.extract_strided_slice %330 {offsets = [0, 64], sizes = [32, 64], strides = [1, 1]} : vector<32x128xf32> to vector<32x64xf32>
    %c160_185 = arith.constant 160 : index
    %c128_186 = arith.constant 128 : index
    %333 = vector.load %arg8[%c160_185, %c128_186] : memref<256x192xf32, #tpu.memory_space<vmem>>, vector<32x64xf32>
    %334 = vector.extract_strided_slice %320 {offsets = [0, 128], sizes = [32, 64], strides = [1, 1]} : vector<32x192xf32> to vector<32x64xf32>
    %335 = arith.addf %334, %152 : vector<32x64xf32>
    %336 = arith.mulf %331, %335 : vector<32x64xf32>
    %337 = arith.addf %333, %336 : vector<32x64xf32>
    %338 = math.tanh %337 : vector<32x64xf32>
    %cst_187 = arith.constant 1.000000e+00 : f32
    %339 = vector.broadcast %cst_187 : f32 to vector<32x64xf32>
    %340 = arith.subf %339, %332 : vector<32x64xf32>
    %341 = arith.mulf %340, %338 : vector<32x64xf32>
    %342 = arith.mulf %332, %310 : vector<32x64xf32>
    %343 = arith.addf %341, %342 : vector<32x64xf32>
    %344 = vector.extract_strided_slice %343 {offsets = [0, 0], sizes = [32, 32], strides = [1, 1]} : vector<32x64xf32> to vector<32x32xf32>
    %345 = arith.truncf %344 : vector<32x32xf32> to vector<32x32xbf16>
    %346 = vector.extract_strided_slice %343 {offsets = [0, 32], sizes = [32, 32], strides = [1, 1]} : vector<32x64xf32> to vector<32x32xf32>
    %347 = arith.truncf %346 : vector<32x32xf32> to vector<32x32xbf16>
    %c160_188 = arith.constant 160 : index
    %c0_189 = arith.constant 0 : index
    %348 = vector.load %arg7[%c160_188, %c0_189] : memref<256x128xbf16, #tpu.memory_space<vmem>>, vector<32x32xbf16>
    tpu.vector_store %arg7[%c160_188, %c0_189], %345 {strides = array<i32>} : memref<256x128xbf16, #tpu.memory_space<vmem>>, vector<32x32xbf16>,
    %c64_190 = arith.constant 64 : index
    %c32_191 = arith.constant 32 : index
    %349 = vector.load %arg7[%c64_190, %c32_191] : memref<256x128xbf16, #tpu.memory_space<vmem>>, vector<32x32xbf16>
    tpu.vector_store %arg7[%c64_190, %c32_191], %347 {strides = array<i32>} : memref<256x128xbf16, #tpu.memory_space<vmem>>, vector<32x32xbf16>,
    %c64_192 = arith.constant 64 : index
    %c64_193 = arith.constant 64 : index
    %350 = vector.load %arg7[%c64_192, %c64_193] : memref<256x128xbf16, #tpu.memory_space<vmem>>, vector<32x32xbf16>
    tpu.vector_store %arg7[%c64_192, %c64_193], %345 {strides = array<i32>} : memref<256x128xbf16, #tpu.memory_space<vmem>>, vector<32x32xbf16>,
    %c160_194 = arith.constant 160 : index
    %c96_195 = arith.constant 96 : index
    %351 = vector.load %arg7[%c160_194, %c96_195] : memref<256x128xbf16, #tpu.memory_space<vmem>>, vector<32x32xbf16>
    tpu.vector_store %arg7[%c160_194, %c96_195], %347 {strides = array<i32>} : memref<256x128xbf16, #tpu.memory_space<vmem>>, vector<32x32xbf16>,
    %352 = arith.truncf %343 : vector<32x64xf32> to vector<32x64xbf16>
    %cst_196 = arith.constant dense<0.000000e+00> : vector<32x192xf32>
    %353 = tpu.matmul %352, %145, %cst_196 {dimension_numbers = #tpu.dot_dimension_numbers<[1], [0], [0], [1], [0, 0, 1, 1], [], []>} : vector<32x64xbf16>, vector<64x192xbf16>, vector<32x192xf32> -> vector<32x192xf32>
    %c192_197 = arith.constant 192 : index
    %c0_198 = arith.constant 0 : index
    %354 = vector.load %arg8[%c192_197, %c0_198] : memref<256x192xf32, #tpu.memory_space<vmem>>, vector<32x128xf32>
    %355 = vector.extract_strided_slice %353 {offsets = [0, 0], sizes = [32, 128], strides = [1, 1]} : vector<32x192xf32> to vector<32x128xf32>
    %356 = arith.addf %354, %355 : vector<32x128xf32>
    %cst_199 = arith.constant 5.000000e-01 : f32
    %357 = vector.broadcast %cst_199 : f32 to vector<32x128xf32>
    %358 = arith.mulf %357, %356 : vector<32x128xf32>
    %359 = math.tanh %358 : vector<32x128xf32>
    %cst_200 = arith.constant 5.000000e-01 : f32
    %360 = vector.broadcast %cst_200 : f32 to vector<32x128xf32>
    %361 = arith.mulf %360, %359 : vector<32x128xf32>
    %cst_201 = arith.constant 5.000000e-01 : f32
    %362 = vector.broadcast %cst_201 : f32 to vector<32x128xf32>
    %363 = arith.addf %361, %362 : vector<32x128xf32>
    %364 = vector.extract_strided_slice %363 {offsets = [0, 0], sizes = [32, 64], strides = [1, 1]} : vector<32x128xf32> to vector<32x64xf32>
    %365 = vector.extract_strided_slice %363 {offsets = [0, 64], sizes = [32, 64], strides = [1, 1]} : vector<32x128xf32> to vector<32x64xf32>
    %c192_202 = arith.constant 192 : index
    %c128_203 = arith.constant 128 : index
    %366 = vector.load %arg8[%c192_202, %c128_203] : memref<256x192xf32, #tpu.memory_space<vmem>>, vector<32x64xf32>
    %367 = vector.extract_strided_slice %353 {offsets = [0, 128], sizes = [32, 64], strides = [1, 1]} : vector<32x192xf32> to vector<32x64xf32>
    %368 = arith.addf %367, %152 : vector<32x64xf32>
    %369 = arith.mulf %364, %368 : vector<32x64xf32>
    %370 = arith.addf %366, %369 : vector<32x64xf32>
    %371 = math.tanh %370 : vector<32x64xf32>
    %cst_204 = arith.constant 1.000000e+00 : f32
    %372 = vector.broadcast %cst_204 : f32 to vector<32x64xf32>
    %373 = arith.subf %372, %365 : vector<32x64xf32>
    %374 = arith.mulf %373, %371 : vector<32x64xf32>
    %375 = arith.mulf %365, %343 : vector<32x64xf32>
    %376 = arith.addf %374, %375 : vector<32x64xf32>
    %377 = vector.extract_strided_slice %376 {offsets = [0, 0], sizes = [32, 32], strides = [1, 1]} : vector<32x64xf32> to vector<32x32xf32>
    %378 = arith.truncf %377 : vector<32x32xf32> to vector<32x32xbf16>
    %379 = vector.extract_strided_slice %376 {offsets = [0, 32], sizes = [32, 32], strides = [1, 1]} : vector<32x64xf32> to vector<32x32xf32>
    %380 = arith.truncf %379 : vector<32x32xf32> to vector<32x32xbf16>
    %c192_205 = arith.constant 192 : index
    %c0_206 = arith.constant 0 : index
    %381 = vector.load %arg7[%c192_205, %c0_206] : memref<256x128xbf16, #tpu.memory_space<vmem>>, vector<32x32xbf16>
    tpu.vector_store %arg7[%c192_205, %c0_206], %378 {strides = array<i32>} : memref<256x128xbf16, #tpu.memory_space<vmem>>, vector<32x32xbf16>,
    %c32_207 = arith.constant 32 : index
    %c32_208 = arith.constant 32 : index
    %382 = vector.load %arg7[%c32_207, %c32_208] : memref<256x128xbf16, #tpu.memory_space<vmem>>, vector<32x32xbf16>
    tpu.vector_store %arg7[%c32_207, %c32_208], %380 {strides = array<i32>} : memref<256x128xbf16, #tpu.memory_space<vmem>>, vector<32x32xbf16>,
    %c32_209 = arith.constant 32 : index
    %c64_210 = arith.constant 64 : index
    %383 = vector.load %arg7[%c32_209, %c64_210] : memref<256x128xbf16, #tpu.memory_space<vmem>>, vector<32x32xbf16>
    tpu.vector_store %arg7[%c32_209, %c64_210], %378 {strides = array<i32>} : memref<256x128xbf16, #tpu.memory_space<vmem>>, vector<32x32xbf16>,
    %c192_211 = arith.constant 192 : index
    %c96_212 = arith.constant 96 : index
    %384 = vector.load %arg7[%c192_211, %c96_212] : memref<256x128xbf16, #tpu.memory_space<vmem>>, vector<32x32xbf16>
    tpu.vector_store %arg7[%c192_211, %c96_212], %380 {strides = array<i32>} : memref<256x128xbf16, #tpu.memory_space<vmem>>, vector<32x32xbf16>,
    %385 = arith.truncf %376 : vector<32x64xf32> to vector<32x64xbf16>
    %cst_213 = arith.constant dense<0.000000e+00> : vector<32x192xf32>
    %386 = tpu.matmul %385, %145, %cst_213 {dimension_numbers = #tpu.dot_dimension_numbers<[1], [0], [0], [1], [0, 0, 1, 1], [], []>} : vector<32x64xbf16>, vector<64x192xbf16>, vector<32x192xf32> -> vector<32x192xf32>
    %c224_214 = arith.constant 224 : index
    %c0_215 = arith.constant 0 : index
    %387 = vector.load %arg8[%c224_214, %c0_215] : memref<256x192xf32, #tpu.memory_space<vmem>>, vector<32x128xf32>
    %388 = vector.extract_strided_slice %386 {offsets = [0, 0], sizes = [32, 128], strides = [1, 1]} : vector<32x192xf32> to vector<32x128xf32>
    %389 = arith.addf %387, %388 : vector<32x128xf32>
    %cst_216 = arith.constant 5.000000e-01 : f32
    %390 = vector.broadcast %cst_216 : f32 to vector<32x128xf32>
    %391 = arith.mulf %390, %389 : vector<32x128xf32>
    %392 = math.tanh %391 : vector<32x128xf32>
    %cst_217 = arith.constant 5.000000e-01 : f32
    %393 = vector.broadcast %cst_217 : f32 to vector<32x128xf32>
    %394 = arith.mulf %393, %392 : vector<32x128xf32>
    %cst_218 = arith.constant 5.000000e-01 : f32
    %395 = vector.broadcast %cst_218 : f32 to vector<32x128xf32>
    %396 = arith.addf %394, %395 : vector<32x128xf32>
    %397 = vector.extract_strided_slice %396 {offsets = [0, 0], sizes = [32, 64], strides = [1, 1]} : vector<32x128xf32> to vector<32x64xf32>
    %398 = vector.extract_strided_slice %396 {offsets = [0, 64], sizes = [32, 64], strides = [1, 1]} : vector<32x128xf32> to vector<32x64xf32>
    %c224_219 = arith.constant 224 : index
    %c128_220 = arith.constant 128 : index
    %399 = vector.load %arg8[%c224_219, %c128_220] : memref<256x192xf32, #tpu.memory_space<vmem>>, vector<32x64xf32>
    %400 = vector.extract_strided_slice %386 {offsets = [0, 128], sizes = [32, 64], strides = [1, 1]} : vector<32x192xf32> to vector<32x64xf32>
    %401 = arith.addf %400, %152 : vector<32x64xf32>
    %402 = arith.mulf %397, %401 : vector<32x64xf32>
    %403 = arith.addf %399, %402 : vector<32x64xf32>
    %404 = math.tanh %403 : vector<32x64xf32>
    %cst_221 = arith.constant 1.000000e+00 : f32
    %405 = vector.broadcast %cst_221 : f32 to vector<32x64xf32>
    %406 = arith.subf %405, %398 : vector<32x64xf32>
    %407 = arith.mulf %406, %404 : vector<32x64xf32>
    %408 = arith.mulf %398, %376 : vector<32x64xf32>
    %409 = arith.addf %407, %408 : vector<32x64xf32>
    %410 = vector.extract_strided_slice %409 {offsets = [0, 0], sizes = [32, 32], strides = [1, 1]} : vector<32x64xf32> to vector<32x32xf32>
    %411 = arith.truncf %410 : vector<32x32xf32> to vector<32x32xbf16>
    %412 = vector.extract_strided_slice %409 {offsets = [0, 32], sizes = [32, 32], strides = [1, 1]} : vector<32x64xf32> to vector<32x32xf32>
    %413 = arith.truncf %412 : vector<32x32xf32> to vector<32x32xbf16>
    %c224_222 = arith.constant 224 : index
    %c0_223 = arith.constant 0 : index
    %414 = vector.load %arg7[%c224_222, %c0_223] : memref<256x128xbf16, #tpu.memory_space<vmem>>, vector<32x32xbf16>
    tpu.vector_store %arg7[%c224_222, %c0_223], %411 {strides = array<i32>} : memref<256x128xbf16, #tpu.memory_space<vmem>>, vector<32x32xbf16>,
    %c0_224 = arith.constant 0 : index
    %c32_225 = arith.constant 32 : index
    %415 = vector.load %arg7[%c0_224, %c32_225] : memref<256x128xbf16, #tpu.memory_space<vmem>>, vector<32x32xbf16>
    tpu.vector_store %arg7[%c0_224, %c32_225], %413 {strides = array<i32>} : memref<256x128xbf16, #tpu.memory_space<vmem>>, vector<32x32xbf16>,
    %c0_226 = arith.constant 0 : index
    %c64_227 = arith.constant 64 : index
    %416 = vector.load %arg7[%c0_226, %c64_227] : memref<256x128xbf16, #tpu.memory_space<vmem>>, vector<32x32xbf16>
    tpu.vector_store %arg7[%c0_226, %c64_227], %411 {strides = array<i32>} : memref<256x128xbf16, #tpu.memory_space<vmem>>, vector<32x32xbf16>,
    %c224_228 = arith.constant 224 : index
    %c96_229 = arith.constant 96 : index
    %417 = vector.load %arg7[%c224_228, %c96_229] : memref<256x128xbf16, #tpu.memory_space<vmem>>, vector<32x32xbf16>
    tpu.vector_store %arg7[%c224_228, %c96_229], %413 {strides = array<i32>} : memref<256x128xbf16, #tpu.memory_space<vmem>>, vector<32x32xbf16>,
    %c0_230 = arith.constant 0 : index
    %c0_231 = arith.constant 0 : index
    %418 = vector.load %arg7[%c0_230, %c0_231] : memref<256x128xbf16, #tpu.memory_space<vmem>>, vector<256x128xbf16>
    %c144 = arith.constant 144 : index
    %c0_232 = arith.constant 0 : index
    %419 = vector.load %arg1[%c144, %c0_232] : memref<336x192xbf16, #tpu.memory_space<vmem>>, vector<128x192xbf16>
    %c2 = arith.constant 2 : index
    %c0_233 = arith.constant 0 : index
    %420 = vector.load %arg2[%c2, %c0_233] : memref<4x192xf32, #tpu.memory_space<vmem>>, vector<1x192xf32>
    %c272 = arith.constant 272 : index
    %c0_234 = arith.constant 0 : index
    %421 = vector.load %arg1[%c272, %c0_234] : memref<336x192xbf16, #tpu.memory_space<vmem>>, vector<64x192xbf16>
    %c3_235 = arith.constant 3 : index
    %c64_236 = arith.constant 64 : index
    %422 = vector.load %arg2[%c3_235, %c64_236] : memref<4x192xf32, #tpu.memory_space<vmem>>, vector<1x64xf32>
    %cst_237 = arith.constant dense<0.000000e+00> : vector<256x192xf32>
    %423 = tpu.matmul %418, %419, %cst_237 {dimension_numbers = #tpu.dot_dimension_numbers<[1], [0], [0], [1], [0, 0, 1, 1], [], []>} : vector<256x128xbf16>, vector<128x192xbf16>, vector<256x192xf32> -> vector<256x192xf32>
    %424 = vector.broadcast %420 : vector<1x192xf32> to vector<256x192xf32>
    %425 = arith.addf %423, %424 : vector<256x192xf32>
    %c0_238 = arith.constant 0 : index
    %c0_239 = arith.constant 0 : index
    %426 = vector.load %arg8[%c0_238, %c0_239] : memref<256x192xf32, #tpu.memory_space<vmem>>, vector<256x192xf32>
    tpu.vector_store %arg8[%c0_238, %c0_239], %425 {strides = array<i32>} : memref<256x192xf32, #tpu.memory_space<vmem>>, vector<256x192xf32>,
    %427 = vector.shape_cast %422 : vector<1x64xf32> to vector<1x64xf32>
    %428 = vector.broadcast %427 : vector<1x64xf32> to vector<32x64xf32>
    %cst_240 = arith.constant 0.000000e+00 : f32
    %429 = vector.broadcast %cst_240 : f32 to vector<32x64xf32>
    %430 = arith.truncf %429 : vector<32x64xf32> to vector<32x64xbf16>
    %cst_241 = arith.constant dense<0.000000e+00> : vector<32x192xf32>
    %431 = tpu.matmul %430, %421, %cst_241 {dimension_numbers = #tpu.dot_dimension_numbers<[1], [0], [0], [1], [0, 0, 1, 1], [], []>} : vector<32x64xbf16>, vector<64x192xbf16>, vector<32x192xf32> -> vector<32x192xf32>
    %c0_242 = arith.constant 0 : index
    %c0_243 = arith.constant 0 : index
    %432 = vector.load %arg8[%c0_242, %c0_243] : memref<256x192xf32, #tpu.memory_space<vmem>>, vector<32x128xf32>
    %433 = vector.extract_strided_slice %431 {offsets = [0, 0], sizes = [32, 128], strides = [1, 1]} : vector<32x192xf32> to vector<32x128xf32>
    %434 = arith.addf %432, %433 : vector<32x128xf32>
    %cst_244 = arith.constant 5.000000e-01 : f32
    %435 = vector.broadcast %cst_244 : f32 to vector<32x128xf32>
    %436 = arith.mulf %435, %434 : vector<32x128xf32>
    %437 = math.tanh %436 : vector<32x128xf32>
    %cst_245 = arith.constant 5.000000e-01 : f32
    %438 = vector.broadcast %cst_245 : f32 to vector<32x128xf32>
    %439 = arith.mulf %438, %437 : vector<32x128xf32>
    %cst_246 = arith.constant 5.000000e-01 : f32
    %440 = vector.broadcast %cst_246 : f32 to vector<32x128xf32>
    %441 = arith.addf %439, %440 : vector<32x128xf32>
    %442 = vector.extract_strided_slice %441 {offsets = [0, 0], sizes = [32, 64], strides = [1, 1]} : vector<32x128xf32> to vector<32x64xf32>
    %443 = vector.extract_strided_slice %441 {offsets = [0, 64], sizes = [32, 64], strides = [1, 1]} : vector<32x128xf32> to vector<32x64xf32>
    %c0_247 = arith.constant 0 : index
    %c128_248 = arith.constant 128 : index
    %444 = vector.load %arg8[%c0_247, %c128_248] : memref<256x192xf32, #tpu.memory_space<vmem>>, vector<32x64xf32>
    %445 = vector.extract_strided_slice %431 {offsets = [0, 128], sizes = [32, 64], strides = [1, 1]} : vector<32x192xf32> to vector<32x64xf32>
    %446 = arith.addf %445, %428 : vector<32x64xf32>
    %447 = arith.mulf %442, %446 : vector<32x64xf32>
    %448 = arith.addf %444, %447 : vector<32x64xf32>
    %449 = math.tanh %448 : vector<32x64xf32>
    %cst_249 = arith.constant 1.000000e+00 : f32
    %450 = vector.broadcast %cst_249 : f32 to vector<32x64xf32>
    %451 = arith.subf %450, %443 : vector<32x64xf32>
    %452 = arith.mulf %451, %449 : vector<32x64xf32>
    %453 = arith.mulf %443, %429 : vector<32x64xf32>
    %454 = arith.addf %452, %453 : vector<32x64xf32>
    %455 = vector.extract_strided_slice %454 {offsets = [0, 0], sizes = [32, 32], strides = [1, 1]} : vector<32x64xf32> to vector<32x32xf32>
    %c0_250 = arith.constant 0 : index
    %c0_251 = arith.constant 0 : index
    %456 = vector.load %arg9[%c0_250, %c0_251] : memref<256x64xf32, #tpu.memory_space<vmem>>, vector<32x32xf32>
    tpu.vector_store %arg9[%c0_250, %c0_251], %455 {strides = array<i32>} : memref<256x64xf32, #tpu.memory_space<vmem>>, vector<32x32xf32>,
    %457 = vector.extract_strided_slice %454 {offsets = [0, 32], sizes = [32, 32], strides = [1, 1]} : vector<32x64xf32> to vector<32x32xf32>
    %c224_252 = arith.constant 224 : index
    %c32_253 = arith.constant 32 : index
    %458 = vector.load %arg9[%c224_252, %c32_253] : memref<256x64xf32, #tpu.memory_space<vmem>>, vector<32x32xf32>
    tpu.vector_store %arg9[%c224_252, %c32_253], %457 {strides = array<i32>} : memref<256x64xf32, #tpu.memory_space<vmem>>, vector<32x32xf32>,
    %459 = arith.truncf %454 : vector<32x64xf32> to vector<32x64xbf16>
    %cst_254 = arith.constant dense<0.000000e+00> : vector<32x192xf32>
    %460 = tpu.matmul %459, %421, %cst_254 {dimension_numbers = #tpu.dot_dimension_numbers<[1], [0], [0], [1], [0, 0, 1, 1], [], []>} : vector<32x64xbf16>, vector<64x192xbf16>, vector<32x192xf32> -> vector<32x192xf32>
    %c32_255 = arith.constant 32 : index
    %c0_256 = arith.constant 0 : index
    %461 = vector.load %arg8[%c32_255, %c0_256] : memref<256x192xf32, #tpu.memory_space<vmem>>, vector<32x128xf32>
    %462 = vector.extract_strided_slice %460 {offsets = [0, 0], sizes = [32, 128], strides = [1, 1]} : vector<32x192xf32> to vector<32x128xf32>
    %463 = arith.addf %461, %462 : vector<32x128xf32>
    %cst_257 = arith.constant 5.000000e-01 : f32
    %464 = vector.broadcast %cst_257 : f32 to vector<32x128xf32>
    %465 = arith.mulf %464, %463 : vector<32x128xf32>
    %466 = math.tanh %465 : vector<32x128xf32>
    %cst_258 = arith.constant 5.000000e-01 : f32
    %467 = vector.broadcast %cst_258 : f32 to vector<32x128xf32>
    %468 = arith.mulf %467, %466 : vector<32x128xf32>
    %cst_259 = arith.constant 5.000000e-01 : f32
    %469 = vector.broadcast %cst_259 : f32 to vector<32x128xf32>
    %470 = arith.addf %468, %469 : vector<32x128xf32>
    %471 = vector.extract_strided_slice %470 {offsets = [0, 0], sizes = [32, 64], strides = [1, 1]} : vector<32x128xf32> to vector<32x64xf32>
    %472 = vector.extract_strided_slice %470 {offsets = [0, 64], sizes = [32, 64], strides = [1, 1]} : vector<32x128xf32> to vector<32x64xf32>
    %c32_260 = arith.constant 32 : index
    %c128_261 = arith.constant 128 : index
    %473 = vector.load %arg8[%c32_260, %c128_261] : memref<256x192xf32, #tpu.memory_space<vmem>>, vector<32x64xf32>
    %474 = vector.extract_strided_slice %460 {offsets = [0, 128], sizes = [32, 64], strides = [1, 1]} : vector<32x192xf32> to vector<32x64xf32>
    %475 = arith.addf %474, %428 : vector<32x64xf32>
    %476 = arith.mulf %471, %475 : vector<32x64xf32>
    %477 = arith.addf %473, %476 : vector<32x64xf32>
    %478 = math.tanh %477 : vector<32x64xf32>
    %cst_262 = arith.constant 1.000000e+00 : f32
    %479 = vector.broadcast %cst_262 : f32 to vector<32x64xf32>
    %480 = arith.subf %479, %472 : vector<32x64xf32>
    %481 = arith.mulf %480, %478 : vector<32x64xf32>
    %482 = arith.mulf %472, %454 : vector<32x64xf32>
    %483 = arith.addf %481, %482 : vector<32x64xf32>
    %484 = vector.extract_strided_slice %483 {offsets = [0, 0], sizes = [32, 32], strides = [1, 1]} : vector<32x64xf32> to vector<32x32xf32>
    %c32_263 = arith.constant 32 : index
    %c0_264 = arith.constant 0 : index
    %485 = vector.load %arg9[%c32_263, %c0_264] : memref<256x64xf32, #tpu.memory_space<vmem>>, vector<32x32xf32>
    tpu.vector_store %arg9[%c32_263, %c0_264], %484 {strides = array<i32>} : memref<256x64xf32, #tpu.memory_space<vmem>>, vector<32x32xf32>,
    %486 = vector.extract_strided_slice %483 {offsets = [0, 32], sizes = [32, 32], strides = [1, 1]} : vector<32x64xf32> to vector<32x32xf32>
    %c192_265 = arith.constant 192 : index
    %c32_266 = arith.constant 32 : index
    %487 = vector.load %arg9[%c192_265, %c32_266] : memref<256x64xf32, #tpu.memory_space<vmem>>, vector<32x32xf32>
    tpu.vector_store %arg9[%c192_265, %c32_266], %486 {strides = array<i32>} : memref<256x64xf32, #tpu.memory_space<vmem>>, vector<32x32xf32>,
    %488 = arith.truncf %483 : vector<32x64xf32> to vector<32x64xbf16>
    %cst_267 = arith.constant dense<0.000000e+00> : vector<32x192xf32>
    %489 = tpu.matmul %488, %421, %cst_267 {dimension_numbers = #tpu.dot_dimension_numbers<[1], [0], [0], [1], [0, 0, 1, 1], [], []>} : vector<32x64xbf16>, vector<64x192xbf16>, vector<32x192xf32> -> vector<32x192xf32>
    %c64_268 = arith.constant 64 : index
    %c0_269 = arith.constant 0 : index
    %490 = vector.load %arg8[%c64_268, %c0_269] : memref<256x192xf32, #tpu.memory_space<vmem>>, vector<32x128xf32>
    %491 = vector.extract_strided_slice %489 {offsets = [0, 0], sizes = [32, 128], strides = [1, 1]} : vector<32x192xf32> to vector<32x128xf32>
    %492 = arith.addf %490, %491 : vector<32x128xf32>
    %cst_270 = arith.constant 5.000000e-01 : f32
    %493 = vector.broadcast %cst_270 : f32 to vector<32x128xf32>
    %494 = arith.mulf %493, %492 : vector<32x128xf32>
    %495 = math.tanh %494 : vector<32x128xf32>
    %cst_271 = arith.constant 5.000000e-01 : f32
    %496 = vector.broadcast %cst_271 : f32 to vector<32x128xf32>
    %497 = arith.mulf %496, %495 : vector<32x128xf32>
    %cst_272 = arith.constant 5.000000e-01 : f32
    %498 = vector.broadcast %cst_272 : f32 to vector<32x128xf32>
    %499 = arith.addf %497, %498 : vector<32x128xf32>
    %500 = vector.extract_strided_slice %499 {offsets = [0, 0], sizes = [32, 64], strides = [1, 1]} : vector<32x128xf32> to vector<32x64xf32>
    %501 = vector.extract_strided_slice %499 {offsets = [0, 64], sizes = [32, 64], strides = [1, 1]} : vector<32x128xf32> to vector<32x64xf32>
    %c64_273 = arith.constant 64 : index
    %c128_274 = arith.constant 128 : index
    %502 = vector.load %arg8[%c64_273, %c128_274] : memref<256x192xf32, #tpu.memory_space<vmem>>, vector<32x64xf32>
    %503 = vector.extract_strided_slice %489 {offsets = [0, 128], sizes = [32, 64], strides = [1, 1]} : vector<32x192xf32> to vector<32x64xf32>
    %504 = arith.addf %503, %428 : vector<32x64xf32>
    %505 = arith.mulf %500, %504 : vector<32x64xf32>
    %506 = arith.addf %502, %505 : vector<32x64xf32>
    %507 = math.tanh %506 : vector<32x64xf32>
    %cst_275 = arith.constant 1.000000e+00 : f32
    %508 = vector.broadcast %cst_275 : f32 to vector<32x64xf32>
    %509 = arith.subf %508, %501 : vector<32x64xf32>
    %510 = arith.mulf %509, %507 : vector<32x64xf32>
    %511 = arith.mulf %501, %483 : vector<32x64xf32>
    %512 = arith.addf %510, %511 : vector<32x64xf32>
    %513 = vector.extract_strided_slice %512 {offsets = [0, 0], sizes = [32, 32], strides = [1, 1]} : vector<32x64xf32> to vector<32x32xf32>
    %c64_276 = arith.constant 64 : index
    %c0_277 = arith.constant 0 : index
    %514 = vector.load %arg9[%c64_276, %c0_277] : memref<256x64xf32, #tpu.memory_space<vmem>>, vector<32x32xf32>
    tpu.vector_store %arg9[%c64_276, %c0_277], %513 {strides = array<i32>} : memref<256x64xf32, #tpu.memory_space<vmem>>, vector<32x32xf32>,
    %515 = vector.extract_strided_slice %512 {offsets = [0, 32], sizes = [32, 32], strides = [1, 1]} : vector<32x64xf32> to vector<32x32xf32>
    %c160_278 = arith.constant 160 : index
    %c32_279 = arith.constant 32 : index
    %516 = vector.load %arg9[%c160_278, %c32_279] : memref<256x64xf32, #tpu.memory_space<vmem>>, vector<32x32xf32>
    tpu.vector_store %arg9[%c160_278, %c32_279], %515 {strides = array<i32>} : memref<256x64xf32, #tpu.memory_space<vmem>>, vector<32x32xf32>,
    %517 = arith.truncf %512 : vector<32x64xf32> to vector<32x64xbf16>
    %cst_280 = arith.constant dense<0.000000e+00> : vector<32x192xf32>
    %518 = tpu.matmul %517, %421, %cst_280 {dimension_numbers = #tpu.dot_dimension_numbers<[1], [0], [0], [1], [0, 0, 1, 1], [], []>} : vector<32x64xbf16>, vector<64x192xbf16>, vector<32x192xf32> -> vector<32x192xf32>
    %c96_281 = arith.constant 96 : index
    %c0_282 = arith.constant 0 : index
    %519 = vector.load %arg8[%c96_281, %c0_282] : memref<256x192xf32, #tpu.memory_space<vmem>>, vector<32x128xf32>
    %520 = vector.extract_strided_slice %518 {offsets = [0, 0], sizes = [32, 128], strides = [1, 1]} : vector<32x192xf32> to vector<32x128xf32>
    %521 = arith.addf %519, %520 : vector<32x128xf32>
    %cst_283 = arith.constant 5.000000e-01 : f32
    %522 = vector.broadcast %cst_283 : f32 to vector<32x128xf32>
    %523 = arith.mulf %522, %521 : vector<32x128xf32>
    %524 = math.tanh %523 : vector<32x128xf32>
    %cst_284 = arith.constant 5.000000e-01 : f32
    %525 = vector.broadcast %cst_284 : f32 to vector<32x128xf32>
    %526 = arith.mulf %525, %524 : vector<32x128xf32>
    %cst_285 = arith.constant 5.000000e-01 : f32
    %527 = vector.broadcast %cst_285 : f32 to vector<32x128xf32>
    %528 = arith.addf %526, %527 : vector<32x128xf32>
    %529 = vector.extract_strided_slice %528 {offsets = [0, 0], sizes = [32, 64], strides = [1, 1]} : vector<32x128xf32> to vector<32x64xf32>
    %530 = vector.extract_strided_slice %528 {offsets = [0, 64], sizes = [32, 64], strides = [1, 1]} : vector<32x128xf32> to vector<32x64xf32>
    %c96_286 = arith.constant 96 : index
    %c128_287 = arith.constant 128 : index
    %531 = vector.load %arg8[%c96_286, %c128_287] : memref<256x192xf32, #tpu.memory_space<vmem>>, vector<32x64xf32>
    %532 = vector.extract_strided_slice %518 {offsets = [0, 128], sizes = [32, 64], strides = [1, 1]} : vector<32x192xf32> to vector<32x64xf32>
    %533 = arith.addf %532, %428 : vector<32x64xf32>
    %534 = arith.mulf %529, %533 : vector<32x64xf32>
    %535 = arith.addf %531, %534 : vector<32x64xf32>
    %536 = math.tanh %535 : vector<32x64xf32>
    %cst_288 = arith.constant 1.000000e+00 : f32
    %537 = vector.broadcast %cst_288 : f32 to vector<32x64xf32>
    %538 = arith.subf %537, %530 : vector<32x64xf32>
    %539 = arith.mulf %538, %536 : vector<32x64xf32>
    %540 = arith.mulf %530, %512 : vector<32x64xf32>
    %541 = arith.addf %539, %540 : vector<32x64xf32>
    %542 = vector.extract_strided_slice %541 {offsets = [0, 0], sizes = [32, 32], strides = [1, 1]} : vector<32x64xf32> to vector<32x32xf32>
    %c96_289 = arith.constant 96 : index
    %c0_290 = arith.constant 0 : index
    %543 = vector.load %arg9[%c96_289, %c0_290] : memref<256x64xf32, #tpu.memory_space<vmem>>, vector<32x32xf32>
    tpu.vector_store %arg9[%c96_289, %c0_290], %542 {strides = array<i32>} : memref<256x64xf32, #tpu.memory_space<vmem>>, vector<32x32xf32>,
    %544 = vector.extract_strided_slice %541 {offsets = [0, 32], sizes = [32, 32], strides = [1, 1]} : vector<32x64xf32> to vector<32x32xf32>
    %c128_291 = arith.constant 128 : index
    %c32_292 = arith.constant 32 : index
    %545 = vector.load %arg9[%c128_291, %c32_292] : memref<256x64xf32, #tpu.memory_space<vmem>>, vector<32x32xf32>
    tpu.vector_store %arg9[%c128_291, %c32_292], %544 {strides = array<i32>} : memref<256x64xf32, #tpu.memory_space<vmem>>, vector<32x32xf32>,
    %546 = arith.truncf %541 : vector<32x64xf32> to vector<32x64xbf16>
    %cst_293 = arith.constant dense<0.000000e+00> : vector<32x192xf32>
    %547 = tpu.matmul %546, %421, %cst_293 {dimension_numbers = #tpu.dot_dimension_numbers<[1], [0], [0], [1], [0, 0, 1, 1], [], []>} : vector<32x64xbf16>, vector<64x192xbf16>, vector<32x192xf32> -> vector<32x192xf32>
    %c128_294 = arith.constant 128 : index
    %c0_295 = arith.constant 0 : index
    %548 = vector.load %arg8[%c128_294, %c0_295] : memref<256x192xf32, #tpu.memory_space<vmem>>, vector<32x128xf32>
    %549 = vector.extract_strided_slice %547 {offsets = [0, 0], sizes = [32, 128], strides = [1, 1]} : vector<32x192xf32> to vector<32x128xf32>
    %550 = arith.addf %548, %549 : vector<32x128xf32>
    %cst_296 = arith.constant 5.000000e-01 : f32
    %551 = vector.broadcast %cst_296 : f32 to vector<32x128xf32>
    %552 = arith.mulf %551, %550 : vector<32x128xf32>
    %553 = math.tanh %552 : vector<32x128xf32>
    %cst_297 = arith.constant 5.000000e-01 : f32
    %554 = vector.broadcast %cst_297 : f32 to vector<32x128xf32>
    %555 = arith.mulf %554, %553 : vector<32x128xf32>
    %cst_298 = arith.constant 5.000000e-01 : f32
    %556 = vector.broadcast %cst_298 : f32 to vector<32x128xf32>
    %557 = arith.addf %555, %556 : vector<32x128xf32>
    %558 = vector.extract_strided_slice %557 {offsets = [0, 0], sizes = [32, 64], strides = [1, 1]} : vector<32x128xf32> to vector<32x64xf32>
    %559 = vector.extract_strided_slice %557 {offsets = [0, 64], sizes = [32, 64], strides = [1, 1]} : vector<32x128xf32> to vector<32x64xf32>
    %c128_299 = arith.constant 128 : index
    %c128_300 = arith.constant 128 : index
    %560 = vector.load %arg8[%c128_299, %c128_300] : memref<256x192xf32, #tpu.memory_space<vmem>>, vector<32x64xf32>
    %561 = vector.extract_strided_slice %547 {offsets = [0, 128], sizes = [32, 64], strides = [1, 1]} : vector<32x192xf32> to vector<32x64xf32>
    %562 = arith.addf %561, %428 : vector<32x64xf32>
    %563 = arith.mulf %558, %562 : vector<32x64xf32>
    %564 = arith.addf %560, %563 : vector<32x64xf32>
    %565 = math.tanh %564 : vector<32x64xf32>
    %cst_301 = arith.constant 1.000000e+00 : f32
    %566 = vector.broadcast %cst_301 : f32 to vector<32x64xf32>
    %567 = arith.subf %566, %559 : vector<32x64xf32>
    %568 = arith.mulf %567, %565 : vector<32x64xf32>
    %569 = arith.mulf %559, %541 : vector<32x64xf32>
    %570 = arith.addf %568, %569 : vector<32x64xf32>
    %571 = vector.extract_strided_slice %570 {offsets = [0, 0], sizes = [32, 32], strides = [1, 1]} : vector<32x64xf32> to vector<32x32xf32>
    %c128_302 = arith.constant 128 : index
    %c0_303 = arith.constant 0 : index
    %572 = vector.load %arg9[%c128_302, %c0_303] : memref<256x64xf32, #tpu.memory_space<vmem>>, vector<32x32xf32>
    tpu.vector_store %arg9[%c128_302, %c0_303], %571 {strides = array<i32>} : memref<256x64xf32, #tpu.memory_space<vmem>>, vector<32x32xf32>,
    %573 = vector.extract_strided_slice %570 {offsets = [0, 32], sizes = [32, 32], strides = [1, 1]} : vector<32x64xf32> to vector<32x32xf32>
    %c96_304 = arith.constant 96 : index
    %c32_305 = arith.constant 32 : index
    %574 = vector.load %arg9[%c96_304, %c32_305] : memref<256x64xf32, #tpu.memory_space<vmem>>, vector<32x32xf32>
    tpu.vector_store %arg9[%c96_304, %c32_305], %573 {strides = array<i32>} : memref<256x64xf32, #tpu.memory_space<vmem>>, vector<32x32xf32>,
    %575 = arith.truncf %570 : vector<32x64xf32> to vector<32x64xbf16>
    %cst_306 = arith.constant dense<0.000000e+00> : vector<32x192xf32>
    %576 = tpu.matmul %575, %421, %cst_306 {dimension_numbers = #tpu.dot_dimension_numbers<[1], [0], [0], [1], [0, 0, 1, 1], [], []>} : vector<32x64xbf16>, vector<64x192xbf16>, vector<32x192xf32> -> vector<32x192xf32>
    %c160_307 = arith.constant 160 : index
    %c0_308 = arith.constant 0 : index
    %577 = vector.load %arg8[%c160_307, %c0_308] : memref<256x192xf32, #tpu.memory_space<vmem>>, vector<32x128xf32>
    %578 = vector.extract_strided_slice %576 {offsets = [0, 0], sizes = [32, 128], strides = [1, 1]} : vector<32x192xf32> to vector<32x128xf32>
    %579 = arith.addf %577, %578 : vector<32x128xf32>
    %cst_309 = arith.constant 5.000000e-01 : f32
    %580 = vector.broadcast %cst_309 : f32 to vector<32x128xf32>
    %581 = arith.mulf %580, %579 : vector<32x128xf32>
    %582 = math.tanh %581 : vector<32x128xf32>
    %cst_310 = arith.constant 5.000000e-01 : f32
    %583 = vector.broadcast %cst_310 : f32 to vector<32x128xf32>
    %584 = arith.mulf %583, %582 : vector<32x128xf32>
    %cst_311 = arith.constant 5.000000e-01 : f32
    %585 = vector.broadcast %cst_311 : f32 to vector<32x128xf32>
    %586 = arith.addf %584, %585 : vector<32x128xf32>
    %587 = vector.extract_strided_slice %586 {offsets = [0, 0], sizes = [32, 64], strides = [1, 1]} : vector<32x128xf32> to vector<32x64xf32>
    %588 = vector.extract_strided_slice %586 {offsets = [0, 64], sizes = [32, 64], strides = [1, 1]} : vector<32x128xf32> to vector<32x64xf32>
    %c160_312 = arith.constant 160 : index
    %c128_313 = arith.constant 128 : index
    %589 = vector.load %arg8[%c160_312, %c128_313] : memref<256x192xf32, #tpu.memory_space<vmem>>, vector<32x64xf32>
    %590 = vector.extract_strided_slice %576 {offsets = [0, 128], sizes = [32, 64], strides = [1, 1]} : vector<32x192xf32> to vector<32x64xf32>
    %591 = arith.addf %590, %428 : vector<32x64xf32>
    %592 = arith.mulf %587, %591 : vector<32x64xf32>
    %593 = arith.addf %589, %592 : vector<32x64xf32>
    %594 = math.tanh %593 : vector<32x64xf32>
    %cst_314 = arith.constant 1.000000e+00 : f32
    %595 = vector.broadcast %cst_314 : f32 to vector<32x64xf32>
    %596 = arith.subf %595, %588 : vector<32x64xf32>
    %597 = arith.mulf %596, %594 : vector<32x64xf32>
    %598 = arith.mulf %588, %570 : vector<32x64xf32>
    %599 = arith.addf %597, %598 : vector<32x64xf32>
    %600 = vector.extract_strided_slice %599 {offsets = [0, 0], sizes = [32, 32], strides = [1, 1]} : vector<32x64xf32> to vector<32x32xf32>
    %c160_315 = arith.constant 160 : index
    %c0_316 = arith.constant 0 : index
    %601 = vector.load %arg9[%c160_315, %c0_316] : memref<256x64xf32, #tpu.memory_space<vmem>>, vector<32x32xf32>
    tpu.vector_store %arg9[%c160_315, %c0_316], %600 {strides = array<i32>} : memref<256x64xf32, #tpu.memory_space<vmem>>, vector<32x32xf32>,
    %602 = vector.extract_strided_slice %599 {offsets = [0, 32], sizes = [32, 32], strides = [1, 1]} : vector<32x64xf32> to vector<32x32xf32>
    %c64_317 = arith.constant 64 : index
    %c32_318 = arith.constant 32 : index
    %603 = vector.load %arg9[%c64_317, %c32_318] : memref<256x64xf32, #tpu.memory_space<vmem>>, vector<32x32xf32>
    tpu.vector_store %arg9[%c64_317, %c32_318], %602 {strides = array<i32>} : memref<256x64xf32, #tpu.memory_space<vmem>>, vector<32x32xf32>,
    %604 = arith.truncf %599 : vector<32x64xf32> to vector<32x64xbf16>
    %cst_319 = arith.constant dense<0.000000e+00> : vector<32x192xf32>
    %605 = tpu.matmul %604, %421, %cst_319 {dimension_numbers = #tpu.dot_dimension_numbers<[1], [0], [0], [1], [0, 0, 1, 1], [], []>} : vector<32x64xbf16>, vector<64x192xbf16>, vector<32x192xf32> -> vector<32x192xf32>
    %c192_320 = arith.constant 192 : index
    %c0_321 = arith.constant 0 : index
    %606 = vector.load %arg8[%c192_320, %c0_321] : memref<256x192xf32, #tpu.memory_space<vmem>>, vector<32x128xf32>
    %607 = vector.extract_strided_slice %605 {offsets = [0, 0], sizes = [32, 128], strides = [1, 1]} : vector<32x192xf32> to vector<32x128xf32>
    %608 = arith.addf %606, %607 : vector<32x128xf32>
    %cst_322 = arith.constant 5.000000e-01 : f32
    %609 = vector.broadcast %cst_322 : f32 to vector<32x128xf32>
    %610 = arith.mulf %609, %608 : vector<32x128xf32>
    %611 = math.tanh %610 : vector<32x128xf32>
    %cst_323 = arith.constant 5.000000e-01 : f32
    %612 = vector.broadcast %cst_323 : f32 to vector<32x128xf32>
    %613 = arith.mulf %612, %611 : vector<32x128xf32>
    %cst_324 = arith.constant 5.000000e-01 : f32
    %614 = vector.broadcast %cst_324 : f32 to vector<32x128xf32>
    %615 = arith.addf %613, %614 : vector<32x128xf32>
    %616 = vector.extract_strided_slice %615 {offsets = [0, 0], sizes = [32, 64], strides = [1, 1]} : vector<32x128xf32> to vector<32x64xf32>
    %617 = vector.extract_strided_slice %615 {offsets = [0, 64], sizes = [32, 64], strides = [1, 1]} : vector<32x128xf32> to vector<32x64xf32>
    %c192_325 = arith.constant 192 : index
    %c128_326 = arith.constant 128 : index
    %618 = vector.load %arg8[%c192_325, %c128_326] : memref<256x192xf32, #tpu.memory_space<vmem>>, vector<32x64xf32>
    %619 = vector.extract_strided_slice %605 {offsets = [0, 128], sizes = [32, 64], strides = [1, 1]} : vector<32x192xf32> to vector<32x64xf32>
    %620 = arith.addf %619, %428 : vector<32x64xf32>
    %621 = arith.mulf %616, %620 : vector<32x64xf32>
    %622 = arith.addf %618, %621 : vector<32x64xf32>
    %623 = math.tanh %622 : vector<32x64xf32>
    %cst_327 = arith.constant 1.000000e+00 : f32
    %624 = vector.broadcast %cst_327 : f32 to vector<32x64xf32>
    %625 = arith.subf %624, %617 : vector<32x64xf32>
    %626 = arith.mulf %625, %623 : vector<32x64xf32>
    %627 = arith.mulf %617, %599 : vector<32x64xf32>
    %628 = arith.addf %626, %627 : vector<32x64xf32>
    %629 = vector.extract_strided_slice %628 {offsets = [0, 0], sizes = [32, 32], strides = [1, 1]} : vector<32x64xf32> to vector<32x32xf32>
    %c192_328 = arith.constant 192 : index
    %c0_329 = arith.constant 0 : index
    %630 = vector.load %arg9[%c192_328, %c0_329] : memref<256x64xf32, #tpu.memory_space<vmem>>, vector<32x32xf32>
    tpu.vector_store %arg9[%c192_328, %c0_329], %629 {strides = array<i32>} : memref<256x64xf32, #tpu.memory_space<vmem>>, vector<32x32xf32>,
    %631 = vector.extract_strided_slice %628 {offsets = [0, 32], sizes = [32, 32], strides = [1, 1]} : vector<32x64xf32> to vector<32x32xf32>
    %c32_330 = arith.constant 32 : index
    %c32_331 = arith.constant 32 : index
    %632 = vector.load %arg9[%c32_330, %c32_331] : memref<256x64xf32, #tpu.memory_space<vmem>>, vector<32x32xf32>
    tpu.vector_store %arg9[%c32_330, %c32_331], %631 {strides = array<i32>} : memref<256x64xf32, #tpu.memory_space<vmem>>, vector<32x32xf32>,
    %633 = arith.truncf %628 : vector<32x64xf32> to vector<32x64xbf16>
    %cst_332 = arith.constant dense<0.000000e+00> : vector<32x192xf32>
    %634 = tpu.matmul %633, %421, %cst_332 {dimension_numbers = #tpu.dot_dimension_numbers<[1], [0], [0], [1], [0, 0, 1, 1], [], []>} : vector<32x64xbf16>, vector<64x192xbf16>, vector<32x192xf32> -> vector<32x192xf32>
    %c224_333 = arith.constant 224 : index
    %c0_334 = arith.constant 0 : index
    %635 = vector.load %arg8[%c224_333, %c0_334] : memref<256x192xf32, #tpu.memory_space<vmem>>, vector<32x128xf32>
    %636 = vector.extract_strided_slice %634 {offsets = [0, 0], sizes = [32, 128], strides = [1, 1]} : vector<32x192xf32> to vector<32x128xf32>
    %637 = arith.addf %635, %636 : vector<32x128xf32>
    %cst_335 = arith.constant 5.000000e-01 : f32
    %638 = vector.broadcast %cst_335 : f32 to vector<32x128xf32>
    %639 = arith.mulf %638, %637 : vector<32x128xf32>
    %640 = math.tanh %639 : vector<32x128xf32>
    %cst_336 = arith.constant 5.000000e-01 : f32
    %641 = vector.broadcast %cst_336 : f32 to vector<32x128xf32>
    %642 = arith.mulf %641, %640 : vector<32x128xf32>
    %cst_337 = arith.constant 5.000000e-01 : f32
    %643 = vector.broadcast %cst_337 : f32 to vector<32x128xf32>
    %644 = arith.addf %642, %643 : vector<32x128xf32>
    %645 = vector.extract_strided_slice %644 {offsets = [0, 0], sizes = [32, 64], strides = [1, 1]} : vector<32x128xf32> to vector<32x64xf32>
    %646 = vector.extract_strided_slice %644 {offsets = [0, 64], sizes = [32, 64], strides = [1, 1]} : vector<32x128xf32> to vector<32x64xf32>
    %c224_338 = arith.constant 224 : index
    %c128_339 = arith.constant 128 : index
    %647 = vector.load %arg8[%c224_338, %c128_339] : memref<256x192xf32, #tpu.memory_space<vmem>>, vector<32x64xf32>
    %648 = vector.extract_strided_slice %634 {offsets = [0, 128], sizes = [32, 64], strides = [1, 1]} : vector<32x192xf32> to vector<32x64xf32>
    %649 = arith.addf %648, %428 : vector<32x64xf32>
    %650 = arith.mulf %645, %649 : vector<32x64xf32>
    %651 = arith.addf %647, %650 : vector<32x64xf32>
    %652 = math.tanh %651 : vector<32x64xf32>
    %cst_340 = arith.constant 1.000000e+00 : f32
    %653 = vector.broadcast %cst_340 : f32 to vector<32x64xf32>
    %654 = arith.subf %653, %646 : vector<32x64xf32>
    %655 = arith.mulf %654, %652 : vector<32x64xf32>
    %656 = arith.mulf %646, %628 : vector<32x64xf32>
    %657 = arith.addf %655, %656 : vector<32x64xf32>
    %658 = vector.extract_strided_slice %657 {offsets = [0, 0], sizes = [32, 32], strides = [1, 1]} : vector<32x64xf32> to vector<32x32xf32>
    %c224_341 = arith.constant 224 : index
    %c0_342 = arith.constant 0 : index
    %659 = vector.load %arg9[%c224_341, %c0_342] : memref<256x64xf32, #tpu.memory_space<vmem>>, vector<32x32xf32>
    tpu.vector_store %arg9[%c224_341, %c0_342], %658 {strides = array<i32>} : memref<256x64xf32, #tpu.memory_space<vmem>>, vector<32x32xf32>,
    %660 = vector.extract_strided_slice %657 {offsets = [0, 32], sizes = [32, 32], strides = [1, 1]} : vector<32x64xf32> to vector<32x32xf32>
    %c0_343 = arith.constant 0 : index
    %c32_344 = arith.constant 32 : index
    %661 = vector.load %arg9[%c0_343, %c32_344] : memref<256x64xf32, #tpu.memory_space<vmem>>, vector<32x32xf32>
    tpu.vector_store %arg9[%c0_343, %c32_344], %660 {strides = array<i32>} : memref<256x64xf32, #tpu.memory_space<vmem>>, vector<32x32xf32>,
    %c0_345 = arith.constant 0 : index
    %c32_346 = arith.constant 32 : index
    %662 = vector.load %arg2[%c0_345, %c32_346] : memref<4x192xf32, #tpu.memory_space<vmem>>, vector<1x64xf32>
    %c0_347 = arith.constant 0 : index
    %c96_348 = arith.constant 96 : index
    %663 = vector.load %arg2[%c0_347, %c96_348] : memref<4x192xf32, #tpu.memory_space<vmem>>, vector<1x1xf32>
    %c0_349 = arith.constant 0 : index
    %c0_350 = arith.constant 0 : index
    %664 = vector.load %arg9[%c0_349, %c0_350] : memref<256x64xf32, #tpu.memory_space<vmem>>, vector<256x64xf32>
    %665 = vector.broadcast %662 : vector<1x64xf32> to vector<256x64xf32>
    %666 = arith.mulf %664, %665 : vector<256x64xf32>
    %cst_351 = arith.constant dense<0.000000e+00> : vector<256xf32>
    %667 = vector.multi_reduction <add>, %666, %cst_351 [1] : vector<256x64xf32> to vector<256xf32>
    %668 = vector.shape_cast %667 : vector<256xf32> to vector<256x1xf32>
    %669 = vector.broadcast %663 : vector<1x1xf32> to vector<256x1xf32>
    %670 = arith.addf %668, %669 : vector<256x1xf32>
    %cst_352 = arith.constant -1.000000e+01 : f32
    %cst_353 = arith.constant 1.000000e+01 : f32
    %671 = vector.broadcast %cst_352 : f32 to vector<256x1xf32>
    %672 = arith.maximumf %671, %670 : vector<256x1xf32>
    %673 = vector.broadcast %cst_353 : f32 to vector<256x1xf32>
    %674 = arith.minimumf %673, %672 : vector<256x1xf32>
    %c0_354 = arith.constant 0 : index
    %c0_355 = arith.constant 0 : index
    %675 = vector.load %arg4[%c0_354, %c0_355] : memref<256x1xf32, #tpu.memory_space<vmem>>, vector<256x1xf32>
    tpu.vector_store %arg4[%c0_354, %c0_355], %674 {strides = array<i32>} : memref<256x1xf32, #tpu.memory_space<vmem>>, vector<256x1xf32>,
    return
  }
}

</mosaic_0001>

<llo_original>
// kernel: rnn_disc_forward.1
$region0: #{rnn_disc_forward.1}
  #allocation0 [shape = 'u32[]', space=smem, size = 0x4, offset = 0x4, fixed_abs, tag = 'smem constant byte address 0x4 - core index']
  #allocation1 [shape = 'u32[144,128]{1,0:T(1,128)}', space=vmem, size = 0x12000, scoped, tag = 'internal scratch']
  #allocation2 [shape = 'f32[256,32]{1,0:T(8,128)}', space=vmem, size = 0x20000, scoped, tag = 'scratch operand']
  #allocation3 [shape = 'bf16[256,64]{1,0:T(8,128)(2,1)}', space=vmem, size = 0x10000, scoped, tag = 'scratch operand']
  #allocation4 [shape = 'bf16[256,128]{1,0:T(8,128)(2,1)}', space=vmem, size = 0x10000, scoped, tag = 'scratch operand']
  #allocation5 [shape = 'f32[256,192]{1,0:T(8,128)}', space=vmem, size = 0x40000, scoped, tag = 'scratch operand']
  #allocation6 [shape = 'f32[256,64]{1,0:T(8,128)}', space=vmem, size = 0x20000, scoped, tag = 'scratch operand']
  %s0 = inlined_call_operand.vmem [shape: f32[256,12], index: 0, kind: input, shape index: {}]
  %s1 = inlined_call_operand.vmem [shape: bf16[336,192], index: 1, kind: input, shape index: {}]
  %s2 = inlined_call_operand.vmem [shape: f32[4,192], index: 2, kind: input, shape index: {}]
  %s3 = inlined_call_operand.vmem [shape: f32[32,2], index: 3, kind: input, shape index: {}]
  %s4 = inlined_call_operand.vmem [shape: f32[256,1], index: 4, kind: output, shape index: {}]
  %s5 = sld [smem:[#allocation0]]
  $region26: #{rnn_disc_forward.1} parent=0
    _
  %s7 = ssub.s32 1, %s5
  %s8 = scalar_select 0, %s7, %s5
  // Predicated region
  $region2: #{rnn_disc_forward.1} parent=0 // pred_check
    _
  $region3: #{rnn_disc_forward.1} parent=0 // pred_check_branch
    %10 = sbr.rel (0) target = $region5
  $region4: #{rnn_disc_forward.1} parent=0 // pred_region
    _
  $region5: #{rnn_disc_forward.1} parent=0 // pred_fallthru
    _
  // Predicated region
  $region6: #{rnn_disc_forward.1} parent=0 // pred_check
    _
  $region7: #{rnn_disc_forward.1} parent=0 // pred_check_branch
    %12 = sbr.rel (0) target = $region9
  $region8: #{rnn_disc_forward.1} parent=0 // pred_region
    _
  $region9: #{rnn_disc_forward.1} parent=0 // pred_fallthru
    _
  // Predicated region
  $region10: #{rnn_disc_forward.1} parent=0 // pred_check
    _
  $region11: #{rnn_disc_forward.1} parent=0 // pred_check_branch
    %14 = sbr.rel (0) target = $region13
  $region12: #{rnn_disc_forward.1} parent=0 // pred_region
    _
  $region13: #{rnn_disc_forward.1} parent=0 // pred_fallthru
    _
  // Predicated region
  $region14: #{rnn_disc_forward.1} parent=0 // pred_check
    _
  $region15: #{rnn_disc_forward.1} parent=0 // pred_check_branch
    %16 = sbr.rel (0) target = $region17
  $region16: #{rnn_disc_forward.1} parent=0 // pred_region
    _
  $region17: #{rnn_disc_forward.1} parent=0 // pred_fallthru
    _
  %v18 = vld [vmem:[%s1] sm:$0xf]
  %v19 = vld [vmem:[%s1 + $0x8] sm:$0x3]
  %v20 = vld [vmem:[%s2] sm:$0x1]
  %v21 = vld [vmem:[%s0] sm:$0xff]
  %v22 = vld [vmem:[%s0 + $0x8] sm:$0xff]
  %v23 = vld [vmem:[%s0 + $0x10] sm:$0xff]
  %v24 = vld [vmem:[%s0 + $0x18] sm:$0xff]
  %v25 = vld [vmem:[%s0 + $0x20] sm:$0xff]
  %v26 = vld [vmem:[%s0 + $0x28] sm:$0xff]
  %v27 = vld [vmem:[%s0 + $0x30] sm:$0xff]
  %v28 = vld [vmem:[%s0 + $0x38] sm:$0xff]
  %v29 = vld [vmem:[%s0 + $0x40] sm:$0xff]
  %v30 = vld [vmem:[%s0 + $0x48] sm:$0xff]
  %v31 = vld [vmem:[%s0 + $0x50] sm:$0xff]
  %v32 = vld [vmem:[%s0 + $0x58] sm:$0xff]
  %v33 = vld [vmem:[%s0 + $0x60] sm:$0xff]
  %v34 = vld [vmem:[%s0 + $0x68] sm:$0xff]
  %v35 = vld [vmem:[%s0 + $0x70] sm:$0xff]
  %v36 = vld [vmem:[%s0 + $0x78] sm:$0xff]
  %v37 = vld [vmem:[%s0 + $0x80] sm:$0xff]
  %v38 = vld [vmem:[%s0 + $0x88] sm:$0xff]
  %v39 = vld [vmem:[%s0 + $0x90] sm:$0xff]
  %v40 = vld [vmem:[%s0 + $0x98] sm:$0xff]
  %v41 = vld [vmem:[%s0 + $0xa0] sm:$0xff]
  %v42 = vld [vmem:[%s0 + $0xa8] sm:$0xff]
  %v43 = vld [vmem:[%s0 + $0xb0] sm:$0xff]
  %v44 = vld [vmem:[%s0 + $0xb8] sm:$0xff]
  %v45 = vld [vmem:[%s0 + $0xc0] sm:$0xff]
  %v46 = vld [vmem:[%s0 + $0xc8] sm:$0xff]
  %v47 = vld [vmem:[%s0 + $0xd0] sm:$0xff]
  %v48 = vld [vmem:[%s0 + $0xd8] sm:$0xff]
  %v49 = vld [vmem:[%s0 + $0xe0] sm:$0xff]
  %v50 = vld [vmem:[%s0 + $0xe8] sm:$0xff]
  %v51 = vld [vmem:[%s0 + $0xf0] sm:$0xff]
  %v52 = vld [vmem:[%s0 + $0xf8] sm:$0xff]
  %v53 = vpack.c.bf16 %v22, %v21
  %v54 = vpack.c.bf16 %v24, %v23
  %v55 = vpack.c.bf16 %v26, %v25
  %v56 = vpack.c.bf16 %v28, %v27
  %v57 = vpack.c.bf16 %v30, %v29
  %v58 = vpack.c.bf16 %v32, %v31
  %v59 = vpack.c.bf16 %v34, %v33
  %v60 = vpack.c.bf16 %v36, %v35
  %v61 = vpack.c.bf16 %v38, %v37
  %v62 = vpack.c.bf16 %v40, %v39
  %v63 = vpack.c.bf16 %v42, %v41
  %v64 = vpack.c.bf16 %v44, %v43
  %v65 = vpack.c.bf16 %v46, %v45
  %v66 = vpack.c.bf16 %v48, %v47
  %v67 = vpack.c.bf16 %v50, %v49
  %v68 = vpack.c.bf16 %v52, %v51
  %v69 = vlaneseq
  %v70 = vshrl.u32 %v69, 7
  %v71 = vsub.s32 0, %v70
  %v72 = vrot.slane %v20, %v71
  %v75 = vunpack.c.l.b16 %v18
  %v76 = vunpack.c.l.b16 %v19
  %v77 = vpack.c.b16 %v76, %v75
  %vm78 = vcmask 97280
  %v80 = vsel %vm78, %v53, 0
  %v83 = vsel %vm78, %v54, 0
  %v86 = vsel %vm78, %v55, 0
  %v89 = vsel %vm78, %v56, 0
  %v92 = vsel %vm78, %v57, 0
  %v95 = vsel %vm78, %v58, 0
  %v98 = vsel %vm78, %v59, 0
  %v101 = vsel %vm78, %v60, 0
  %v104 = vsel %vm78, %v61, 0
  %v107 = vsel %vm78, %v62, 0
  %v110 = vsel %vm78, %v63, 0
  %v113 = vsel %vm78, %v64, 0
  %v116 = vsel %vm78, %v65, 0
  %v119 = vsel %vm78, %v66, 0
  %v122 = vsel %vm78, %v67, 0
  %v125 = vsel %vm78, %v68, 0
  %vm127 = vcmask 1045504
  %v129 = vsel %vm127, %v77, 0
  %131 = vmatprep.subr.bf16.mxu0 0
  %132 = vmatpush1.bf16.msra.mxu0 0
  %133 = vmatprep.subr.bf16.mxu0 0
  %134 = vmatpush1.bf16.msra.mxu0 0
  %135 = vmatprep.subr.bf16.mxu0 0
  %136 = vmatpush1.bf16.msra.mxu0 0
  %137 = vmatprep.subr.bf16.mxu0 0
  %138 = vmatpush1.bf16.msra.mxu0 0
  %139 = vmatprep.subr.bf16.mxu0 0
  %140 = vmatpush1.bf16.msra.mxu0 0
  %141 = vmatprep.subr.bf16.mxu0 0
  %142 = vmatpush1.bf16.msra.mxu0 0
  %143 = vmatprep.subr.bf16.mxu0 0
  %144 = vmatpush1.bf16.msra.mxu0 0
  %145 = vmatprep.subr.bf16.mxu0 0
  %146 = vmatpush1.bf16.msra.mxu0 %v129
  %147 = vmatprep.subr.bf16.mxu0 0
  %148 = vmatpush2.bf16.msra.mxu0 0
  %149 = vmatprep.subr.bf16.mxu0 0
  %150 = vmatpush2.bf16.msra.mxu0 0
  %151 = vmatprep.subr.bf16.mxu0 0
  %152 = vmatpush2.bf16.msra.mxu0 0
  %153 = vmatprep.subr.bf16.mxu0 0
  %154 = vmatpush2.bf16.msra.mxu0 0
  %155 = vmatprep.subr.bf16.mxu0 0
  %156 = vmatpush2.bf16.msra.mxu0 0
  %157 = vmatprep.subr.bf16.mxu0 0
  %158 = vmatpush2.bf16.msra.mxu0 0
  %159 = vmatprep.subr.bf16.mxu0 0
  %160 = vmatpush2.bf16.msra.mxu0 0
  %161 = vmatprep.subr.bf16.mxu0 0
  %162 = vmatpush2.bf16.msra.mxu0 0
  %163 = vmatprep.mubr.bf16.mxu0 0
  %164 = vmatmul.mubr.bf16.gmra.mxu0 %v80
  %v165 = vpop.f32.mrf.mxu0
  %v166 = vadd.f32 %v72, %v165
  %v167 = vpop.f32.mrf.mxu0
  %v168 = vpop.f32.mrf.mxu0
  %v169 = vadd.f32 %v72, %v168
  %v170 = vpop.f32.mrf.mxu0
  %171 = vmatprep.mubr.bf16.mxu0 0
  %172 = vmatmul.mubr.bf16.gmra.mxu0 %v83
  %v173 = vpop.f32.mrf.mxu0
  %v174 = vadd.f32 %v72, %v173
  %v175 = vpop.f32.mrf.mxu0
  %v176 = vpop.f32.mrf.mxu0
  %v177 = vadd.f32 %v72, %v176
  %v178 = vpop.f32.mrf.mxu0
  %179 = vmatprep.mubr.bf16.mxu0 0
  %180 = vmatmul.mubr.bf16.gmra.mxu0 %v86
  %v181 = vpop.f32.mrf.mxu0
  %v182 = vadd.f32 %v72, %v181
  %v183 = vpop.f32.mrf.mxu0
  %v184 = vpop.f32.mrf.mxu0
  %v185 = vadd.f32 %v72, %v184
  %v186 = vpop.f32.mrf.mxu0
  %187 = vmatprep.mubr.bf16.mxu0 0
  %188 = vmatmul.mubr.bf16.gmra.mxu0 %v89
  %v189 = vpop.f32.mrf.mxu0
  %v190 = vadd.f32 %v72, %v189
  %v191 = vpop.f32.mrf.mxu0
  %v192 = vpop.f32.mrf.mxu0
  %v193 = vadd.f32 %v72, %v192
  %v194 = vpop.f32.mrf.mxu0
  %195 = vmatprep.mubr.bf16.mxu0 0
  %196 = vmatmul.mubr.bf16.gmra.mxu0 %v92
  %v197 = vpop.f32.mrf.mxu0
  %v198 = vadd.f32 %v72, %v197
  %v199 = vpop.f32.mrf.mxu0
  %v200 = vpop.f32.mrf.mxu0
  %v201 = vadd.f32 %v72, %v200
  %v202 = vpop.f32.mrf.mxu0
  %203 = vmatprep.mubr.bf16.mxu0 0
  %204 = vmatmul.mubr.bf16.gmra.mxu0 %v95
  %v205 = vpop.f32.mrf.mxu0
  %v206 = vadd.f32 %v72, %v205
  %v207 = vpop.f32.mrf.mxu0
  %v208 = vpop.f32.mrf.mxu0
  %v209 = vadd.f32 %v72, %v208
  %v210 = vpop.f32.mrf.mxu0
  %211 = vmatprep.mubr.bf16.mxu0 0
  %212 = vmatmul.mubr.bf16.gmra.mxu0 %v98
  %v213 = vpop.f32.mrf.mxu0
  %v214 = vadd.f32 %v72, %v213
  %v215 = vpop.f32.mrf.mxu0
  %v216 = vpop.f32.mrf.mxu0
  %v217 = vadd.f32 %v72, %v216
  %v218 = vpop.f32.mrf.mxu0
  %219 = vmatprep.mubr.bf16.mxu0 0
  %220 = vmatmul.mubr.bf16.gmra.mxu0 %v101
  %v221 = vpop.f32.mrf.mxu0
  %v222 = vadd.f32 %v72, %v221
  %v223 = vpop.f32.mrf.mxu0
  %v224 = vpop.f32.mrf.mxu0
  %v225 = vadd.f32 %v72, %v224
  %v226 = vpop.f32.mrf.mxu0
  %227 = vmatprep.mubr.bf16.mxu0 0
  %228 = vmatmul.mubr.bf16.gmra.mxu0 %v104
  %v229 = vpop.f32.mrf.mxu0
  %v230 = vadd.f32 %v72, %v229
  %v231 = vpop.f32.mrf.mxu0
  %v232 = vpop.f32.mrf.mxu0
  %v233 = vadd.f32 %v72, %v232
  %v234 = vpop.f32.mrf.mxu0
  %235 = vmatprep.mubr.bf16.mxu0 0
  %236 = vmatmul.mubr.bf16.gmra.mxu0 %v107
  %v237 = vpop.f32.mrf.mxu0
  %v238 = vadd.f32 %v72, %v237
  %v239 = vpop.f32.mrf.mxu0
  %v240 = vpop.f32.mrf.mxu0
  %v241 = vadd.f32 %v72, %v240
  %v242 = vpop.f32.mrf.mxu0
  %243 = vmatprep.mubr.bf16.mxu0 0
  %244 = vmatmul.mubr.bf16.gmra.mxu0 %v110
  %v245 = vpop.f32.mrf.mxu0
  %v246 = vadd.f32 %v72, %v245
  %v247 = vpop.f32.mrf.mxu0
  %v248 = vpop.f32.mrf.mxu0
  %v249 = vadd.f32 %v72, %v248
  %v250 = vpop.f32.mrf.mxu0
  %251 = vmatprep.mubr.bf16.mxu0 0
  %252 = vmatmul.mubr.bf16.gmra.mxu0 %v113
  %v253 = vpop.f32.mrf.mxu0
  %v254 = vadd.f32 %v72, %v253
  %v255 = vpop.f32.mrf.mxu0
  %v256 = vpop.f32.mrf.mxu0
  %v257 = vadd.f32 %v72, %v256
  %v258 = vpop.f32.mrf.mxu0
  %259 = vmatprep.mubr.bf16.mxu0 0
  %260 = vmatmul.mubr.bf16.gmra.mxu0 %v116
  %v261 = vpop.f32.mrf.mxu0
  %v262 = vadd.f32 %v72, %v261
  %v263 = vpop.f32.mrf.mxu0
  %v264 = vpop.f32.mrf.mxu0
  %v265 = vadd.f32 %v72, %v264
  %v266 = vpop.f32.mrf.mxu0
  %267 = vmatprep.mubr.bf16.mxu0 0
  %268 = vmatmul.mubr.bf16.gmra.mxu0 %v119
  %v269 = vpop.f32.mrf.mxu0
  %v270 = vadd.f32 %v72, %v269
  %v271 = vpop.f32.mrf.mxu0
  %v272 = vpop.f32.mrf.mxu0
  %v273 = vadd.f32 %v72, %v272
  %v274 = vpop.f32.mrf.mxu0
  %275 = vmatprep.mubr.bf16.mxu0 0
  %276 = vmatmul.mubr.bf16.gmra.mxu0 %v122
  %v277 = vpop.f32.mrf.mxu0
  %v278 = vadd.f32 %v72, %v277
  %v279 = vpop.f32.mrf.mxu0
  %v280 = vpop.f32.mrf.mxu0
  %v281 = vadd.f32 %v72, %v280
  %v282 = vpop.f32.mrf.mxu0
  %283 = vmatprep.mubr.bf16.mxu0 0
  %284 = vmatmul.mubr.bf16.gmra.mxu0 %v125
  %v285 = vpop.f32.mrf.mxu0
  %v286 = vadd.f32 %v72, %v285
  %v287 = vpop.f32.mrf.mxu0
  %v288 = vpop.f32.mrf.mxu0
  %v289 = vadd.f32 %v72, %v288
  %v290 = vpop.f32.mrf.mxu0
  %291 = vdwg.mxu0
  %vm292 = vcmask 261120
  %293 = vst.msk [vmem:[#allocation2] sm:$0xff] %vm292, %v166
  %294 = vst.msk [vmem:[#allocation2 + $0x8] sm:$0xff] %vm292, %v169
  %295 = vst.msk [vmem:[#allocation2 + $0x10] sm:$0xff] %vm292, %v174
  %296 = vst.msk [vmem:[#allocation2 + $0x18] sm:$0xff] %vm292, %v177
  %297 = vst.msk [vmem:[#allocation2 + $0x20] sm:$0xff] %vm292, %v182
  %298 = vst.msk [vmem:[#allocation2 + $0x28] sm:$0xff] %vm292, %v185
  %299 = vst.msk [vmem:[#allocation2 + $0x30] sm:$0xff] %vm292, %v190
  %300 = vst.msk [vmem:[#allocation2 + $0x38] sm:$0xff] %vm292, %v193
  %301 = vst.msk [vmem:[#allocation2 + $0x40] sm:$0xff] %vm292, %v198
  %302 = vst.msk [vmem:[#allocation2 + $0x48] sm:$0xff] %vm292, %v201
  %303 = vst.msk [vmem:[#allocation2 + $0x50] sm:$0xff] %vm292, %v206
  %304 = vst.msk [vmem:[#allocation2 + $0x58] sm:$0xff] %vm292, %v209
  %305 = vst.msk [vmem:[#allocation2 + $0x60] sm:$0xff] %vm292, %v214
  %306 = vst.msk [vmem:[#allocation2 + $0x68] sm:$0xff] %vm292, %v217
  %307 = vst.msk [vmem:[#allocation2 + $0x70] sm:$0xff] %vm292, %v222
  %308 = vst.msk [vmem:[#allocation2 + $0x78] sm:$0xff] %vm292, %v225
  %309 = vst.msk [vmem:[#allocation2 + $0x80] sm:$0xff] %vm292, %v230
  %310 = vst.msk [vmem:[#allocation2 + $0x88] sm:$0xff] %vm292, %v233
  %311 = vst.msk [vmem:[#allocation2 + $0x90] sm:$0xff] %vm292, %v238
  %312 = vst.msk [vmem:[#allocation2 + $0x98] sm:$0xff] %vm292, %v241
  %313 = vst.msk [vmem:[#allocation2 + $0xa0] sm:$0xff] %vm292, %v246
  %314 = vst.msk [vmem:[#allocation2 + $0xa8] sm:$0xff] %vm292, %v249
  %315 = vst.msk [vmem:[#allocation2 + $0xb0] sm:$0xff] %vm292, %v254
  %316 = vst.msk [vmem:[#allocation2 + $0xb8] sm:$0xff] %vm292, %v257
  %317 = vst.msk [vmem:[#allocation2 + $0xc0] sm:$0xff] %vm292, %v262
  %318 = vst.msk [vmem:[#allocation2 + $0xc8] sm:$0xff] %vm292, %v265
  %319 = vst.msk [vmem:[#allocation2 + $0xd0] sm:$0xff] %vm292, %v270
  %320 = vst.msk [vmem:[#allocation2 + $0xd8] sm:$0xff] %vm292, %v273
  %321 = vst.msk [vmem:[#allocation2 + $0xe0] sm:$0xff] %vm292, %v278
  %322 = vst.msk [vmem:[#allocation2 + $0xe8] sm:$0xff] %vm292, %v281
  %323 = vst.msk [vmem:[#allocation2 + $0xf0] sm:$0xff] %vm292, %v286
  %324 = vst.msk [vmem:[#allocation2 + $0xf8] sm:$0xff] %vm292, %v289
  %v325 = vld [vmem:[#allocation2] sm:$0xff]
  %v326 = vld [vmem:[#allocation2 + $0x8] sm:$0xff]
  %v327 = vld [vmem:[#allocation2 + $0x10] sm:$0xff]
  %v328 = vld [vmem:[#allocation2 + $0x18] sm:$0xff]
  %v329 = vadd.f32 %v325, 0.0
  %v330 = vadd.f32 %v326, 0.0
  %v331 = vadd.f32 %v327, 0.0
  %v332 = vadd.f32 %v328, 0.0
  %v333 = vmul.f32 %v325, %v325
  %v334 = vmul.f32 %v326, %v326
  %v335 = vmul.f32 %v327, %v327
  %v336 = vmul.f32 %v328, %v328
  %v337 = vadd.f32 %v333, 0.0
  %v338 = vadd.f32 %v334, 0.0
  %v339 = vadd.f32 %v335, 0.0
  %v340 = vadd.f32 %v336, 0.0
  %v341 = vld [vmem:[#allocation2 + $0x20] sm:$0xff]
  %v342 = vld [vmem:[#allocation2 + $0x28] sm:$0xff]
  %v343 = vld [vmem:[#allocation2 + $0x30] sm:$0xff]
  %v344 = vld [vmem:[#allocation2 + $0x38] sm:$0xff]
  %v345 = vadd.f32 %v329, %v341
  %v346 = vadd.f32 %v330, %v342
  %v347 = vadd.f32 %v331, %v343
  %v348 = vadd.f32 %v332, %v344
  %v349 = vmul.f32 %v341, %v341
  %v350 = vmul.f32 %v342, %v342
  %v351 = vmul.f32 %v343, %v343
  %v352 = vmul.f32 %v344, %v344
  %v353 = vadd.f32 %v337, %v349
  %v354 = vadd.f32 %v338, %v350
  %v355 = vadd.f32 %v339, %v351
  %v356 = vadd.f32 %v340, %v352
  %v357 = vld [vmem:[#allocation2 + $0x40] sm:$0xff]
  %v358 = vld [vmem:[#allocation2 + $0x48] sm:$0xff]
  %v359 = vld [vmem:[#allocation2 + $0x50] sm:$0xff]
  %v360 = vld [vmem:[#allocation2 + $0x58] sm:$0xff]
  %v361 = vadd.f32 %v345, %v357
  %v362 = vadd.f32 %v346, %v358
  %v363 = vadd.f32 %v347, %v359
  %v364 = vadd.f32 %v348, %v360
  %v365 = vmul.f32 %v357, %v357
  %v366 = vmul.f32 %v358, %v358
  %v367 = vmul.f32 %v359, %v359
  %v368 = vmul.f32 %v360, %v360
  %v369 = vadd.f32 %v353, %v365
  %v370 = vadd.f32 %v354, %v366
  %v371 = vadd.f32 %v355, %v367
  %v372 = vadd.f32 %v356, %v368
  %v373 = vld [vmem:[#allocation2 + $0x60] sm:$0xff]
  %v374 = vld [vmem:[#allocation2 + $0x68] sm:$0xff]
  %v375 = vld [vmem:[#allocation2 + $0x70] sm:$0xff]
  %v376 = vld [vmem:[#allocation2 + $0x78] sm:$0xff]
  %v377 = vadd.f32 %v361, %v373
  %v378 = vadd.f32 %v362, %v374
  %v379 = vadd.f32 %v363, %v375
  %v380 = vadd.f32 %v364, %v376
  %v381 = vmul.f32 %v373, %v373
  %v382 = vmul.f32 %v374, %v374
  %v383 = vmul.f32 %v375, %v375
  %v384 = vmul.f32 %v376, %v376
  %v385 = vadd.f32 %v369, %v381
  %v386 = vadd.f32 %v370, %v382
  %v387 = vadd.f32 %v371, %v383
  %v388 = vadd.f32 %v372, %v384
  %v389 = vld [vmem:[#allocation2 + $0x80] sm:$0xff]
  %v390 = vld [vmem:[#allocation2 + $0x88] sm:$0xff]
  %v391 = vld [vmem:[#allocation2 + $0x90] sm:$0xff]
  %v392 = vld [vmem:[#allocation2 + $0x98] sm:$0xff]
  %v393 = vadd.f32 %v377, %v389
  %v394 = vadd.f32 %v378, %v390
  %v395 = vadd.f32 %v379, %v391
  %v396 = vadd.f32 %v380, %v392
  %v397 = vmul.f32 %v389, %v389
  %v398 = vmul.f32 %v390, %v390
  %v399 = vmul.f32 %v391, %v391
  %v400 = vmul.f32 %v392, %v392
  %v401 = vadd.f32 %v385, %v397
  %v402 = vadd.f32 %v386, %v398
  %v403 = vadd.f32 %v387, %v399
  %v404 = vadd.f32 %v388, %v400
  %v405 = vld [vmem:[#allocation2 + $0xa0] sm:$0xff]
  %v406 = vld [vmem:[#allocation2 + $0xa8] sm:$0xff]
  %v407 = vld [vmem:[#allocation2 + $0xb0] sm:$0xff]
  %v408 = vld [vmem:[#allocation2 + $0xb8] sm:$0xff]
  %v409 = vadd.f32 %v393, %v405
  %v410 = vadd.f32 %v394, %v406
  %v411 = vadd.f32 %v395, %v407
  %v412 = vadd.f32 %v396, %v408
  %v413 = vmul.f32 %v405, %v405
  %v414 = vmul.f32 %v406, %v406
  %v415 = vmul.f32 %v407, %v407
  %v416 = vmul.f32 %v408, %v408
  %v417 = vadd.f32 %v401, %v413
  %v418 = vadd.f32 %v402, %v414
  %v419 = vadd.f32 %v403, %v415
  %v420 = vadd.f32 %v404, %v416
  %v421 = vld [vmem:[#allocation2 + $0xc0] sm:$0xff]
  %v422 = vld [vmem:[#allocation2 + $0xc8] sm:$0xff]
  %v423 = vld [vmem:[#allocation2 + $0xd0] sm:$0xff]
  %v424 = vld [vmem:[#allocation2 + $0xd8] sm:$0xff]
  %v425 = vadd.f32 %v409, %v421
  %v426 = vadd.f32 %v410, %v422
  %v427 = vadd.f32 %v411, %v423
  %v428 = vadd.f32 %v412, %v424
  %v429 = vmul.f32 %v421, %v421
  %v430 = vmul.f32 %v422, %v422
  %v431 = vmul.f32 %v423, %v423
  %v432 = vmul.f32 %v424, %v424
  %v433 = vadd.f32 %v417, %v429
  %v434 = vadd.f32 %v418, %v430
  %v435 = vadd.f32 %v419, %v431
  %v436 = vadd.f32 %v420, %v432
  %v437 = vld [vmem:[#allocation2 + $0xe0] sm:$0xff]
  %v438 = vld [vmem:[#allocation2 + $0xe8] sm:$0xff]
  %v439 = vld [vmem:[#allocation2 + $0xf0] sm:$0xff]
  %v440 = vld [vmem:[#allocation2 + $0xf8] sm:$0xff]
  %v441 = vadd.f32 %v425, %v437
  %v442 = vadd.f32 %v426, %v438
  %v443 = vadd.f32 %v427, %v439
  %v444 = vadd.f32 %v428, %v440
  %v445 = vmul.f32 %v437, %v437
  %v446 = vmul.f32 %v438, %v438
  %v447 = vmul.f32 %v439, %v439
  %v448 = vmul.f32 %v440, %v440
  %v449 = vadd.f32 %v433, %v445
  %v450 = vadd.f32 %v434, %v446
  %v451 = vadd.f32 %v435, %v447
  %v452 = vadd.f32 %v436, %v448
  %v453 = vsel %vm292, %v441, 0.0
  %454 = vadd.xlane.f32.xlu0 %v453
  %v455 = vpop.xlane.xlu0 %454
  %v456 = vsel %vm292, %v442, 0.0
  %457 = vadd.xlane.f32.xlu0 %v456
  %v458 = vpop.xlane.xlu0 %457
  %v459 = vsel %vm292, %v443, 0.0
  %460 = vadd.xlane.f32.xlu0 %v459
  %v461 = vpop.xlane.xlu0 %460
  %v462 = vsel %vm292, %v444, 0.0
  %463 = vadd.xlane.f32.xlu0 %v462
  %v464 = vpop.xlane.xlu0 %463
  %v465 = vmul.f32 %v455, 0.00390625
  %v466 = vmul.f32 %v458, 0.00390625
  %v467 = vmul.f32 %v461, 0.00390625
  %v468 = vmul.f32 %v464, 0.00390625
  %v469 = vsel %vm292, %v449, 0.0
  %470 = vadd.xlane.f32.xlu0 %v469
  %v471 = vpop.xlane.xlu0 %470
  %v472 = vsel %vm292, %v450, 0.0
  %473 = vadd.xlane.f32.xlu0 %v472
  %v474 = vpop.xlane.xlu0 %473
  %v475 = vsel %vm292, %v451, 0.0
  %476 = vadd.xlane.f32.xlu0 %v475
  %v477 = vpop.xlane.xlu0 %476
  %v478 = vsel %vm292, %v452, 0.0
  %479 = vadd.xlane.f32.xlu0 %v478
  %v480 = vpop.xlane.xlu0 %479
  %v481 = vmul.f32 %v471, 0.00390625
  %v482 = vmul.f32 %v474, 0.00390625
  %v483 = vmul.f32 %v477, 0.00390625
  %v484 = vmul.f32 %v480, 0.00390625
  %v485 = vmul.f32 %v465, %v465
  %v486 = vmul.f32 %v466, %v466
  %v487 = vmul.f32 %v467, %v467
  %v488 = vmul.f32 %v468, %v468
  %v489 = vsub.f32 %v481, %v485
  %v490 = vsub.f32 %v482, %v486
  %v491 = vsub.f32 %v483, %v487
  %v492 = vsub.f32 %v484, %v488
  %v493 = vmax.f32 %v489, 0.0
  %v494 = vmax.f32 %v490, 0.0
  %v495 = vmax.f32 %v491, 0.0
  %v496 = vmax.f32 %v492, 0.0
  %v497 = vld [vmem:[%s3] sm:$0xff]
  %v498 = vld [vmem:[%s3 + $0x8] sm:$0xff]
  %v499 = vld [vmem:[%s3 + $0x10] sm:$0xff]
  %v500 = vld [vmem:[%s3 + $0x18] sm:$0xff]
  %v501 = vadd.f32 %v493, 1e-05
  %v502 = vadd.f32 %v494, 1e-05
  %v503 = vadd.f32 %v495, 1e-05
  %v504 = vadd.f32 %v496, 1e-05
  %v505 = vrsqrt.pop %v501
  %v506 = vrsqrt.pop %v502
  %v507 = vrsqrt.pop %v503
  %v508 = vrsqrt.pop %v504
  %v509 = vmul.f32 %v497, %v505
  %v510 = vmul.f32 %v498, %v506
  %v511 = vmul.f32 %v499, %v507
  %v512 = vmul.f32 %v500, %v508
  %v513 = vmul.f32 %v465, %v509
  %v514 = vmul.f32 %v466, %v510
  %v515 = vmul.f32 %v467, %v511
  %v516 = vmul.f32 %v468, %v512
  %521 = vrot.lane.b32.xlu0 %v513, 1
  %v522 = vpop.permute.xlu0 %521
  %523 = vrot.lane.b32.xlu0 %v514, 1
  %v524 = vpop.permute.xlu0 %523
  %525 = vrot.lane.b32.xlu0 %v515, 1
  %v526 = vpop.permute.xlu0 %525
  %527 = vrot.lane.b32.xlu0 %v516, 1
  %v528 = vpop.permute.xlu0 %527
  %v533 = vsub.f32 %v497, %v522
  %v534 = vsub.f32 %v498, %v524
  %v535 = vsub.f32 %v499, %v526
  %v536 = vsub.f32 %v500, %v528
  %538 = vset.pattern.permute.xlu0 0
  %539 = vperm.xlu0 %538, %v509
  %v540 = vpop.permute.xlu0 %539
  %543 = vset.pattern.permute.xlu0 0
  %544 = vperm.xlu0 %543, %v510
  %v545 = vpop.permute.xlu0 %544
  %548 = vset.pattern.permute.xlu0 0
  %549 = vperm.xlu0 %548, %v511
  %v550 = vpop.permute.xlu0 %549
  %553 = vset.pattern.permute.xlu0 0
  %554 = vperm.xlu0 %553, %v512
  %v555 = vpop.permute.xlu0 %554
  %v557 = vmul.f32 %v325, %v540
  %v558 = vmul.f32 %v326, %v545
  %v559 = vmul.f32 %v327, %v550
  %v560 = vmul.f32 %v328, %v555
  %562 = vset.pattern.permute.xlu0 1
  %563 = vperm.xlu0 %562, %v533
  %v564 = vpop.permute.xlu0 %563
  %567 = vset.pattern.permute.xlu0 1
  %568 = vperm.xlu0 %567, %v534
  %v569 = vpop.permute.xlu0 %568
  %572 = vset.pattern.permute.xlu0 1
  %573 = vperm.xlu0 %572, %v535
  %v574 = vpop.permute.xlu0 %573
  %577 = vset.pattern.permute.xlu0 1
  %578 = vperm.xlu0 %577, %v536
  %v579 = vpop.permute.xlu0 %578
  %v581 = vadd.f32 %v557, %v564
  %v582 = vadd.f32 %v558, %v569
  %v583 = vadd.f32 %v559, %v574
  %v584 = vadd.f32 %v560, %v579
  %v585 = vmax.f32 %v581, 0.0
  %v586 = vmax.f32 %v582, 0.0
  %v587 = vmax.f32 %v583, 0.0
  %v588 = vmax.f32 %v584, 0.0
  %v589 = vpack.c.bf16 %v586, %v585
  %v590 = vpack.c.bf16 %v588, %v587
  %v593 = vunpack.c.l.b16 %v589
  %v594 = vunpack.c.h.b16 %v589
  %v595 = vunpack.c.l.b16 %v590
  %v596 = vunpack.c.h.b16 %v590
  %v597 = vpack.c.b16 %v593, %v593
  %v598 = vpack.c.b16 %v594, %v594
  %v599 = vpack.c.b16 %v595, %v595
  %v600 = vpack.c.b16 %v596, %v596
  %vm605 = vcmask 257024
  %606 = vst.msk [vmem:[#allocation3] sm:$0xf] %vm605, %v597
  %607 = vst.msk [vmem:[#allocation3 + $0x4] sm:$0xf] %vm605, %v598
  %608 = vst.msk [vmem:[#allocation3 + $0x8] sm:$0xf] %vm605, %v599
  %609 = vst.msk [vmem:[#allocation3 + $0xc] sm:$0xf] %vm605, %v600
  %610 = vrot.lane.b32.xlu0 %v597, 32
  %v611 = vpop.permute.xlu0 %610
  %612 = vrot.lane.b32.xlu0 %v598, 32
  %v613 = vpop.permute.xlu0 %612
  %614 = vrot.lane.b32.xlu0 %v599, 32
  %v615 = vpop.permute.xlu0 %614
  %616 = vrot.lane.b32.xlu0 %v600, 32
  %v617 = vpop.permute.xlu0 %616
  %vm622 = vcmask 519424
  %623 = vst.msk [vmem:[#allocation3 + $0x70] sm:$0xf] %vm622, %v611
  %624 = vst.msk [vmem:[#allocation3 + $0x74] sm:$0xf] %vm622, %v613
  %625 = vst.msk [vmem:[#allocation3 + $0x78] sm:$0xf] %vm622, %v615
  %626 = vst.msk [vmem:[#allocation3 + $0x7c] sm:$0xf] %vm622, %v617
  %v627 = vld [vmem:[#allocation2 + $0x20] sm:$0xff]
  %v628 = vld [vmem:[#allocation2 + $0x28] sm:$0xff]
  %v629 = vld [vmem:[#allocation2 + $0x30] sm:$0xff]
  %v630 = vld [vmem:[#allocation2 + $0x38] sm:$0xff]
  %v631 = vmul.f32 %v627, %v540
  %v632 = vmul.f32 %v628, %v545
  %v633 = vmul.f32 %v629, %v550
  %v634 = vmul.f32 %v630, %v555
  %v635 = vadd.f32 %v631, %v564
  %v636 = vadd.f32 %v632, %v569
  %v637 = vadd.f32 %v633, %v574
  %v638 = vadd.f32 %v634, %v579
  %v639 = vmax.f32 %v635, 0.0
  %v640 = vmax.f32 %v636, 0.0
  %v641 = vmax.f32 %v637, 0.0
  %v642 = vmax.f32 %v638, 0.0
  %v643 = vpack.c.bf16 %v640, %v639
  %v644 = vpack.c.bf16 %v642, %v641
  %v647 = vunpack.c.l.b16 %v643
  %v648 = vunpack.c.h.b16 %v643
  %v649 = vunpack.c.l.b16 %v644
  %v650 = vunpack.c.h.b16 %v644
  %v651 = vpack.c.b16 %v647, %v647
  %v652 = vpack.c.b16 %v648, %v648
  %v653 = vpack.c.b16 %v649, %v649
  %v654 = vpack.c.b16 %v650, %v650
  %659 = vst.msk [vmem:[#allocation3 + $0x10] sm:$0xf] %vm605, %v651
  %660 = vst.msk [vmem:[#allocation3 + $0x14] sm:$0xf] %vm605, %v652
  %661 = vst.msk [vmem:[#allocation3 + $0x18] sm:$0xf] %vm605, %v653
  %662 = vst.msk [vmem:[#allocation3 + $0x1c] sm:$0xf] %vm605, %v654
  %663 = vrot.lane.b32.xlu0 %v651, 32
  %v664 = vpop.permute.xlu0 %663
  %665 = vrot.lane.b32.xlu0 %v652, 32
  %v666 = vpop.permute.xlu0 %665
  %667 = vrot.lane.b32.xlu0 %v653, 32
  %v668 = vpop.permute.xlu0 %667
  %669 = vrot.lane.b32.xlu0 %v654, 32
  %v670 = vpop.permute.xlu0 %669
  %675 = vst.msk [vmem:[#allocation3 + $0x60] sm:$0xf] %vm622, %v664
  %676 = vst.msk [vmem:[#allocation3 + $0x64] sm:$0xf] %vm622, %v666
  %677 = vst.msk [vmem:[#allocation3 + $0x68] sm:$0xf] %vm622, %v668
  %678 = vst.msk [vmem:[#allocation3 + $0x6c] sm:$0xf] %vm622, %v670
  %v679 = vld [vmem:[#allocation2 + $0x40] sm:$0xff]
  %v680 = vld [vmem:[#allocation2 + $0x48] sm:$0xff]
  %v681 = vld [vmem:[#allocation2 + $0x50] sm:$0xff]
  %v682 = vld [vmem:[#allocation2 + $0x58] sm:$0xff]
  %v683 = vmul.f32 %v679, %v540
  %v684 = vmul.f32 %v680, %v545
  %v685 = vmul.f32 %v681, %v550
  %v686 = vmul.f32 %v682, %v555
  %v687 = vadd.f32 %v683, %v564
  %v688 = vadd.f32 %v684, %v569
  %v689 = vadd.f32 %v685, %v574
  %v690 = vadd.f32 %v686, %v579
  %v691 = vmax.f32 %v687, 0.0
  %v692 = vmax.f32 %v688, 0.0
  %v693 = vmax.f32 %v689, 0.0
  %v694 = vmax.f32 %v690, 0.0
  %v695 = vpack.c.bf16 %v692, %v691
  %v696 = vpack.c.bf16 %v694, %v693
  %v699 = vunpack.c.l.b16 %v695
  %v700 = vunpack.c.h.b16 %v695
  %v701 = vunpack.c.l.b16 %v696
  %v702 = vunpack.c.h.b16 %v696
  %v703 = vpack.c.b16 %v699, %v699
  %v704 = vpack.c.b16 %v700, %v700
  %v705 = vpack.c.b16 %v701, %v701
  %v706 = vpack.c.b16 %v702, %v702
  %711 = vst.msk [vmem:[#allocation3 + $0x20] sm:$0xf] %vm605, %v703
  %712 = vst.msk [vmem:[#allocation3 + $0x24] sm:$0xf] %vm605, %v704
  %713 = vst.msk [vmem:[#allocation3 + $0x28] sm:$0xf] %vm605, %v705
  %714 = vst.msk [vmem:[#allocation3 + $0x2c] sm:$0xf] %vm605, %v706
  %715 = vrot.lane.b32.xlu0 %v703, 32
  %v716 = vpop.permute.xlu0 %715
  %717 = vrot.lane.b32.xlu0 %v704, 32
  %v718 = vpop.permute.xlu0 %717
  %719 = vrot.lane.b32.xlu0 %v705, 32
  %v720 = vpop.permute.xlu0 %719
  %721 = vrot.lane.b32.xlu0 %v706, 32
  %v722 = vpop.permute.xlu0 %721
  %727 = vst.msk [vmem:[#allocation3 + $0x50] sm:$0xf] %vm622, %v716
  %728 = vst.msk [vmem:[#allocation3 + $0x54] sm:$0xf] %vm622, %v718
  %729 = vst.msk [vmem:[#allocation3 + $0x58] sm:$0xf] %vm622, %v720
  %730 = vst.msk [vmem:[#allocation3 + $0x5c] sm:$0xf] %vm622, %v722
  %v731 = vld [vmem:[#allocation2 + $0x60] sm:$0xff]
  %v732 = vld [vmem:[#allocation2 + $0x68] sm:$0xff]
  %v733 = vld [vmem:[#allocation2 + $0x70] sm:$0xff]
  %v734 = vld [vmem:[#allocation2 + $0x78] sm:$0xff]
  %v735 = vmul.f32 %v731, %v540
  %v736 = vmul.f32 %v732, %v545
  %v737 = vmul.f32 %v733, %v550
  %v738 = vmul.f32 %v734, %v555
  %v739 = vadd.f32 %v735, %v564
  %v740 = vadd.f32 %v736, %v569
  %v741 = vadd.f32 %v737, %v574
  %v742 = vadd.f32 %v738, %v579
  %v743 = vmax.f32 %v739, 0.0
  %v744 = vmax.f32 %v740, 0.0
  %v745 = vmax.f32 %v741, 0.0
  %v746 = vmax.f32 %v742, 0.0
  %v747 = vpack.c.bf16 %v744, %v743
  %v748 = vpack.c.bf16 %v746, %v745
  %v751 = vunpack.c.l.b16 %v747
  %v752 = vunpack.c.h.b16 %v747
  %v753 = vunpack.c.l.b16 %v748
  %v754 = vunpack.c.h.b16 %v748
  %v755 = vpack.c.b16 %v751, %v751
  %v756 = vpack.c.b16 %v752, %v752
  %v757 = vpack.c.b16 %v753, %v753
  %v758 = vpack.c.b16 %v754, %v754
  %763 = vst.msk [vmem:[#allocation3 + $0x30] sm:$0xf] %vm605, %v755
  %764 = vst.msk [vmem:[#allocation3 + $0x34] sm:$0xf] %vm605, %v756
  %765 = vst.msk [vmem:[#allocation3 + $0x38] sm:$0xf] %vm605, %v757
  %766 = vst.msk [vmem:[#allocation3 + $0x3c] sm:$0xf] %vm605, %v758
  %767 = vrot.lane.b32.xlu0 %v755, 32
  %v768 = vpop.permute.xlu0 %767
  %769 = vrot.lane.b32.xlu0 %v756, 32
  %v770 = vpop.permute.xlu0 %769
  %771 = vrot.lane.b32.xlu0 %v757, 32
  %v772 = vpop.permute.xlu0 %771
  %773 = vrot.lane.b32.xlu0 %v758, 32
  %v774 = vpop.permute.xlu0 %773
  %779 = vst.msk [vmem:[#allocation3 + $0x40] sm:$0xf] %vm622, %v768
  %780 = vst.msk [vmem:[#allocation3 + $0x44] sm:$0xf] %vm622, %v770
  %781 = vst.msk [vmem:[#allocation3 + $0x48] sm:$0xf] %vm622, %v772
  %782 = vst.msk [vmem:[#allocation3 + $0x4c] sm:$0xf] %vm622, %v774
  %v783 = vld [vmem:[#allocation2 + $0x80] sm:$0xff]
  %v784 = vld [vmem:[#allocation2 + $0x88] sm:$0xff]
  %v785 = vld [vmem:[#allocation2 + $0x90] sm:$0xff]
  %v786 = vld [vmem:[#allocation2 + $0x98] sm:$0xff]
  %v787 = vmul.f32 %v783, %v540
  %v788 = vmul.f32 %v784, %v545
  %v789 = vmul.f32 %v785, %v550
  %v790 = vmul.f32 %v786, %v555
  %v791 = vadd.f32 %v787, %v564
  %v792 = vadd.f32 %v788, %v569
  %v793 = vadd.f32 %v789, %v574
  %v794 = vadd.f32 %v790, %v579
  %v795 = vmax.f32 %v791, 0.0
  %v796 = vmax.f32 %v792, 0.0
  %v797 = vmax.f32 %v793, 0.0
  %v798 = vmax.f32 %v794, 0.0
  %v799 = vpack.c.bf16 %v796, %v795
  %v800 = vpack.c.bf16 %v798, %v797
  %v803 = vunpack.c.l.b16 %v799
  %v804 = vunpack.c.h.b16 %v799
  %v805 = vunpack.c.l.b16 %v800
  %v806 = vunpack.c.h.b16 %v800
  %v807 = vpack.c.b16 %v803, %v803
  %v808 = vpack.c.b16 %v804, %v804
  %v809 = vpack.c.b16 %v805, %v805
  %v810 = vpack.c.b16 %v806, %v806
  %815 = vst.msk [vmem:[#allocation3 + $0x40] sm:$0xf] %vm605, %v807
  %816 = vst.msk [vmem:[#allocation3 + $0x44] sm:$0xf] %vm605, %v808
  %817 = vst.msk [vmem:[#allocation3 + $0x48] sm:$0xf] %vm605, %v809
  %818 = vst.msk [vmem:[#allocation3 + $0x4c] sm:$0xf] %vm605, %v810
  %819 = vrot.lane.b32.xlu0 %v807, 32
  %v820 = vpop.permute.xlu0 %819
  %821 = vrot.lane.b32.xlu0 %v808, 32
  %v822 = vpop.permute.xlu0 %821
  %823 = vrot.lane.b32.xlu0 %v809, 32
  %v824 = vpop.permute.xlu0 %823
  %825 = vrot.lane.b32.xlu0 %v810, 32
  %v826 = vpop.permute.xlu0 %825
  %831 = vst.msk [vmem:[#allocation3 + $0x30] sm:$0xf] %vm622, %v820
  %832 = vst.msk [vmem:[#allocation3 + $0x34] sm:$0xf] %vm622, %v822
  %833 = vst.msk [vmem:[#allocation3 + $0x38] sm:$0xf] %vm622, %v824
  %834 = vst.msk [vmem:[#allocation3 + $0x3c] sm:$0xf] %vm622, %v826
  %v835 = vld [vmem:[#allocation2 + $0xa0] sm:$0xff]
  %v836 = vld [vmem:[#allocation2 + $0xa8] sm:$0xff]
  %v837 = vld [vmem:[#allocation2 + $0xb0] sm:$0xff]
  %v838 = vld [vmem:[#allocation2 + $0xb8] sm:$0xff]
  %v839 = vmul.f32 %v835, %v540
  %v840 = vmul.f32 %v836, %v545
  %v841 = vmul.f32 %v837, %v550
  %v842 = vmul.f32 %v838, %v555
  %v843 = vadd.f32 %v839, %v564
  %v844 = vadd.f32 %v840, %v569
  %v845 = vadd.f32 %v841, %v574
  %v846 = vadd.f32 %v842, %v579
  %v847 = vmax.f32 %v843, 0.0
  %v848 = vmax.f32 %v844, 0.0
  %v849 = vmax.f32 %v845, 0.0
  %v850 = vmax.f32 %v846, 0.0
  %v851 = vpack.c.bf16 %v848, %v847
  %v852 = vpack.c.bf16 %v850, %v849
  %v855 = vunpack.c.l.b16 %v851
  %v856 = vunpack.c.h.b16 %v851
  %v857 = vunpack.c.l.b16 %v852
  %v858 = vunpack.c.h.b16 %v852
  %v859 = vpack.c.b16 %v855, %v855
  %v860 = vpack.c.b16 %v856, %v856
  %v861 = vpack.c.b16 %v857, %v857
  %v862 = vpack.c.b16 %v858, %v858
  %867 = vst.msk [vmem:[#allocation3 + $0x50] sm:$0xf] %vm605, %v859
  %868 = vst.msk [vmem:[#allocation3 + $0x54] sm:$0xf] %vm605, %v860
  %869 = vst.msk [vmem:[#allocation3 + $0x58] sm:$0xf] %vm605, %v861
  %870 = vst.msk [vmem:[#allocation3 + $0x5c] sm:$0xf] %vm605, %v862
  %871 = vrot.lane.b32.xlu0 %v859, 32
  %v872 = vpop.permute.xlu0 %871
  %873 = vrot.lane.b32.xlu0 %v860, 32
  %v874 = vpop.permute.xlu0 %873
  %875 = vrot.lane.b32.xlu0 %v861, 32
  %v876 = vpop.permute.xlu0 %875
  %877 = vrot.lane.b32.xlu0 %v862, 32
  %v878 = vpop.permute.xlu0 %877
  %883 = vst.msk [vmem:[#allocation3 + $0x20] sm:$0xf] %vm622, %v872
  %884 = vst.msk [vmem:[#allocation3 + $0x24] sm:$0xf] %vm622, %v874
  %885 = vst.msk [vmem:[#allocation3 + $0x28] sm:$0xf] %vm622, %v876
  %886 = vst.msk [vmem:[#allocation3 + $0x2c] sm:$0xf] %vm622, %v878
  %v887 = vld [vmem:[#allocation2 + $0xc0] sm:$0xff]
  %v888 = vld [vmem:[#allocation2 + $0xc8] sm:$0xff]
  %v889 = vld [vmem:[#allocation2 + $0xd0] sm:$0xff]
  %v890 = vld [vmem:[#allocation2 + $0xd8] sm:$0xff]
  %v891 = vmul.f32 %v887, %v540
  %v892 = vmul.f32 %v888, %v545
  %v893 = vmul.f32 %v889, %v550
  %v894 = vmul.f32 %v890, %v555
  %v895 = vadd.f32 %v891, %v564
  %v896 = vadd.f32 %v892, %v569
  %v897 = vadd.f32 %v893, %v574
  %v898 = vadd.f32 %v894, %v579
  %v899 = vmax.f32 %v895, 0.0
  %v900 = vmax.f32 %v896, 0.0
  %v901 = vmax.f32 %v897, 0.0
  %v902 = vmax.f32 %v898, 0.0
  %v903 = vpack.c.bf16 %v900, %v899
  %v904 = vpack.c.bf16 %v902, %v901
  %v907 = vunpack.c.l.b16 %v903
  %v908 = vunpack.c.h.b16 %v903
  %v909 = vunpack.c.l.b16 %v904
  %v910 = vunpack.c.h.b16 %v904
  %v911 = vpack.c.b16 %v907, %v907
  %v912 = vpack.c.b16 %v908, %v908
  %v913 = vpack.c.b16 %v909, %v909
  %v914 = vpack.c.b16 %v910, %v910
  %919 = vst.msk [vmem:[#allocation3 + $0x60] sm:$0xf] %vm605, %v911
  %920 = vst.msk [vmem:[#allocation3 + $0x64] sm:$0xf] %vm605, %v912
  %921 = vst.msk [vmem:[#allocation3 + $0x68] sm:$0xf] %vm605, %v913
  %922 = vst.msk [vmem:[#allocation3 + $0x6c] sm:$0xf] %vm605, %v914
  %923 = vrot.lane.b32.xlu0 %v911, 32
  %v924 = vpop.permute.xlu0 %923
  %925 = vrot.lane.b32.xlu0 %v912, 32
  %v926 = vpop.permute.xlu0 %925
  %927 = vrot.lane.b32.xlu0 %v913, 32
  %v928 = vpop.permute.xlu0 %927
  %929 = vrot.lane.b32.xlu0 %v914, 32
  %v930 = vpop.permute.xlu0 %929
  %935 = vst.msk [vmem:[#allocation3 + $0x10] sm:$0xf] %vm622, %v924
  %936 = vst.msk [vmem:[#allocation3 + $0x14] sm:$0xf] %vm622, %v926
  %937 = vst.msk [vmem:[#allocation3 + $0x18] sm:$0xf] %vm622, %v928
  %938 = vst.msk [vmem:[#allocation3 + $0x1c] sm:$0xf] %vm622, %v930
  %v939 = vld [vmem:[#allocation2 + $0xe0] sm:$0xff]
  %v940 = vld [vmem:[#allocation2 + $0xe8] sm:$0xff]
  %v941 = vld [vmem:[#allocation2 + $0xf0] sm:$0xff]
  %v942 = vld [vmem:[#allocation2 + $0xf8] sm:$0xff]
  %v943 = vmul.f32 %v939, %v540
  %v944 = vmul.f32 %v940, %v545
  %v945 = vmul.f32 %v941, %v550
  %v946 = vmul.f32 %v942, %v555
  %v947 = vadd.f32 %v943, %v564
  %v948 = vadd.f32 %v944, %v569
  %v949 = vadd.f32 %v945, %v574
  %v950 = vadd.f32 %v946, %v579
  %v951 = vmax.f32 %v947, 0.0
  %v952 = vmax.f32 %v948, 0.0
  %v953 = vmax.f32 %v949, 0.0
  %v954 = vmax.f32 %v950, 0.0
  %v955 = vpack.c.bf16 %v952, %v951
  %v956 = vpack.c.bf16 %v954, %v953
  %v959 = vunpack.c.l.b16 %v955
  %v960 = vunpack.c.h.b16 %v955
  %v961 = vunpack.c.l.b16 %v956
  %v962 = vunpack.c.h.b16 %v956
  %v963 = vpack.c.b16 %v959, %v959
  %v964 = vpack.c.b16 %v960, %v960
  %v965 = vpack.c.b16 %v961, %v961
  %v966 = vpack.c.b16 %v962, %v962
  %971 = vst.msk [vmem:[#allocation3 + $0x70] sm:$0xf] %vm605, %v963
  %972 = vst.msk [vmem:[#allocation3 + $0x74] sm:$0xf] %vm605, %v964
  %973 = vst.msk [vmem:[#allocation3 + $0x78] sm:$0xf] %vm605, %v965
  %974 = vst.msk [vmem:[#allocation3 + $0x7c] sm:$0xf] %vm605, %v966
  %975 = vrot.lane.b32.xlu0 %v963, 32
  %v976 = vpop.permute.xlu0 %975
  %977 = vrot.lane.b32.xlu0 %v964, 32
  %v978 = vpop.permute.xlu0 %977
  %979 = vrot.lane.b32.xlu0 %v965, 32
  %v980 = vpop.permute.xlu0 %979
  %981 = vrot.lane.b32.xlu0 %v966, 32
  %v982 = vpop.permute.xlu0 %981
  %987 = vst.msk [vmem:[#allocation3] sm:$0xf] %vm622, %v976
  %988 = vst.msk [vmem:[#allocation3 + $0x4] sm:$0xf] %vm622, %v978
  %989 = vst.msk [vmem:[#allocation3 + $0x8] sm:$0xf] %vm622, %v980
  %990 = vst.msk [vmem:[#allocation3 + $0xc] sm:$0xf] %vm622, %v982
  %v991 = vld [vmem:[#allocation3] sm:$0xf]
  %v992 = vld [vmem:[#allocation3 + $0x4] sm:$0xf]
  %v993 = vld [vmem:[#allocation3 + $0x8] sm:$0xf]
  %v994 = vld [vmem:[#allocation3 + $0xc] sm:$0xf]
  %v995 = vld [vmem:[#allocation3 + $0x10] sm:$0xf]
  %v996 = vld [vmem:[#allocation3 + $0x14] sm:$0xf]
  %v997 = vld [vmem:[#allocation3 + $0x18] sm:$0xf]
  %v998 = vld [vmem:[#allocation3 + $0x1c] sm:$0xf]
  %v999 = vld [vmem:[#allocation3 + $0x20] sm:$0xf]
  %v1000 = vld [vmem:[#allocation3 + $0x24] sm:$0xf]
  %v1001 = vld [vmem:[#allocation3 + $0x28] sm:$0xf]
  %v1002 = vld [vmem:[#allocation3 + $0x2c] sm:$0xf]
  %v1003 = vld [vmem:[#allocation3 + $0x30] sm:$0xf]
  %v1004 = vld [vmem:[#allocation3 + $0x34] sm:$0xf]
  %v1005 = vld [vmem:[#allocation3 + $0x38] sm:$0xf]
  %v1006 = vld [vmem:[#allocation3 + $0x3c] sm:$0xf]
  %v1007 = vld [vmem:[#allocation3 + $0x40] sm:$0xf]
  %v1008 = vld [vmem:[#allocation3 + $0x44] sm:$0xf]
  %v1009 = vld [vmem:[#allocation3 + $0x48] sm:$0xf]
  %v1010 = vld [vmem:[#allocation3 + $0x4c] sm:$0xf]
  %v1011 = vld [vmem:[#allocation3 + $0x50] sm:$0xf]
  %v1012 = vld [vmem:[#allocation3 + $0x54] sm:$0xf]
  %v1013 = vld [vmem:[#allocation3 + $0x58] sm:$0xf]
  %v1014 = vld [vmem:[#allocation3 + $0x5c] sm:$0xf]
  %v1015 = vld [vmem:[#allocation3 + $0x60] sm:$0xf]
  %v1016 = vld [vmem:[#allocation3 + $0x64] sm:$0xf]
  %v1017 = vld [vmem:[#allocation3 + $0x68] sm:$0xf]
  %v1018 = vld [vmem:[#allocation3 + $0x6c] sm:$0xf]
  %v1019 = vld [vmem:[#allocation3 + $0x70] sm:$0xf]
  %v1020 = vld [vmem:[#allocation3 + $0x74] sm:$0xf]
  %v1021 = vld [vmem:[#allocation3 + $0x78] sm:$0xf]
  %v1022 = vld [vmem:[#allocation3 + $0x7c] sm:$0xf]
  %v1023 = vld [vmem:[%s1 + $0x10] sm:$0xff]
  %v1024 = vld [vmem:[%s1 + $0x18] sm:$0xff]
  %v1025 = vld [vmem:[%s1 + $0x20] sm:$0xff]
  %v1026 = vld [vmem:[%s1 + $0x28] sm:$0xff]
  %v1027 = vld [vmem:[%s1 + $0x30] sm:$0xff]
  %v1028 = vld [vmem:[%s1 + $0x38] sm:$0xff]
  %v1029 = vld [vmem:[%s1 + $0x40] sm:$0xff]
  %v1030 = vld [vmem:[%s1 + $0x48] sm:$0xff]
  %s1031 = scalar_lea.vmem %s2, 1
  %v1032 = vld [vmem:[%s1031] ss:$4 sm:$0x3]
  %v1033 = vld [vmem:[%s1 + $0x50] sm:$0xff]
  %v1034 = vld [vmem:[%s1 + $0x58] sm:$0xff]
  %v1035 = vld [vmem:[%s1 + $0x60] sm:$0xff]
  %v1036 = vld [vmem:[%s1 + $0x68] sm:$0xff]
  %v1037 = vld [vmem:[%s1 + $0x70] sm:$0xff]
  %v1038 = vld [vmem:[%s1 + $0x78] sm:$0xff]
  %v1039 = vld [vmem:[%s1 + $0x80] sm:$0xff]
  %v1040 = vld [vmem:[%s1 + $0x88] sm:$0xff]
  %v1041 = vld [vmem:[%s2 + $0x3] sm:$0x1]
  %v1043 = vlaneseq
  %v1044 = vshrl.u32 %v1043, 7
  %v1045 = vsub.s32 0, %v1044
  %v1046 = vrot.slane %v1032, %v1045
  %v1047 = vlaneseq
  %v1048 = vshrl.u32 %v1047, 7
  %v1049 = vsub.s32 1, %v1048
  %v1050 = vrot.slane %v1032, %v1049
  %v1085 = vunpack.c.l.b16 %v991
  %v1086 = vunpack.c.l.b16 %v992
  %v1087 = vunpack.c.l.b16 %v993
  %v1088 = vunpack.c.l.b16 %v994
  %v1089 = vunpack.c.l.b16 %v995
  %v1090 = vunpack.c.l.b16 %v996
  %v1091 = vunpack.c.l.b16 %v997
  %v1092 = vunpack.c.l.b16 %v998
  %v1093 = vunpack.c.l.b16 %v999
  %v1094 = vunpack.c.l.b16 %v1000
  %v1095 = vunpack.c.l.b16 %v1001
  %v1096 = vunpack.c.l.b16 %v1002
  %v1097 = vunpack.c.l.b16 %v1003
  %v1098 = vunpack.c.l.b16 %v1004
  %v1099 = vunpack.c.l.b16 %v1005
  %v1100 = vunpack.c.l.b16 %v1006
  %v1101 = vunpack.c.l.b16 %v1007
  %v1102 = vunpack.c.l.b16 %v1008
  %v1103 = vunpack.c.l.b16 %v1009
  %v1104 = vunpack.c.l.b16 %v1010
  %v1105 = vunpack.c.l.b16 %v1011
  %v1106 = vunpack.c.l.b16 %v1012
  %v1107 = vunpack.c.l.b16 %v1013
  %v1108 = vunpack.c.l.b16 %v1014
  %v1109 = vunpack.c.l.b16 %v1015
  %v1110 = vunpack.c.l.b16 %v1016
  %v1111 = vunpack.c.l.b16 %v1017
  %v1112 = vunpack.c.l.b16 %v1018
  %v1113 = vunpack.c.l.b16 %v1019
  %v1114 = vunpack.c.l.b16 %v1020
  %v1115 = vunpack.c.l.b16 %v1021
  %v1116 = vunpack.c.l.b16 %v1022
  %v1117 = vpack.c.b16 %v1086, %v1085
  %v1118 = vpack.c.b16 %v1088, %v1087
  %v1119 = vpack.c.b16 %v1090, %v1089
  %v1120 = vpack.c.b16 %v1092, %v1091
  %v1121 = vpack.c.b16 %v1094, %v1093
  %v1122 = vpack.c.b16 %v1096, %v1095
  %v1123 = vpack.c.b16 %v1098, %v1097
  %v1124 = vpack.c.b16 %v1100, %v1099
  %v1125 = vpack.c.b16 %v1102, %v1101
  %v1126 = vpack.c.b16 %v1104, %v1103
  %v1127 = vpack.c.b16 %v1106, %v1105
  %v1128 = vpack.c.b16 %v1108, %v1107
  %v1129 = vpack.c.b16 %v1110, %v1109
  %v1130 = vpack.c.b16 %v1112, %v1111
  %v1131 = vpack.c.b16 %v1114, %v1113
  %v1132 = vpack.c.b16 %v1116, %v1115
  %v1141 = vunpack.c.l.b16 %v1023
  %v1142 = vunpack.c.h.b16 %v1023
  %v1143 = vunpack.c.l.b16 %v1024
  %v1144 = vunpack.c.h.b16 %v1024
  %v1145 = vunpack.c.l.b16 %v1025
  %v1146 = vunpack.c.h.b16 %v1025
  %v1147 = vunpack.c.l.b16 %v1026
  %v1148 = vunpack.c.h.b16 %v1026
  %v1149 = vunpack.c.l.b16 %v1027
  %v1150 = vunpack.c.h.b16 %v1027
  %v1151 = vunpack.c.l.b16 %v1028
  %v1152 = vunpack.c.h.b16 %v1028
  %v1153 = vunpack.c.l.b16 %v1029
  %v1154 = vunpack.c.h.b16 %v1029
  %v1155 = vunpack.c.l.b16 %v1030
  %v1156 = vunpack.c.h.b16 %v1030
  %v1157 = vpack.c.b16 %v1143, %v1141
  %v1158 = vpack.c.b16 %v1144, %v1142
  %v1159 = vpack.c.b16 %v1147, %v1145
  %v1160 = vpack.c.b16 %v1148, %v1146
  %v1161 = vpack.c.b16 %v1151, %v1149
  %v1162 = vpack.c.b16 %v1152, %v1150
  %v1163 = vpack.c.b16 %v1155, %v1153
  %v1164 = vpack.c.b16 %v1156, %v1154
  %vm1173 = vcmask 523264
  %v1175 = vsel %vm1173, %v1117, 0
  %v1178 = vsel %vm1173, %v1118, 0
  %v1181 = vsel %vm1173, %v1119, 0
  %v1184 = vsel %vm1173, %v1120, 0
  %v1187 = vsel %vm1173, %v1121, 0
  %v1190 = vsel %vm1173, %v1122, 0
  %v1193 = vsel %vm1173, %v1123, 0
  %v1196 = vsel %vm1173, %v1124, 0
  %v1199 = vsel %vm1173, %v1125, 0
  %v1202 = vsel %vm1173, %v1126, 0
  %v1205 = vsel %vm1173, %v1127, 0
  %v1208 = vsel %vm1173, %v1128, 0
  %v1211 = vsel %vm1173, %v1129, 0
  %v1214 = vsel %vm1173, %v1130, 0
  %v1217 = vsel %vm1173, %v1131, 0
  %v1220 = vsel %vm1173, %v1132, 0
  %1222 = vmatprep.subr.bf16.mxu0 0
  %1223 = vmatpush1.bf16.msra.mxu0 0
  %1224 = vmatprep.subr.bf16.mxu0 0
  %1225 = vmatpush1.bf16.msra.mxu0 0
  %1226 = vmatprep.subr.bf16.mxu0 0
  %1227 = vmatpush1.bf16.msra.mxu0 0
  %1228 = vmatprep.subr.bf16.mxu0 0
  %1229 = vmatpush1.bf16.msra.mxu0 0
  %1230 = vmatprep.subr.bf16.mxu0 %v1164
  %1231 = vmatpush1.bf16.msra.mxu0 %v1163
  %1232 = vmatprep.subr.bf16.mxu0 %v1162
  %1233 = vmatpush1.bf16.msra.mxu0 %v1161
  %1234 = vmatprep.subr.bf16.mxu0 %v1160
  %1235 = vmatpush1.bf16.msra.mxu0 %v1159
  %1236 = vmatprep.subr.bf16.mxu0 %v1158
  %1237 = vmatpush1.bf16.msra.mxu0 %v1157
  %1238 = vmatprep.subr.bf16.mxu0 0
  %1239 = vmatpush2.bf16.msra.mxu0 0
  %1240 = vmatprep.subr.bf16.mxu0 0
  %1241 = vmatpush2.bf16.msra.mxu0 0
  %1242 = vmatprep.subr.bf16.mxu0 0
  %1243 = vmatpush2.bf16.msra.mxu0 0
  %1244 = vmatprep.subr.bf16.mxu0 0
  %1245 = vmatpush2.bf16.msra.mxu0 0
  %1246 = vmatprep.subr.bf16.mxu0 0
  %1247 = vmatpush2.bf16.msra.mxu0 0
  %1248 = vmatprep.subr.bf16.mxu0 0
  %1249 = vmatpush2.bf16.msra.mxu0 0
  %1250 = vmatprep.subr.bf16.mxu0 0
  %1251 = vmatpush2.bf16.msra.mxu0 0
  %1252 = vmatprep.subr.bf16.mxu0 0
  %1253 = vmatpush2.bf16.msra.mxu0 0
  %1254 = vmatprep.mubr.bf16.mxu0 0
  %1255 = vmatmul.mubr.bf16.gmra.mxu0 %v1175
  %v1256 = vpop.f32.mrf.mxu0
  %v1257 = vadd.f32 %v1046, %v1256
  %v1258 = vpop.f32.mrf.mxu0
  %v1259 = vadd.f32 %v1050, %v1258
  %v1260 = vpop.f32.mrf.mxu0
  %v1261 = vadd.f32 %v1046, %v1260
  %v1262 = vpop.f32.mrf.mxu0
  %v1263 = vadd.f32 %v1050, %v1262
  %1264 = vmatprep.mubr.bf16.mxu0 0
  %1265 = vmatmul.mubr.bf16.gmra.mxu0 %v1178
  %v1266 = vpop.f32.mrf.mxu0
  %v1267 = vadd.f32 %v1046, %v1266
  %v1268 = vpop.f32.mrf.mxu0
  %v1269 = vadd.f32 %v1050, %v1268
  %v1270 = vpop.f32.mrf.mxu0
  %v1271 = vadd.f32 %v1046, %v1270
  %v1272 = vpop.f32.mrf.mxu0
  %v1273 = vadd.f32 %v1050, %v1272
  %1274 = vmatprep.mubr.bf16.mxu0 0
  %1275 = vmatmul.mubr.bf16.gmra.mxu0 %v1181
  %v1276 = vpop.f32.mrf.mxu0
  %v1277 = vadd.f32 %v1046, %v1276
  %v1278 = vpop.f32.mrf.mxu0
  %v1279 = vadd.f32 %v1050, %v1278
  %v1280 = vpop.f32.mrf.mxu0
  %v1281 = vadd.f32 %v1046, %v1280
  %v1282 = vpop.f32.mrf.mxu0
  %v1283 = vadd.f32 %v1050, %v1282
  %1284 = vmatprep.mubr.bf16.mxu0 0
  %1285 = vmatmul.mubr.bf16.gmra.mxu0 %v1184
  %v1286 = vpop.f32.mrf.mxu0
  %v1287 = vadd.f32 %v1046, %v1286
  %v1288 = vpop.f32.mrf.mxu0
  %v1289 = vadd.f32 %v1050, %v1288
  %v1290 = vpop.f32.mrf.mxu0
  %v1291 = vadd.f32 %v1046, %v1290
  %v1292 = vpop.f32.mrf.mxu0
  %v1293 = vadd.f32 %v1050, %v1292
  %1294 = vmatprep.mubr.bf16.mxu0 0
  %1295 = vmatmul.mubr.bf16.gmra.mxu0 %v1187
  %v1296 = vpop.f32.mrf.mxu0
  %v1297 = vadd.f32 %v1046, %v1296
  %v1298 = vpop.f32.mrf.mxu0
  %v1299 = vadd.f32 %v1050, %v1298
  %v1300 = vpop.f32.mrf.mxu0
  %v1301 = vadd.f32 %v1046, %v1300
  %v1302 = vpop.f32.mrf.mxu0
  %v1303 = vadd.f32 %v1050, %v1302
  %1304 = vmatprep.mubr.bf16.mxu0 0
  %1305 = vmatmul.mubr.bf16.gmra.mxu0 %v1190
  %v1306 = vpop.f32.mrf.mxu0
  %v1307 = vadd.f32 %v1046, %v1306
  %v1308 = vpop.f32.mrf.mxu0
  %v1309 = vadd.f32 %v1050, %v1308
  %v1310 = vpop.f32.mrf.mxu0
  %v1311 = vadd.f32 %v1046, %v1310
  %v1312 = vpop.f32.mrf.mxu0
  %v1313 = vadd.f32 %v1050, %v1312
  %1314 = vmatprep.mubr.bf16.mxu0 0
  %1315 = vmatmul.mubr.bf16.gmra.mxu0 %v1193
  %v1316 = vpop.f32.mrf.mxu0
  %v1317 = vadd.f32 %v1046, %v1316
  %v1318 = vpop.f32.mrf.mxu0
  %v1319 = vadd.f32 %v1050, %v1318
  %v1320 = vpop.f32.mrf.mxu0
  %v1321 = vadd.f32 %v1046, %v1320
  %v1322 = vpop.f32.mrf.mxu0
  %v1323 = vadd.f32 %v1050, %v1322
  %1324 = vmatprep.mubr.bf16.mxu0 0
  %1325 = vmatmul.mubr.bf16.gmra.mxu0 %v1196
  %v1326 = vpop.f32.mrf.mxu0
  %v1327 = vadd.f32 %v1046, %v1326
  %v1328 = vpop.f32.mrf.mxu0
  %v1329 = vadd.f32 %v1050, %v1328
  %v1330 = vpop.f32.mrf.mxu0
  %v1331 = vadd.f32 %v1046, %v1330
  %v1332 = vpop.f32.mrf.mxu0
  %v1333 = vadd.f32 %v1050, %v1332
  %1334 = vmatprep.mubr.bf16.mxu0 0
  %1335 = vmatmul.mubr.bf16.gmra.mxu0 %v1199
  %v1336 = vpop.f32.mrf.mxu0
  %v1337 = vadd.f32 %v1046, %v1336
  %v1338 = vpop.f32.mrf.mxu0
  %v1339 = vadd.f32 %v1050, %v1338
  %v1340 = vpop.f32.mrf.mxu0
  %v1341 = vadd.f32 %v1046, %v1340
  %v1342 = vpop.f32.mrf.mxu0
  %v1343 = vadd.f32 %v1050, %v1342
  %1344 = vmatprep.mubr.bf16.mxu0 0
  %1345 = vmatmul.mubr.bf16.gmra.mxu0 %v1202
  %v1346 = vpop.f32.mrf.mxu0
  %v1347 = vadd.f32 %v1046, %v1346
  %v1348 = vpop.f32.mrf.mxu0
  %v1349 = vadd.f32 %v1050, %v1348
  %v1350 = vpop.f32.mrf.mxu0
  %v1351 = vadd.f32 %v1046, %v1350
  %v1352 = vpop.f32.mrf.mxu0
  %v1353 = vadd.f32 %v1050, %v1352
  %1354 = vmatprep.mubr.bf16.mxu0 0
  %1355 = vmatmul.mubr.bf16.gmra.mxu0 %v1205
  %v1356 = vpop.f32.mrf.mxu0
  %v1357 = vadd.f32 %v1046, %v1356
  %v1358 = vpop.f32.mrf.mxu0
  %v1359 = vadd.f32 %v1050, %v1358
  %v1360 = vpop.f32.mrf.mxu0
  %v1361 = vadd.f32 %v1046, %v1360
  %v1362 = vpop.f32.mrf.mxu0
  %v1363 = vadd.f32 %v1050, %v1362
  %1364 = vmatprep.mubr.bf16.mxu0 0
  %1365 = vmatmul.mubr.bf16.gmra.mxu0 %v1208
  %v1366 = vpop.f32.mrf.mxu0
  %v1367 = vadd.f32 %v1046, %v1366
  %v1368 = vpop.f32.mrf.mxu0
  %v1369 = vadd.f32 %v1050, %v1368
  %v1370 = vpop.f32.mrf.mxu0
  %v1371 = vadd.f32 %v1046, %v1370
  %v1372 = vpop.f32.mrf.mxu0
  %v1373 = vadd.f32 %v1050, %v1372
  %1374 = vmatprep.mubr.bf16.mxu0 0
  %1375 = vmatmul.mubr.bf16.gmra.mxu0 %v1211
  %v1376 = vpop.f32.mrf.mxu0
  %v1377 = vadd.f32 %v1046, %v1376
  %v1378 = vpop.f32.mrf.mxu0
  %v1379 = vadd.f32 %v1050, %v1378
  %v1380 = vpop.f32.mrf.mxu0
  %v1381 = vadd.f32 %v1046, %v1380
  %v1382 = vpop.f32.mrf.mxu0
  %v1383 = vadd.f32 %v1050, %v1382
  %1384 = vmatprep.mubr.bf16.mxu0 0
  %1385 = vmatmul.mubr.bf16.gmra.mxu0 %v1214
  %v1386 = vpop.f32.mrf.mxu0
  %v1387 = vadd.f32 %v1046, %v1386
  %v1388 = vpop.f32.mrf.mxu0
  %v1389 = vadd.f32 %v1050, %v1388
  %v1390 = vpop.f32.mrf.mxu0
  %v1391 = vadd.f32 %v1046, %v1390
  %v1392 = vpop.f32.mrf.mxu0
  %v1393 = vadd.f32 %v1050, %v1392
  %1394 = vmatprep.mubr.bf16.mxu0 0
  %1395 = vmatmul.mubr.bf16.gmra.mxu0 %v1217
  %v1396 = vpop.f32.mrf.mxu0
  %v1397 = vadd.f32 %v1046, %v1396
  %v1398 = vpop.f32.mrf.mxu0
  %v1399 = vadd.f32 %v1050, %v1398
  %v1400 = vpop.f32.mrf.mxu0
  %v1401 = vadd.f32 %v1046, %v1400
  %v1402 = vpop.f32.mrf.mxu0
  %v1403 = vadd.f32 %v1050, %v1402
  %1404 = vmatprep.mubr.bf16.mxu0 0
  %1405 = vmatmul.mubr.bf16.gmra.mxu0 %v1220
  %v1406 = vpop.f32.mrf.mxu0
  %v1407 = vadd.f32 %v1046, %v1406
  %v1408 = vpop.f32.mrf.mxu0
  %v1409 = vadd.f32 %v1050, %v1408
  %v1410 = vpop.f32.mrf.mxu0
  %v1411 = vadd.f32 %v1046, %v1410
  %v1412 = vpop.f32.mrf.mxu0
  %v1413 = vadd.f32 %v1050, %v1412
  %1414 = vdwg.mxu0
  %1415 = vst [vmem:[#allocation5] sm:$0xff] %v1257
  %1416 = vst.msk [vmem:[#allocation5 + $0x8] sm:$0xff] %vm1173, %v1259
  %1417 = vst [vmem:[#allocation5 + $0x10] sm:$0xff] %v1261
  %1418 = vst.msk [vmem:[#allocation5 + $0x18] sm:$0xff] %vm1173, %v1263
  %1419 = vst [vmem:[#allocation5 + $0x20] sm:$0xff] %v1267
  %1420 = vst.msk [vmem:[#allocation5 + $0x28] sm:$0xff] %vm1173, %v1269
  %1421 = vst [vmem:[#allocation5 + $0x30] sm:$0xff] %v1271
  %1422 = vst.msk [vmem:[#allocation5 + $0x38] sm:$0xff] %vm1173, %v1273
  %1423 = vst [vmem:[#allocation5 + $0x40] sm:$0xff] %v1277
  %1424 = vst.msk [vmem:[#allocation5 + $0x48] sm:$0xff] %vm1173, %v1279
  %1425 = vst [vmem:[#allocation5 + $0x50] sm:$0xff] %v1281
  %1426 = vst.msk [vmem:[#allocation5 + $0x58] sm:$0xff] %vm1173, %v1283
  %1427 = vst [vmem:[#allocation5 + $0x60] sm:$0xff] %v1287
  %1428 = vst.msk [vmem:[#allocation5 + $0x68] sm:$0xff] %vm1173, %v1289
  %1429 = vst [vmem:[#allocation5 + $0x70] sm:$0xff] %v1291
  %1430 = vst.msk [vmem:[#allocation5 + $0x78] sm:$0xff] %vm1173, %v1293
  %1431 = vst [vmem:[#allocation5 + $0x80] sm:$0xff] %v1297
  %1432 = vst.msk [vmem:[#allocation5 + $0x88] sm:$0xff] %vm1173, %v1299
  %1433 = vst [vmem:[#allocation5 + $0x90] sm:$0xff] %v1301
  %1434 = vst.msk [vmem:[#allocation5 + $0x98] sm:$0xff] %vm1173, %v1303
  %1435 = vst [vmem:[#allocation5 + $0xa0] sm:$0xff] %v1307
  %1436 = vst.msk [vmem:[#allocation5 + $0xa8] sm:$0xff] %vm1173, %v1309
  %1437 = vst [vmem:[#allocation5 + $0xb0] sm:$0xff] %v1311
  %1438 = vst.msk [vmem:[#allocation5 + $0xb8] sm:$0xff] %vm1173, %v1313
  %1439 = vst [vmem:[#allocation5 + $0xc0] sm:$0xff] %v1317
  %1440 = vst.msk [vmem:[#allocation5 + $0xc8] sm:$0xff] %vm1173, %v1319
  %1441 = vst [vmem:[#allocation5 + $0xd0] sm:$0xff] %v1321
  %1442 = vst.msk [vmem:[#allocation5 + $0xd8] sm:$0xff] %vm1173, %v1323
  %1443 = vst [vmem:[#allocation5 + $0xe0] sm:$0xff] %v1327
  %1444 = vst.msk [vmem:[#allocation5 + $0xe8] sm:$0xff] %vm1173, %v1329
  %1445 = vst [vmem:[#allocation5 + $0xf0] sm:$0xff] %v1331
  %1446 = vst.msk [vmem:[#allocation5 + $0xf8] sm:$0xff] %vm1173, %v1333
  %1447 = vst [vmem:[#allocation5 + $0x100] sm:$0xff] %v1337
  %1448 = vst.msk [vmem:[#allocation5 + $0x108] sm:$0xff] %vm1173, %v1339
  %1449 = vst [vmem:[#allocation5 + $0x110] sm:$0xff] %v1341
  %1450 = vst.msk [vmem:[#allocation5 + $0x118] sm:$0xff] %vm1173, %v1343
  %1451 = vst [vmem:[#allocation5 + $0x120] sm:$0xff] %v1347
  %1452 = vst.msk [vmem:[#allocation5 + $0x128] sm:$0xff] %vm1173, %v1349
  %1453 = vst [vmem:[#allocation5 + $0x130] sm:$0xff] %v1351
  %1454 = vst.msk [vmem:[#allocation5 + $0x138] sm:$0xff] %vm1173, %v1353
  %1455 = vst [vmem:[#allocation5 + $0x140] sm:$0xff] %v1357
  %1456 = vst.msk [vmem:[#allocation5 + $0x148] sm:$0xff] %vm1173, %v1359
  %1457 = vst [vmem:[#allocation5 + $0x150] sm:$0xff] %v1361
  %1458 = vst.msk [vmem:[#allocation5 + $0x158] sm:$0xff] %vm1173, %v1363
  %1459 = vst [vmem:[#allocation5 + $0x160] sm:$0xff] %v1367
  %1460 = vst.msk [vmem:[#allocation5 + $0x168] sm:$0xff] %vm1173, %v1369
  %1461 = vst [vmem:[#allocation5 + $0x170] sm:$0xff] %v1371
  %1462 = vst.msk [vmem:[#allocation5 + $0x178] sm:$0xff] %vm1173, %v1373
  %1463 = vst [vmem:[#allocation5 + $0x180] sm:$0xff] %v1377
  %1464 = vst.msk [vmem:[#allocation5 + $0x188] sm:$0xff] %vm1173, %v1379
  %1465 = vst [vmem:[#allocation5 + $0x190] sm:$0xff] %v1381
  %1466 = vst.msk [vmem:[#allocation5 + $0x198] sm:$0xff] %vm1173, %v1383
  %1467 = vst [vmem:[#allocation5 + $0x1a0] sm:$0xff] %v1387
  %1468 = vst.msk [vmem:[#allocation5 + $0x1a8] sm:$0xff] %vm1173, %v1389
  %1469 = vst [vmem:[#allocation5 + $0x1b0] sm:$0xff] %v1391
  %1470 = vst.msk [vmem:[#allocation5 + $0x1b8] sm:$0xff] %vm1173, %v1393
  %1471 = vst [vmem:[#allocation5 + $0x1c0] sm:$0xff] %v1397
  %1472 = vst.msk [vmem:[#allocation5 + $0x1c8] sm:$0xff] %vm1173, %v1399
  %1473 = vst [vmem:[#allocation5 + $0x1d0] sm:$0xff] %v1401
  %1474 = vst.msk [vmem:[#allocation5 + $0x1d8] sm:$0xff] %vm1173, %v1403
  %1475 = vst [vmem:[#allocation5 + $0x1e0] sm:$0xff] %v1407
  %1476 = vst.msk [vmem:[#allocation5 + $0x1e8] sm:$0xff] %vm1173, %v1409
  %1477 = vst [vmem:[#allocation5 + $0x1f0] sm:$0xff] %v1411
  %1478 = vst.msk [vmem:[#allocation5 + $0x1f8] sm:$0xff] %vm1173, %v1413
  %v1479 = vlaneseq
  %v1480 = vshrl.u32 %v1479, 7
  %v1481 = vsub.s32 0, %v1480
  %v1482 = vrot.slane %v1041, %v1481
  %v1491 = vunpack.c.l.b16 %v1033
  %v1492 = vunpack.c.h.b16 %v1033
  %v1493 = vunpack.c.l.b16 %v1034
  %v1494 = vunpack.c.h.b16 %v1034
  %v1495 = vunpack.c.l.b16 %v1035
  %v1496 = vunpack.c.h.b16 %v1035
  %v1497 = vunpack.c.l.b16 %v1036
  %v1498 = vunpack.c.h.b16 %v1036
  %v1499 = vunpack.c.l.b16 %v1037
  %v1500 = vunpack.c.h.b16 %v1037
  %v1501 = vunpack.c.l.b16 %v1038
  %v1502 = vunpack.c.h.b16 %v1038
  %v1503 = vunpack.c.l.b16 %v1039
  %v1504 = vunpack.c.h.b16 %v1039
  %v1505 = vunpack.c.l.b16 %v1040
  %v1506 = vunpack.c.h.b16 %v1040
  %v1507 = vpack.c.b16 %v1493, %v1491
  %v1508 = vpack.c.b16 %v1494, %v1492
  %v1509 = vpack.c.b16 %v1497, %v1495
  %v1510 = vpack.c.b16 %v1498, %v1496
  %v1511 = vpack.c.b16 %v1501, %v1499
  %v1512 = vpack.c.b16 %v1502, %v1500
  %v1513 = vpack.c.b16 %v1505, %v1503
  %v1514 = vpack.c.b16 %v1506, %v1504
  %v1524 = vsel %vm1173, 0, 0
  %1526 = vmatprep.subr.bf16.mxu0 0
  %1527 = vmatpush1.bf16.msra.mxu0 0
  %1528 = vmatprep.subr.bf16.mxu0 0
  %1529 = vmatpush1.bf16.msra.mxu0 0
  %1530 = vmatprep.subr.bf16.mxu0 0
  %1531 = vmatpush1.bf16.msra.mxu0 0
  %1532 = vmatprep.subr.bf16.mxu0 0
  %1533 = vmatpush1.bf16.msra.mxu0 0
  %1534 = vmatprep.subr.bf16.mxu0 %v1514
  %1535 = vmatpush1.bf16.msra.mxu0 %v1513
  %1536 = vmatprep.subr.bf16.mxu0 %v1512
  %1537 = vmatpush1.bf16.msra.mxu0 %v1511
  %1538 = vmatprep.subr.bf16.mxu0 %v1510
  %1539 = vmatpush1.bf16.msra.mxu0 %v1509
  %1540 = vmatprep.subr.bf16.mxu0 %v1508
  %1541 = vmatpush1.bf16.msra.mxu0 %v1507
  %1542 = vmatprep.subr.bf16.mxu0 0
  %1543 = vmatpush2.bf16.msra.mxu0 0
  %1544 = vmatprep.subr.bf16.mxu0 0
  %1545 = vmatpush2.bf16.msra.mxu0 0
  %1546 = vmatprep.subr.bf16.mxu0 0
  %1547 = vmatpush2.bf16.msra.mxu0 0
  %1548 = vmatprep.subr.bf16.mxu0 0
  %1549 = vmatpush2.bf16.msra.mxu0 0
  %1550 = vmatprep.subr.bf16.mxu0 0
  %1551 = vmatpush2.bf16.msra.mxu0 0
  %1552 = vmatprep.subr.bf16.mxu0 0
  %1553 = vmatpush2.bf16.msra.mxu0 0
  %1554 = vmatprep.subr.bf16.mxu0 0
  %1555 = vmatpush2.bf16.msra.mxu0 0
  %1556 = vmatprep.subr.bf16.mxu0 0
  %1557 = vmatpush2.bf16.msra.mxu0 0
  %1558 = vmatprep.mubr.bf16.mxu0 0
  %1559 = vmatmul.mubr.bf16.gmra.mxu0 %v1524
  %v1560 = vpop.f32.mrf.mxu0
  %v1561 = vadd.f32 0.0, %v1560
  %v1562 = vpop.f32.mrf.mxu0
  %v1563 = vadd.f32 0.0, %v1562
  %v1564 = vpop.f32.mrf.mxu0
  %v1565 = vadd.f32 0.0, %v1564
  %v1566 = vpop.f32.mrf.mxu0
  %v1567 = vadd.f32 0.0, %v1566
  %1568 = vmatprep.mubr.bf16.mxu0 0
  %1569 = vmatmul.mubr.bf16.gmra.mxu0 %v1524
  %v1570 = vpop.f32.mrf.mxu0
  %v1571 = vadd.f32 0.0, %v1570
  %v1572 = vpop.f32.mrf.mxu0
  %v1573 = vadd.f32 0.0, %v1572
  %v1574 = vpop.f32.mrf.mxu0
  %v1575 = vadd.f32 0.0, %v1574
  %v1576 = vpop.f32.mrf.mxu0
  %v1577 = vadd.f32 0.0, %v1576
  %1578 = vdwg.mxu0
  %v1579 = vld [vmem:[#allocation5] sm:$0xff]
  %v1580 = vld [vmem:[#allocation5 + $0x10] sm:$0xff]
  %v1581 = vld [vmem:[#allocation5 + $0x20] sm:$0xff]
  %v1582 = vld [vmem:[#allocation5 + $0x30] sm:$0xff]
  %v1583 = vadd.f32 %v1579, %v1561
  %v1584 = vadd.f32 %v1580, %v1565
  %v1585 = vadd.f32 %v1581, %v1571
  %v1586 = vadd.f32 %v1582, %v1575
  %v1587 = vmul.f32 %v1583, 0.5
  %v1588 = vmul.f32 %v1584, 0.5
  %v1589 = vmul.f32 %v1585, 0.5
  %v1590 = vmul.f32 %v1586, 0.5
  %v1591 = vtanh.pop %v1587
  %v1592 = vtanh.pop %v1588
  %v1593 = vtanh.pop %v1589
  %v1594 = vtanh.pop %v1590
  %v1595 = vmul.f32 %v1591, 0.5
  %v1596 = vmul.f32 %v1592, 0.5
  %v1597 = vmul.f32 %v1593, 0.5
  %v1598 = vmul.f32 %v1594, 0.5
  %v1599 = vadd.f32 %v1595, 0.5
  %v1600 = vadd.f32 %v1596, 0.5
  %v1601 = vadd.f32 %v1597, 0.5
  %v1602 = vadd.f32 %v1598, 0.5
  %v1603 = vld [vmem:[#allocation5 + $0x8] sm:$0xff]
  %v1604 = vld [vmem:[#allocation5 + $0x18] sm:$0xff]
  %v1605 = vld [vmem:[#allocation5 + $0x28] sm:$0xff]
  %v1606 = vld [vmem:[#allocation5 + $0x38] sm:$0xff]
  %v1607 = vadd.f32 %v1563, %v1482
  %v1608 = vadd.f32 %v1567, %v1482
  %v1609 = vadd.f32 %v1573, %v1482
  %v1610 = vadd.f32 %v1577, %v1482
  %v1611 = vmul.f32 %v1599, %v1607
  %v1612 = vmul.f32 %v1600, %v1608
  %v1613 = vmul.f32 %v1601, %v1609
  %v1614 = vmul.f32 %v1602, %v1610
  %v1615 = vadd.f32 %v1603, %v1611
  %v1616 = vadd.f32 %v1604, %v1612
  %v1617 = vadd.f32 %v1605, %v1613
  %v1618 = vadd.f32 %v1606, %v1614
  %v1619 = vtanh.pop %v1615
  %v1620 = vtanh.pop %v1616
  %v1621 = vtanh.pop %v1617
  %v1622 = vtanh.pop %v1618
  %v1623 = vsub.f32 1.0, %v1599
  %v1624 = vsub.f32 1.0, %v1600
  %v1625 = vsub.f32 1.0, %v1601
  %v1626 = vsub.f32 1.0, %v1602
  %1631 = vrot.lane.b32.xlu0 %v1619, 64
  %v1632 = vpop.permute.xlu0 %1631
  %1633 = vrot.lane.b32.xlu0 %v1620, 64
  %v1634 = vpop.permute.xlu0 %1633
  %1635 = vrot.lane.b32.xlu0 %v1621, 64
  %v1636 = vpop.permute.xlu0 %1635
  %1637 = vrot.lane.b32.xlu0 %v1622, 64
  %v1638 = vpop.permute.xlu0 %1637
  %v1643 = vmul.f32 %v1623, %v1632
  %v1644 = vmul.f32 %v1624, %v1634
  %v1645 = vmul.f32 %v1625, %v1636
  %v1646 = vmul.f32 %v1626, %v1638
  %v1647 = vmul.f32 %v1599, 0.0
  %v1648 = vmul.f32 %v1600, 0.0
  %v1649 = vmul.f32 %v1601, 0.0
  %v1650 = vmul.f32 %v1602, 0.0
  %v1651 = vadd.f32 %v1643, %v1647
  %v1652 = vadd.f32 %v1644, %v1648
  %v1653 = vadd.f32 %v1645, %v1649
  %v1654 = vadd.f32 %v1646, %v1650
  %v1655 = vpack.c.bf16 %v1652, %v1651
  %v1656 = vpack.c.bf16 %v1654, %v1653
  %v1659 = vunpack.c.l.b16 %v1655
  %v1660 = vunpack.c.h.b16 %v1655
  %v1661 = vunpack.c.l.b16 %v1656
  %v1662 = vunpack.c.h.b16 %v1656
  %v1663 = vpack.c.b16 %v1659, %v1659
  %v1664 = vpack.c.b16 %v1660, %v1660
  %v1665 = vpack.c.b16 %v1661, %v1661
  %v1666 = vpack.c.b16 %v1662, %v1662
  %1667 = vrot.lane.b32.xlu0 %v1663, 64
  %v1668 = vpop.permute.xlu0 %1667
  %1669 = vrot.lane.b32.xlu0 %v1664, 64
  %v1670 = vpop.permute.xlu0 %1669
  %1671 = vrot.lane.b32.xlu0 %v1665, 64
  %v1672 = vpop.permute.xlu0 %1671
  %1673 = vrot.lane.b32.xlu0 %v1666, 64
  %v1674 = vpop.permute.xlu0 %1673
  %1679 = vst.msk [vmem:[#allocation4] sm:$0xf] %vm605, %v1668
  %1680 = vst.msk [vmem:[#allocation4 + $0x4] sm:$0xf] %vm605, %v1670
  %1681 = vst.msk [vmem:[#allocation4 + $0x8] sm:$0xf] %vm605, %v1672
  %1682 = vst.msk [vmem:[#allocation4 + $0xc] sm:$0xf] %vm605, %v1674
  %1683 = vst.msk [vmem:[#allocation4 + $0x70] sm:$0xf] %vm622, %v1668
  %1684 = vst.msk [vmem:[#allocation4 + $0x74] sm:$0xf] %vm622, %v1670
  %1685 = vst.msk [vmem:[#allocation4 + $0x78] sm:$0xf] %vm622, %v1672
  %1686 = vst.msk [vmem:[#allocation4 + $0x7c] sm:$0xf] %vm622, %v1674
  %vm1691 = vcmask 781824
  %1692 = vst.msk [vmem:[#allocation4 + $0x70] sm:$0xf] %vm1691, %v1663
  %1693 = vst.msk [vmem:[#allocation4 + $0x74] sm:$0xf] %vm1691, %v1664
  %1694 = vst.msk [vmem:[#allocation4 + $0x78] sm:$0xf] %vm1691, %v1665
  %1695 = vst.msk [vmem:[#allocation4 + $0x7c] sm:$0xf] %vm1691, %v1666
  %vm1696 = vcmask 1044224
  %1697 = vst.msk [vmem:[#allocation4] sm:$0xf] %vm1696, %v1663
  %1698 = vst.msk [vmem:[#allocation4 + $0x4] sm:$0xf] %vm1696, %v1664
  %1699 = vst.msk [vmem:[#allocation4 + $0x8] sm:$0xf] %vm1696, %v1665
  %1700 = vst.msk [vmem:[#allocation4 + $0xc] sm:$0xf] %vm1696, %v1666
  %1701 = vrot.lane.b32.xlu0 %v1655, 64
  %v1702 = vpop.permute.xlu0 %1701
  %1703 = vrot.lane.b32.xlu0 %v1656, 64
  %v1704 = vpop.permute.xlu0 %1703
  %v1706 = vsel %vm1173, %v1702, 0
  %v1709 = vsel %vm1173, %v1704, 0
  %1711 = vmatprep.subr.bf16.mxu0 0
  %1712 = vmatpush1.bf16.msra.mxu0 0
  %1713 = vmatprep.subr.bf16.mxu0 0
  %1714 = vmatpush1.bf16.msra.mxu0 0
  %1715 = vmatprep.subr.bf16.mxu0 0
  %1716 = vmatpush1.bf16.msra.mxu0 0
  %1717 = vmatprep.subr.bf16.mxu0 0
  %1718 = vmatpush1.bf16.msra.mxu0 0
  %1719 = vmatprep.subr.bf16.mxu0 %v1514
  %1720 = vmatpush1.bf16.msra.mxu0 %v1513
  %1721 = vmatprep.subr.bf16.mxu0 %v1512
  %1722 = vmatpush1.bf16.msra.mxu0 %v1511
  %1723 = vmatprep.subr.bf16.mxu0 %v1510
  %1724 = vmatpush1.bf16.msra.mxu0 %v1509
  %1725 = vmatprep.subr.bf16.mxu0 %v1508
  %1726 = vmatpush1.bf16.msra.mxu0 %v1507
  %1727 = vmatprep.subr.bf16.mxu0 0
  %1728 = vmatpush2.bf16.msra.mxu0 0
  %1729 = vmatprep.subr.bf16.mxu0 0
  %1730 = vmatpush2.bf16.msra.mxu0 0
  %1731 = vmatprep.subr.bf16.mxu0 0
  %1732 = vmatpush2.bf16.msra.mxu0 0
  %1733 = vmatprep.subr.bf16.mxu0 0
  %1734 = vmatpush2.bf16.msra.mxu0 0
  %1735 = vmatprep.subr.bf16.mxu0 0
  %1736 = vmatpush2.bf16.msra.mxu0 0
  %1737 = vmatprep.subr.bf16.mxu0 0
  %1738 = vmatpush2.bf16.msra.mxu0 0
  %1739 = vmatprep.subr.bf16.mxu0 0
  %1740 = vmatpush2.bf16.msra.mxu0 0
  %1741 = vmatprep.subr.bf16.mxu0 0
  %1742 = vmatpush2.bf16.msra.mxu0 0
  %1743 = vmatprep.mubr.bf16.mxu0 0
  %1744 = vmatmul.mubr.bf16.gmra.mxu0 %v1706
  %v1745 = vpop.f32.mrf.mxu0
  %v1746 = vadd.f32 0.0, %v1745
  %v1747 = vpop.f32.mrf.mxu0
  %v1748 = vadd.f32 0.0, %v1747
  %v1749 = vpop.f32.mrf.mxu0
  %v1750 = vadd.f32 0.0, %v1749
  %v1751 = vpop.f32.mrf.mxu0
  %v1752 = vadd.f32 0.0, %v1751
  %1753 = vmatprep.mubr.bf16.mxu0 0
  %1754 = vmatmul.mubr.bf16.gmra.mxu0 %v1709
  %v1755 = vpop.f32.mrf.mxu0
  %v1756 = vadd.f32 0.0, %v1755
  %v1757 = vpop.f32.mrf.mxu0
  %v1758 = vadd.f32 0.0, %v1757
  %v1759 = vpop.f32.mrf.mxu0
  %v1760 = vadd.f32 0.0, %v1759
  %v1761 = vpop.f32.mrf.mxu0
  %v1762 = vadd.f32 0.0, %v1761
  %1763 = vdwg.mxu0
  %v1764 = vld [vmem:[#allocation5 + $0x40] sm:$0xff]
  %v1765 = vld [vmem:[#allocation5 + $0x50] sm:$0xff]
  %v1766 = vld [vmem:[#allocation5 + $0x60] sm:$0xff]
  %v1767 = vld [vmem:[#allocation5 + $0x70] sm:$0xff]
  %v1768 = vadd.f32 %v1764, %v1746
  %v1769 = vadd.f32 %v1765, %v1750
  %v1770 = vadd.f32 %v1766, %v1756
  %v1771 = vadd.f32 %v1767, %v1760
  %v1772 = vmul.f32 %v1768, 0.5
  %v1773 = vmul.f32 %v1769, 0.5
  %v1774 = vmul.f32 %v1770, 0.5
  %v1775 = vmul.f32 %v1771, 0.5
  %v1776 = vtanh.pop %v1772
  %v1777 = vtanh.pop %v1773
  %v1778 = vtanh.pop %v1774
  %v1779 = vtanh.pop %v1775
  %v1780 = vmul.f32 %v1776, 0.5
  %v1781 = vmul.f32 %v1777, 0.5
  %v1782 = vmul.f32 %v1778, 0.5
  %v1783 = vmul.f32 %v1779, 0.5
  %v1784 = vadd.f32 %v1780, 0.5
  %v1785 = vadd.f32 %v1781, 0.5
  %v1786 = vadd.f32 %v1782, 0.5
  %v1787 = vadd.f32 %v1783, 0.5
  %v1788 = vld [vmem:[#allocation5 + $0x48] sm:$0xff]
  %v1789 = vld [vmem:[#allocation5 + $0x58] sm:$0xff]
  %v1790 = vld [vmem:[#allocation5 + $0x68] sm:$0xff]
  %v1791 = vld [vmem:[#allocation5 + $0x78] sm:$0xff]
  %v1792 = vadd.f32 %v1748, %v1482
  %v1793 = vadd.f32 %v1752, %v1482
  %v1794 = vadd.f32 %v1758, %v1482
  %v1795 = vadd.f32 %v1762, %v1482
  %v1796 = vmul.f32 %v1784, %v1792
  %v1797 = vmul.f32 %v1785, %v1793
  %v1798 = vmul.f32 %v1786, %v1794
  %v1799 = vmul.f32 %v1787, %v1795
  %v1800 = vadd.f32 %v1788, %v1796
  %v1801 = vadd.f32 %v1789, %v1797
  %v1802 = vadd.f32 %v1790, %v1798
  %v1803 = vadd.f32 %v1791, %v1799
  %v1804 = vtanh.pop %v1800
  %v1805 = vtanh.pop %v1801
  %v1806 = vtanh.pop %v1802
  %v1807 = vtanh.pop %v1803
  %v1808 = vsub.f32 1.0, %v1784
  %v1809 = vsub.f32 1.0, %v1785
  %v1810 = vsub.f32 1.0, %v1786
  %v1811 = vsub.f32 1.0, %v1787
  %1816 = vrot.lane.b32.xlu0 %v1804, 64
  %v1817 = vpop.permute.xlu0 %1816
  %1818 = vrot.lane.b32.xlu0 %v1805, 64
  %v1819 = vpop.permute.xlu0 %1818
  %1820 = vrot.lane.b32.xlu0 %v1806, 64
  %v1821 = vpop.permute.xlu0 %1820
  %1822 = vrot.lane.b32.xlu0 %v1807, 64
  %v1823 = vpop.permute.xlu0 %1822
  %v1828 = vmul.f32 %v1808, %v1817
  %v1829 = vmul.f32 %v1809, %v1819
  %v1830 = vmul.f32 %v1810, %v1821
  %v1831 = vmul.f32 %v1811, %v1823
  %v1832 = vmul.f32 %v1784, %v1651
  %v1833 = vmul.f32 %v1785, %v1652
  %v1834 = vmul.f32 %v1786, %v1653
  %v1835 = vmul.f32 %v1787, %v1654
  %v1836 = vadd.f32 %v1828, %v1832
  %v1837 = vadd.f32 %v1829, %v1833
  %v1838 = vadd.f32 %v1830, %v1834
  %v1839 = vadd.f32 %v1831, %v1835
  %v1840 = vpack.c.bf16 %v1837, %v1836
  %v1841 = vpack.c.bf16 %v1839, %v1838
  %v1844 = vunpack.c.l.b16 %v1840
  %v1845 = vunpack.c.h.b16 %v1840
  %v1846 = vunpack.c.l.b16 %v1841
  %v1847 = vunpack.c.h.b16 %v1841
  %v1848 = vpack.c.b16 %v1844, %v1844
  %v1849 = vpack.c.b16 %v1845, %v1845
  %v1850 = vpack.c.b16 %v1846, %v1846
  %v1851 = vpack.c.b16 %v1847, %v1847
  %1852 = vrot.lane.b32.xlu0 %v1848, 64
  %v1853 = vpop.permute.xlu0 %1852
  %1854 = vrot.lane.b32.xlu0 %v1849, 64
  %v1855 = vpop.permute.xlu0 %1854
  %1856 = vrot.lane.b32.xlu0 %v1850, 64
  %v1857 = vpop.permute.xlu0 %1856
  %1858 = vrot.lane.b32.xlu0 %v1851, 64
  %v1859 = vpop.permute.xlu0 %1858
  %1864 = vst.msk [vmem:[#allocation4 + $0x10] sm:$0xf] %vm605, %v1853
  %1865 = vst.msk [vmem:[#allocation4 + $0x14] sm:$0xf] %vm605, %v1855
  %1866 = vst.msk [vmem:[#allocation4 + $0x18] sm:$0xf] %vm605, %v1857
  %1867 = vst.msk [vmem:[#allocation4 + $0x1c] sm:$0xf] %vm605, %v1859
  %1868 = vst.msk [vmem:[#allocation4 + $0x60] sm:$0xf] %vm622, %v1853
  %1869 = vst.msk [vmem:[#allocation4 + $0x64] sm:$0xf] %vm622, %v1855
  %1870 = vst.msk [vmem:[#allocation4 + $0x68] sm:$0xf] %vm622, %v1857
  %1871 = vst.msk [vmem:[#allocation4 + $0x6c] sm:$0xf] %vm622, %v1859
  %1876 = vst.msk [vmem:[#allocation4 + $0x60] sm:$0xf] %vm1691, %v1848
  %1877 = vst.msk [vmem:[#allocation4 + $0x64] sm:$0xf] %vm1691, %v1849
  %1878 = vst.msk [vmem:[#allocation4 + $0x68] sm:$0xf] %vm1691, %v1850
  %1879 = vst.msk [vmem:[#allocation4 + $0x6c] sm:$0xf] %vm1691, %v1851
  %1880 = vst.msk [vmem:[#allocation4 + $0x10] sm:$0xf] %vm1696, %v1848
  %1881 = vst.msk [vmem:[#allocation4 + $0x14] sm:$0xf] %vm1696, %v1849
  %1882 = vst.msk [vmem:[#allocation4 + $0x18] sm:$0xf] %vm1696, %v1850
  %1883 = vst.msk [vmem:[#allocation4 + $0x1c] sm:$0xf] %vm1696, %v1851
  %1884 = vrot.lane.b32.xlu0 %v1840, 64
  %v1885 = vpop.permute.xlu0 %1884
  %1886 = vrot.lane.b32.xlu0 %v1841, 64
  %v1887 = vpop.permute.xlu0 %1886
  %v1889 = vsel %vm1173, %v1885, 0
  %v1892 = vsel %vm1173, %v1887, 0
  %1894 = vmatprep.subr.bf16.mxu0 0
  %1895 = vmatpush1.bf16.msra.mxu0 0
  %1896 = vmatprep.subr.bf16.mxu0 0
  %1897 = vmatpush1.bf16.msra.mxu0 0
  %1898 = vmatprep.subr.bf16.mxu0 0
  %1899 = vmatpush1.bf16.msra.mxu0 0
  %1900 = vmatprep.subr.bf16.mxu0 0
  %1901 = vmatpush1.bf16.msra.mxu0 0
  %1902 = vmatprep.subr.bf16.mxu0 %v1514
  %1903 = vmatpush1.bf16.msra.mxu0 %v1513
  %1904 = vmatprep.subr.bf16.mxu0 %v1512
  %1905 = vmatpush1.bf16.msra.mxu0 %v1511
  %1906 = vmatprep.subr.bf16.mxu0 %v1510
  %1907 = vmatpush1.bf16.msra.mxu0 %v1509
  %1908 = vmatprep.subr.bf16.mxu0 %v1508
  %1909 = vmatpush1.bf16.msra.mxu0 %v1507
  %1910 = vmatprep.subr.bf16.mxu0 0
  %1911 = vmatpush2.bf16.msra.mxu0 0
  %1912 = vmatprep.subr.bf16.mxu0 0
  %1913 = vmatpush2.bf16.msra.mxu0 0
  %1914 = vmatprep.subr.bf16.mxu0 0
  %1915 = vmatpush2.bf16.msra.mxu0 0
  %1916 = vmatprep.subr.bf16.mxu0 0
  %1917 = vmatpush2.bf16.msra.mxu0 0
  %1918 = vmatprep.subr.bf16.mxu0 0
  %1919 = vmatpush2.bf16.msra.mxu0 0
  %1920 = vmatprep.subr.bf16.mxu0 0
  %1921 = vmatpush2.bf16.msra.mxu0 0
  %1922 = vmatprep.subr.bf16.mxu0 0
  %1923 = vmatpush2.bf16.msra.mxu0 0
  %1924 = vmatprep.subr.bf16.mxu0 0
  %1925 = vmatpush2.bf16.msra.mxu0 0
  %1926 = vmatprep.mubr.bf16.mxu0 0
  %1927 = vmatmul.mubr.bf16.gmra.mxu0 %v1889
  %v1928 = vpop.f32.mrf.mxu0
  %v1929 = vadd.f32 0.0, %v1928
  %v1930 = vpop.f32.mrf.mxu0
  %v1931 = vadd.f32 0.0, %v1930
  %v1932 = vpop.f32.mrf.mxu0
  %v1933 = vadd.f32 0.0, %v1932
  %v1934 = vpop.f32.mrf.mxu0
  %v1935 = vadd.f32 0.0, %v1934
  %1936 = vmatprep.mubr.bf16.mxu0 0
  %1937 = vmatmul.mubr.bf16.gmra.mxu0 %v1892
  %v1938 = vpop.f32.mrf.mxu0
  %v1939 = vadd.f32 0.0, %v1938
  %v1940 = vpop.f32.mrf.mxu0
  %v1941 = vadd.f32 0.0, %v1940
  %v1942 = vpop.f32.mrf.mxu0
  %v1943 = vadd.f32 0.0, %v1942
  %v1944 = vpop.f32.mrf.mxu0
  %v1945 = vadd.f32 0.0, %v1944
  %1946 = vdwg.mxu0
  %v1947 = vld [vmem:[#allocation5 + $0x80] sm:$0xff]
  %v1948 = vld [vmem:[#allocation5 + $0x90] sm:$0xff]
  %v1949 = vld [vmem:[#allocation5 + $0xa0] sm:$0xff]
  %v1950 = vld [vmem:[#allocation5 + $0xb0] sm:$0xff]
  %v1951 = vadd.f32 %v1947, %v1929
  %v1952 = vadd.f32 %v1948, %v1933
  %v1953 = vadd.f32 %v1949, %v1939
  %v1954 = vadd.f32 %v1950, %v1943
  %v1955 = vmul.f32 %v1951, 0.5
  %v1956 = vmul.f32 %v1952, 0.5
  %v1957 = vmul.f32 %v1953, 0.5
  %v1958 = vmul.f32 %v1954, 0.5
  %v1959 = vtanh.pop %v1955
  %v1960 = vtanh.pop %v1956
  %v1961 = vtanh.pop %v1957
  %v1962 = vtanh.pop %v1958
  %v1963 = vmul.f32 %v1959, 0.5
  %v1964 = vmul.f32 %v1960, 0.5
  %v1965 = vmul.f32 %v1961, 0.5
  %v1966 = vmul.f32 %v1962, 0.5
  %v1967 = vadd.f32 %v1963, 0.5
  %v1968 = vadd.f32 %v1964, 0.5
  %v1969 = vadd.f32 %v1965, 0.5
  %v1970 = vadd.f32 %v1966, 0.5
  %v1971 = vld [vmem:[#allocation5 + $0x88] sm:$0xff]
  %v1972 = vld [vmem:[#allocation5 + $0x98] sm:$0xff]
  %v1973 = vld [vmem:[#allocation5 + $0xa8] sm:$0xff]
  %v1974 = vld [vmem:[#allocation5 + $0xb8] sm:$0xff]
  %v1975 = vadd.f32 %v1931, %v1482
  %v1976 = vadd.f32 %v1935, %v1482
  %v1977 = vadd.f32 %v1941, %v1482
  %v1978 = vadd.f32 %v1945, %v1482
  %v1979 = vmul.f32 %v1967, %v1975
  %v1980 = vmul.f32 %v1968, %v1976
  %v1981 = vmul.f32 %v1969, %v1977
  %v1982 = vmul.f32 %v1970, %v1978
  %v1983 = vadd.f32 %v1971, %v1979
  %v1984 = vadd.f32 %v1972, %v1980
  %v1985 = vadd.f32 %v1973, %v1981
  %v1986 = vadd.f32 %v1974, %v1982
  %v1987 = vtanh.pop %v1983
  %v1988 = vtanh.pop %v1984
  %v1989 = vtanh.pop %v1985
  %v1990 = vtanh.pop %v1986
  %v1991 = vsub.f32 1.0, %v1967
  %v1992 = vsub.f32 1.0, %v1968
  %v1993 = vsub.f32 1.0, %v1969
  %v1994 = vsub.f32 1.0, %v1970
  %1999 = vrot.lane.b32.xlu0 %v1987, 64
  %v2000 = vpop.permute.xlu0 %1999
  %2001 = vrot.lane.b32.xlu0 %v1988, 64
  %v2002 = vpop.permute.xlu0 %2001
  %2003 = vrot.lane.b32.xlu0 %v1989, 64
  %v2004 = vpop.permute.xlu0 %2003
  %2005 = vrot.lane.b32.xlu0 %v1990, 64
  %v2006 = vpop.permute.xlu0 %2005
  %v2011 = vmul.f32 %v1991, %v2000
  %v2012 = vmul.f32 %v1992, %v2002
  %v2013 = vmul.f32 %v1993, %v2004
  %v2014 = vmul.f32 %v1994, %v2006
  %v2015 = vmul.f32 %v1967, %v1836
  %v2016 = vmul.f32 %v1968, %v1837
  %v2017 = vmul.f32 %v1969, %v1838
  %v2018 = vmul.f32 %v1970, %v1839
  %v2019 = vadd.f32 %v2011, %v2015
  %v2020 = vadd.f32 %v2012, %v2016
  %v2021 = vadd.f32 %v2013, %v2017
  %v2022 = vadd.f32 %v2014, %v2018
  %v2023 = vpack.c.bf16 %v2020, %v2019
  %v2024 = vpack.c.bf16 %v2022, %v2021
  %v2027 = vunpack.c.l.b16 %v2023
  %v2028 = vunpack.c.h.b16 %v2023
  %v2029 = vunpack.c.l.b16 %v2024
  %v2030 = vunpack.c.h.b16 %v2024
  %v2031 = vpack.c.b16 %v2027, %v2027
  %v2032 = vpack.c.b16 %v2028, %v2028
  %v2033 = vpack.c.b16 %v2029, %v2029
  %v2034 = vpack.c.b16 %v2030, %v2030
  %2035 = vrot.lane.b32.xlu0 %v2031, 64
  %v2036 = vpop.permute.xlu0 %2035
  %2037 = vrot.lane.b32.xlu0 %v2032, 64
  %v2038 = vpop.permute.xlu0 %2037
  %2039 = vrot.lane.b32.xlu0 %v2033, 64
  %v2040 = vpop.permute.xlu0 %2039
  %2041 = vrot.lane.b32.xlu0 %v2034, 64
  %v2042 = vpop.permute.xlu0 %2041
  %2047 = vst.msk [vmem:[#allocation4 + $0x20] sm:$0xf] %vm605, %v2036
  %2048 = vst.msk [vmem:[#allocation4 + $0x24] sm:$0xf] %vm605, %v2038
  %2049 = vst.msk [vmem:[#allocation4 + $0x28] sm:$0xf] %vm605, %v2040
  %2050 = vst.msk [vmem:[#allocation4 + $0x2c] sm:$0xf] %vm605, %v2042
  %2051 = vst.msk [vmem:[#allocation4 + $0x50] sm:$0xf] %vm622, %v2036
  %2052 = vst.msk [vmem:[#allocation4 + $0x54] sm:$0xf] %vm622, %v2038
  %2053 = vst.msk [vmem:[#allocation4 + $0x58] sm:$0xf] %vm622, %v2040
  %2054 = vst.msk [vmem:[#allocation4 + $0x5c] sm:$0xf] %vm622, %v2042
  %2059 = vst.msk [vmem:[#allocation4 + $0x50] sm:$0xf] %vm1691, %v2031
  %2060 = vst.msk [vmem:[#allocation4 + $0x54] sm:$0xf] %vm1691, %v2032
  %2061 = vst.msk [vmem:[#allocation4 + $0x58] sm:$0xf] %vm1691, %v2033
  %2062 = vst.msk [vmem:[#allocation4 + $0x5c] sm:$0xf] %vm1691, %v2034
  %2063 = vst.msk [vmem:[#allocation4 + $0x20] sm:$0xf] %vm1696, %v2031
  %2064 = vst.msk [vmem:[#allocation4 + $0x24] sm:$0xf] %vm1696, %v2032
  %2065 = vst.msk [vmem:[#allocation4 + $0x28] sm:$0xf] %vm1696, %v2033
  %2066 = vst.msk [vmem:[#allocation4 + $0x2c] sm:$0xf] %vm1696, %v2034
  %2067 = vrot.lane.b32.xlu0 %v2023, 64
  %v2068 = vpop.permute.xlu0 %2067
  %2069 = vrot.lane.b32.xlu0 %v2024, 64
  %v2070 = vpop.permute.xlu0 %2069
  %v2072 = vsel %vm1173, %v2068, 0
  %v2075 = vsel %vm1173, %v2070, 0
  %2077 = vmatprep.subr.bf16.mxu0 0
  %2078 = vmatpush1.bf16.msra.mxu0 0
  %2079 = vmatprep.subr.bf16.mxu0 0
  %2080 = vmatpush1.bf16.msra.mxu0 0
  %2081 = vmatprep.subr.bf16.mxu0 0
  %2082 = vmatpush1.bf16.msra.mxu0 0
  %2083 = vmatprep.subr.bf16.mxu0 0
  %2084 = vmatpush1.bf16.msra.mxu0 0
  %2085 = vmatprep.subr.bf16.mxu0 %v1514
  %2086 = vmatpush1.bf16.msra.mxu0 %v1513
  %2087 = vmatprep.subr.bf16.mxu0 %v1512
  %2088 = vmatpush1.bf16.msra.mxu0 %v1511
  %2089 = vmatprep.subr.bf16.mxu0 %v1510
  %2090 = vmatpush1.bf16.msra.mxu0 %v1509
  %2091 = vmatprep.subr.bf16.mxu0 %v1508
  %2092 = vmatpush1.bf16.msra.mxu0 %v1507
  %2093 = vmatprep.subr.bf16.mxu0 0
  %2094 = vmatpush2.bf16.msra.mxu0 0
  %2095 = vmatprep.subr.bf16.mxu0 0
  %2096 = vmatpush2.bf16.msra.mxu0 0
  %2097 = vmatprep.subr.bf16.mxu0 0
  %2098 = vmatpush2.bf16.msra.mxu0 0
  %2099 = vmatprep.subr.bf16.mxu0 0
  %2100 = vmatpush2.bf16.msra.mxu0 0
  %2101 = vmatprep.subr.bf16.mxu0 0
  %2102 = vmatpush2.bf16.msra.mxu0 0
  %2103 = vmatprep.subr.bf16.mxu0 0
  %2104 = vmatpush2.bf16.msra.mxu0 0
  %2105 = vmatprep.subr.bf16.mxu0 0
  %2106 = vmatpush2.bf16.msra.mxu0 0
  %2107 = vmatprep.subr.bf16.mxu0 0
  %2108 = vmatpush2.bf16.msra.mxu0 0
  %2109 = vmatprep.mubr.bf16.mxu0 0
  %2110 = vmatmul.mubr.bf16.gmra.mxu0 %v2072
  %v2111 = vpop.f32.mrf.mxu0
  %v2112 = vadd.f32 0.0, %v2111
  %v2113 = vpop.f32.mrf.mxu0
  %v2114 = vadd.f32 0.0, %v2113
  %v2115 = vpop.f32.mrf.mxu0
  %v2116 = vadd.f32 0.0, %v2115
  %v2117 = vpop.f32.mrf.mxu0
  %v2118 = vadd.f32 0.0, %v2117
  %2119 = vmatprep.mubr.bf16.mxu0 0
  %2120 = vmatmul.mubr.bf16.gmra.mxu0 %v2075
  %v2121 = vpop.f32.mrf.mxu0
  %v2122 = vadd.f32 0.0, %v2121
  %v2123 = vpop.f32.mrf.mxu0
  %v2124 = vadd.f32 0.0, %v2123
  %v2125 = vpop.f32.mrf.mxu0
  %v2126 = vadd.f32 0.0, %v2125
  %v2127 = vpop.f32.mrf.mxu0
  %v2128 = vadd.f32 0.0, %v2127
  %2129 = vdwg.mxu0
  %v2130 = vld [vmem:[#allocation5 + $0xc0] sm:$0xff]
  %v2131 = vld [vmem:[#allocation5 + $0xd0] sm:$0xff]
  %v2132 = vld [vmem:[#allocation5 + $0xe0] sm:$0xff]
  %v2133 = vld [vmem:[#allocation5 + $0xf0] sm:$0xff]
  %v2134 = vadd.f32 %v2130, %v2112
  %v2135 = vadd.f32 %v2131, %v2116
  %v2136 = vadd.f32 %v2132, %v2122
  %v2137 = vadd.f32 %v2133, %v2126
  %v2138 = vmul.f32 %v2134, 0.5
  %v2139 = vmul.f32 %v2135, 0.5
  %v2140 = vmul.f32 %v2136, 0.5
  %v2141 = vmul.f32 %v2137, 0.5
  %v2142 = vtanh.pop %v2138
  %v2143 = vtanh.pop %v2139
  %v2144 = vtanh.pop %v2140
  %v2145 = vtanh.pop %v2141
  %v2146 = vmul.f32 %v2142, 0.5
  %v2147 = vmul.f32 %v2143, 0.5
  %v2148 = vmul.f32 %v2144, 0.5
  %v2149 = vmul.f32 %v2145, 0.5
  %v2150 = vadd.f32 %v2146, 0.5
  %v2151 = vadd.f32 %v2147, 0.5
  %v2152 = vadd.f32 %v2148, 0.5
  %v2153 = vadd.f32 %v2149, 0.5
  %v2154 = vld [vmem:[#allocation5 + $0xc8] sm:$0xff]
  %v2155 = vld [vmem:[#allocation5 + $0xd8] sm:$0xff]
  %v2156 = vld [vmem:[#allocation5 + $0xe8] sm:$0xff]
  %v2157 = vld [vmem:[#allocation5 + $0xf8] sm:$0xff]
  %v2158 = vadd.f32 %v2114, %v1482
  %v2159 = vadd.f32 %v2118, %v1482
  %v2160 = vadd.f32 %v2124, %v1482
  %v2161 = vadd.f32 %v2128, %v1482
  %v2162 = vmul.f32 %v2150, %v2158
  %v2163 = vmul.f32 %v2151, %v2159
  %v2164 = vmul.f32 %v2152, %v2160
  %v2165 = vmul.f32 %v2153, %v2161
  %v2166 = vadd.f32 %v2154, %v2162
  %v2167 = vadd.f32 %v2155, %v2163
  %v2168 = vadd.f32 %v2156, %v2164
  %v2169 = vadd.f32 %v2157, %v2165
  %v2170 = vtanh.pop %v2166
  %v2171 = vtanh.pop %v2167
  %v2172 = vtanh.pop %v2168
  %v2173 = vtanh.pop %v2169
  %v2174 = vsub.f32 1.0, %v2150
  %v2175 = vsub.f32 1.0, %v2151
  %v2176 = vsub.f32 1.0, %v2152
  %v2177 = vsub.f32 1.0, %v2153
  %2182 = vrot.lane.b32.xlu0 %v2170, 64
  %v2183 = vpop.permute.xlu0 %2182
  %2184 = vrot.lane.b32.xlu0 %v2171, 64
  %v2185 = vpop.permute.xlu0 %2184
  %2186 = vrot.lane.b32.xlu0 %v2172, 64
  %v2187 = vpop.permute.xlu0 %2186
  %2188 = vrot.lane.b32.xlu0 %v2173, 64
  %v2189 = vpop.permute.xlu0 %2188
  %v2194 = vmul.f32 %v2174, %v2183
  %v2195 = vmul.f32 %v2175, %v2185
  %v2196 = vmul.f32 %v2176, %v2187
  %v2197 = vmul.f32 %v2177, %v2189
  %v2198 = vmul.f32 %v2150, %v2019
  %v2199 = vmul.f32 %v2151, %v2020
  %v2200 = vmul.f32 %v2152, %v2021
  %v2201 = vmul.f32 %v2153, %v2022
  %v2202 = vadd.f32 %v2194, %v2198
  %v2203 = vadd.f32 %v2195, %v2199
  %v2204 = vadd.f32 %v2196, %v2200
  %v2205 = vadd.f32 %v2197, %v2201
  %v2206 = vpack.c.bf16 %v2203, %v2202
  %v2207 = vpack.c.bf16 %v2205, %v2204
  %v2210 = vunpack.c.l.b16 %v2206
  %v2211 = vunpack.c.h.b16 %v2206
  %v2212 = vunpack.c.l.b16 %v2207
  %v2213 = vunpack.c.h.b16 %v2207
  %v2214 = vpack.c.b16 %v2210, %v2210
  %v2215 = vpack.c.b16 %v2211, %v2211
  %v2216 = vpack.c.b16 %v2212, %v2212
  %v2217 = vpack.c.b16 %v2213, %v2213
  %2218 = vrot.lane.b32.xlu0 %v2214, 64
  %v2219 = vpop.permute.xlu0 %2218
  %2220 = vrot.lane.b32.xlu0 %v2215, 64
  %v2221 = vpop.permute.xlu0 %2220
  %2222 = vrot.lane.b32.xlu0 %v2216, 64
  %v2223 = vpop.permute.xlu0 %2222
  %2224 = vrot.lane.b32.xlu0 %v2217, 64
  %v2225 = vpop.permute.xlu0 %2224
  %2230 = vst.msk [vmem:[#allocation4 + $0x30] sm:$0xf] %vm605, %v2219
  %2231 = vst.msk [vmem:[#allocation4 + $0x34] sm:$0xf] %vm605, %v2221
  %2232 = vst.msk [vmem:[#allocation4 + $0x38] sm:$0xf] %vm605, %v2223
  %2233 = vst.msk [vmem:[#allocation4 + $0x3c] sm:$0xf] %vm605, %v2225
  %2234 = vst.msk [vmem:[#allocation4 + $0x40] sm:$0xf] %vm622, %v2219
  %2235 = vst.msk [vmem:[#allocation4 + $0x44] sm:$0xf] %vm622, %v2221
  %2236 = vst.msk [vmem:[#allocation4 + $0x48] sm:$0xf] %vm622, %v2223
  %2237 = vst.msk [vmem:[#allocation4 + $0x4c] sm:$0xf] %vm622, %v2225
  %2242 = vst.msk [vmem:[#allocation4 + $0x40] sm:$0xf] %vm1691, %v2214
  %2243 = vst.msk [vmem:[#allocation4 + $0x44] sm:$0xf] %vm1691, %v2215
  %2244 = vst.msk [vmem:[#allocation4 + $0x48] sm:$0xf] %vm1691, %v2216
  %2245 = vst.msk [vmem:[#allocation4 + $0x4c] sm:$0xf] %vm1691, %v2217
  %2246 = vst.msk [vmem:[#allocation4 + $0x30] sm:$0xf] %vm1696, %v2214
  %2247 = vst.msk [vmem:[#allocation4 + $0x34] sm:$0xf] %vm1696, %v2215
  %2248 = vst.msk [vmem:[#allocation4 + $0x38] sm:$0xf] %vm1696, %v2216
  %2249 = vst.msk [vmem:[#allocation4 + $0x3c] sm:$0xf] %vm1696, %v2217
  %2250 = vrot.lane.b32.xlu0 %v2206, 64
  %v2251 = vpop.permute.xlu0 %2250
  %2252 = vrot.lane.b32.xlu0 %v2207, 64
  %v2253 = vpop.permute.xlu0 %2252
  %v2255 = vsel %vm1173, %v2251, 0
  %v2258 = vsel %vm1173, %v2253, 0
  %2260 = vmatprep.subr.bf16.mxu0 0
  %2261 = vmatpush1.bf16.msra.mxu0 0
  %2262 = vmatprep.subr.bf16.mxu0 0
  %2263 = vmatpush1.bf16.msra.mxu0 0
  %2264 = vmatprep.subr.bf16.mxu0 0
  %2265 = vmatpush1.bf16.msra.mxu0 0
  %2266 = vmatprep.subr.bf16.mxu0 0
  %2267 = vmatpush1.bf16.msra.mxu0 0
  %2268 = vmatprep.subr.bf16.mxu0 %v1514
  %2269 = vmatpush1.bf16.msra.mxu0 %v1513
  %2270 = vmatprep.subr.bf16.mxu0 %v1512
  %2271 = vmatpush1.bf16.msra.mxu0 %v1511
  %2272 = vmatprep.subr.bf16.mxu0 %v1510
  %2273 = vmatpush1.bf16.msra.mxu0 %v1509
  %2274 = vmatprep.subr.bf16.mxu0 %v1508
  %2275 = vmatpush1.bf16.msra.mxu0 %v1507
  %2276 = vmatprep.subr.bf16.mxu0 0
  %2277 = vmatpush2.bf16.msra.mxu0 0
  %2278 = vmatprep.subr.bf16.mxu0 0
  %2279 = vmatpush2.bf16.msra.mxu0 0
  %2280 = vmatprep.subr.bf16.mxu0 0
  %2281 = vmatpush2.bf16.msra.mxu0 0
  %2282 = vmatprep.subr.bf16.mxu0 0
  %2283 = vmatpush2.bf16.msra.mxu0 0
  %2284 = vmatprep.subr.bf16.mxu0 0
  %2285 = vmatpush2.bf16.msra.mxu0 0
  %2286 = vmatprep.subr.bf16.mxu0 0
  %2287 = vmatpush2.bf16.msra.mxu0 0
  %2288 = vmatprep.subr.bf16.mxu0 0
  %2289 = vmatpush2.bf16.msra.mxu0 0
  %2290 = vmatprep.subr.bf16.mxu0 0
  %2291 = vmatpush2.bf16.msra.mxu0 0
  %2292 = vmatprep.mubr.bf16.mxu0 0
  %2293 = vmatmul.mubr.bf16.gmra.mxu0 %v2255
  %v2294 = vpop.f32.mrf.mxu0
  %v2295 = vadd.f32 0.0, %v2294
  %v2296 = vpop.f32.mrf.mxu0
  %v2297 = vadd.f32 0.0, %v2296
  %v2298 = vpop.f32.mrf.mxu0
  %v2299 = vadd.f32 0.0, %v2298
  %v2300 = vpop.f32.mrf.mxu0
  %v2301 = vadd.f32 0.0, %v2300
  %2302 = vmatprep.mubr.bf16.mxu0 0
  %2303 = vmatmul.mubr.bf16.gmra.mxu0 %v2258
  %v2304 = vpop.f32.mrf.mxu0
  %v2305 = vadd.f32 0.0, %v2304
  %v2306 = vpop.f32.mrf.mxu0
  %v2307 = vadd.f32 0.0, %v2306
  %v2308 = vpop.f32.mrf.mxu0
  %v2309 = vadd.f32 0.0, %v2308
  %v2310 = vpop.f32.mrf.mxu0
  %v2311 = vadd.f32 0.0, %v2310
  %2312 = vdwg.mxu0
  %v2313 = vld [vmem:[#allocation5 + $0x100] sm:$0xff]
  %v2314 = vld [vmem:[#allocation5 + $0x110] sm:$0xff]
  %v2315 = vld [vmem:[#allocation5 + $0x120] sm:$0xff]
  %v2316 = vld [vmem:[#allocation5 + $0x130] sm:$0xff]
  %v2317 = vadd.f32 %v2313, %v2295
  %v2318 = vadd.f32 %v2314, %v2299
  %v2319 = vadd.f32 %v2315, %v2305
  %v2320 = vadd.f32 %v2316, %v2309
  %v2321 = vmul.f32 %v2317, 0.5
  %v2322 = vmul.f32 %v2318, 0.5
  %v2323 = vmul.f32 %v2319, 0.5
  %v2324 = vmul.f32 %v2320, 0.5
  %v2325 = vtanh.pop %v2321
  %v2326 = vtanh.pop %v2322
  %v2327 = vtanh.pop %v2323
  %v2328 = vtanh.pop %v2324
  %v2329 = vmul.f32 %v2325, 0.5
  %v2330 = vmul.f32 %v2326, 0.5
  %v2331 = vmul.f32 %v2327, 0.5
  %v2332 = vmul.f32 %v2328, 0.5
  %v2333 = vadd.f32 %v2329, 0.5
  %v2334 = vadd.f32 %v2330, 0.5
  %v2335 = vadd.f32 %v2331, 0.5
  %v2336 = vadd.f32 %v2332, 0.5
  %v2337 = vld [vmem:[#allocation5 + $0x108] sm:$0xff]
  %v2338 = vld [vmem:[#allocation5 + $0x118] sm:$0xff]
  %v2339 = vld [vmem:[#allocation5 + $0x128] sm:$0xff]
  %v2340 = vld [vmem:[#allocation5 + $0x138] sm:$0xff]
  %v2341 = vadd.f32 %v2297, %v1482
  %v2342 = vadd.f32 %v2301, %v1482
  %v2343 = vadd.f32 %v2307, %v1482
  %v2344 = vadd.f32 %v2311, %v1482
  %v2345 = vmul.f32 %v2333, %v2341
  %v2346 = vmul.f32 %v2334, %v2342
  %v2347 = vmul.f32 %v2335, %v2343
  %v2348 = vmul.f32 %v2336, %v2344
  %v2349 = vadd.f32 %v2337, %v2345
  %v2350 = vadd.f32 %v2338, %v2346
  %v2351 = vadd.f32 %v2339, %v2347
  %v2352 = vadd.f32 %v2340, %v2348
  %v2353 = vtanh.pop %v2349
  %v2354 = vtanh.pop %v2350
  %v2355 = vtanh.pop %v2351
  %v2356 = vtanh.pop %v2352
  %v2357 = vsub.f32 1.0, %v2333
  %v2358 = vsub.f32 1.0, %v2334
  %v2359 = vsub.f32 1.0, %v2335
  %v2360 = vsub.f32 1.0, %v2336
  %2365 = vrot.lane.b32.xlu0 %v2353, 64
  %v2366 = vpop.permute.xlu0 %2365
  %2367 = vrot.lane.b32.xlu0 %v2354, 64
  %v2368 = vpop.permute.xlu0 %2367
  %2369 = vrot.lane.b32.xlu0 %v2355, 64
  %v2370 = vpop.permute.xlu0 %2369
  %2371 = vrot.lane.b32.xlu0 %v2356, 64
  %v2372 = vpop.permute.xlu0 %2371
  %v2377 = vmul.f32 %v2357, %v2366
  %v2378 = vmul.f32 %v2358, %v2368
  %v2379 = vmul.f32 %v2359, %v2370
  %v2380 = vmul.f32 %v2360, %v2372
  %v2381 = vmul.f32 %v2333, %v2202
  %v2382 = vmul.f32 %v2334, %v2203
  %v2383 = vmul.f32 %v2335, %v2204
  %v2384 = vmul.f32 %v2336, %v2205
  %v2385 = vadd.f32 %v2377, %v2381
  %v2386 = vadd.f32 %v2378, %v2382
  %v2387 = vadd.f32 %v2379, %v2383
  %v2388 = vadd.f32 %v2380, %v2384
  %v2389 = vpack.c.bf16 %v2386, %v2385
  %v2390 = vpack.c.bf16 %v2388, %v2387
  %v2393 = vunpack.c.l.b16 %v2389
  %v2394 = vunpack.c.h.b16 %v2389
  %v2395 = vunpack.c.l.b16 %v2390
  %v2396 = vunpack.c.h.b16 %v2390
  %v2397 = vpack.c.b16 %v2393, %v2393
  %v2398 = vpack.c.b16 %v2394, %v2394
  %v2399 = vpack.c.b16 %v2395, %v2395
  %v2400 = vpack.c.b16 %v2396, %v2396
  %2401 = vrot.lane.b32.xlu0 %v2397, 64
  %v2402 = vpop.permute.xlu0 %2401
  %2403 = vrot.lane.b32.xlu0 %v2398, 64
  %v2404 = vpop.permute.xlu0 %2403
  %2405 = vrot.lane.b32.xlu0 %v2399, 64
  %v2406 = vpop.permute.xlu0 %2405
  %2407 = vrot.lane.b32.xlu0 %v2400, 64
  %v2408 = vpop.permute.xlu0 %2407
  %2413 = vst.msk [vmem:[#allocation4 + $0x40] sm:$0xf] %vm605, %v2402
  %2414 = vst.msk [vmem:[#allocation4 + $0x44] sm:$0xf] %vm605, %v2404
  %2415 = vst.msk [vmem:[#allocation4 + $0x48] sm:$0xf] %vm605, %v2406
  %2416 = vst.msk [vmem:[#allocation4 + $0x4c] sm:$0xf] %vm605, %v2408
  %2417 = vst.msk [vmem:[#allocation4 + $0x30] sm:$0xf] %vm622, %v2402
  %2418 = vst.msk [vmem:[#allocation4 + $0x34] sm:$0xf] %vm622, %v2404
  %2419 = vst.msk [vmem:[#allocation4 + $0x38] sm:$0xf] %vm622, %v2406
  %2420 = vst.msk [vmem:[#allocation4 + $0x3c] sm:$0xf] %vm622, %v2408
  %2425 = vst.msk [vmem:[#allocation4 + $0x30] sm:$0xf] %vm1691, %v2397
  %2426 = vst.msk [vmem:[#allocation4 + $0x34] sm:$0xf] %vm1691, %v2398
  %2427 = vst.msk [vmem:[#allocation4 + $0x38] sm:$0xf] %vm1691, %v2399
  %2428 = vst.msk [vmem:[#allocation4 + $0x3c] sm:$0xf] %vm1691, %v2400
  %2429 = vst.msk [vmem:[#allocation4 + $0x40] sm:$0xf] %vm1696, %v2397
  %2430 = vst.msk [vmem:[#allocation4 + $0x44] sm:$0xf] %vm1696, %v2398
  %2431 = vst.msk [vmem:[#allocation4 + $0x48] sm:$0xf] %vm1696, %v2399
  %2432 = vst.msk [vmem:[#allocation4 + $0x4c] sm:$0xf] %vm1696, %v2400
  %2433 = vrot.lane.b32.xlu0 %v2389, 64
  %v2434 = vpop.permute.xlu0 %2433
  %2435 = vrot.lane.b32.xlu0 %v2390, 64
  %v2436 = vpop.permute.xlu0 %2435
  %v2438 = vsel %vm1173, %v2434, 0
  %v2441 = vsel %vm1173, %v2436, 0
  %2443 = vmatprep.subr.bf16.mxu0 0
  %2444 = vmatpush1.bf16.msra.mxu0 0
  %2445 = vmatprep.subr.bf16.mxu0 0
  %2446 = vmatpush1.bf16.msra.mxu0 0
  %2447 = vmatprep.subr.bf16.mxu0 0
  %2448 = vmatpush1.bf16.msra.mxu0 0
  %2449 = vmatprep.subr.bf16.mxu0 0
  %2450 = vmatpush1.bf16.msra.mxu0 0
  %2451 = vmatprep.subr.bf16.mxu0 %v1514
  %2452 = vmatpush1.bf16.msra.mxu0 %v1513
  %2453 = vmatprep.subr.bf16.mxu0 %v1512
  %2454 = vmatpush1.bf16.msra.mxu0 %v1511
  %2455 = vmatprep.subr.bf16.mxu0 %v1510
  %2456 = vmatpush1.bf16.msra.mxu0 %v1509
  %2457 = vmatprep.subr.bf16.mxu0 %v1508
  %2458 = vmatpush1.bf16.msra.mxu0 %v1507
  %2459 = vmatprep.subr.bf16.mxu0 0
  %2460 = vmatpush2.bf16.msra.mxu0 0
  %2461 = vmatprep.subr.bf16.mxu0 0
  %2462 = vmatpush2.bf16.msra.mxu0 0
  %2463 = vmatprep.subr.bf16.mxu0 0
  %2464 = vmatpush2.bf16.msra.mxu0 0
  %2465 = vmatprep.subr.bf16.mxu0 0
  %2466 = vmatpush2.bf16.msra.mxu0 0
  %2467 = vmatprep.subr.bf16.mxu0 0
  %2468 = vmatpush2.bf16.msra.mxu0 0
  %2469 = vmatprep.subr.bf16.mxu0 0
  %2470 = vmatpush2.bf16.msra.mxu0 0
  %2471 = vmatprep.subr.bf16.mxu0 0
  %2472 = vmatpush2.bf16.msra.mxu0 0
  %2473 = vmatprep.subr.bf16.mxu0 0
  %2474 = vmatpush2.bf16.msra.mxu0 0
  %2475 = vmatprep.mubr.bf16.mxu0 0
  %2476 = vmatmul.mubr.bf16.gmra.mxu0 %v2438
  %v2477 = vpop.f32.mrf.mxu0
  %v2478 = vadd.f32 0.0, %v2477
  %v2479 = vpop.f32.mrf.mxu0
  %v2480 = vadd.f32 0.0, %v2479
  %v2481 = vpop.f32.mrf.mxu0
  %v2482 = vadd.f32 0.0, %v2481
  %v2483 = vpop.f32.mrf.mxu0
  %v2484 = vadd.f32 0.0, %v2483
  %2485 = vmatprep.mubr.bf16.mxu0 0
  %2486 = vmatmul.mubr.bf16.gmra.mxu0 %v2441
  %v2487 = vpop.f32.mrf.mxu0
  %v2488 = vadd.f32 0.0, %v2487
  %v2489 = vpop.f32.mrf.mxu0
  %v2490 = vadd.f32 0.0, %v2489
  %v2491 = vpop.f32.mrf.mxu0
  %v2492 = vadd.f32 0.0, %v2491
  %v2493 = vpop.f32.mrf.mxu0
  %v2494 = vadd.f32 0.0, %v2493
  %2495 = vdwg.mxu0
  %v2496 = vld [vmem:[#allocation5 + $0x140] sm:$0xff]
  %v2497 = vld [vmem:[#allocation5 + $0x150] sm:$0xff]
  %v2498 = vld [vmem:[#allocation5 + $0x160] sm:$0xff]
  %v2499 = vld [vmem:[#allocation5 + $0x170] sm:$0xff]
  %v2500 = vadd.f32 %v2496, %v2478
  %v2501 = vadd.f32 %v2497, %v2482
  %v2502 = vadd.f32 %v2498, %v2488
  %v2503 = vadd.f32 %v2499, %v2492
  %v2504 = vmul.f32 %v2500, 0.5
  %v2505 = vmul.f32 %v2501, 0.5
  %v2506 = vmul.f32 %v2502, 0.5
  %v2507 = vmul.f32 %v2503, 0.5
  %v2508 = vtanh.pop %v2504
  %v2509 = vtanh.pop %v2505
  %v2510 = vtanh.pop %v2506
  %v2511 = vtanh.pop %v2507
  %v2512 = vmul.f32 %v2508, 0.5
  %v2513 = vmul.f32 %v2509, 0.5
  %v2514 = vmul.f32 %v2510, 0.5
  %v2515 = vmul.f32 %v2511, 0.5
  %v2516 = vadd.f32 %v2512, 0.5
  %v2517 = vadd.f32 %v2513, 0.5
  %v2518 = vadd.f32 %v2514, 0.5
  %v2519 = vadd.f32 %v2515, 0.5
  %v2520 = vld [vmem:[#allocation5 + $0x148] sm:$0xff]
  %v2521 = vld [vmem:[#allocation5 + $0x158] sm:$0xff]
  %v2522 = vld [vmem:[#allocation5 + $0x168] sm:$0xff]
  %v2523 = vld [vmem:[#allocation5 + $0x178] sm:$0xff]
  %v2524 = vadd.f32 %v2480, %v1482
  %v2525 = vadd.f32 %v2484, %v1482
  %v2526 = vadd.f32 %v2490, %v1482
  %v2527 = vadd.f32 %v2494, %v1482
  %v2528 = vmul.f32 %v2516, %v2524
  %v2529 = vmul.f32 %v2517, %v2525
  %v2530 = vmul.f32 %v2518, %v2526
  %v2531 = vmul.f32 %v2519, %v2527
  %v2532 = vadd.f32 %v2520, %v2528
  %v2533 = vadd.f32 %v2521, %v2529
  %v2534 = vadd.f32 %v2522, %v2530
  %v2535 = vadd.f32 %v2523, %v2531
  %v2536 = vtanh.pop %v2532
  %v2537 = vtanh.pop %v2533
  %v2538 = vtanh.pop %v2534
  %v2539 = vtanh.pop %v2535
  %v2540 = vsub.f32 1.0, %v2516
  %v2541 = vsub.f32 1.0, %v2517
  %v2542 = vsub.f32 1.0, %v2518
  %v2543 = vsub.f32 1.0, %v2519
  %2548 = vrot.lane.b32.xlu0 %v2536, 64
  %v2549 = vpop.permute.xlu0 %2548
  %2550 = vrot.lane.b32.xlu0 %v2537, 64
  %v2551 = vpop.permute.xlu0 %2550
  %2552 = vrot.lane.b32.xlu0 %v2538, 64
  %v2553 = vpop.permute.xlu0 %2552
  %2554 = vrot.lane.b32.xlu0 %v2539, 64
  %v2555 = vpop.permute.xlu0 %2554
  %v2560 = vmul.f32 %v2540, %v2549
  %v2561 = vmul.f32 %v2541, %v2551
  %v2562 = vmul.f32 %v2542, %v2553
  %v2563 = vmul.f32 %v2543, %v2555
  %v2564 = vmul.f32 %v2516, %v2385
  %v2565 = vmul.f32 %v2517, %v2386
  %v2566 = vmul.f32 %v2518, %v2387
  %v2567 = vmul.f32 %v2519, %v2388
  %v2568 = vadd.f32 %v2560, %v2564
  %v2569 = vadd.f32 %v2561, %v2565
  %v2570 = vadd.f32 %v2562, %v2566
  %v2571 = vadd.f32 %v2563, %v2567
  %v2572 = vpack.c.bf16 %v2569, %v2568
  %v2573 = vpack.c.bf16 %v2571, %v2570
  %v2576 = vunpack.c.l.b16 %v2572
  %v2577 = vunpack.c.h.b16 %v2572
  %v2578 = vunpack.c.l.b16 %v2573
  %v2579 = vunpack.c.h.b16 %v2573
  %v2580 = vpack.c.b16 %v2576, %v2576
  %v2581 = vpack.c.b16 %v2577, %v2577
  %v2582 = vpack.c.b16 %v2578, %v2578
  %v2583 = vpack.c.b16 %v2579, %v2579
  %2584 = vrot.lane.b32.xlu0 %v2580, 64
  %v2585 = vpop.permute.xlu0 %2584
  %2586 = vrot.lane.b32.xlu0 %v2581, 64
  %v2587 = vpop.permute.xlu0 %2586
  %2588 = vrot.lane.b32.xlu0 %v2582, 64
  %v2589 = vpop.permute.xlu0 %2588
  %2590 = vrot.lane.b32.xlu0 %v2583, 64
  %v2591 = vpop.permute.xlu0 %2590
  %2596 = vst.msk [vmem:[#allocation4 + $0x50] sm:$0xf] %vm605, %v2585
  %2597 = vst.msk [vmem:[#allocation4 + $0x54] sm:$0xf] %vm605, %v2587
  %2598 = vst.msk [vmem:[#allocation4 + $0x58] sm:$0xf] %vm605, %v2589
  %2599 = vst.msk [vmem:[#allocation4 + $0x5c] sm:$0xf] %vm605, %v2591
  %2600 = vst.msk [vmem:[#allocation4 + $0x20] sm:$0xf] %vm622, %v2585
  %2601 = vst.msk [vmem:[#allocation4 + $0x24] sm:$0xf] %vm622, %v2587
  %2602 = vst.msk [vmem:[#allocation4 + $0x28] sm:$0xf] %vm622, %v2589
  %2603 = vst.msk [vmem:[#allocation4 + $0x2c] sm:$0xf] %vm622, %v2591
  %2608 = vst.msk [vmem:[#allocation4 + $0x20] sm:$0xf] %vm1691, %v2580
  %2609 = vst.msk [vmem:[#allocation4 + $0x24] sm:$0xf] %vm1691, %v2581
  %2610 = vst.msk [vmem:[#allocation4 + $0x28] sm:$0xf] %vm1691, %v2582
  %2611 = vst.msk [vmem:[#allocation4 + $0x2c] sm:$0xf] %vm1691, %v2583
  %2612 = vst.msk [vmem:[#allocation4 + $0x50] sm:$0xf] %vm1696, %v2580
  %2613 = vst.msk [vmem:[#allocation4 + $0x54] sm:$0xf] %vm1696, %v2581
  %2614 = vst.msk [vmem:[#allocation4 + $0x58] sm:$0xf] %vm1696, %v2582
  %2615 = vst.msk [vmem:[#allocation4 + $0x5c] sm:$0xf] %vm1696, %v2583
  %2616 = vrot.lane.b32.xlu0 %v2572, 64
  %v2617 = vpop.permute.xlu0 %2616
  %2618 = vrot.lane.b32.xlu0 %v2573, 64
  %v2619 = vpop.permute.xlu0 %2618
  %v2621 = vsel %vm1173, %v2617, 0
  %v2624 = vsel %vm1173, %v2619, 0
  %2626 = vmatprep.subr.bf16.mxu0 0
  %2627 = vmatpush1.bf16.msra.mxu0 0
  %2628 = vmatprep.subr.bf16.mxu0 0
  %2629 = vmatpush1.bf16.msra.mxu0 0
  %2630 = vmatprep.subr.bf16.mxu0 0
  %2631 = vmatpush1.bf16.msra.mxu0 0
  %2632 = vmatprep.subr.bf16.mxu0 0
  %2633 = vmatpush1.bf16.msra.mxu0 0
  %2634 = vmatprep.subr.bf16.mxu0 %v1514
  %2635 = vmatpush1.bf16.msra.mxu0 %v1513
  %2636 = vmatprep.subr.bf16.mxu0 %v1512
  %2637 = vmatpush1.bf16.msra.mxu0 %v1511
  %2638 = vmatprep.subr.bf16.mxu0 %v1510
  %2639 = vmatpush1.bf16.msra.mxu0 %v1509
  %2640 = vmatprep.subr.bf16.mxu0 %v1508
  %2641 = vmatpush1.bf16.msra.mxu0 %v1507
  %2642 = vmatprep.subr.bf16.mxu0 0
  %2643 = vmatpush2.bf16.msra.mxu0 0
  %2644 = vmatprep.subr.bf16.mxu0 0
  %2645 = vmatpush2.bf16.msra.mxu0 0
  %2646 = vmatprep.subr.bf16.mxu0 0
  %2647 = vmatpush2.bf16.msra.mxu0 0
  %2648 = vmatprep.subr.bf16.mxu0 0
  %2649 = vmatpush2.bf16.msra.mxu0 0
  %2650 = vmatprep.subr.bf16.mxu0 0
  %2651 = vmatpush2.bf16.msra.mxu0 0
  %2652 = vmatprep.subr.bf16.mxu0 0
  %2653 = vmatpush2.bf16.msra.mxu0 0
  %2654 = vmatprep.subr.bf16.mxu0 0
  %2655 = vmatpush2.bf16.msra.mxu0 0
  %2656 = vmatprep.subr.bf16.mxu0 0
  %2657 = vmatpush2.bf16.msra.mxu0 0
  %2658 = vmatprep.mubr.bf16.mxu0 0
  %2659 = vmatmul.mubr.bf16.gmra.mxu0 %v2621
  %v2660 = vpop.f32.mrf.mxu0
  %v2661 = vadd.f32 0.0, %v2660
  %v2662 = vpop.f32.mrf.mxu0
  %v2663 = vadd.f32 0.0, %v2662
  %v2664 = vpop.f32.mrf.mxu0
  %v2665 = vadd.f32 0.0, %v2664
  %v2666 = vpop.f32.mrf.mxu0
  %v2667 = vadd.f32 0.0, %v2666
  %2668 = vmatprep.mubr.bf16.mxu0 0
  %2669 = vmatmul.mubr.bf16.gmra.mxu0 %v2624
  %v2670 = vpop.f32.mrf.mxu0
  %v2671 = vadd.f32 0.0, %v2670
  %v2672 = vpop.f32.mrf.mxu0
  %v2673 = vadd.f32 0.0, %v2672
  %v2674 = vpop.f32.mrf.mxu0
  %v2675 = vadd.f32 0.0, %v2674
  %v2676 = vpop.f32.mrf.mxu0
  %v2677 = vadd.f32 0.0, %v2676
  %2678 = vdwg.mxu0
  %v2679 = vld [vmem:[#allocation5 + $0x180] sm:$0xff]
  %v2680 = vld [vmem:[#allocation5 + $0x190] sm:$0xff]
  %v2681 = vld [vmem:[#allocation5 + $0x1a0] sm:$0xff]
  %v2682 = vld [vmem:[#allocation5 + $0x1b0] sm:$0xff]
  %v2683 = vadd.f32 %v2679, %v2661
  %v2684 = vadd.f32 %v2680, %v2665
  %v2685 = vadd.f32 %v2681, %v2671
  %v2686 = vadd.f32 %v2682, %v2675
  %v2687 = vmul.f32 %v2683, 0.5
  %v2688 = vmul.f32 %v2684, 0.5
  %v2689 = vmul.f32 %v2685, 0.5
  %v2690 = vmul.f32 %v2686, 0.5
  %v2691 = vtanh.pop %v2687
  %v2692 = vtanh.pop %v2688
  %v2693 = vtanh.pop %v2689
  %v2694 = vtanh.pop %v2690
  %v2695 = vmul.f32 %v2691, 0.5
  %v2696 = vmul.f32 %v2692, 0.5
  %v2697 = vmul.f32 %v2693, 0.5
  %v2698 = vmul.f32 %v2694, 0.5
  %v2699 = vadd.f32 %v2695, 0.5
  %v2700 = vadd.f32 %v2696, 0.5
  %v2701 = vadd.f32 %v2697, 0.5
  %v2702 = vadd.f32 %v2698, 0.5
  %v2703 = vld [vmem:[#allocation5 + $0x188] sm:$0xff]
  %v2704 = vld [vmem:[#allocation5 + $0x198] sm:$0xff]
  %v2705 = vld [vmem:[#allocation5 + $0x1a8] sm:$0xff]
  %v2706 = vld [vmem:[#allocation5 + $0x1b8] sm:$0xff]
  %v2707 = vadd.f32 %v2663, %v1482
  %v2708 = vadd.f32 %v2667, %v1482
  %v2709 = vadd.f32 %v2673, %v1482
  %v2710 = vadd.f32 %v2677, %v1482
  %v2711 = vmul.f32 %v2699, %v2707
  %v2712 = vmul.f32 %v2700, %v2708
  %v2713 = vmul.f32 %v2701, %v2709
  %v2714 = vmul.f32 %v2702, %v2710
  %v2715 = vadd.f32 %v2703, %v2711
  %v2716 = vadd.f32 %v2704, %v2712
  %v2717 = vadd.f32 %v2705, %v2713
  %v2718 = vadd.f32 %v2706, %v2714
  %v2719 = vtanh.pop %v2715
  %v2720 = vtanh.pop %v2716
  %v2721 = vtanh.pop %v2717
  %v2722 = vtanh.pop %v2718
  %v2723 = vsub.f32 1.0, %v2699
  %v2724 = vsub.f32 1.0, %v2700
  %v2725 = vsub.f32 1.0, %v2701
  %v2726 = vsub.f32 1.0, %v2702
  %2731 = vrot.lane.b32.xlu0 %v2719, 64
  %v2732 = vpop.permute.xlu0 %2731
  %2733 = vrot.lane.b32.xlu0 %v2720, 64
  %v2734 = vpop.permute.xlu0 %2733
  %2735 = vrot.lane.b32.xlu0 %v2721, 64
  %v2736 = vpop.permute.xlu0 %2735
  %2737 = vrot.lane.b32.xlu0 %v2722, 64
  %v2738 = vpop.permute.xlu0 %2737
  %v2743 = vmul.f32 %v2723, %v2732
  %v2744 = vmul.f32 %v2724, %v2734
  %v2745 = vmul.f32 %v2725, %v2736
  %v2746 = vmul.f32 %v2726, %v2738
  %v2747 = vmul.f32 %v2699, %v2568
  %v2748 = vmul.f32 %v2700, %v2569
  %v2749 = vmul.f32 %v2701, %v2570
  %v2750 = vmul.f32 %v2702, %v2571
  %v2751 = vadd.f32 %v2743, %v2747
  %v2752 = vadd.f32 %v2744, %v2748
  %v2753 = vadd.f32 %v2745, %v2749
  %v2754 = vadd.f32 %v2746, %v2750
  %v2755 = vpack.c.bf16 %v2752, %v2751
  %v2756 = vpack.c.bf16 %v2754, %v2753
  %v2759 = vunpack.c.l.b16 %v2755
  %v2760 = vunpack.c.h.b16 %v2755
  %v2761 = vunpack.c.l.b16 %v2756
  %v2762 = vunpack.c.h.b16 %v2756
  %v2763 = vpack.c.b16 %v2759, %v2759
  %v2764 = vpack.c.b16 %v2760, %v2760
  %v2765 = vpack.c.b16 %v2761, %v2761
  %v2766 = vpack.c.b16 %v2762, %v2762
  %2767 = vrot.lane.b32.xlu0 %v2763, 64
  %v2768 = vpop.permute.xlu0 %2767
  %2769 = vrot.lane.b32.xlu0 %v2764, 64
  %v2770 = vpop.permute.xlu0 %2769
  %2771 = vrot.lane.b32.xlu0 %v2765, 64
  %v2772 = vpop.permute.xlu0 %2771
  %2773 = vrot.lane.b32.xlu0 %v2766, 64
  %v2774 = vpop.permute.xlu0 %2773
  %2779 = vst.msk [vmem:[#allocation4 + $0x60] sm:$0xf] %vm605, %v2768
  %2780 = vst.msk [vmem:[#allocation4 + $0x64] sm:$0xf] %vm605, %v2770
  %2781 = vst.msk [vmem:[#allocation4 + $0x68] sm:$0xf] %vm605, %v2772
  %2782 = vst.msk [vmem:[#allocation4 + $0x6c] sm:$0xf] %vm605, %v2774
  %2783 = vst.msk [vmem:[#allocation4 + $0x10] sm:$0xf] %vm622, %v2768
  %2784 = vst.msk [vmem:[#allocation4 + $0x14] sm:$0xf] %vm622, %v2770
  %2785 = vst.msk [vmem:[#allocation4 + $0x18] sm:$0xf] %vm622, %v2772
  %2786 = vst.msk [vmem:[#allocation4 + $0x1c] sm:$0xf] %vm622, %v2774
  %2791 = vst.msk [vmem:[#allocation4 + $0x10] sm:$0xf] %vm1691, %v2763
  %2792 = vst.msk [vmem:[#allocation4 + $0x14] sm:$0xf] %vm1691, %v2764
  %2793 = vst.msk [vmem:[#allocation4 + $0x18] sm:$0xf] %vm1691, %v2765
  %2794 = vst.msk [vmem:[#allocation4 + $0x1c] sm:$0xf] %vm1691, %v2766
  %2795 = vst.msk [vmem:[#allocation4 + $0x60] sm:$0xf] %vm1696, %v2763
  %2796 = vst.msk [vmem:[#allocation4 + $0x64] sm:$0xf] %vm1696, %v2764
  %2797 = vst.msk [vmem:[#allocation4 + $0x68] sm:$0xf] %vm1696, %v2765
  %2798 = vst.msk [vmem:[#allocation4 + $0x6c] sm:$0xf] %vm1696, %v2766
  %2799 = vrot.lane.b32.xlu0 %v2755, 64
  %v2800 = vpop.permute.xlu0 %2799
  %2801 = vrot.lane.b32.xlu0 %v2756, 64
  %v2802 = vpop.permute.xlu0 %2801
  %v2804 = vsel %vm1173, %v2800, 0
  %v2807 = vsel %vm1173, %v2802, 0
  %2809 = vmatprep.subr.bf16.mxu0 0
  %2810 = vmatpush1.bf16.msra.mxu0 0
  %2811 = vmatprep.subr.bf16.mxu0 0
  %2812 = vmatpush1.bf16.msra.mxu0 0
  %2813 = vmatprep.subr.bf16.mxu0 0
  %2814 = vmatpush1.bf16.msra.mxu0 0
  %2815 = vmatprep.subr.bf16.mxu0 0
  %2816 = vmatpush1.bf16.msra.mxu0 0
  %2817 = vmatprep.subr.bf16.mxu0 %v1514
  %2818 = vmatpush1.bf16.msra.mxu0 %v1513
  %2819 = vmatprep.subr.bf16.mxu0 %v1512
  %2820 = vmatpush1.bf16.msra.mxu0 %v1511
  %2821 = vmatprep.subr.bf16.mxu0 %v1510
  %2822 = vmatpush1.bf16.msra.mxu0 %v1509
  %2823 = vmatprep.subr.bf16.mxu0 %v1508
  %2824 = vmatpush1.bf16.msra.mxu0 %v1507
  %2825 = vmatprep.subr.bf16.mxu0 0
  %2826 = vmatpush2.bf16.msra.mxu0 0
  %2827 = vmatprep.subr.bf16.mxu0 0
  %2828 = vmatpush2.bf16.msra.mxu0 0
  %2829 = vmatprep.subr.bf16.mxu0 0
  %2830 = vmatpush2.bf16.msra.mxu0 0
  %2831 = vmatprep.subr.bf16.mxu0 0
  %2832 = vmatpush2.bf16.msra.mxu0 0
  %2833 = vmatprep.subr.bf16.mxu0 0
  %2834 = vmatpush2.bf16.msra.mxu0 0
  %2835 = vmatprep.subr.bf16.mxu0 0
  %2836 = vmatpush2.bf16.msra.mxu0 0
  %2837 = vmatprep.subr.bf16.mxu0 0
  %2838 = vmatpush2.bf16.msra.mxu0 0
  %2839 = vmatprep.subr.bf16.mxu0 0
  %2840 = vmatpush2.bf16.msra.mxu0 0
  %2841 = vmatprep.mubr.bf16.mxu0 0
  %2842 = vmatmul.mubr.bf16.gmra.mxu0 %v2804
  %v2843 = vpop.f32.mrf.mxu0
  %v2844 = vadd.f32 0.0, %v2843
  %v2845 = vpop.f32.mrf.mxu0
  %v2846 = vadd.f32 0.0, %v2845
  %v2847 = vpop.f32.mrf.mxu0
  %v2848 = vadd.f32 0.0, %v2847
  %v2849 = vpop.f32.mrf.mxu0
  %v2850 = vadd.f32 0.0, %v2849
  %2851 = vmatprep.mubr.bf16.mxu0 0
  %2852 = vmatmul.mubr.bf16.gmra.mxu0 %v2807
  %v2853 = vpop.f32.mrf.mxu0
  %v2854 = vadd.f32 0.0, %v2853
  %v2855 = vpop.f32.mrf.mxu0
  %v2856 = vadd.f32 0.0, %v2855
  %v2857 = vpop.f32.mrf.mxu0
  %v2858 = vadd.f32 0.0, %v2857
  %v2859 = vpop.f32.mrf.mxu0
  %v2860 = vadd.f32 0.0, %v2859
  %2861 = vdwg.mxu0
  %v2862 = vld [vmem:[#allocation5 + $0x1c0] sm:$0xff]
  %v2863 = vld [vmem:[#allocation5 + $0x1d0] sm:$0xff]
  %v2864 = vld [vmem:[#allocation5 + $0x1e0] sm:$0xff]
  %v2865 = vld [vmem:[#allocation5 + $0x1f0] sm:$0xff]
  %v2866 = vadd.f32 %v2862, %v2844
  %v2867 = vadd.f32 %v2863, %v2848
  %v2868 = vadd.f32 %v2864, %v2854
  %v2869 = vadd.f32 %v2865, %v2858
  %v2870 = vmul.f32 %v2866, 0.5
  %v2871 = vmul.f32 %v2867, 0.5
  %v2872 = vmul.f32 %v2868, 0.5
  %v2873 = vmul.f32 %v2869, 0.5
  %v2874 = vtanh.pop %v2870
  %v2875 = vtanh.pop %v2871
  %v2876 = vtanh.pop %v2872
  %v2877 = vtanh.pop %v2873
  %v2878 = vmul.f32 %v2874, 0.5
  %v2879 = vmul.f32 %v2875, 0.5
  %v2880 = vmul.f32 %v2876, 0.5
  %v2881 = vmul.f32 %v2877, 0.5
  %v2882 = vadd.f32 %v2878, 0.5
  %v2883 = vadd.f32 %v2879, 0.5
  %v2884 = vadd.f32 %v2880, 0.5
  %v2885 = vadd.f32 %v2881, 0.5
  %v2886 = vld [vmem:[#allocation5 + $0x1c8] sm:$0xff]
  %v2887 = vld [vmem:[#allocation5 + $0x1d8] sm:$0xff]
  %v2888 = vld [vmem:[#allocation5 + $0x1e8] sm:$0xff]
  %v2889 = vld [vmem:[#allocation5 + $0x1f8] sm:$0xff]
  %v2890 = vadd.f32 %v2846, %v1482
  %v2891 = vadd.f32 %v2850, %v1482
  %v2892 = vadd.f32 %v2856, %v1482
  %v2893 = vadd.f32 %v2860, %v1482
  %v2894 = vmul.f32 %v2882, %v2890
  %v2895 = vmul.f32 %v2883, %v2891
  %v2896 = vmul.f32 %v2884, %v2892
  %v2897 = vmul.f32 %v2885, %v2893
  %v2898 = vadd.f32 %v2886, %v2894
  %v2899 = vadd.f32 %v2887, %v2895
  %v2900 = vadd.f32 %v2888, %v2896
  %v2901 = vadd.f32 %v2889, %v2897
  %v2902 = vtanh.pop %v2898
  %v2903 = vtanh.pop %v2899
  %v2904 = vtanh.pop %v2900
  %v2905 = vtanh.pop %v2901
  %v2906 = vsub.f32 1.0, %v2882
  %v2907 = vsub.f32 1.0, %v2883
  %v2908 = vsub.f32 1.0, %v2884
  %v2909 = vsub.f32 1.0, %v2885
  %2914 = vrot.lane.b32.xlu0 %v2902, 64
  %v2915 = vpop.permute.xlu0 %2914
  %2916 = vrot.lane.b32.xlu0 %v2903, 64
  %v2917 = vpop.permute.xlu0 %2916
  %2918 = vrot.lane.b32.xlu0 %v2904, 64
  %v2919 = vpop.permute.xlu0 %2918
  %2920 = vrot.lane.b32.xlu0 %v2905, 64
  %v2921 = vpop.permute.xlu0 %2920
  %v2926 = vmul.f32 %v2906, %v2915
  %v2927 = vmul.f32 %v2907, %v2917
  %v2928 = vmul.f32 %v2908, %v2919
  %v2929 = vmul.f32 %v2909, %v2921
  %v2930 = vmul.f32 %v2882, %v2751
  %v2931 = vmul.f32 %v2883, %v2752
  %v2932 = vmul.f32 %v2884, %v2753
  %v2933 = vmul.f32 %v2885, %v2754
  %v2934 = vadd.f32 %v2926, %v2930
  %v2935 = vadd.f32 %v2927, %v2931
  %v2936 = vadd.f32 %v2928, %v2932
  %v2937 = vadd.f32 %v2929, %v2933
  %v2938 = vpack.c.bf16 %v2935, %v2934
  %v2939 = vpack.c.bf16 %v2937, %v2936
  %v2942 = vunpack.c.l.b16 %v2938
  %v2943 = vunpack.c.h.b16 %v2938
  %v2944 = vunpack.c.l.b16 %v2939
  %v2945 = vunpack.c.h.b16 %v2939
  %v2946 = vpack.c.b16 %v2942, %v2942
  %v2947 = vpack.c.b16 %v2943, %v2943
  %v2948 = vpack.c.b16 %v2944, %v2944
  %v2949 = vpack.c.b16 %v2945, %v2945
  %2950 = vrot.lane.b32.xlu0 %v2946, 64
  %v2951 = vpop.permute.xlu0 %2950
  %2952 = vrot.lane.b32.xlu0 %v2947, 64
  %v2953 = vpop.permute.xlu0 %2952
  %2954 = vrot.lane.b32.xlu0 %v2948, 64
  %v2955 = vpop.permute.xlu0 %2954
  %2956 = vrot.lane.b32.xlu0 %v2949, 64
  %v2957 = vpop.permute.xlu0 %2956
  %2962 = vst.msk [vmem:[#allocation4 + $0x70] sm:$0xf] %vm605, %v2951
  %2963 = vst.msk [vmem:[#allocation4 + $0x74] sm:$0xf] %vm605, %v2953
  %2964 = vst.msk [vmem:[#allocation4 + $0x78] sm:$0xf] %vm605, %v2955
  %2965 = vst.msk [vmem:[#allocation4 + $0x7c] sm:$0xf] %vm605, %v2957
  %2966 = vst.msk [vmem:[#allocation4] sm:$0xf] %vm622, %v2951
  %2967 = vst.msk [vmem:[#allocation4 + $0x4] sm:$0xf] %vm622, %v2953
  %2968 = vst.msk [vmem:[#allocation4 + $0x8] sm:$0xf] %vm622, %v2955
  %2969 = vst.msk [vmem:[#allocation4 + $0xc] sm:$0xf] %vm622, %v2957
  %2974 = vst.msk [vmem:[#allocation4] sm:$0xf] %vm1691, %v2946
  %2975 = vst.msk [vmem:[#allocation4 + $0x4] sm:$0xf] %vm1691, %v2947
  %2976 = vst.msk [vmem:[#allocation4 + $0x8] sm:$0xf] %vm1691, %v2948
  %2977 = vst.msk [vmem:[#allocation4 + $0xc] sm:$0xf] %vm1691, %v2949
  %2978 = vst.msk [vmem:[#allocation4 + $0x70] sm:$0xf] %vm1696, %v2946
  %2979 = vst.msk [vmem:[#allocation4 + $0x74] sm:$0xf] %vm1696, %v2947
  %2980 = vst.msk [vmem:[#allocation4 + $0x78] sm:$0xf] %vm1696, %v2948
  %2981 = vst.msk [vmem:[#allocation4 + $0x7c] sm:$0xf] %vm1696, %v2949
  %v2982 = vld [vmem:[#allocation4] sm:$0xf]
  %v2983 = vld [vmem:[#allocation4 + $0x4] sm:$0xf]
  %v2984 = vld [vmem:[#allocation4 + $0x8] sm:$0xf]
  %v2985 = vld [vmem:[#allocation4 + $0xc] sm:$0xf]
  %v2986 = vld [vmem:[#allocation4 + $0x10] sm:$0xf]
  %v2987 = vld [vmem:[#allocation4 + $0x14] sm:$0xf]
  %v2988 = vld [vmem:[#allocation4 + $0x18] sm:$0xf]
  %v2989 = vld [vmem:[#allocation4 + $0x1c] sm:$0xf]
  %v2990 = vld [vmem:[#allocation4 + $0x20] sm:$0xf]
  %v2991 = vld [vmem:[#allocation4 + $0x24] sm:$0xf]
  %v2992 = vld [vmem:[#allocation4 + $0x28] sm:$0xf]
  %v2993 = vld [vmem:[#allocation4 + $0x2c] sm:$0xf]
  %v2994 = vld [vmem:[#allocation4 + $0x30] sm:$0xf]
  %v2995 = vld [vmem:[#allocation4 + $0x34] sm:$0xf]
  %v2996 = vld [vmem:[#allocation4 + $0x38] sm:$0xf]
  %v2997 = vld [vmem:[#allocation4 + $0x3c] sm:$0xf]
  %v2998 = vld [vmem:[#allocation4 + $0x40] sm:$0xf]
  %v2999 = vld [vmem:[#allocation4 + $0x44] sm:$0xf]
  %v3000 = vld [vmem:[#allocation4 + $0x48] sm:$0xf]
  %v3001 = vld [vmem:[#allocation4 + $0x4c] sm:$0xf]
  %v3002 = vld [vmem:[#allocation4 + $0x50] sm:$0xf]
  %v3003 = vld [vmem:[#allocation4 + $0x54] sm:$0xf]
  %v3004 = vld [vmem:[#allocation4 + $0x58] sm:$0xf]
  %v3005 = vld [vmem:[#allocation4 + $0x5c] sm:$0xf]
  %v3006 = vld [vmem:[#allocation4 + $0x60] sm:$0xf]
  %v3007 = vld [vmem:[#allocation4 + $0x64] sm:$0xf]
  %v3008 = vld [vmem:[#allocation4 + $0x68] sm:$0xf]
  %v3009 = vld [vmem:[#allocation4 + $0x6c] sm:$0xf]
  %v3010 = vld [vmem:[#allocation4 + $0x70] sm:$0xf]
  %v3011 = vld [vmem:[#allocation4 + $0x74] sm:$0xf]
  %v3012 = vld [vmem:[#allocation4 + $0x78] sm:$0xf]
  %v3013 = vld [vmem:[#allocation4 + $0x7c] sm:$0xf]
  %v3014 = vld [vmem:[%s1 + $0x90] sm:$0xff]
  %v3015 = vld [vmem:[%s1 + $0x98] sm:$0xff]
  %v3016 = vld [vmem:[%s1 + $0xa0] sm:$0xff]
  %v3017 = vld [vmem:[%s1 + $0xa8] sm:$0xff]
  %v3018 = vld [vmem:[%s1 + $0xb0] sm:$0xff]
  %v3019 = vld [vmem:[%s1 + $0xb8] sm:$0xff]
  %v3020 = vld [vmem:[%s1 + $0xc0] sm:$0xff]
  %v3021 = vld [vmem:[%s1 + $0xc8] sm:$0xff]
  %v3022 = vld [vmem:[%s1 + $0xd0] sm:$0xff]
  %v3023 = vld [vmem:[%s1 + $0xd8] sm:$0xff]
  %v3024 = vld [vmem:[%s1 + $0xe0] sm:$0xff]
  %v3025 = vld [vmem:[%s1 + $0xe8] sm:$0xff]
  %v3026 = vld [vmem:[%s1 + $0xf0] sm:$0xff]
  %v3027 = vld [vmem:[%s1 + $0xf8] sm:$0xff]
  %v3028 = vld [vmem:[%s1 + $0x100] sm:$0xff]
  %v3029 = vld [vmem:[%s1 + $0x108] sm:$0xff]
  %s3030 = scalar_lea.vmem %s2, 2
  %v3031 = vld [vmem:[%s3030] ss:$4 sm:$0x3]
  %v3032 = vld [vmem:[%s1 + $0x110] sm:$0xff]
  %v3033 = vld [vmem:[%s1 + $0x118] sm:$0xff]
  %v3034 = vld [vmem:[%s1 + $0x120] sm:$0xff]
  %v3035 = vld [vmem:[%s1 + $0x128] sm:$0xff]
  %v3036 = vld [vmem:[%s1 + $0x130] sm:$0xff]
  %v3037 = vld [vmem:[%s1 + $0x138] sm:$0xff]
  %v3038 = vld [vmem:[%s1 + $0x140] sm:$0xff]
  %v3039 = vld [vmem:[%s1 + $0x148] sm:$0xff]
  %v3040 = vld [vmem:[%s2 + $0x3] sm:$0x1]
  %v3042 = vlaneseq
  %v3043 = vshrl.u32 %v3042, 7
  %v3044 = vsub.s32 0, %v3043
  %v3045 = vrot.slane %v3031, %v3044
  %v3046 = vlaneseq
  %v3047 = vshrl.u32 %v3046, 7
  %v3048 = vsub.s32 1, %v3047
  %v3049 = vrot.slane %v3031, %v3048
  %v3084 = vunpack.c.l.b16 %v2982
  %v3085 = vunpack.c.l.b16 %v2983
  %v3086 = vunpack.c.l.b16 %v2984
  %v3087 = vunpack.c.l.b16 %v2985
  %v3088 = vunpack.c.l.b16 %v2986
  %v3089 = vunpack.c.l.b16 %v2987
  %v3090 = vunpack.c.l.b16 %v2988
  %v3091 = vunpack.c.l.b16 %v2989
  %v3092 = vunpack.c.l.b16 %v2990
  %v3093 = vunpack.c.l.b16 %v2991
  %v3094 = vunpack.c.l.b16 %v2992
  %v3095 = vunpack.c.l.b16 %v2993
  %v3096 = vunpack.c.l.b16 %v2994
  %v3097 = vunpack.c.l.b16 %v2995
  %v3098 = vunpack.c.l.b16 %v2996
  %v3099 = vunpack.c.l.b16 %v2997
  %v3100 = vunpack.c.l.b16 %v2998
  %v3101 = vunpack.c.l.b16 %v2999
  %v3102 = vunpack.c.l.b16 %v3000
  %v3103 = vunpack.c.l.b16 %v3001
  %v3104 = vunpack.c.l.b16 %v3002
  %v3105 = vunpack.c.l.b16 %v3003
  %v3106 = vunpack.c.l.b16 %v3004
  %v3107 = vunpack.c.l.b16 %v3005
  %v3108 = vunpack.c.l.b16 %v3006
  %v3109 = vunpack.c.l.b16 %v3007
  %v3110 = vunpack.c.l.b16 %v3008
  %v3111 = vunpack.c.l.b16 %v3009
  %v3112 = vunpack.c.l.b16 %v3010
  %v3113 = vunpack.c.l.b16 %v3011
  %v3114 = vunpack.c.l.b16 %v3012
  %v3115 = vunpack.c.l.b16 %v3013
  %v3116 = vpack.c.b16 %v3085, %v3084
  %v3117 = vpack.c.b16 %v3087, %v3086
  %v3118 = vpack.c.b16 %v3089, %v3088
  %v3119 = vpack.c.b16 %v3091, %v3090
  %v3120 = vpack.c.b16 %v3093, %v3092
  %v3121 = vpack.c.b16 %v3095, %v3094
  %v3122 = vpack.c.b16 %v3097, %v3096
  %v3123 = vpack.c.b16 %v3099, %v3098
  %v3124 = vpack.c.b16 %v3101, %v3100
  %v3125 = vpack.c.b16 %v3103, %v3102
  %v3126 = vpack.c.b16 %v3105, %v3104
  %v3127 = vpack.c.b16 %v3107, %v3106
  %v3128 = vpack.c.b16 %v3109, %v3108
  %v3129 = vpack.c.b16 %v3111, %v3110
  %v3130 = vpack.c.b16 %v3113, %v3112
  %v3131 = vpack.c.b16 %v3115, %v3114
  %v3164 = vunpack.c.l.b16 %v3014
  %v3165 = vunpack.c.h.b16 %v3014
  %v3166 = vunpack.c.l.b16 %v3015
  %v3167 = vunpack.c.h.b16 %v3015
  %v3168 = vunpack.c.l.b16 %v3016
  %v3169 = vunpack.c.h.b16 %v3016
  %v3170 = vunpack.c.l.b16 %v3017
  %v3171 = vunpack.c.h.b16 %v3017
  %v3172 = vunpack.c.l.b16 %v3018
  %v3173 = vunpack.c.h.b16 %v3018
  %v3174 = vunpack.c.l.b16 %v3019
  %v3175 = vunpack.c.h.b16 %v3019
  %v3176 = vunpack.c.l.b16 %v3020
  %v3177 = vunpack.c.h.b16 %v3020
  %v3178 = vunpack.c.l.b16 %v3021
  %v3179 = vunpack.c.h.b16 %v3021
  %v3180 = vunpack.c.l.b16 %v3022
  %v3181 = vunpack.c.h.b16 %v3022
  %v3182 = vunpack.c.l.b16 %v3023
  %v3183 = vunpack.c.h.b16 %v3023
  %v3184 = vunpack.c.l.b16 %v3024
  %v3185 = vunpack.c.h.b16 %v3024
  %v3186 = vunpack.c.l.b16 %v3025
  %v3187 = vunpack.c.h.b16 %v3025
  %v3188 = vunpack.c.l.b16 %v3026
  %v3189 = vunpack.c.h.b16 %v3026
  %v3190 = vunpack.c.l.b16 %v3027
  %v3191 = vunpack.c.h.b16 %v3027
  %v3192 = vunpack.c.l.b16 %v3028
  %v3193 = vunpack.c.h.b16 %v3028
  %v3194 = vunpack.c.l.b16 %v3029
  %v3195 = vunpack.c.h.b16 %v3029
  %v3196 = vpack.c.b16 %v3166, %v3164
  %v3197 = vpack.c.b16 %v3167, %v3165
  %v3198 = vpack.c.b16 %v3170, %v3168
  %v3199 = vpack.c.b16 %v3171, %v3169
  %v3200 = vpack.c.b16 %v3174, %v3172
  %v3201 = vpack.c.b16 %v3175, %v3173
  %v3202 = vpack.c.b16 %v3178, %v3176
  %v3203 = vpack.c.b16 %v3179, %v3177
  %v3204 = vpack.c.b16 %v3182, %v3180
  %v3205 = vpack.c.b16 %v3183, %v3181
  %v3206 = vpack.c.b16 %v3186, %v3184
  %v3207 = vpack.c.b16 %v3187, %v3185
  %v3208 = vpack.c.b16 %v3190, %v3188
  %v3209 = vpack.c.b16 %v3191, %v3189
  %v3210 = vpack.c.b16 %v3194, %v3192
  %v3211 = vpack.c.b16 %v3195, %v3193
  %3228 = vmatprep.subr.bf16.mxu0 %v3211
  %3229 = vmatpush1.bf16.msra.mxu0 %v3210
  %3230 = vmatprep.subr.bf16.mxu0 %v3209
  %3231 = vmatpush1.bf16.msra.mxu0 %v3208
  %3232 = vmatprep.subr.bf16.mxu0 %v3207
  %3233 = vmatpush1.bf16.msra.mxu0 %v3206
  %3234 = vmatprep.subr.bf16.mxu0 %v3205
  %3235 = vmatpush1.bf16.msra.mxu0 %v3204
  %3236 = vmatprep.subr.bf16.mxu0 %v3203
  %3237 = vmatpush1.bf16.msra.mxu0 %v3202
  %3238 = vmatprep.subr.bf16.mxu0 %v3201
  %3239 = vmatpush1.bf16.msra.mxu0 %v3200
  %3240 = vmatprep.subr.bf16.mxu0 %v3199
  %3241 = vmatpush1.bf16.msra.mxu0 %v3198
  %3242 = vmatprep.subr.bf16.mxu0 %v3197
  %3243 = vmatpush1.bf16.msra.mxu0 %v3196
  %3244 = vmatprep.subr.bf16.mxu0 0
  %3245 = vmatpush2.bf16.msra.mxu0 0
  %3246 = vmatprep.subr.bf16.mxu0 0
  %3247 = vmatpush2.bf16.msra.mxu0 0
  %3248 = vmatprep.subr.bf16.mxu0 0
  %3249 = vmatpush2.bf16.msra.mxu0 0
  %3250 = vmatprep.subr.bf16.mxu0 0
  %3251 = vmatpush2.bf16.msra.mxu0 0
  %3252 = vmatprep.subr.bf16.mxu0 0
  %3253 = vmatpush2.bf16.msra.mxu0 0
  %3254 = vmatprep.subr.bf16.mxu0 0
  %3255 = vmatpush2.bf16.msra.mxu0 0
  %3256 = vmatprep.subr.bf16.mxu0 0
  %3257 = vmatpush2.bf16.msra.mxu0 0
  %3258 = vmatprep.subr.bf16.mxu0 0
  %3259 = vmatpush2.bf16.msra.mxu0 0
  %3260 = vmatprep.mubr.bf16.mxu0 0
  %3261 = vmatmul.mubr.bf16.gmra.mxu0 %v3116
  %v3262 = vpop.f32.mrf.mxu0
  %v3263 = vadd.f32 %v3045, %v3262
  %v3264 = vpop.f32.mrf.mxu0
  %v3265 = vadd.f32 %v3049, %v3264
  %v3266 = vpop.f32.mrf.mxu0
  %v3267 = vadd.f32 %v3045, %v3266
  %v3268 = vpop.f32.mrf.mxu0
  %v3269 = vadd.f32 %v3049, %v3268
  %3270 = vmatprep.mubr.bf16.mxu0 0
  %3271 = vmatmul.mubr.bf16.gmra.mxu0 %v3117
  %v3272 = vpop.f32.mrf.mxu0
  %v3273 = vadd.f32 %v3045, %v3272
  %v3274 = vpop.f32.mrf.mxu0
  %v3275 = vadd.f32 %v3049, %v3274
  %v3276 = vpop.f32.mrf.mxu0
  %v3277 = vadd.f32 %v3045, %v3276
  %v3278 = vpop.f32.mrf.mxu0
  %v3279 = vadd.f32 %v3049, %v3278
  %3280 = vmatprep.mubr.bf16.mxu0 0
  %3281 = vmatmul.mubr.bf16.gmra.mxu0 %v3118
  %v3282 = vpop.f32.mrf.mxu0
  %v3283 = vadd.f32 %v3045, %v3282
  %v3284 = vpop.f32.mrf.mxu0
  %v3285 = vadd.f32 %v3049, %v3284
  %v3286 = vpop.f32.mrf.mxu0
  %v3287 = vadd.f32 %v3045, %v3286
  %v3288 = vpop.f32.mrf.mxu0
  %v3289 = vadd.f32 %v3049, %v3288
  %3290 = vmatprep.mubr.bf16.mxu0 0
  %3291 = vmatmul.mubr.bf16.gmra.mxu0 %v3119
  %v3292 = vpop.f32.mrf.mxu0
  %v3293 = vadd.f32 %v3045, %v3292
  %v3294 = vpop.f32.mrf.mxu0
  %v3295 = vadd.f32 %v3049, %v3294
  %v3296 = vpop.f32.mrf.mxu0
  %v3297 = vadd.f32 %v3045, %v3296
  %v3298 = vpop.f32.mrf.mxu0
  %v3299 = vadd.f32 %v3049, %v3298
  %3300 = vmatprep.mubr.bf16.mxu0 0
  %3301 = vmatmul.mubr.bf16.gmra.mxu0 %v3120
  %v3302 = vpop.f32.mrf.mxu0
  %v3303 = vadd.f32 %v3045, %v3302
  %v3304 = vpop.f32.mrf.mxu0
  %v3305 = vadd.f32 %v3049, %v3304
  %v3306 = vpop.f32.mrf.mxu0
  %v3307 = vadd.f32 %v3045, %v3306
  %v3308 = vpop.f32.mrf.mxu0
  %v3309 = vadd.f32 %v3049, %v3308
  %3310 = vmatprep.mubr.bf16.mxu0 0
  %3311 = vmatmul.mubr.bf16.gmra.mxu0 %v3121
  %v3312 = vpop.f32.mrf.mxu0
  %v3313 = vadd.f32 %v3045, %v3312
  %v3314 = vpop.f32.mrf.mxu0
  %v3315 = vadd.f32 %v3049, %v3314
  %v3316 = vpop.f32.mrf.mxu0
  %v3317 = vadd.f32 %v3045, %v3316
  %v3318 = vpop.f32.mrf.mxu0
  %v3319 = vadd.f32 %v3049, %v3318
  %3320 = vmatprep.mubr.bf16.mxu0 0
  %3321 = vmatmul.mubr.bf16.gmra.mxu0 %v3122
  %v3322 = vpop.f32.mrf.mxu0
  %v3323 = vadd.f32 %v3045, %v3322
  %v3324 = vpop.f32.mrf.mxu0
  %v3325 = vadd.f32 %v3049, %v3324
  %v3326 = vpop.f32.mrf.mxu0
  %v3327 = vadd.f32 %v3045, %v3326
  %v3328 = vpop.f32.mrf.mxu0
  %v3329 = vadd.f32 %v3049, %v3328
  %3330 = vmatprep.mubr.bf16.mxu0 0
  %3331 = vmatmul.mubr.bf16.gmra.mxu0 %v3123
  %v3332 = vpop.f32.mrf.mxu0
  %v3333 = vadd.f32 %v3045, %v3332
  %v3334 = vpop.f32.mrf.mxu0
  %v3335 = vadd.f32 %v3049, %v3334
  %v3336 = vpop.f32.mrf.mxu0
  %v3337 = vadd.f32 %v3045, %v3336
  %v3338 = vpop.f32.mrf.mxu0
  %v3339 = vadd.f32 %v3049, %v3338
  %3340 = vmatprep.mubr.bf16.mxu0 0
  %3341 = vmatmul.mubr.bf16.gmra.mxu0 %v3124
  %v3342 = vpop.f32.mrf.mxu0
  %v3343 = vadd.f32 %v3045, %v3342
  %v3344 = vpop.f32.mrf.mxu0
  %v3345 = vadd.f32 %v3049, %v3344
  %v3346 = vpop.f32.mrf.mxu0
  %v3347 = vadd.f32 %v3045, %v3346
  %v3348 = vpop.f32.mrf.mxu0
  %v3349 = vadd.f32 %v3049, %v3348
  %3350 = vmatprep.mubr.bf16.mxu0 0
  %3351 = vmatmul.mubr.bf16.gmra.mxu0 %v3125
  %v3352 = vpop.f32.mrf.mxu0
  %v3353 = vadd.f32 %v3045, %v3352
  %v3354 = vpop.f32.mrf.mxu0
  %v3355 = vadd.f32 %v3049, %v3354
  %v3356 = vpop.f32.mrf.mxu0
  %v3357 = vadd.f32 %v3045, %v3356
  %v3358 = vpop.f32.mrf.mxu0
  %v3359 = vadd.f32 %v3049, %v3358
  %3360 = vmatprep.mubr.bf16.mxu0 0
  %3361 = vmatmul.mubr.bf16.gmra.mxu0 %v3126
  %v3362 = vpop.f32.mrf.mxu0
  %v3363 = vadd.f32 %v3045, %v3362
  %v3364 = vpop.f32.mrf.mxu0
  %v3365 = vadd.f32 %v3049, %v3364
  %v3366 = vpop.f32.mrf.mxu0
  %v3367 = vadd.f32 %v3045, %v3366
  %v3368 = vpop.f32.mrf.mxu0
  %v3369 = vadd.f32 %v3049, %v3368
  %3370 = vmatprep.mubr.bf16.mxu0 0
  %3371 = vmatmul.mubr.bf16.gmra.mxu0 %v3127
  %v3372 = vpop.f32.mrf.mxu0
  %v3373 = vadd.f32 %v3045, %v3372
  %v3374 = vpop.f32.mrf.mxu0
  %v3375 = vadd.f32 %v3049, %v3374
  %v3376 = vpop.f32.mrf.mxu0
  %v3377 = vadd.f32 %v3045, %v3376
  %v3378 = vpop.f32.mrf.mxu0
  %v3379 = vadd.f32 %v3049, %v3378
  %3380 = vmatprep.mubr.bf16.mxu0 0
  %3381 = vmatmul.mubr.bf16.gmra.mxu0 %v3128
  %v3382 = vpop.f32.mrf.mxu0
  %v3383 = vadd.f32 %v3045, %v3382
  %v3384 = vpop.f32.mrf.mxu0
  %v3385 = vadd.f32 %v3049, %v3384
  %v3386 = vpop.f32.mrf.mxu0
  %v3387 = vadd.f32 %v3045, %v3386
  %v3388 = vpop.f32.mrf.mxu0
  %v3389 = vadd.f32 %v3049, %v3388
  %3390 = vmatprep.mubr.bf16.mxu0 0
  %3391 = vmatmul.mubr.bf16.gmra.mxu0 %v3129
  %v3392 = vpop.f32.mrf.mxu0
  %v3393 = vadd.f32 %v3045, %v3392
  %v3394 = vpop.f32.mrf.mxu0
  %v3395 = vadd.f32 %v3049, %v3394
  %v3396 = vpop.f32.mrf.mxu0
  %v3397 = vadd.f32 %v3045, %v3396
  %v3398 = vpop.f32.mrf.mxu0
  %v3399 = vadd.f32 %v3049, %v3398
  %3400 = vmatprep.mubr.bf16.mxu0 0
  %3401 = vmatmul.mubr.bf16.gmra.mxu0 %v3130
  %v3402 = vpop.f32.mrf.mxu0
  %v3403 = vadd.f32 %v3045, %v3402
  %v3404 = vpop.f32.mrf.mxu0
  %v3405 = vadd.f32 %v3049, %v3404
  %v3406 = vpop.f32.mrf.mxu0
  %v3407 = vadd.f32 %v3045, %v3406
  %v3408 = vpop.f32.mrf.mxu0
  %v3409 = vadd.f32 %v3049, %v3408
  %3410 = vmatprep.mubr.bf16.mxu0 0
  %3411 = vmatmul.mubr.bf16.gmra.mxu0 %v3131
  %v3412 = vpop.f32.mrf.mxu0
  %v3413 = vadd.f32 %v3045, %v3412
  %v3414 = vpop.f32.mrf.mxu0
  %v3415 = vadd.f32 %v3049, %v3414
  %v3416 = vpop.f32.mrf.mxu0
  %v3417 = vadd.f32 %v3045, %v3416
  %v3418 = vpop.f32.mrf.mxu0
  %v3419 = vadd.f32 %v3049, %v3418
  %3420 = vdwg.mxu0
  %3421 = vst [vmem:[#allocation5] sm:$0xff] %v3263
  %3422 = vst.msk [vmem:[#allocation5 + $0x8] sm:$0xff] %vm1173, %v3265
  %3423 = vst [vmem:[#allocation5 + $0x10] sm:$0xff] %v3267
  %3424 = vst.msk [vmem:[#allocation5 + $0x18] sm:$0xff] %vm1173, %v3269
  %3425 = vst [vmem:[#allocation5 + $0x20] sm:$0xff] %v3273
  %3426 = vst.msk [vmem:[#allocation5 + $0x28] sm:$0xff] %vm1173, %v3275
  %3427 = vst [vmem:[#allocation5 + $0x30] sm:$0xff] %v3277
  %3428 = vst.msk [vmem:[#allocation5 + $0x38] sm:$0xff] %vm1173, %v3279
  %3429 = vst [vmem:[#allocation5 + $0x40] sm:$0xff] %v3283
  %3430 = vst.msk [vmem:[#allocation5 + $0x48] sm:$0xff] %vm1173, %v3285
  %3431 = vst [vmem:[#allocation5 + $0x50] sm:$0xff] %v3287
  %3432 = vst.msk [vmem:[#allocation5 + $0x58] sm:$0xff] %vm1173, %v3289
  %3433 = vst [vmem:[#allocation5 + $0x60] sm:$0xff] %v3293
  %3434 = vst.msk [vmem:[#allocation5 + $0x68] sm:$0xff] %vm1173, %v3295
  %3435 = vst [vmem:[#allocation5 + $0x70] sm:$0xff] %v3297
  %3436 = vst.msk [vmem:[#allocation5 + $0x78] sm:$0xff] %vm1173, %v3299
  %3437 = vst [vmem:[#allocation5 + $0x80] sm:$0xff] %v3303
  %3438 = vst.msk [vmem:[#allocation5 + $0x88] sm:$0xff] %vm1173, %v3305
  %3439 = vst [vmem:[#allocation5 + $0x90] sm:$0xff] %v3307
  %3440 = vst.msk [vmem:[#allocation5 + $0x98] sm:$0xff] %vm1173, %v3309
  %3441 = vst [vmem:[#allocation5 + $0xa0] sm:$0xff] %v3313
  %3442 = vst.msk [vmem:[#allocation5 + $0xa8] sm:$0xff] %vm1173, %v3315
  %3443 = vst [vmem:[#allocation5 + $0xb0] sm:$0xff] %v3317
  %3444 = vst.msk [vmem:[#allocation5 + $0xb8] sm:$0xff] %vm1173, %v3319
  %3445 = vst [vmem:[#allocation5 + $0xc0] sm:$0xff] %v3323
  %3446 = vst.msk [vmem:[#allocation5 + $0xc8] sm:$0xff] %vm1173, %v3325
  %3447 = vst [vmem:[#allocation5 + $0xd0] sm:$0xff] %v3327
  %3448 = vst.msk [vmem:[#allocation5 + $0xd8] sm:$0xff] %vm1173, %v3329
  %3449 = vst [vmem:[#allocation5 + $0xe0] sm:$0xff] %v3333
  %3450 = vst.msk [vmem:[#allocation5 + $0xe8] sm:$0xff] %vm1173, %v3335
  %3451 = vst [vmem:[#allocation5 + $0xf0] sm:$0xff] %v3337
  %3452 = vst.msk [vmem:[#allocation5 + $0xf8] sm:$0xff] %vm1173, %v3339
  %3453 = vst [vmem:[#allocation5 + $0x100] sm:$0xff] %v3343
  %3454 = vst.msk [vmem:[#allocation5 + $0x108] sm:$0xff] %vm1173, %v3345
  %3455 = vst [vmem:[#allocation5 + $0x110] sm:$0xff] %v3347
  %3456 = vst.msk [vmem:[#allocation5 + $0x118] sm:$0xff] %vm1173, %v3349
  %3457 = vst [vmem:[#allocation5 + $0x120] sm:$0xff] %v3353
  %3458 = vst.msk [vmem:[#allocation5 + $0x128] sm:$0xff] %vm1173, %v3355
  %3459 = vst [vmem:[#allocation5 + $0x130] sm:$0xff] %v3357
  %3460 = vst.msk [vmem:[#allocation5 + $0x138] sm:$0xff] %vm1173, %v3359
  %3461 = vst [vmem:[#allocation5 + $0x140] sm:$0xff] %v3363
  %3462 = vst.msk [vmem:[#allocation5 + $0x148] sm:$0xff] %vm1173, %v3365
  %3463 = vst [vmem:[#allocation5 + $0x150] sm:$0xff] %v3367
  %3464 = vst.msk [vmem:[#allocation5 + $0x158] sm:$0xff] %vm1173, %v3369
  %3465 = vst [vmem:[#allocation5 + $0x160] sm:$0xff] %v3373
  %3466 = vst.msk [vmem:[#allocation5 + $0x168] sm:$0xff] %vm1173, %v3375
  %3467 = vst [vmem:[#allocation5 + $0x170] sm:$0xff] %v3377
  %3468 = vst.msk [vmem:[#allocation5 + $0x178] sm:$0xff] %vm1173, %v3379
  %3469 = vst [vmem:[#allocation5 + $0x180] sm:$0xff] %v3383
  %3470 = vst.msk [vmem:[#allocation5 + $0x188] sm:$0xff] %vm1173, %v3385
  %3471 = vst [vmem:[#allocation5 + $0x190] sm:$0xff] %v3387
  %3472 = vst.msk [vmem:[#allocation5 + $0x198] sm:$0xff] %vm1173, %v3389
  %3473 = vst [vmem:[#allocation5 + $0x1a0] sm:$0xff] %v3393
  %3474 = vst.msk [vmem:[#allocation5 + $0x1a8] sm:$0xff] %vm1173, %v3395
  %3475 = vst [vmem:[#allocation5 + $0x1b0] sm:$0xff] %v3397
  %3476 = vst.msk [vmem:[#allocation5 + $0x1b8] sm:$0xff] %vm1173, %v3399
  %3477 = vst [vmem:[#allocation5 + $0x1c0] sm:$0xff] %v3403
  %3478 = vst.msk [vmem:[#allocation5 + $0x1c8] sm:$0xff] %vm1173, %v3405
  %3479 = vst [vmem:[#allocation5 + $0x1d0] sm:$0xff] %v3407
  %3480 = vst.msk [vmem:[#allocation5 + $0x1d8] sm:$0xff] %vm1173, %v3409
  %3481 = vst [vmem:[#allocation5 + $0x1e0] sm:$0xff] %v3413
  %3482 = vst.msk [vmem:[#allocation5 + $0x1e8] sm:$0xff] %vm1173, %v3415
  %3483 = vst [vmem:[#allocation5 + $0x1f0] sm:$0xff] %v3417
  %3484 = vst.msk [vmem:[#allocation5 + $0x1f8] sm:$0xff] %vm1173, %v3419
  %v3485 = vlaneseq
  %v3486 = vshrl.u32 %v3485, 7
  %v3487 = vsub.s32 0, %v3486
  %v3488 = vrot.slane %v3040, %v3487
  %v3497 = vunpack.c.l.b16 %v3032
  %v3498 = vunpack.c.h.b16 %v3032
  %v3499 = vunpack.c.l.b16 %v3033
  %v3500 = vunpack.c.h.b16 %v3033
  %v3501 = vunpack.c.l.b16 %v3034
  %v3502 = vunpack.c.h.b16 %v3034
  %v3503 = vunpack.c.l.b16 %v3035
  %v3504 = vunpack.c.h.b16 %v3035
  %v3505 = vunpack.c.l.b16 %v3036
  %v3506 = vunpack.c.h.b16 %v3036
  %v3507 = vunpack.c.l.b16 %v3037
  %v3508 = vunpack.c.h.b16 %v3037
  %v3509 = vunpack.c.l.b16 %v3038
  %v3510 = vunpack.c.h.b16 %v3038
  %v3511 = vunpack.c.l.b16 %v3039
  %v3512 = vunpack.c.h.b16 %v3039
  %v3513 = vpack.c.b16 %v3499, %v3497
  %v3514 = vpack.c.b16 %v3500, %v3498
  %v3515 = vpack.c.b16 %v3503, %v3501
  %v3516 = vpack.c.b16 %v3504, %v3502
  %v3517 = vpack.c.b16 %v3507, %v3505
  %v3518 = vpack.c.b16 %v3508, %v3506
  %v3519 = vpack.c.b16 %v3511, %v3509
  %v3520 = vpack.c.b16 %v3512, %v3510
  %3529 = vmatprep.subr.bf16.mxu0 0
  %3530 = vmatpush1.bf16.msra.mxu0 0
  %3531 = vmatprep.subr.bf16.mxu0 0
  %3532 = vmatpush1.bf16.msra.mxu0 0
  %3533 = vmatprep.subr.bf16.mxu0 0
  %3534 = vmatpush1.bf16.msra.mxu0 0
  %3535 = vmatprep.subr.bf16.mxu0 0
  %3536 = vmatpush1.bf16.msra.mxu0 0
  %3537 = vmatprep.subr.bf16.mxu0 %v3520
  %3538 = vmatpush1.bf16.msra.mxu0 %v3519
  %3539 = vmatprep.subr.bf16.mxu0 %v3518
  %3540 = vmatpush1.bf16.msra.mxu0 %v3517
  %3541 = vmatprep.subr.bf16.mxu0 %v3516
  %3542 = vmatpush1.bf16.msra.mxu0 %v3515
  %3543 = vmatprep.subr.bf16.mxu0 %v3514
  %3544 = vmatpush1.bf16.msra.mxu0 %v3513
  %3545 = vmatprep.subr.bf16.mxu0 0
  %3546 = vmatpush2.bf16.msra.mxu0 0
  %3547 = vmatprep.subr.bf16.mxu0 0
  %3548 = vmatpush2.bf16.msra.mxu0 0
  %3549 = vmatprep.subr.bf16.mxu0 0
  %3550 = vmatpush2.bf16.msra.mxu0 0
  %3551 = vmatprep.subr.bf16.mxu0 0
  %3552 = vmatpush2.bf16.msra.mxu0 0
  %3553 = vmatprep.subr.bf16.mxu0 0
  %3554 = vmatpush2.bf16.msra.mxu0 0
  %3555 = vmatprep.subr.bf16.mxu0 0
  %3556 = vmatpush2.bf16.msra.mxu0 0
  %3557 = vmatprep.subr.bf16.mxu0 0
  %3558 = vmatpush2.bf16.msra.mxu0 0
  %3559 = vmatprep.subr.bf16.mxu0 0
  %3560 = vmatpush2.bf16.msra.mxu0 0
  %3561 = vmatprep.mubr.bf16.mxu0 0
  %3562 = vmatmul.mubr.bf16.gmra.mxu0 %v1524
  %v3563 = vpop.f32.mrf.mxu0
  %v3564 = vadd.f32 0.0, %v3563
  %v3565 = vpop.f32.mrf.mxu0
  %v3566 = vadd.f32 0.0, %v3565
  %v3567 = vpop.f32.mrf.mxu0
  %v3568 = vadd.f32 0.0, %v3567
  %v3569 = vpop.f32.mrf.mxu0
  %v3570 = vadd.f32 0.0, %v3569
  %3571 = vmatprep.mubr.bf16.mxu0 0
  %3572 = vmatmul.mubr.bf16.gmra.mxu0 %v1524
  %v3573 = vpop.f32.mrf.mxu0
  %v3574 = vadd.f32 0.0, %v3573
  %v3575 = vpop.f32.mrf.mxu0
  %v3576 = vadd.f32 0.0, %v3575
  %v3577 = vpop.f32.mrf.mxu0
  %v3578 = vadd.f32 0.0, %v3577
  %v3579 = vpop.f32.mrf.mxu0
  %v3580 = vadd.f32 0.0, %v3579
  %3581 = vdwg.mxu0
  %v3582 = vld [vmem:[#allocation5] sm:$0xff]
  %v3583 = vld [vmem:[#allocation5 + $0x10] sm:$0xff]
  %v3584 = vld [vmem:[#allocation5 + $0x20] sm:$0xff]
  %v3585 = vld [vmem:[#allocation5 + $0x30] sm:$0xff]
  %v3586 = vadd.f32 %v3582, %v3564
  %v3587 = vadd.f32 %v3583, %v3568
  %v3588 = vadd.f32 %v3584, %v3574
  %v3589 = vadd.f32 %v3585, %v3578
  %v3590 = vmul.f32 %v3586, 0.5
  %v3591 = vmul.f32 %v3587, 0.5
  %v3592 = vmul.f32 %v3588, 0.5
  %v3593 = vmul.f32 %v3589, 0.5
  %v3594 = vtanh.pop %v3590
  %v3595 = vtanh.pop %v3591
  %v3596 = vtanh.pop %v3592
  %v3597 = vtanh.pop %v3593
  %v3598 = vmul.f32 %v3594, 0.5
  %v3599 = vmul.f32 %v3595, 0.5
  %v3600 = vmul.f32 %v3596, 0.5
  %v3601 = vmul.f32 %v3597, 0.5
  %v3602 = vadd.f32 %v3598, 0.5
  %v3603 = vadd.f32 %v3599, 0.5
  %v3604 = vadd.f32 %v3600, 0.5
  %v3605 = vadd.f32 %v3601, 0.5
  %v3606 = vld [vmem:[#allocation5 + $0x8] sm:$0xff]
  %v3607 = vld [vmem:[#allocation5 + $0x18] sm:$0xff]
  %v3608 = vld [vmem:[#allocation5 + $0x28] sm:$0xff]
  %v3609 = vld [vmem:[#allocation5 + $0x38] sm:$0xff]
  %3611 = vrot.lane.b32.xlu0 %v3488, 64
  %v3612 = vpop.permute.xlu0 %3611
  %v3614 = vadd.f32 %v3566, %v3612
  %v3615 = vadd.f32 %v3570, %v3612
  %v3616 = vadd.f32 %v3576, %v3612
  %v3617 = vadd.f32 %v3580, %v3612
  %v3618 = vmul.f32 %v3602, %v3614
  %v3619 = vmul.f32 %v3603, %v3615
  %v3620 = vmul.f32 %v3604, %v3616
  %v3621 = vmul.f32 %v3605, %v3617
  %v3622 = vadd.f32 %v3606, %v3618
  %v3623 = vadd.f32 %v3607, %v3619
  %v3624 = vadd.f32 %v3608, %v3620
  %v3625 = vadd.f32 %v3609, %v3621
  %v3626 = vtanh.pop %v3622
  %v3627 = vtanh.pop %v3623
  %v3628 = vtanh.pop %v3624
  %v3629 = vtanh.pop %v3625
  %v3630 = vsub.f32 1.0, %v3602
  %v3631 = vsub.f32 1.0, %v3603
  %v3632 = vsub.f32 1.0, %v3604
  %v3633 = vsub.f32 1.0, %v3605
  %3638 = vrot.lane.b32.xlu0 %v3626, 64
  %v3639 = vpop.permute.xlu0 %3638
  %3640 = vrot.lane.b32.xlu0 %v3627, 64
  %v3641 = vpop.permute.xlu0 %3640
  %3642 = vrot.lane.b32.xlu0 %v3628, 64
  %v3643 = vpop.permute.xlu0 %3642
  %3644 = vrot.lane.b32.xlu0 %v3629, 64
  %v3645 = vpop.permute.xlu0 %3644
  %v3650 = vmul.f32 %v3630, %v3639
  %v3651 = vmul.f32 %v3631, %v3641
  %v3652 = vmul.f32 %v3632, %v3643
  %v3653 = vmul.f32 %v3633, %v3645
  %v3654 = vmul.f32 %v3602, 0.0
  %v3655 = vmul.f32 %v3603, 0.0
  %v3656 = vmul.f32 %v3604, 0.0
  %v3657 = vmul.f32 %v3605, 0.0
  %v3658 = vadd.f32 %v3650, %v3654
  %v3659 = vadd.f32 %v3651, %v3655
  %v3660 = vadd.f32 %v3652, %v3656
  %v3661 = vadd.f32 %v3653, %v3657
  %3666 = vrot.lane.b32.xlu0 %v3658, 64
  %v3667 = vpop.permute.xlu0 %3666
  %3668 = vrot.lane.b32.xlu0 %v3659, 64
  %v3669 = vpop.permute.xlu0 %3668
  %3670 = vrot.lane.b32.xlu0 %v3660, 64
  %v3671 = vpop.permute.xlu0 %3670
  %3672 = vrot.lane.b32.xlu0 %v3661, 64
  %v3673 = vpop.permute.xlu0 %3672
  %3678 = vst.msk [vmem:[#allocation6] sm:$0xff] %vm292, %v3667
  %3679 = vst.msk [vmem:[#allocation6 + $0x8] sm:$0xff] %vm292, %v3669
  %3680 = vst.msk [vmem:[#allocation6 + $0x10] sm:$0xff] %vm292, %v3671
  %3681 = vst.msk [vmem:[#allocation6 + $0x18] sm:$0xff] %vm292, %v3673
  %vm3682 = vcmask 523520
  %3683 = vst.msk [vmem:[#allocation6 + $0xe0] sm:$0xff] %vm3682, %v3667
  %3684 = vst.msk [vmem:[#allocation6 + $0xe8] sm:$0xff] %vm3682, %v3669
  %3685 = vst.msk [vmem:[#allocation6 + $0xf0] sm:$0xff] %vm3682, %v3671
  %3686 = vst.msk [vmem:[#allocation6 + $0xf8] sm:$0xff] %vm3682, %v3673
  %v3687 = vpack.c.bf16 %v3659, %v3658
  %v3688 = vpack.c.bf16 %v3661, %v3660
  %3691 = vrot.lane.b32.xlu0 %v3687, 64
  %v3692 = vpop.permute.xlu0 %3691
  %3693 = vrot.lane.b32.xlu0 %v3688, 64
  %v3694 = vpop.permute.xlu0 %3693
  %v3696 = vsel %vm1173, %v3692, 0
  %v3699 = vsel %vm1173, %v3694, 0
  %3701 = vmatprep.subr.bf16.mxu0 0
  %3702 = vmatpush1.bf16.msra.mxu0 0
  %3703 = vmatprep.subr.bf16.mxu0 0
  %3704 = vmatpush1.bf16.msra.mxu0 0
  %3705 = vmatprep.subr.bf16.mxu0 0
  %3706 = vmatpush1.bf16.msra.mxu0 0
  %3707 = vmatprep.subr.bf16.mxu0 0
  %3708 = vmatpush1.bf16.msra.mxu0 0
  %3709 = vmatprep.subr.bf16.mxu0 %v3520
  %3710 = vmatpush1.bf16.msra.mxu0 %v3519
  %3711 = vmatprep.subr.bf16.mxu0 %v3518
  %3712 = vmatpush1.bf16.msra.mxu0 %v3517
  %3713 = vmatprep.subr.bf16.mxu0 %v3516
  %3714 = vmatpush1.bf16.msra.mxu0 %v3515
  %3715 = vmatprep.subr.bf16.mxu0 %v3514
  %3716 = vmatpush1.bf16.msra.mxu0 %v3513
  %3717 = vmatprep.subr.bf16.mxu0 0
  %3718 = vmatpush2.bf16.msra.mxu0 0
  %3719 = vmatprep.subr.bf16.mxu0 0
  %3720 = vmatpush2.bf16.msra.mxu0 0
  %3721 = vmatprep.subr.bf16.mxu0 0
  %3722 = vmatpush2.bf16.msra.mxu0 0
  %3723 = vmatprep.subr.bf16.mxu0 0
  %3724 = vmatpush2.bf16.msra.mxu0 0
  %3725 = vmatprep.subr.bf16.mxu0 0
  %3726 = vmatpush2.bf16.msra.mxu0 0
  %3727 = vmatprep.subr.bf16.mxu0 0
  %3728 = vmatpush2.bf16.msra.mxu0 0
  %3729 = vmatprep.subr.bf16.mxu0 0
  %3730 = vmatpush2.bf16.msra.mxu0 0
  %3731 = vmatprep.subr.bf16.mxu0 0
  %3732 = vmatpush2.bf16.msra.mxu0 0
  %3733 = vmatprep.mubr.bf16.mxu0 0
  %3734 = vmatmul.mubr.bf16.gmra.mxu0 %v3696
  %v3735 = vpop.f32.mrf.mxu0
  %v3736 = vadd.f32 0.0, %v3735
  %v3737 = vpop.f32.mrf.mxu0
  %v3738 = vadd.f32 0.0, %v3737
  %v3739 = vpop.f32.mrf.mxu0
  %v3740 = vadd.f32 0.0, %v3739
  %v3741 = vpop.f32.mrf.mxu0
  %v3742 = vadd.f32 0.0, %v3741
  %3743 = vmatprep.mubr.bf16.mxu0 0
  %3744 = vmatmul.mubr.bf16.gmra.mxu0 %v3699
  %v3745 = vpop.f32.mrf.mxu0
  %v3746 = vadd.f32 0.0, %v3745
  %v3747 = vpop.f32.mrf.mxu0
  %v3748 = vadd.f32 0.0, %v3747
  %v3749 = vpop.f32.mrf.mxu0
  %v3750 = vadd.f32 0.0, %v3749
  %v3751 = vpop.f32.mrf.mxu0
  %v3752 = vadd.f32 0.0, %v3751
  %3753 = vdwg.mxu0
  %v3754 = vld [vmem:[#allocation5 + $0x40] sm:$0xff]
  %v3755 = vld [vmem:[#allocation5 + $0x50] sm:$0xff]
  %v3756 = vld [vmem:[#allocation5 + $0x60] sm:$0xff]
  %v3757 = vld [vmem:[#allocation5 + $0x70] sm:$0xff]
  %v3758 = vadd.f32 %v3754, %v3736
  %v3759 = vadd.f32 %v3755, %v3740
  %v3760 = vadd.f32 %v3756, %v3746
  %v3761 = vadd.f32 %v3757, %v3750
  %v3762 = vmul.f32 %v3758, 0.5
  %v3763 = vmul.f32 %v3759, 0.5
  %v3764 = vmul.f32 %v3760, 0.5
  %v3765 = vmul.f32 %v3761, 0.5
  %v3766 = vtanh.pop %v3762
  %v3767 = vtanh.pop %v3763
  %v3768 = vtanh.pop %v3764
  %v3769 = vtanh.pop %v3765
  %v3770 = vmul.f32 %v3766, 0.5
  %v3771 = vmul.f32 %v3767, 0.5
  %v3772 = vmul.f32 %v3768, 0.5
  %v3773 = vmul.f32 %v3769, 0.5
  %v3774 = vadd.f32 %v3770, 0.5
  %v3775 = vadd.f32 %v3771, 0.5
  %v3776 = vadd.f32 %v3772, 0.5
  %v3777 = vadd.f32 %v3773, 0.5
  %v3778 = vld [vmem:[#allocation5 + $0x48] sm:$0xff]
  %v3779 = vld [vmem:[#allocation5 + $0x58] sm:$0xff]
  %v3780 = vld [vmem:[#allocation5 + $0x68] sm:$0xff]
  %v3781 = vld [vmem:[#allocation5 + $0x78] sm:$0xff]
  %v3782 = vadd.f32 %v3738, %v3612
  %v3783 = vadd.f32 %v3742, %v3612
  %v3784 = vadd.f32 %v3748, %v3612
  %v3785 = vadd.f32 %v3752, %v3612
  %v3786 = vmul.f32 %v3774, %v3782
  %v3787 = vmul.f32 %v3775, %v3783
  %v3788 = vmul.f32 %v3776, %v3784
  %v3789 = vmul.f32 %v3777, %v3785
  %v3790 = vadd.f32 %v3778, %v3786
  %v3791 = vadd.f32 %v3779, %v3787
  %v3792 = vadd.f32 %v3780, %v3788
  %v3793 = vadd.f32 %v3781, %v3789
  %v3794 = vtanh.pop %v3790
  %v3795 = vtanh.pop %v3791
  %v3796 = vtanh.pop %v3792
  %v3797 = vtanh.pop %v3793
  %v3798 = vsub.f32 1.0, %v3774
  %v3799 = vsub.f32 1.0, %v3775
  %v3800 = vsub.f32 1.0, %v3776
  %v3801 = vsub.f32 1.0, %v3777
  %3806 = vrot.lane.b32.xlu0 %v3794, 64
  %v3807 = vpop.permute.xlu0 %3806
  %3808 = vrot.lane.b32.xlu0 %v3795, 64
  %v3809 = vpop.permute.xlu0 %3808
  %3810 = vrot.lane.b32.xlu0 %v3796, 64
  %v3811 = vpop.permute.xlu0 %3810
  %3812 = vrot.lane.b32.xlu0 %v3797, 64
  %v3813 = vpop.permute.xlu0 %3812
  %v3818 = vmul.f32 %v3798, %v3807
  %v3819 = vmul.f32 %v3799, %v3809
  %v3820 = vmul.f32 %v3800, %v3811
  %v3821 = vmul.f32 %v3801, %v3813
  %v3822 = vmul.f32 %v3774, %v3658
  %v3823 = vmul.f32 %v3775, %v3659
  %v3824 = vmul.f32 %v3776, %v3660
  %v3825 = vmul.f32 %v3777, %v3661
  %v3826 = vadd.f32 %v3818, %v3822
  %v3827 = vadd.f32 %v3819, %v3823
  %v3828 = vadd.f32 %v3820, %v3824
  %v3829 = vadd.f32 %v3821, %v3825
  %3834 = vrot.lane.b32.xlu0 %v3826, 64
  %v3835 = vpop.permute.xlu0 %3834
  %3836 = vrot.lane.b32.xlu0 %v3827, 64
  %v3837 = vpop.permute.xlu0 %3836
  %3838 = vrot.lane.b32.xlu0 %v3828, 64
  %v3839 = vpop.permute.xlu0 %3838
  %3840 = vrot.lane.b32.xlu0 %v3829, 64
  %v3841 = vpop.permute.xlu0 %3840
  %3846 = vst.msk [vmem:[#allocation6 + $0x20] sm:$0xff] %vm292, %v3835
  %3847 = vst.msk [vmem:[#allocation6 + $0x28] sm:$0xff] %vm292, %v3837
  %3848 = vst.msk [vmem:[#allocation6 + $0x30] sm:$0xff] %vm292, %v3839
  %3849 = vst.msk [vmem:[#allocation6 + $0x38] sm:$0xff] %vm292, %v3841
  %3850 = vst.msk [vmem:[#allocation6 + $0xc0] sm:$0xff] %vm3682, %v3835
  %3851 = vst.msk [vmem:[#allocation6 + $0xc8] sm:$0xff] %vm3682, %v3837
  %3852 = vst.msk [vmem:[#allocation6 + $0xd0] sm:$0xff] %vm3682, %v3839
  %3853 = vst.msk [vmem:[#allocation6 + $0xd8] sm:$0xff] %vm3682, %v3841
  %v3854 = vpack.c.bf16 %v3827, %v3826
  %v3855 = vpack.c.bf16 %v3829, %v3828
  %3858 = vrot.lane.b32.xlu0 %v3854, 64
  %v3859 = vpop.permute.xlu0 %3858
  %3860 = vrot.lane.b32.xlu0 %v3855, 64
  %v3861 = vpop.permute.xlu0 %3860
  %v3863 = vsel %vm1173, %v3859, 0
  %v3866 = vsel %vm1173, %v3861, 0
  %3868 = vmatprep.subr.bf16.mxu0 0
  %3869 = vmatpush1.bf16.msra.mxu0 0
  %3870 = vmatprep.subr.bf16.mxu0 0
  %3871 = vmatpush1.bf16.msra.mxu0 0
  %3872 = vmatprep.subr.bf16.mxu0 0
  %3873 = vmatpush1.bf16.msra.mxu0 0
  %3874 = vmatprep.subr.bf16.mxu0 0
  %3875 = vmatpush1.bf16.msra.mxu0 0
  %3876 = vmatprep.subr.bf16.mxu0 %v3520
  %3877 = vmatpush1.bf16.msra.mxu0 %v3519
  %3878 = vmatprep.subr.bf16.mxu0 %v3518
  %3879 = vmatpush1.bf16.msra.mxu0 %v3517
  %3880 = vmatprep.subr.bf16.mxu0 %v3516
  %3881 = vmatpush1.bf16.msra.mxu0 %v3515
  %3882 = vmatprep.subr.bf16.mxu0 %v3514
  %3883 = vmatpush1.bf16.msra.mxu0 %v3513
  %3884 = vmatprep.subr.bf16.mxu0 0
  %3885 = vmatpush2.bf16.msra.mxu0 0
  %3886 = vmatprep.subr.bf16.mxu0 0
  %3887 = vmatpush2.bf16.msra.mxu0 0
  %3888 = vmatprep.subr.bf16.mxu0 0
  %3889 = vmatpush2.bf16.msra.mxu0 0
  %3890 = vmatprep.subr.bf16.mxu0 0
  %3891 = vmatpush2.bf16.msra.mxu0 0
  %3892 = vmatprep.subr.bf16.mxu0 0
  %3893 = vmatpush2.bf16.msra.mxu0 0
  %3894 = vmatprep.subr.bf16.mxu0 0
  %3895 = vmatpush2.bf16.msra.mxu0 0
  %3896 = vmatprep.subr.bf16.mxu0 0
  %3897 = vmatpush2.bf16.msra.mxu0 0
  %3898 = vmatprep.subr.bf16.mxu0 0
  %3899 = vmatpush2.bf16.msra.mxu0 0
  %3900 = vmatprep.mubr.bf16.mxu0 0
  %3901 = vmatmul.mubr.bf16.gmra.mxu0 %v3863
  %v3902 = vpop.f32.mrf.mxu0
  %v3903 = vadd.f32 0.0, %v3902
  %v3904 = vpop.f32.mrf.mxu0
  %v3905 = vadd.f32 0.0, %v3904
  %v3906 = vpop.f32.mrf.mxu0
  %v3907 = vadd.f32 0.0, %v3906
  %v3908 = vpop.f32.mrf.mxu0
  %v3909 = vadd.f32 0.0, %v3908
  %3910 = vmatprep.mubr.bf16.mxu0 0
  %3911 = vmatmul.mubr.bf16.gmra.mxu0 %v3866
  %v3912 = vpop.f32.mrf.mxu0
  %v3913 = vadd.f32 0.0, %v3912
  %v3914 = vpop.f32.mrf.mxu0
  %v3915 = vadd.f32 0.0, %v3914
  %v3916 = vpop.f32.mrf.mxu0
  %v3917 = vadd.f32 0.0, %v3916
  %v3918 = vpop.f32.mrf.mxu0
  %v3919 = vadd.f32 0.0, %v3918
  %3920 = vdwg.mxu0
  %v3921 = vld [vmem:[#allocation5 + $0x80] sm:$0xff]
  %v3922 = vld [vmem:[#allocation5 + $0x90] sm:$0xff]
  %v3923 = vld [vmem:[#allocation5 + $0xa0] sm:$0xff]
  %v3924 = vld [vmem:[#allocation5 + $0xb0] sm:$0xff]
  %v3925 = vadd.f32 %v3921, %v3903
  %v3926 = vadd.f32 %v3922, %v3907
  %v3927 = vadd.f32 %v3923, %v3913
  %v3928 = vadd.f32 %v3924, %v3917
  %v3929 = vmul.f32 %v3925, 0.5
  %v3930 = vmul.f32 %v3926, 0.5
  %v3931 = vmul.f32 %v3927, 0.5
  %v3932 = vmul.f32 %v3928, 0.5
  %v3933 = vtanh.pop %v3929
  %v3934 = vtanh.pop %v3930
  %v3935 = vtanh.pop %v3931
  %v3936 = vtanh.pop %v3932
  %v3937 = vmul.f32 %v3933, 0.5
  %v3938 = vmul.f32 %v3934, 0.5
  %v3939 = vmul.f32 %v3935, 0.5
  %v3940 = vmul.f32 %v3936, 0.5
  %v3941 = vadd.f32 %v3937, 0.5
  %v3942 = vadd.f32 %v3938, 0.5
  %v3943 = vadd.f32 %v3939, 0.5
  %v3944 = vadd.f32 %v3940, 0.5
  %v3945 = vld [vmem:[#allocation5 + $0x88] sm:$0xff]
  %v3946 = vld [vmem:[#allocation5 + $0x98] sm:$0xff]
  %v3947 = vld [vmem:[#allocation5 + $0xa8] sm:$0xff]
  %v3948 = vld [vmem:[#allocation5 + $0xb8] sm:$0xff]
  %v3949 = vadd.f32 %v3905, %v3612
  %v3950 = vadd.f32 %v3909, %v3612
  %v3951 = vadd.f32 %v3915, %v3612
  %v3952 = vadd.f32 %v3919, %v3612
  %v3953 = vmul.f32 %v3941, %v3949
  %v3954 = vmul.f32 %v3942, %v3950
  %v3955 = vmul.f32 %v3943, %v3951
  %v3956 = vmul.f32 %v3944, %v3952
  %v3957 = vadd.f32 %v3945, %v3953
  %v3958 = vadd.f32 %v3946, %v3954
  %v3959 = vadd.f32 %v3947, %v3955
  %v3960 = vadd.f32 %v3948, %v3956
  %v3961 = vtanh.pop %v3957
  %v3962 = vtanh.pop %v3958
  %v3963 = vtanh.pop %v3959
  %v3964 = vtanh.pop %v3960
  %v3965 = vsub.f32 1.0, %v3941
  %v3966 = vsub.f32 1.0, %v3942
  %v3967 = vsub.f32 1.0, %v3943
  %v3968 = vsub.f32 1.0, %v3944
  %3973 = vrot.lane.b32.xlu0 %v3961, 64
  %v3974 = vpop.permute.xlu0 %3973
  %3975 = vrot.lane.b32.xlu0 %v3962, 64
  %v3976 = vpop.permute.xlu0 %3975
  %3977 = vrot.lane.b32.xlu0 %v3963, 64
  %v3978 = vpop.permute.xlu0 %3977
  %3979 = vrot.lane.b32.xlu0 %v3964, 64
  %v3980 = vpop.permute.xlu0 %3979
  %v3985 = vmul.f32 %v3965, %v3974
  %v3986 = vmul.f32 %v3966, %v3976
  %v3987 = vmul.f32 %v3967, %v3978
  %v3988 = vmul.f32 %v3968, %v3980
  %v3989 = vmul.f32 %v3941, %v3826
  %v3990 = vmul.f32 %v3942, %v3827
  %v3991 = vmul.f32 %v3943, %v3828
  %v3992 = vmul.f32 %v3944, %v3829
  %v3993 = vadd.f32 %v3985, %v3989
  %v3994 = vadd.f32 %v3986, %v3990
  %v3995 = vadd.f32 %v3987, %v3991
  %v3996 = vadd.f32 %v3988, %v3992
  %4001 = vrot.lane.b32.xlu0 %v3993, 64
  %v4002 = vpop.permute.xlu0 %4001
  %4003 = vrot.lane.b32.xlu0 %v3994, 64
  %v4004 = vpop.permute.xlu0 %4003
  %4005 = vrot.lane.b32.xlu0 %v3995, 64
  %v4006 = vpop.permute.xlu0 %4005
  %4007 = vrot.lane.b32.xlu0 %v3996, 64
  %v4008 = vpop.permute.xlu0 %4007
  %4013 = vst.msk [vmem:[#allocation6 + $0x40] sm:$0xff] %vm292, %v4002
  %4014 = vst.msk [vmem:[#allocation6 + $0x48] sm:$0xff] %vm292, %v4004
  %4015 = vst.msk [vmem:[#allocation6 + $0x50] sm:$0xff] %vm292, %v4006
  %4016 = vst.msk [vmem:[#allocation6 + $0x58] sm:$0xff] %vm292, %v4008
  %4017 = vst.msk [vmem:[#allocation6 + $0xa0] sm:$0xff] %vm3682, %v4002
  %4018 = vst.msk [vmem:[#allocation6 + $0xa8] sm:$0xff] %vm3682, %v4004
  %4019 = vst.msk [vmem:[#allocation6 + $0xb0] sm:$0xff] %vm3682, %v4006
  %4020 = vst.msk [vmem:[#allocation6 + $0xb8] sm:$0xff] %vm3682, %v4008
  %v4021 = vpack.c.bf16 %v3994, %v3993
  %v4022 = vpack.c.bf16 %v3996, %v3995
  %4025 = vrot.lane.b32.xlu0 %v4021, 64
  %v4026 = vpop.permute.xlu0 %4025
  %4027 = vrot.lane.b32.xlu0 %v4022, 64
  %v4028 = vpop.permute.xlu0 %4027
  %v4030 = vsel %vm1173, %v4026, 0
  %v4033 = vsel %vm1173, %v4028, 0
  %4035 = vmatprep.subr.bf16.mxu0 0
  %4036 = vmatpush1.bf16.msra.mxu0 0
  %4037 = vmatprep.subr.bf16.mxu0 0
  %4038 = vmatpush1.bf16.msra.mxu0 0
  %4039 = vmatprep.subr.bf16.mxu0 0
  %4040 = vmatpush1.bf16.msra.mxu0 0
  %4041 = vmatprep.subr.bf16.mxu0 0
  %4042 = vmatpush1.bf16.msra.mxu0 0
  %4043 = vmatprep.subr.bf16.mxu0 %v3520
  %4044 = vmatpush1.bf16.msra.mxu0 %v3519
  %4045 = vmatprep.subr.bf16.mxu0 %v3518
  %4046 = vmatpush1.bf16.msra.mxu0 %v3517
  %4047 = vmatprep.subr.bf16.mxu0 %v3516
  %4048 = vmatpush1.bf16.msra.mxu0 %v3515
  %4049 = vmatprep.subr.bf16.mxu0 %v3514
  %4050 = vmatpush1.bf16.msra.mxu0 %v3513
  %4051 = vmatprep.subr.bf16.mxu0 0
  %4052 = vmatpush2.bf16.msra.mxu0 0
  %4053 = vmatprep.subr.bf16.mxu0 0
  %4054 = vmatpush2.bf16.msra.mxu0 0
  %4055 = vmatprep.subr.bf16.mxu0 0
  %4056 = vmatpush2.bf16.msra.mxu0 0
  %4057 = vmatprep.subr.bf16.mxu0 0
  %4058 = vmatpush2.bf16.msra.mxu0 0
  %4059 = vmatprep.subr.bf16.mxu0 0
  %4060 = vmatpush2.bf16.msra.mxu0 0
  %4061 = vmatprep.subr.bf16.mxu0 0
  %4062 = vmatpush2.bf16.msra.mxu0 0
  %4063 = vmatprep.subr.bf16.mxu0 0
  %4064 = vmatpush2.bf16.msra.mxu0 0
  %4065 = vmatprep.subr.bf16.mxu0 0
  %4066 = vmatpush2.bf16.msra.mxu0 0
  %4067 = vmatprep.mubr.bf16.mxu0 0
  %4068 = vmatmul.mubr.bf16.gmra.mxu0 %v4030
  %v4069 = vpop.f32.mrf.mxu0
  %v4070 = vadd.f32 0.0, %v4069
  %v4071 = vpop.f32.mrf.mxu0
  %v4072 = vadd.f32 0.0, %v4071
  %v4073 = vpop.f32.mrf.mxu0
  %v4074 = vadd.f32 0.0, %v4073
  %v4075 = vpop.f32.mrf.mxu0
  %v4076 = vadd.f32 0.0, %v4075
  %4077 = vmatprep.mubr.bf16.mxu0 0
  %4078 = vmatmul.mubr.bf16.gmra.mxu0 %v4033
  %v4079 = vpop.f32.mrf.mxu0
  %v4080 = vadd.f32 0.0, %v4079
  %v4081 = vpop.f32.mrf.mxu0
  %v4082 = vadd.f32 0.0, %v4081
  %v4083 = vpop.f32.mrf.mxu0
  %v4084 = vadd.f32 0.0, %v4083
  %v4085 = vpop.f32.mrf.mxu0
  %v4086 = vadd.f32 0.0, %v4085
  %4087 = vdwg.mxu0
  %v4088 = vld [vmem:[#allocation5 + $0xc0] sm:$0xff]
  %v4089 = vld [vmem:[#allocation5 + $0xd0] sm:$0xff]
  %v4090 = vld [vmem:[#allocation5 + $0xe0] sm:$0xff]
  %v4091 = vld [vmem:[#allocation5 + $0xf0] sm:$0xff]
  %v4092 = vadd.f32 %v4088, %v4070
  %v4093 = vadd.f32 %v4089, %v4074
  %v4094 = vadd.f32 %v4090, %v4080
  %v4095 = vadd.f32 %v4091, %v4084
  %v4096 = vmul.f32 %v4092, 0.5
  %v4097 = vmul.f32 %v4093, 0.5
  %v4098 = vmul.f32 %v4094, 0.5
  %v4099 = vmul.f32 %v4095, 0.5
  %v4100 = vtanh.pop %v4096
  %v4101 = vtanh.pop %v4097
  %v4102 = vtanh.pop %v4098
  %v4103 = vtanh.pop %v4099
  %v4104 = vmul.f32 %v4100, 0.5
  %v4105 = vmul.f32 %v4101, 0.5
  %v4106 = vmul.f32 %v4102, 0.5
  %v4107 = vmul.f32 %v4103, 0.5
  %v4108 = vadd.f32 %v4104, 0.5
  %v4109 = vadd.f32 %v4105, 0.5
  %v4110 = vadd.f32 %v4106, 0.5
  %v4111 = vadd.f32 %v4107, 0.5
  %v4112 = vld [vmem:[#allocation5 + $0xc8] sm:$0xff]
  %v4113 = vld [vmem:[#allocation5 + $0xd8] sm:$0xff]
  %v4114 = vld [vmem:[#allocation5 + $0xe8] sm:$0xff]
  %v4115 = vld [vmem:[#allocation5 + $0xf8] sm:$0xff]
  %v4116 = vadd.f32 %v4072, %v3612
  %v4117 = vadd.f32 %v4076, %v3612
  %v4118 = vadd.f32 %v4082, %v3612
  %v4119 = vadd.f32 %v4086, %v3612
  %v4120 = vmul.f32 %v4108, %v4116
  %v4121 = vmul.f32 %v4109, %v4117
  %v4122 = vmul.f32 %v4110, %v4118
  %v4123 = vmul.f32 %v4111, %v4119
  %v4124 = vadd.f32 %v4112, %v4120
  %v4125 = vadd.f32 %v4113, %v4121
  %v4126 = vadd.f32 %v4114, %v4122
  %v4127 = vadd.f32 %v4115, %v4123
  %v4128 = vtanh.pop %v4124
  %v4129 = vtanh.pop %v4125
  %v4130 = vtanh.pop %v4126
  %v4131 = vtanh.pop %v4127
  %v4132 = vsub.f32 1.0, %v4108
  %v4133 = vsub.f32 1.0, %v4109
  %v4134 = vsub.f32 1.0, %v4110
  %v4135 = vsub.f32 1.0, %v4111
  %4140 = vrot.lane.b32.xlu0 %v4128, 64
  %v4141 = vpop.permute.xlu0 %4140
  %4142 = vrot.lane.b32.xlu0 %v4129, 64
  %v4143 = vpop.permute.xlu0 %4142
  %4144 = vrot.lane.b32.xlu0 %v4130, 64
  %v4145 = vpop.permute.xlu0 %4144
  %4146 = vrot.lane.b32.xlu0 %v4131, 64
  %v4147 = vpop.permute.xlu0 %4146
  %v4152 = vmul.f32 %v4132, %v4141
  %v4153 = vmul.f32 %v4133, %v4143
  %v4154 = vmul.f32 %v4134, %v4145
  %v4155 = vmul.f32 %v4135, %v4147
  %v4156 = vmul.f32 %v4108, %v3993
  %v4157 = vmul.f32 %v4109, %v3994
  %v4158 = vmul.f32 %v4110, %v3995
  %v4159 = vmul.f32 %v4111, %v3996
  %v4160 = vadd.f32 %v4152, %v4156
  %v4161 = vadd.f32 %v4153, %v4157
  %v4162 = vadd.f32 %v4154, %v4158
  %v4163 = vadd.f32 %v4155, %v4159
  %4168 = vrot.lane.b32.xlu0 %v4160, 64
  %v4169 = vpop.permute.xlu0 %4168
  %4170 = vrot.lane.b32.xlu0 %v4161, 64
  %v4171 = vpop.permute.xlu0 %4170
  %4172 = vrot.lane.b32.xlu0 %v4162, 64
  %v4173 = vpop.permute.xlu0 %4172
  %4174 = vrot.lane.b32.xlu0 %v4163, 64
  %v4175 = vpop.permute.xlu0 %4174
  %4180 = vst.msk [vmem:[#allocation6 + $0x60] sm:$0xff] %vm292, %v4169
  %4181 = vst.msk [vmem:[#allocation6 + $0x68] sm:$0xff] %vm292, %v4171
  %4182 = vst.msk [vmem:[#allocation6 + $0x70] sm:$0xff] %vm292, %v4173
  %4183 = vst.msk [vmem:[#allocation6 + $0x78] sm:$0xff] %vm292, %v4175
  %4184 = vst.msk [vmem:[#allocation6 + $0x80] sm:$0xff] %vm3682, %v4169
  %4185 = vst.msk [vmem:[#allocation6 + $0x88] sm:$0xff] %vm3682, %v4171
  %4186 = vst.msk [vmem:[#allocation6 + $0x90] sm:$0xff] %vm3682, %v4173
  %4187 = vst.msk [vmem:[#allocation6 + $0x98] sm:$0xff] %vm3682, %v4175
  %v4188 = vpack.c.bf16 %v4161, %v4160
  %v4189 = vpack.c.bf16 %v4163, %v4162
  %4192 = vrot.lane.b32.xlu0 %v4188, 64
  %v4193 = vpop.permute.xlu0 %4192
  %4194 = vrot.lane.b32.xlu0 %v4189, 64
  %v4195 = vpop.permute.xlu0 %4194
  %v4197 = vsel %vm1173, %v4193, 0
  %v4200 = vsel %vm1173, %v4195, 0
  %4202 = vmatprep.subr.bf16.mxu0 0
  %4203 = vmatpush1.bf16.msra.mxu0 0
  %4204 = vmatprep.subr.bf16.mxu0 0
  %4205 = vmatpush1.bf16.msra.mxu0 0
  %4206 = vmatprep.subr.bf16.mxu0 0
  %4207 = vmatpush1.bf16.msra.mxu0 0
  %4208 = vmatprep.subr.bf16.mxu0 0
  %4209 = vmatpush1.bf16.msra.mxu0 0
  %4210 = vmatprep.subr.bf16.mxu0 %v3520
  %4211 = vmatpush1.bf16.msra.mxu0 %v3519
  %4212 = vmatprep.subr.bf16.mxu0 %v3518
  %4213 = vmatpush1.bf16.msra.mxu0 %v3517
  %4214 = vmatprep.subr.bf16.mxu0 %v3516
  %4215 = vmatpush1.bf16.msra.mxu0 %v3515
  %4216 = vmatprep.subr.bf16.mxu0 %v3514
  %4217 = vmatpush1.bf16.msra.mxu0 %v3513
  %4218 = vmatprep.subr.bf16.mxu0 0
  %4219 = vmatpush2.bf16.msra.mxu0 0
  %4220 = vmatprep.subr.bf16.mxu0 0
  %4221 = vmatpush2.bf16.msra.mxu0 0
  %4222 = vmatprep.subr.bf16.mxu0 0
  %4223 = vmatpush2.bf16.msra.mxu0 0
  %4224 = vmatprep.subr.bf16.mxu0 0
  %4225 = vmatpush2.bf16.msra.mxu0 0
  %4226 = vmatprep.subr.bf16.mxu0 0
  %4227 = vmatpush2.bf16.msra.mxu0 0
  %4228 = vmatprep.subr.bf16.mxu0 0
  %4229 = vmatpush2.bf16.msra.mxu0 0
  %4230 = vmatprep.subr.bf16.mxu0 0
  %4231 = vmatpush2.bf16.msra.mxu0 0
  %4232 = vmatprep.subr.bf16.mxu0 0
  %4233 = vmatpush2.bf16.msra.mxu0 0
  %4234 = vmatprep.mubr.bf16.mxu0 0
  %4235 = vmatmul.mubr.bf16.gmra.mxu0 %v4197
  %v4236 = vpop.f32.mrf.mxu0
  %v4237 = vadd.f32 0.0, %v4236
  %v4238 = vpop.f32.mrf.mxu0
  %v4239 = vadd.f32 0.0, %v4238
  %v4240 = vpop.f32.mrf.mxu0
  %v4241 = vadd.f32 0.0, %v4240
  %v4242 = vpop.f32.mrf.mxu0
  %v4243 = vadd.f32 0.0, %v4242
  %4244 = vmatprep.mubr.bf16.mxu0 0
  %4245 = vmatmul.mubr.bf16.gmra.mxu0 %v4200
  %v4246 = vpop.f32.mrf.mxu0
  %v4247 = vadd.f32 0.0, %v4246
  %v4248 = vpop.f32.mrf.mxu0
  %v4249 = vadd.f32 0.0, %v4248
  %v4250 = vpop.f32.mrf.mxu0
  %v4251 = vadd.f32 0.0, %v4250
  %v4252 = vpop.f32.mrf.mxu0
  %v4253 = vadd.f32 0.0, %v4252
  %4254 = vdwg.mxu0
  %v4255 = vld [vmem:[#allocation5 + $0x100] sm:$0xff]
  %v4256 = vld [vmem:[#allocation5 + $0x110] sm:$0xff]
  %v4257 = vld [vmem:[#allocation5 + $0x120] sm:$0xff]
  %v4258 = vld [vmem:[#allocation5 + $0x130] sm:$0xff]
  %v4259 = vadd.f32 %v4255, %v4237
  %v4260 = vadd.f32 %v4256, %v4241
  %v4261 = vadd.f32 %v4257, %v4247
  %v4262 = vadd.f32 %v4258, %v4251
  %v4263 = vmul.f32 %v4259, 0.5
  %v4264 = vmul.f32 %v4260, 0.5
  %v4265 = vmul.f32 %v4261, 0.5
  %v4266 = vmul.f32 %v4262, 0.5
  %v4267 = vtanh.pop %v4263
  %v4268 = vtanh.pop %v4264
  %v4269 = vtanh.pop %v4265
  %v4270 = vtanh.pop %v4266
  %v4271 = vmul.f32 %v4267, 0.5
  %v4272 = vmul.f32 %v4268, 0.5
  %v4273 = vmul.f32 %v4269, 0.5
  %v4274 = vmul.f32 %v4270, 0.5
  %v4275 = vadd.f32 %v4271, 0.5
  %v4276 = vadd.f32 %v4272, 0.5
  %v4277 = vadd.f32 %v4273, 0.5
  %v4278 = vadd.f32 %v4274, 0.5
  %v4279 = vld [vmem:[#allocation5 + $0x108] sm:$0xff]
  %v4280 = vld [vmem:[#allocation5 + $0x118] sm:$0xff]
  %v4281 = vld [vmem:[#allocation5 + $0x128] sm:$0xff]
  %v4282 = vld [vmem:[#allocation5 + $0x138] sm:$0xff]
  %v4283 = vadd.f32 %v4239, %v3612
  %v4284 = vadd.f32 %v4243, %v3612
  %v4285 = vadd.f32 %v4249, %v3612
  %v4286 = vadd.f32 %v4253, %v3612
  %v4287 = vmul.f32 %v4275, %v4283
  %v4288 = vmul.f32 %v4276, %v4284
  %v4289 = vmul.f32 %v4277, %v4285
  %v4290 = vmul.f32 %v4278, %v4286
  %v4291 = vadd.f32 %v4279, %v4287
  %v4292 = vadd.f32 %v4280, %v4288
  %v4293 = vadd.f32 %v4281, %v4289
  %v4294 = vadd.f32 %v4282, %v4290
  %v4295 = vtanh.pop %v4291
  %v4296 = vtanh.pop %v4292
  %v4297 = vtanh.pop %v4293
  %v4298 = vtanh.pop %v4294
  %v4299 = vsub.f32 1.0, %v4275
  %v4300 = vsub.f32 1.0, %v4276
  %v4301 = vsub.f32 1.0, %v4277
  %v4302 = vsub.f32 1.0, %v4278
  %4307 = vrot.lane.b32.xlu0 %v4295, 64
  %v4308 = vpop.permute.xlu0 %4307
  %4309 = vrot.lane.b32.xlu0 %v4296, 64
  %v4310 = vpop.permute.xlu0 %4309
  %4311 = vrot.lane.b32.xlu0 %v4297, 64
  %v4312 = vpop.permute.xlu0 %4311
  %4313 = vrot.lane.b32.xlu0 %v4298, 64
  %v4314 = vpop.permute.xlu0 %4313
  %v4319 = vmul.f32 %v4299, %v4308
  %v4320 = vmul.f32 %v4300, %v4310
  %v4321 = vmul.f32 %v4301, %v4312
  %v4322 = vmul.f32 %v4302, %v4314
  %v4323 = vmul.f32 %v4275, %v4160
  %v4324 = vmul.f32 %v4276, %v4161
  %v4325 = vmul.f32 %v4277, %v4162
  %v4326 = vmul.f32 %v4278, %v4163
  %v4327 = vadd.f32 %v4319, %v4323
  %v4328 = vadd.f32 %v4320, %v4324
  %v4329 = vadd.f32 %v4321, %v4325
  %v4330 = vadd.f32 %v4322, %v4326
  %4335 = vrot.lane.b32.xlu0 %v4327, 64
  %v4336 = vpop.permute.xlu0 %4335
  %4337 = vrot.lane.b32.xlu0 %v4328, 64
  %v4338 = vpop.permute.xlu0 %4337
  %4339 = vrot.lane.b32.xlu0 %v4329, 64
  %v4340 = vpop.permute.xlu0 %4339
  %4341 = vrot.lane.b32.xlu0 %v4330, 64
  %v4342 = vpop.permute.xlu0 %4341
  %4347 = vst.msk [vmem:[#allocation6 + $0x80] sm:$0xff] %vm292, %v4336
  %4348 = vst.msk [vmem:[#allocation6 + $0x88] sm:$0xff] %vm292, %v4338
  %4349 = vst.msk [vmem:[#allocation6 + $0x90] sm:$0xff] %vm292, %v4340
  %4350 = vst.msk [vmem:[#allocation6 + $0x98] sm:$0xff] %vm292, %v4342
  %4351 = vst.msk [vmem:[#allocation6 + $0x60] sm:$0xff] %vm3682, %v4336
  %4352 = vst.msk [vmem:[#allocation6 + $0x68] sm:$0xff] %vm3682, %v4338
  %4353 = vst.msk [vmem:[#allocation6 + $0x70] sm:$0xff] %vm3682, %v4340
  %4354 = vst.msk [vmem:[#allocation6 + $0x78] sm:$0xff] %vm3682, %v4342
  %v4355 = vpack.c.bf16 %v4328, %v4327
  %v4356 = vpack.c.bf16 %v4330, %v4329
  %4359 = vrot.lane.b32.xlu0 %v4355, 64
  %v4360 = vpop.permute.xlu0 %4359
  %4361 = vrot.lane.b32.xlu0 %v4356, 64
  %v4362 = vpop.permute.xlu0 %4361
  %v4364 = vsel %vm1173, %v4360, 0
  %v4367 = vsel %vm1173, %v4362, 0
  %4369 = vmatprep.subr.bf16.mxu0 0
  %4370 = vmatpush1.bf16.msra.mxu0 0
  %4371 = vmatprep.subr.bf16.mxu0 0
  %4372 = vmatpush1.bf16.msra.mxu0 0
  %4373 = vmatprep.subr.bf16.mxu0 0
  %4374 = vmatpush1.bf16.msra.mxu0 0
  %4375 = vmatprep.subr.bf16.mxu0 0
  %4376 = vmatpush1.bf16.msra.mxu0 0
  %4377 = vmatprep.subr.bf16.mxu0 %v3520
  %4378 = vmatpush1.bf16.msra.mxu0 %v3519
  %4379 = vmatprep.subr.bf16.mxu0 %v3518
  %4380 = vmatpush1.bf16.msra.mxu0 %v3517
  %4381 = vmatprep.subr.bf16.mxu0 %v3516
  %4382 = vmatpush1.bf16.msra.mxu0 %v3515
  %4383 = vmatprep.subr.bf16.mxu0 %v3514
  %4384 = vmatpush1.bf16.msra.mxu0 %v3513
  %4385 = vmatprep.subr.bf16.mxu0 0
  %4386 = vmatpush2.bf16.msra.mxu0 0
  %4387 = vmatprep.subr.bf16.mxu0 0
  %4388 = vmatpush2.bf16.msra.mxu0 0
  %4389 = vmatprep.subr.bf16.mxu0 0
  %4390 = vmatpush2.bf16.msra.mxu0 0
  %4391 = vmatprep.subr.bf16.mxu0 0
  %4392 = vmatpush2.bf16.msra.mxu0 0
  %4393 = vmatprep.subr.bf16.mxu0 0
  %4394 = vmatpush2.bf16.msra.mxu0 0
  %4395 = vmatprep.subr.bf16.mxu0 0
  %4396 = vmatpush2.bf16.msra.mxu0 0
  %4397 = vmatprep.subr.bf16.mxu0 0
  %4398 = vmatpush2.bf16.msra.mxu0 0
  %4399 = vmatprep.subr.bf16.mxu0 0
  %4400 = vmatpush2.bf16.msra.mxu0 0
  %4401 = vmatprep.mubr.bf16.mxu0 0
  %4402 = vmatmul.mubr.bf16.gmra.mxu0 %v4364
  %v4403 = vpop.f32.mrf.mxu0
  %v4404 = vadd.f32 0.0, %v4403
  %v4405 = vpop.f32.mrf.mxu0
  %v4406 = vadd.f32 0.0, %v4405
  %v4407 = vpop.f32.mrf.mxu0
  %v4408 = vadd.f32 0.0, %v4407
  %v4409 = vpop.f32.mrf.mxu0
  %v4410 = vadd.f32 0.0, %v4409
  %4411 = vmatprep.mubr.bf16.mxu0 0
  %4412 = vmatmul.mubr.bf16.gmra.mxu0 %v4367
  %v4413 = vpop.f32.mrf.mxu0
  %v4414 = vadd.f32 0.0, %v4413
  %v4415 = vpop.f32.mrf.mxu0
  %v4416 = vadd.f32 0.0, %v4415
  %v4417 = vpop.f32.mrf.mxu0
  %v4418 = vadd.f32 0.0, %v4417
  %v4419 = vpop.f32.mrf.mxu0
  %v4420 = vadd.f32 0.0, %v4419
  %4421 = vdwg.mxu0
  %v4422 = vld [vmem:[#allocation5 + $0x140] sm:$0xff]
  %v4423 = vld [vmem:[#allocation5 + $0x150] sm:$0xff]
  %v4424 = vld [vmem:[#allocation5 + $0x160] sm:$0xff]
  %v4425 = vld [vmem:[#allocation5 + $0x170] sm:$0xff]
  %v4426 = vadd.f32 %v4422, %v4404
  %v4427 = vadd.f32 %v4423, %v4408
  %v4428 = vadd.f32 %v4424, %v4414
  %v4429 = vadd.f32 %v4425, %v4418
  %v4430 = vmul.f32 %v4426, 0.5
  %v4431 = vmul.f32 %v4427, 0.5
  %v4432 = vmul.f32 %v4428, 0.5
  %v4433 = vmul.f32 %v4429, 0.5
  %v4434 = vtanh.pop %v4430
  %v4435 = vtanh.pop %v4431
  %v4436 = vtanh.pop %v4432
  %v4437 = vtanh.pop %v4433
  %v4438 = vmul.f32 %v4434, 0.5
  %v4439 = vmul.f32 %v4435, 0.5
  %v4440 = vmul.f32 %v4436, 0.5
  %v4441 = vmul.f32 %v4437, 0.5
  %v4442 = vadd.f32 %v4438, 0.5
  %v4443 = vadd.f32 %v4439, 0.5
  %v4444 = vadd.f32 %v4440, 0.5
  %v4445 = vadd.f32 %v4441, 0.5
  %v4446 = vld [vmem:[#allocation5 + $0x148] sm:$0xff]
  %v4447 = vld [vmem:[#allocation5 + $0x158] sm:$0xff]
  %v4448 = vld [vmem:[#allocation5 + $0x168] sm:$0xff]
  %v4449 = vld [vmem:[#allocation5 + $0x178] sm:$0xff]
  %v4450 = vadd.f32 %v4406, %v3612
  %v4451 = vadd.f32 %v4410, %v3612
  %v4452 = vadd.f32 %v4416, %v3612
  %v4453 = vadd.f32 %v4420, %v3612
  %v4454 = vmul.f32 %v4442, %v4450
  %v4455 = vmul.f32 %v4443, %v4451
  %v4456 = vmul.f32 %v4444, %v4452
  %v4457 = vmul.f32 %v4445, %v4453
  %v4458 = vadd.f32 %v4446, %v4454
  %v4459 = vadd.f32 %v4447, %v4455
  %v4460 = vadd.f32 %v4448, %v4456
  %v4461 = vadd.f32 %v4449, %v4457
  %v4462 = vtanh.pop %v4458
  %v4463 = vtanh.pop %v4459
  %v4464 = vtanh.pop %v4460
  %v4465 = vtanh.pop %v4461
  %v4466 = vsub.f32 1.0, %v4442
  %v4467 = vsub.f32 1.0, %v4443
  %v4468 = vsub.f32 1.0, %v4444
  %v4469 = vsub.f32 1.0, %v4445
  %4474 = vrot.lane.b32.xlu0 %v4462, 64
  %v4475 = vpop.permute.xlu0 %4474
  %4476 = vrot.lane.b32.xlu0 %v4463, 64
  %v4477 = vpop.permute.xlu0 %4476
  %4478 = vrot.lane.b32.xlu0 %v4464, 64
  %v4479 = vpop.permute.xlu0 %4478
  %4480 = vrot.lane.b32.xlu0 %v4465, 64
  %v4481 = vpop.permute.xlu0 %4480
  %v4486 = vmul.f32 %v4466, %v4475
  %v4487 = vmul.f32 %v4467, %v4477
  %v4488 = vmul.f32 %v4468, %v4479
  %v4489 = vmul.f32 %v4469, %v4481
  %v4490 = vmul.f32 %v4442, %v4327
  %v4491 = vmul.f32 %v4443, %v4328
  %v4492 = vmul.f32 %v4444, %v4329
  %v4493 = vmul.f32 %v4445, %v4330
  %v4494 = vadd.f32 %v4486, %v4490
  %v4495 = vadd.f32 %v4487, %v4491
  %v4496 = vadd.f32 %v4488, %v4492
  %v4497 = vadd.f32 %v4489, %v4493
  %4502 = vrot.lane.b32.xlu0 %v4494, 64
  %v4503 = vpop.permute.xlu0 %4502
  %4504 = vrot.lane.b32.xlu0 %v4495, 64
  %v4505 = vpop.permute.xlu0 %4504
  %4506 = vrot.lane.b32.xlu0 %v4496, 64
  %v4507 = vpop.permute.xlu0 %4506
  %4508 = vrot.lane.b32.xlu0 %v4497, 64
  %v4509 = vpop.permute.xlu0 %4508
  %4514 = vst.msk [vmem:[#allocation6 + $0xa0] sm:$0xff] %vm292, %v4503
  %4515 = vst.msk [vmem:[#allocation6 + $0xa8] sm:$0xff] %vm292, %v4505
  %4516 = vst.msk [vmem:[#allocation6 + $0xb0] sm:$0xff] %vm292, %v4507
  %4517 = vst.msk [vmem:[#allocation6 + $0xb8] sm:$0xff] %vm292, %v4509
  %4518 = vst.msk [vmem:[#allocation6 + $0x40] sm:$0xff] %vm3682, %v4503
  %4519 = vst.msk [vmem:[#allocation6 + $0x48] sm:$0xff] %vm3682, %v4505
  %4520 = vst.msk [vmem:[#allocation6 + $0x50] sm:$0xff] %vm3682, %v4507
  %4521 = vst.msk [vmem:[#allocation6 + $0x58] sm:$0xff] %vm3682, %v4509
  %v4522 = vpack.c.bf16 %v4495, %v4494
  %v4523 = vpack.c.bf16 %v4497, %v4496
  %4526 = vrot.lane.b32.xlu0 %v4522, 64
  %v4527 = vpop.permute.xlu0 %4526
  %4528 = vrot.lane.b32.xlu0 %v4523, 64
  %v4529 = vpop.permute.xlu0 %4528
  %v4531 = vsel %vm1173, %v4527, 0
  %v4534 = vsel %vm1173, %v4529, 0
  %4536 = vmatprep.subr.bf16.mxu0 0
  %4537 = vmatpush1.bf16.msra.mxu0 0
  %4538 = vmatprep.subr.bf16.mxu0 0
  %4539 = vmatpush1.bf16.msra.mxu0 0
  %4540 = vmatprep.subr.bf16.mxu0 0
  %4541 = vmatpush1.bf16.msra.mxu0 0
  %4542 = vmatprep.subr.bf16.mxu0 0
  %4543 = vmatpush1.bf16.msra.mxu0 0
  %4544 = vmatprep.subr.bf16.mxu0 %v3520
  %4545 = vmatpush1.bf16.msra.mxu0 %v3519
  %4546 = vmatprep.subr.bf16.mxu0 %v3518
  %4547 = vmatpush1.bf16.msra.mxu0 %v3517
  %4548 = vmatprep.subr.bf16.mxu0 %v3516
  %4549 = vmatpush1.bf16.msra.mxu0 %v3515
  %4550 = vmatprep.subr.bf16.mxu0 %v3514
  %4551 = vmatpush1.bf16.msra.mxu0 %v3513
  %4552 = vmatprep.subr.bf16.mxu0 0
  %4553 = vmatpush2.bf16.msra.mxu0 0
  %4554 = vmatprep.subr.bf16.mxu0 0
  %4555 = vmatpush2.bf16.msra.mxu0 0
  %4556 = vmatprep.subr.bf16.mxu0 0
  %4557 = vmatpush2.bf16.msra.mxu0 0
  %4558 = vmatprep.subr.bf16.mxu0 0
  %4559 = vmatpush2.bf16.msra.mxu0 0
  %4560 = vmatprep.subr.bf16.mxu0 0
  %4561 = vmatpush2.bf16.msra.mxu0 0
  %4562 = vmatprep.subr.bf16.mxu0 0
  %4563 = vmatpush2.bf16.msra.mxu0 0
  %4564 = vmatprep.subr.bf16.mxu0 0
  %4565 = vmatpush2.bf16.msra.mxu0 0
  %4566 = vmatprep.subr.bf16.mxu0 0
  %4567 = vmatpush2.bf16.msra.mxu0 0
  %4568 = vmatprep.mubr.bf16.mxu0 0
  %4569 = vmatmul.mubr.bf16.gmra.mxu0 %v4531
  %v4570 = vpop.f32.mrf.mxu0
  %v4571 = vadd.f32 0.0, %v4570
  %v4572 = vpop.f32.mrf.mxu0
  %v4573 = vadd.f32 0.0, %v4572
  %v4574 = vpop.f32.mrf.mxu0
  %v4575 = vadd.f32 0.0, %v4574
  %v4576 = vpop.f32.mrf.mxu0
  %v4577 = vadd.f32 0.0, %v4576
  %4578 = vmatprep.mubr.bf16.mxu0 0
  %4579 = vmatmul.mubr.bf16.gmra.mxu0 %v4534
  %v4580 = vpop.f32.mrf.mxu0
  %v4581 = vadd.f32 0.0, %v4580
  %v4582 = vpop.f32.mrf.mxu0
  %v4583 = vadd.f32 0.0, %v4582
  %v4584 = vpop.f32.mrf.mxu0
  %v4585 = vadd.f32 0.0, %v4584
  %v4586 = vpop.f32.mrf.mxu0
  %v4587 = vadd.f32 0.0, %v4586
  %4588 = vdwg.mxu0
  %v4589 = vld [vmem:[#allocation5 + $0x180] sm:$0xff]
  %v4590 = vld [vmem:[#allocation5 + $0x190] sm:$0xff]
  %v4591 = vld [vmem:[#allocation5 + $0x1a0] sm:$0xff]
  %v4592 = vld [vmem:[#allocation5 + $0x1b0] sm:$0xff]
  %v4593 = vadd.f32 %v4589, %v4571
  %v4594 = vadd.f32 %v4590, %v4575
  %v4595 = vadd.f32 %v4591, %v4581
  %v4596 = vadd.f32 %v4592, %v4585
  %v4597 = vmul.f32 %v4593, 0.5
  %v4598 = vmul.f32 %v4594, 0.5
  %v4599 = vmul.f32 %v4595, 0.5
  %v4600 = vmul.f32 %v4596, 0.5
  %v4601 = vtanh.pop %v4597
  %v4602 = vtanh.pop %v4598
  %v4603 = vtanh.pop %v4599
  %v4604 = vtanh.pop %v4600
  %v4605 = vmul.f32 %v4601, 0.5
  %v4606 = vmul.f32 %v4602, 0.5
  %v4607 = vmul.f32 %v4603, 0.5
  %v4608 = vmul.f32 %v4604, 0.5
  %v4609 = vadd.f32 %v4605, 0.5
  %v4610 = vadd.f32 %v4606, 0.5
  %v4611 = vadd.f32 %v4607, 0.5
  %v4612 = vadd.f32 %v4608, 0.5
  %v4613 = vld [vmem:[#allocation5 + $0x188] sm:$0xff]
  %v4614 = vld [vmem:[#allocation5 + $0x198] sm:$0xff]
  %v4615 = vld [vmem:[#allocation5 + $0x1a8] sm:$0xff]
  %v4616 = vld [vmem:[#allocation5 + $0x1b8] sm:$0xff]
  %v4617 = vadd.f32 %v4573, %v3612
  %v4618 = vadd.f32 %v4577, %v3612
  %v4619 = vadd.f32 %v4583, %v3612
  %v4620 = vadd.f32 %v4587, %v3612
  %v4621 = vmul.f32 %v4609, %v4617
  %v4622 = vmul.f32 %v4610, %v4618
  %v4623 = vmul.f32 %v4611, %v4619
  %v4624 = vmul.f32 %v4612, %v4620
  %v4625 = vadd.f32 %v4613, %v4621
  %v4626 = vadd.f32 %v4614, %v4622
  %v4627 = vadd.f32 %v4615, %v4623
  %v4628 = vadd.f32 %v4616, %v4624
  %v4629 = vtanh.pop %v4625
  %v4630 = vtanh.pop %v4626
  %v4631 = vtanh.pop %v4627
  %v4632 = vtanh.pop %v4628
  %v4633 = vsub.f32 1.0, %v4609
  %v4634 = vsub.f32 1.0, %v4610
  %v4635 = vsub.f32 1.0, %v4611
  %v4636 = vsub.f32 1.0, %v4612
  %4641 = vrot.lane.b32.xlu0 %v4629, 64
  %v4642 = vpop.permute.xlu0 %4641
  %4643 = vrot.lane.b32.xlu0 %v4630, 64
  %v4644 = vpop.permute.xlu0 %4643
  %4645 = vrot.lane.b32.xlu0 %v4631, 64
  %v4646 = vpop.permute.xlu0 %4645
  %4647 = vrot.lane.b32.xlu0 %v4632, 64
  %v4648 = vpop.permute.xlu0 %4647
  %v4653 = vmul.f32 %v4633, %v4642
  %v4654 = vmul.f32 %v4634, %v4644
  %v4655 = vmul.f32 %v4635, %v4646
  %v4656 = vmul.f32 %v4636, %v4648
  %v4657 = vmul.f32 %v4609, %v4494
  %v4658 = vmul.f32 %v4610, %v4495
  %v4659 = vmul.f32 %v4611, %v4496
  %v4660 = vmul.f32 %v4612, %v4497
  %v4661 = vadd.f32 %v4653, %v4657
  %v4662 = vadd.f32 %v4654, %v4658
  %v4663 = vadd.f32 %v4655, %v4659
  %v4664 = vadd.f32 %v4656, %v4660
  %4669 = vrot.lane.b32.xlu0 %v4661, 64
  %v4670 = vpop.permute.xlu0 %4669
  %4671 = vrot.lane.b32.xlu0 %v4662, 64
  %v4672 = vpop.permute.xlu0 %4671
  %4673 = vrot.lane.b32.xlu0 %v4663, 64
  %v4674 = vpop.permute.xlu0 %4673
  %4675 = vrot.lane.b32.xlu0 %v4664, 64
  %v4676 = vpop.permute.xlu0 %4675
  %4681 = vst.msk [vmem:[#allocation6 + $0xc0] sm:$0xff] %vm292, %v4670
  %4682 = vst.msk [vmem:[#allocation6 + $0xc8] sm:$0xff] %vm292, %v4672
  %4683 = vst.msk [vmem:[#allocation6 + $0xd0] sm:$0xff] %vm292, %v4674
  %4684 = vst.msk [vmem:[#allocation6 + $0xd8] sm:$0xff] %vm292, %v4676
  %4685 = vst.msk [vmem:[#allocation6 + $0x20] sm:$0xff] %vm3682, %v4670
  %4686 = vst.msk [vmem:[#allocation6 + $0x28] sm:$0xff] %vm3682, %v4672
  %4687 = vst.msk [vmem:[#allocation6 + $0x30] sm:$0xff] %vm3682, %v4674
  %4688 = vst.msk [vmem:[#allocation6 + $0x38] sm:$0xff] %vm3682, %v4676
  %v4689 = vpack.c.bf16 %v4662, %v4661
  %v4690 = vpack.c.bf16 %v4664, %v4663
  %4693 = vrot.lane.b32.xlu0 %v4689, 64
  %v4694 = vpop.permute.xlu0 %4693
  %4695 = vrot.lane.b32.xlu0 %v4690, 64
  %v4696 = vpop.permute.xlu0 %4695
  %v4698 = vsel %vm1173, %v4694, 0
  %v4701 = vsel %vm1173, %v4696, 0
  %4703 = vmatprep.subr.bf16.mxu0 0
  %4704 = vmatpush1.bf16.msra.mxu0 0
  %4705 = vmatprep.subr.bf16.mxu0 0
  %4706 = vmatpush1.bf16.msra.mxu0 0
  %4707 = vmatprep.subr.bf16.mxu0 0
  %4708 = vmatpush1.bf16.msra.mxu0 0
  %4709 = vmatprep.subr.bf16.mxu0 0
  %4710 = vmatpush1.bf16.msra.mxu0 0
  %4711 = vmatprep.subr.bf16.mxu0 %v3520
  %4712 = vmatpush1.bf16.msra.mxu0 %v3519
  %4713 = vmatprep.subr.bf16.mxu0 %v3518
  %4714 = vmatpush1.bf16.msra.mxu0 %v3517
  %4715 = vmatprep.subr.bf16.mxu0 %v3516
  %4716 = vmatpush1.bf16.msra.mxu0 %v3515
  %4717 = vmatprep.subr.bf16.mxu0 %v3514
  %4718 = vmatpush1.bf16.msra.mxu0 %v3513
  %4719 = vmatprep.subr.bf16.mxu0 0
  %4720 = vmatpush2.bf16.msra.mxu0 0
  %4721 = vmatprep.subr.bf16.mxu0 0
  %4722 = vmatpush2.bf16.msra.mxu0 0
  %4723 = vmatprep.subr.bf16.mxu0 0
  %4724 = vmatpush2.bf16.msra.mxu0 0
  %4725 = vmatprep.subr.bf16.mxu0 0
  %4726 = vmatpush2.bf16.msra.mxu0 0
  %4727 = vmatprep.subr.bf16.mxu0 0
  %4728 = vmatpush2.bf16.msra.mxu0 0
  %4729 = vmatprep.subr.bf16.mxu0 0
  %4730 = vmatpush2.bf16.msra.mxu0 0
  %4731 = vmatprep.subr.bf16.mxu0 0
  %4732 = vmatpush2.bf16.msra.mxu0 0
  %4733 = vmatprep.subr.bf16.mxu0 0
  %4734 = vmatpush2.bf16.msra.mxu0 0
  %4735 = vmatprep.mubr.bf16.mxu0 0
  %4736 = vmatmul.mubr.bf16.gmra.mxu0 %v4698
  %v4737 = vpop.f32.mrf.mxu0
  %v4738 = vadd.f32 0.0, %v4737
  %v4739 = vpop.f32.mrf.mxu0
  %v4740 = vadd.f32 0.0, %v4739
  %v4741 = vpop.f32.mrf.mxu0
  %v4742 = vadd.f32 0.0, %v4741
  %v4743 = vpop.f32.mrf.mxu0
  %v4744 = vadd.f32 0.0, %v4743
  %4745 = vmatprep.mubr.bf16.mxu0 0
  %4746 = vmatmul.mubr.bf16.gmra.mxu0 %v4701
  %v4747 = vpop.f32.mrf.mxu0
  %v4748 = vadd.f32 0.0, %v4747
  %v4749 = vpop.f32.mrf.mxu0
  %v4750 = vadd.f32 0.0, %v4749
  %v4751 = vpop.f32.mrf.mxu0
  %v4752 = vadd.f32 0.0, %v4751
  %v4753 = vpop.f32.mrf.mxu0
  %v4754 = vadd.f32 0.0, %v4753
  %4755 = vdwg.mxu0
  %v4756 = vld [vmem:[#allocation5 + $0x1c0] sm:$0xff]
  %v4757 = vld [vmem:[#allocation5 + $0x1d0] sm:$0xff]
  %v4758 = vld [vmem:[#allocation5 + $0x1e0] sm:$0xff]
  %v4759 = vld [vmem:[#allocation5 + $0x1f0] sm:$0xff]
  %v4760 = vadd.f32 %v4756, %v4738
  %v4761 = vadd.f32 %v4757, %v4742
  %v4762 = vadd.f32 %v4758, %v4748
  %v4763 = vadd.f32 %v4759, %v4752
  %v4764 = vmul.f32 %v4760, 0.5
  %v4765 = vmul.f32 %v4761, 0.5
  %v4766 = vmul.f32 %v4762, 0.5
  %v4767 = vmul.f32 %v4763, 0.5
  %v4768 = vtanh.pop %v4764
  %v4769 = vtanh.pop %v4765
  %v4770 = vtanh.pop %v4766
  %v4771 = vtanh.pop %v4767
  %v4772 = vmul.f32 %v4768, 0.5
  %v4773 = vmul.f32 %v4769, 0.5
  %v4774 = vmul.f32 %v4770, 0.5
  %v4775 = vmul.f32 %v4771, 0.5
  %v4776 = vadd.f32 %v4772, 0.5
  %v4777 = vadd.f32 %v4773, 0.5
  %v4778 = vadd.f32 %v4774, 0.5
  %v4779 = vadd.f32 %v4775, 0.5
  %v4780 = vld [vmem:[#allocation5 + $0x1c8] sm:$0xff]
  %v4781 = vld [vmem:[#allocation5 + $0x1d8] sm:$0xff]
  %v4782 = vld [vmem:[#allocation5 + $0x1e8] sm:$0xff]
  %v4783 = vld [vmem:[#allocation5 + $0x1f8] sm:$0xff]
  %v4784 = vadd.f32 %v4740, %v3612
  %v4785 = vadd.f32 %v4744, %v3612
  %v4786 = vadd.f32 %v4750, %v3612
  %v4787 = vadd.f32 %v4754, %v3612
  %v4788 = vmul.f32 %v4776, %v4784
  %v4789 = vmul.f32 %v4777, %v4785
  %v4790 = vmul.f32 %v4778, %v4786
  %v4791 = vmul.f32 %v4779, %v4787
  %v4792 = vadd.f32 %v4780, %v4788
  %v4793 = vadd.f32 %v4781, %v4789
  %v4794 = vadd.f32 %v4782, %v4790
  %v4795 = vadd.f32 %v4783, %v4791
  %v4796 = vtanh.pop %v4792
  %v4797 = vtanh.pop %v4793
  %v4798 = vtanh.pop %v4794
  %v4799 = vtanh.pop %v4795
  %v4800 = vsub.f32 1.0, %v4776
  %v4801 = vsub.f32 1.0, %v4777
  %v4802 = vsub.f32 1.0, %v4778
  %v4803 = vsub.f32 1.0, %v4779
  %4808 = vrot.lane.b32.xlu0 %v4796, 64
  %v4809 = vpop.permute.xlu0 %4808
  %4810 = vrot.lane.b32.xlu0 %v4797, 64
  %v4811 = vpop.permute.xlu0 %4810
  %4812 = vrot.lane.b32.xlu0 %v4798, 64
  %v4813 = vpop.permute.xlu0 %4812
  %4814 = vrot.lane.b32.xlu0 %v4799, 64
  %v4815 = vpop.permute.xlu0 %4814
  %v4820 = vmul.f32 %v4800, %v4809
  %v4821 = vmul.f32 %v4801, %v4811
  %v4822 = vmul.f32 %v4802, %v4813
  %v4823 = vmul.f32 %v4803, %v4815
  %v4824 = vmul.f32 %v4776, %v4661
  %v4825 = vmul.f32 %v4777, %v4662
  %v4826 = vmul.f32 %v4778, %v4663
  %v4827 = vmul.f32 %v4779, %v4664
  %v4828 = vadd.f32 %v4820, %v4824
  %v4829 = vadd.f32 %v4821, %v4825
  %v4830 = vadd.f32 %v4822, %v4826
  %v4831 = vadd.f32 %v4823, %v4827
  %4836 = vrot.lane.b32.xlu0 %v4828, 64
  %v4837 = vpop.permute.xlu0 %4836
  %4838 = vrot.lane.b32.xlu0 %v4829, 64
  %v4839 = vpop.permute.xlu0 %4838
  %4840 = vrot.lane.b32.xlu0 %v4830, 64
  %v4841 = vpop.permute.xlu0 %4840
  %4842 = vrot.lane.b32.xlu0 %v4831, 64
  %v4843 = vpop.permute.xlu0 %4842
  %4848 = vst.msk [vmem:[#allocation6 + $0xe0] sm:$0xff] %vm292, %v4837
  %4849 = vst.msk [vmem:[#allocation6 + $0xe8] sm:$0xff] %vm292, %v4839
  %4850 = vst.msk [vmem:[#allocation6 + $0xf0] sm:$0xff] %vm292, %v4841
  %4851 = vst.msk [vmem:[#allocation6 + $0xf8] sm:$0xff] %vm292, %v4843
  %4852 = vst.msk [vmem:[#allocation6] sm:$0xff] %vm3682, %v4837
  %4853 = vst.msk [vmem:[#allocation6 + $0x8] sm:$0xff] %vm3682, %v4839
  %4854 = vst.msk [vmem:[#allocation6 + $0x10] sm:$0xff] %vm3682, %v4841
  %4855 = vst.msk [vmem:[#allocation6 + $0x18] sm:$0xff] %vm3682, %v4843
  %v4856 = vld [vmem:[%s2] sm:$0x1]
  %v4857 = vld [vmem:[#allocation6] sm:$0xff]
  %v4858 = vld [vmem:[#allocation6 + $0x8] sm:$0xff]
  %v4859 = vld [vmem:[#allocation6 + $0x10] sm:$0xff]
  %v4860 = vld [vmem:[#allocation6 + $0x18] sm:$0xff]
  %v4861 = vld [vmem:[#allocation6 + $0x20] sm:$0xff]
  %v4862 = vld [vmem:[#allocation6 + $0x28] sm:$0xff]
  %v4863 = vld [vmem:[#allocation6 + $0x30] sm:$0xff]
  %v4864 = vld [vmem:[#allocation6 + $0x38] sm:$0xff]
  %v4865 = vld [vmem:[#allocation6 + $0x40] sm:$0xff]
  %v4866 = vld [vmem:[#allocation6 + $0x48] sm:$0xff]
  %v4867 = vld [vmem:[#allocation6 + $0x50] sm:$0xff]
  %v4868 = vld [vmem:[#allocation6 + $0x58] sm:$0xff]
  %v4869 = vld [vmem:[#allocation6 + $0x60] sm:$0xff]
  %v4870 = vld [vmem:[#allocation6 + $0x68] sm:$0xff]
  %v4871 = vld [vmem:[#allocation6 + $0x70] sm:$0xff]
  %v4872 = vld [vmem:[#allocation6 + $0x78] sm:$0xff]
  %v4873 = vld [vmem:[#allocation6 + $0x80] sm:$0xff]
  %v4874 = vld [vmem:[#allocation6 + $0x88] sm:$0xff]
  %v4875 = vld [vmem:[#allocation6 + $0x90] sm:$0xff]
  %v4876 = vld [vmem:[#allocation6 + $0x98] sm:$0xff]
  %v4877 = vld [vmem:[#allocation6 + $0xa0] sm:$0xff]
  %v4878 = vld [vmem:[#allocation6 + $0xa8] sm:$0xff]
  %v4879 = vld [vmem:[#allocation6 + $0xb0] sm:$0xff]
  %v4880 = vld [vmem:[#allocation6 + $0xb8] sm:$0xff]
  %v4881 = vld [vmem:[#allocation6 + $0xc0] sm:$0xff]
  %v4882 = vld [vmem:[#allocation6 + $0xc8] sm:$0xff]
  %v4883 = vld [vmem:[#allocation6 + $0xd0] sm:$0xff]
  %v4884 = vld [vmem:[#allocation6 + $0xd8] sm:$0xff]
  %v4885 = vld [vmem:[#allocation6 + $0xe0] sm:$0xff]
  %v4886 = vld [vmem:[#allocation6 + $0xe8] sm:$0xff]
  %v4887 = vld [vmem:[#allocation6 + $0xf0] sm:$0xff]
  %v4888 = vld [vmem:[#allocation6 + $0xf8] sm:$0xff]
  %v4889 = vlaneseq
  %v4890 = vshrl.u32 %v4889, 7
  %v4891 = vsub.s32 0, %v4890
  %v4892 = vrot.slane %v4856, %v4891
  %4894 = vrot.lane.b32.xlu0 %v4892, 96
  %v4895 = vpop.permute.xlu0 %4894
  %v4897 = vmul.f32 %v4857, %v4895
  %v4898 = vmul.f32 %v4858, %v4895
  %v4899 = vmul.f32 %v4859, %v4895
  %v4900 = vmul.f32 %v4860, %v4895
  %v4901 = vmul.f32 %v4861, %v4895
  %v4902 = vmul.f32 %v4862, %v4895
  %v4903 = vmul.f32 %v4863, %v4895
  %v4904 = vmul.f32 %v4864, %v4895
  %v4905 = vmul.f32 %v4865, %v4895
  %v4906 = vmul.f32 %v4866, %v4895
  %v4907 = vmul.f32 %v4867, %v4895
  %v4908 = vmul.f32 %v4868, %v4895
  %v4909 = vmul.f32 %v4869, %v4895
  %v4910 = vmul.f32 %v4870, %v4895
  %v4911 = vmul.f32 %v4871, %v4895
  %v4912 = vmul.f32 %v4872, %v4895
  %v4913 = vmul.f32 %v4873, %v4895
  %v4914 = vmul.f32 %v4874, %v4895
  %v4915 = vmul.f32 %v4875, %v4895
  %v4916 = vmul.f32 %v4876, %v4895
  %v4917 = vmul.f32 %v4877, %v4895
  %v4918 = vmul.f32 %v4878, %v4895
  %v4919 = vmul.f32 %v4879, %v4895
  %v4920 = vmul.f32 %v4880, %v4895
  %v4921 = vmul.f32 %v4881, %v4895
  %v4922 = vmul.f32 %v4882, %v4895
  %v4923 = vmul.f32 %v4883, %v4895
  %v4924 = vmul.f32 %v4884, %v4895
  %v4925 = vmul.f32 %v4885, %v4895
  %v4926 = vmul.f32 %v4886, %v4895
  %v4927 = vmul.f32 %v4887, %v4895
  %v4928 = vmul.f32 %v4888, %v4895
  %v4929 = vsel %vm1173, %v4897, 0.0
  %4930 = vadd.xlane.f32.xlu0 %v4929
  %v4931 = vpop.xlane.xlu0 %4930
  %v4932 = vsel %vm1173, %v4898, 0.0
  %4933 = vadd.xlane.f32.xlu0 %v4932
  %v4934 = vpop.xlane.xlu0 %4933
  %v4935 = vsel %vm1173, %v4899, 0.0
  %4936 = vadd.xlane.f32.xlu0 %v4935
  %v4937 = vpop.xlane.xlu0 %4936
  %v4938 = vsel %vm1173, %v4900, 0.0
  %4939 = vadd.xlane.f32.xlu0 %v4938
  %v4940 = vpop.xlane.xlu0 %4939
  %v4941 = vsel %vm1173, %v4901, 0.0
  %4942 = vadd.xlane.f32.xlu0 %v4941
  %v4943 = vpop.xlane.xlu0 %4942
  %v4944 = vsel %vm1173, %v4902, 0.0
  %4945 = vadd.xlane.f32.xlu0 %v4944
  %v4946 = vpop.xlane.xlu0 %4945
  %v4947 = vsel %vm1173, %v4903, 0.0
  %4948 = vadd.xlane.f32.xlu0 %v4947
  %v4949 = vpop.xlane.xlu0 %4948
  %v4950 = vsel %vm1173, %v4904, 0.0
  %4951 = vadd.xlane.f32.xlu0 %v4950
  %v4952 = vpop.xlane.xlu0 %4951
  %v4953 = vsel %vm1173, %v4905, 0.0
  %4954 = vadd.xlane.f32.xlu0 %v4953
  %v4955 = vpop.xlane.xlu0 %4954
  %v4956 = vsel %vm1173, %v4906, 0.0
  %4957 = vadd.xlane.f32.xlu0 %v4956
  %v4958 = vpop.xlane.xlu0 %4957
  %v4959 = vsel %vm1173, %v4907, 0.0
  %4960 = vadd.xlane.f32.xlu0 %v4959
  %v4961 = vpop.xlane.xlu0 %4960
  %v4962 = vsel %vm1173, %v4908, 0.0
  %4963 = vadd.xlane.f32.xlu0 %v4962
  %v4964 = vpop.xlane.xlu0 %4963
  %v4965 = vsel %vm1173, %v4909, 0.0
  %4966 = vadd.xlane.f32.xlu0 %v4965
  %v4967 = vpop.xlane.xlu0 %4966
  %v4968 = vsel %vm1173, %v4910, 0.0
  %4969 = vadd.xlane.f32.xlu0 %v4968
  %v4970 = vpop.xlane.xlu0 %4969
  %v4971 = vsel %vm1173, %v4911, 0.0
  %4972 = vadd.xlane.f32.xlu0 %v4971
  %v4973 = vpop.xlane.xlu0 %4972
  %v4974 = vsel %vm1173, %v4912, 0.0
  %4975 = vadd.xlane.f32.xlu0 %v4974
  %v4976 = vpop.xlane.xlu0 %4975
  %v4977 = vsel %vm1173, %v4913, 0.0
  %4978 = vadd.xlane.f32.xlu0 %v4977
  %v4979 = vpop.xlane.xlu0 %4978
  %v4980 = vsel %vm1173, %v4914, 0.0
  %4981 = vadd.xlane.f32.xlu0 %v4980
  %v4982 = vpop.xlane.xlu0 %4981
  %v4983 = vsel %vm1173, %v4915, 0.0
  %4984 = vadd.xlane.f32.xlu0 %v4983
  %v4985 = vpop.xlane.xlu0 %4984
  %v4986 = vsel %vm1173, %v4916, 0.0
  %4987 = vadd.xlane.f32.xlu0 %v4986
  %v4988 = vpop.xlane.xlu0 %4987
  %v4989 = vsel %vm1173, %v4917, 0.0
  %4990 = vadd.xlane.f32.xlu0 %v4989
  %v4991 = vpop.xlane.xlu0 %4990
  %v4992 = vsel %vm1173, %v4918, 0.0
  %4993 = vadd.xlane.f32.xlu0 %v4992
  %v4994 = vpop.xlane.xlu0 %4993
  %v4995 = vsel %vm1173, %v4919, 0.0
  %4996 = vadd.xlane.f32.xlu0 %v4995
  %v4997 = vpop.xlane.xlu0 %4996
  %v4998 = vsel %vm1173, %v4920, 0.0
  %4999 = vadd.xlane.f32.xlu0 %v4998
  %v5000 = vpop.xlane.xlu0 %4999
  %v5001 = vsel %vm1173, %v4921, 0.0
  %5002 = vadd.xlane.f32.xlu0 %v5001
  %v5003 = vpop.xlane.xlu0 %5002
  %v5004 = vsel %vm1173, %v4922, 0.0
  %5005 = vadd.xlane.f32.xlu0 %v5004
  %v5006 = vpop.xlane.xlu0 %5005
  %v5007 = vsel %vm1173, %v4923, 0.0
  %5008 = vadd.xlane.f32.xlu0 %v5007
  %v5009 = vpop.xlane.xlu0 %5008
  %v5010 = vsel %vm1173, %v4924, 0.0
  %5011 = vadd.xlane.f32.xlu0 %v5010
  %v5012 = vpop.xlane.xlu0 %5011
  %v5013 = vsel %vm1173, %v4925, 0.0
  %5014 = vadd.xlane.f32.xlu0 %v5013
  %v5015 = vpop.xlane.xlu0 %5014
  %v5016 = vsel %vm1173, %v4926, 0.0
  %5017 = vadd.xlane.f32.xlu0 %v5016
  %v5018 = vpop.xlane.xlu0 %5017
  %v5019 = vsel %vm1173, %v4927, 0.0
  %5020 = vadd.xlane.f32.xlu0 %v5019
  %v5021 = vpop.xlane.xlu0 %5020
  %v5022 = vsel %vm1173, %v4928, 0.0
  %5023 = vadd.xlane.f32.xlu0 %v5022
  %v5024 = vpop.xlane.xlu0 %5023
  %v5025 = vadd.f32 %v4931, %v4892
  %v5026 = vadd.f32 %v4934, %v4892
  %v5027 = vadd.f32 %v4937, %v4892
  %v5028 = vadd.f32 %v4940, %v4892
  %v5029 = vadd.f32 %v4943, %v4892
  %v5030 = vadd.f32 %v4946, %v4892
  %v5031 = vadd.f32 %v4949, %v4892
  %v5032 = vadd.f32 %v4952, %v4892
  %v5033 = vadd.f32 %v4955, %v4892
  %v5034 = vadd.f32 %v4958, %v4892
  %v5035 = vadd.f32 %v4961, %v4892
  %v5036 = vadd.f32 %v4964, %v4892
  %v5037 = vadd.f32 %v4967, %v4892
  %v5038 = vadd.f32 %v4970, %v4892
  %v5039 = vadd.f32 %v4973, %v4892
  %v5040 = vadd.f32 %v4976, %v4892
  %v5041 = vadd.f32 %v4979, %v4892
  %v5042 = vadd.f32 %v4982, %v4892
  %v5043 = vadd.f32 %v4985, %v4892
  %v5044 = vadd.f32 %v4988, %v4892
  %v5045 = vadd.f32 %v4991, %v4892
  %v5046 = vadd.f32 %v4994, %v4892
  %v5047 = vadd.f32 %v4997, %v4892
  %v5048 = vadd.f32 %v5000, %v4892
  %v5049 = vadd.f32 %v5003, %v4892
  %v5050 = vadd.f32 %v5006, %v4892
  %v5051 = vadd.f32 %v5009, %v4892
  %v5052 = vadd.f32 %v5012, %v4892
  %v5053 = vadd.f32 %v5015, %v4892
  %v5054 = vadd.f32 %v5018, %v4892
  %v5055 = vadd.f32 %v5021, %v4892
  %v5056 = vadd.f32 %v5024, %v4892
  %v5057 = vmax.f32 %v5025, -10.0
  %v5058 = vmax.f32 %v5026, -10.0
  %v5059 = vmax.f32 %v5027, -10.0
  %v5060 = vmax.f32 %v5028, -10.0
  %v5061 = vmax.f32 %v5029, -10.0
  %v5062 = vmax.f32 %v5030, -10.0
  %v5063 = vmax.f32 %v5031, -10.0
  %v5064 = vmax.f32 %v5032, -10.0
  %v5065 = vmax.f32 %v5033, -10.0
  %v5066 = vmax.f32 %v5034, -10.0
  %v5067 = vmax.f32 %v5035, -10.0
  %v5068 = vmax.f32 %v5036, -10.0
  %v5069 = vmax.f32 %v5037, -10.0
  %v5070 = vmax.f32 %v5038, -10.0
  %v5071 = vmax.f32 %v5039, -10.0
  %v5072 = vmax.f32 %v5040, -10.0
  %v5073 = vmax.f32 %v5041, -10.0
  %v5074 = vmax.f32 %v5042, -10.0
  %v5075 = vmax.f32 %v5043, -10.0
  %v5076 = vmax.f32 %v5044, -10.0
  %v5077 = vmax.f32 %v5045, -10.0
  %v5078 = vmax.f32 %v5046, -10.0
  %v5079 = vmax.f32 %v5047, -10.0
  %v5080 = vmax.f32 %v5048, -10.0
  %v5081 = vmax.f32 %v5049, -10.0
  %v5082 = vmax.f32 %v5050, -10.0
  %v5083 = vmax.f32 %v5051, -10.0
  %v5084 = vmax.f32 %v5052, -10.0
  %v5085 = vmax.f32 %v5053, -10.0
  %v5086 = vmax.f32 %v5054, -10.0
  %v5087 = vmax.f32 %v5055, -10.0
  %v5088 = vmax.f32 %v5056, -10.0
  %v5089 = vmin.f32 %v5057, 10.0
  %v5090 = vmin.f32 %v5058, 10.0
  %v5091 = vmin.f32 %v5059, 10.0
  %v5092 = vmin.f32 %v5060, 10.0
  %v5093 = vmin.f32 %v5061, 10.0
  %v5094 = vmin.f32 %v5062, 10.0
  %v5095 = vmin.f32 %v5063, 10.0
  %v5096 = vmin.f32 %v5064, 10.0
  %v5097 = vmin.f32 %v5065, 10.0
  %v5098 = vmin.f32 %v5066, 10.0
  %v5099 = vmin.f32 %v5067, 10.0
  %v5100 = vmin.f32 %v5068, 10.0
  %v5101 = vmin.f32 %v5069, 10.0
  %v5102 = vmin.f32 %v5070, 10.0
  %v5103 = vmin.f32 %v5071, 10.0
  %v5104 = vmin.f32 %v5072, 10.0
  %v5105 = vmin.f32 %v5073, 10.0
  %v5106 = vmin.f32 %v5074, 10.0
  %v5107 = vmin.f32 %v5075, 10.0
  %v5108 = vmin.f32 %v5076, 10.0
  %v5109 = vmin.f32 %v5077, 10.0
  %v5110 = vmin.f32 %v5078, 10.0
  %v5111 = vmin.f32 %v5079, 10.0
  %v5112 = vmin.f32 %v5080, 10.0
  %v5113 = vmin.f32 %v5081, 10.0
  %v5114 = vmin.f32 %v5082, 10.0
  %v5115 = vmin.f32 %v5083, 10.0
  %v5116 = vmin.f32 %v5084, 10.0
  %v5117 = vmin.f32 %v5085, 10.0
  %v5118 = vmin.f32 %v5086, 10.0
  %v5119 = vmin.f32 %v5087, 10.0
  %v5120 = vmin.f32 %v5088, 10.0
  %5153 = vrot.lane.b32.xlu0 %v5089, 32
  %v5154 = vpop.permute.xlu0 %5153
  %5155 = vrot.lane.b32.xlu0 %v5090, 32
  %v5156 = vpop.permute.xlu0 %5155
  %5157 = vrot.lane.b32.xlu0 %v5091, 32
  %v5158 = vpop.permute.xlu0 %5157
  %5159 = vrot.lane.b32.xlu0 %v5092, 32
  %v5160 = vpop.permute.xlu0 %5159
  %5161 = vrot.lane.b32.xlu0 %v5093, 32
  %v5162 = vpop.permute.xlu0 %5161
  %5163 = vrot.lane.b32.xlu0 %v5094, 32
  %v5164 = vpop.permute.xlu0 %5163
  %5165 = vrot.lane.b32.xlu0 %v5095, 32
  %v5166 = vpop.permute.xlu0 %5165
  %5167 = vrot.lane.b32.xlu0 %v5096, 32
  %v5168 = vpop.permute.xlu0 %5167
  %5169 = vrot.lane.b32.xlu0 %v5097, 32
  %v5170 = vpop.permute.xlu0 %5169
  %5171 = vrot.lane.b32.xlu0 %v5098, 32
  %v5172 = vpop.permute.xlu0 %5171
  %5173 = vrot.lane.b32.xlu0 %v5099, 32
  %v5174 = vpop.permute.xlu0 %5173
  %5175 = vrot.lane.b32.xlu0 %v5100, 32
  %v5176 = vpop.permute.xlu0 %5175
  %5177 = vrot.lane.b32.xlu0 %v5101, 32
  %v5178 = vpop.permute.xlu0 %5177
  %5179 = vrot.lane.b32.xlu0 %v5102, 32
  %v5180 = vpop.permute.xlu0 %5179
  %5181 = vrot.lane.b32.xlu0 %v5103, 32
  %v5182 = vpop.permute.xlu0 %5181
  %5183 = vrot.lane.b32.xlu0 %v5104, 32
  %v5184 = vpop.permute.xlu0 %5183
  %5185 = vrot.lane.b32.xlu0 %v5105, 32
  %v5186 = vpop.permute.xlu0 %5185
  %5187 = vrot.lane.b32.xlu0 %v5106, 32
  %v5188 = vpop.permute.xlu0 %5187
  %5189 = vrot.lane.b32.xlu0 %v5107, 32
  %v5190 = vpop.permute.xlu0 %5189
  %5191 = vrot.lane.b32.xlu0 %v5108, 32
  %v5192 = vpop.permute.xlu0 %5191
  %5193 = vrot.lane.b32.xlu0 %v5109, 32
  %v5194 = vpop.permute.xlu0 %5193
  %5195 = vrot.lane.b32.xlu0 %v5110, 32
  %v5196 = vpop.permute.xlu0 %5195
  %5197 = vrot.lane.b32.xlu0 %v5111, 32
  %v5198 = vpop.permute.xlu0 %5197
  %5199 = vrot.lane.b32.xlu0 %v5112, 32
  %v5200 = vpop.permute.xlu0 %5199
  %5201 = vrot.lane.b32.xlu0 %v5113, 32
  %v5202 = vpop.permute.xlu0 %5201
  %5203 = vrot.lane.b32.xlu0 %v5114, 32
  %v5204 = vpop.permute.xlu0 %5203
  %5205 = vrot.lane.b32.xlu0 %v5115, 32
  %v5206 = vpop.permute.xlu0 %5205
  %5207 = vrot.lane.b32.xlu0 %v5116, 32
  %v5208 = vpop.permute.xlu0 %5207
  %5209 = vrot.lane.b32.xlu0 %v5117, 32
  %v5210 = vpop.permute.xlu0 %5209
  %5211 = vrot.lane.b32.xlu0 %v5118, 32
  %v5212 = vpop.permute.xlu0 %5211
  %5213 = vrot.lane.b32.xlu0 %v5119, 32
  %v5214 = vpop.permute.xlu0 %5213
  %5215 = vrot.lane.b32.xlu0 %v5120, 32
  %v5216 = vpop.permute.xlu0 %5215
  %vm5249 = vcmask 7168
  %5250 = vst.msk [vmem:[%s4] sm:$0xff] %vm5249, %v5154
  %5251 = vst.msk [vmem:[%s4 + $0x8] sm:$0xff] %vm5249, %v5156
  %5252 = vst.msk [vmem:[%s4 + $0x10] sm:$0xff] %vm5249, %v5158
  %5253 = vst.msk [vmem:[%s4 + $0x18] sm:$0xff] %vm5249, %v5160
  %5254 = vst.msk [vmem:[%s4 + $0x20] sm:$0xff] %vm5249, %v5162
  %5255 = vst.msk [vmem:[%s4 + $0x28] sm:$0xff] %vm5249, %v5164
  %5256 = vst.msk [vmem:[%s4 + $0x30] sm:$0xff] %vm5249, %v5166
  %5257 = vst.msk [vmem:[%s4 + $0x38] sm:$0xff] %vm5249, %v5168
  %5258 = vst.msk [vmem:[%s4 + $0x40] sm:$0xff] %vm5249, %v5170
  %5259 = vst.msk [vmem:[%s4 + $0x48] sm:$0xff] %vm5249, %v5172
  %5260 = vst.msk [vmem:[%s4 + $0x50] sm:$0xff] %vm5249, %v5174
  %5261 = vst.msk [vmem:[%s4 + $0x58] sm:$0xff] %vm5249, %v5176
  %5262 = vst.msk [vmem:[%s4 + $0x60] sm:$0xff] %vm5249, %v5178
  %5263 = vst.msk [vmem:[%s4 + $0x68] sm:$0xff] %vm5249, %v5180
  %5264 = vst.msk [vmem:[%s4 + $0x70] sm:$0xff] %vm5249, %v5182
  %5265 = vst.msk [vmem:[%s4 + $0x78] sm:$0xff] %vm5249, %v5184
  %5266 = vst.msk [vmem:[%s4 + $0x80] sm:$0xff] %vm5249, %v5186
  %5267 = vst.msk [vmem:[%s4 + $0x88] sm:$0xff] %vm5249, %v5188
  %5268 = vst.msk [vmem:[%s4 + $0x90] sm:$0xff] %vm5249, %v5190
  %5269 = vst.msk [vmem:[%s4 + $0x98] sm:$0xff] %vm5249, %v5192
  %5270 = vst.msk [vmem:[%s4 + $0xa0] sm:$0xff] %vm5249, %v5194
  %5271 = vst.msk [vmem:[%s4 + $0xa8] sm:$0xff] %vm5249, %v5196
  %5272 = vst.msk [vmem:[%s4 + $0xb0] sm:$0xff] %vm5249, %v5198
  %5273 = vst.msk [vmem:[%s4 + $0xb8] sm:$0xff] %vm5249, %v5200
  %5274 = vst.msk [vmem:[%s4 + $0xc0] sm:$0xff] %vm5249, %v5202
  %5275 = vst.msk [vmem:[%s4 + $0xc8] sm:$0xff] %vm5249, %v5204
  %5276 = vst.msk [vmem:[%s4 + $0xd0] sm:$0xff] %vm5249, %v5206
  %5277 = vst.msk [vmem:[%s4 + $0xd8] sm:$0xff] %vm5249, %v5208
  %5278 = vst.msk [vmem:[%s4 + $0xe0] sm:$0xff] %vm5249, %v5210
  %5279 = vst.msk [vmem:[%s4 + $0xe8] sm:$0xff] %vm5249, %v5212
  %5280 = vst.msk [vmem:[%s4 + $0xf0] sm:$0xff] %vm5249, %v5214
  %5281 = vst.msk [vmem:[%s4 + $0xf8] sm:$0xff] %vm5249, %v5216
  // Predicated region
  $region18: #{rnn_disc_forward.1} parent=0 // pred_check
    _
  $region19: #{rnn_disc_forward.1} parent=0 // pred_check_branch
    %5283 = sbr.rel (0) target = $region21
  $region20: #{rnn_disc_forward.1} parent=0 // pred_region
    _
  $region21: #{rnn_disc_forward.1} parent=0 // pred_fallthru
    _
  // Predicated region
  $region22: #{rnn_disc_forward.1} parent=0 // pred_check
    _
  $region23: #{rnn_disc_forward.1} parent=0 // pred_check_branch
    %5285 = sbr.rel (0) target = $region25
  $region24: #{rnn_disc_forward.1} parent=0 // pred_region
    _
  $region25: #{rnn_disc_forward.1} parent=0 // pred_fallthru
    _

</llo_original>
